<compile_context>
chip_gen: v5e
topology: v5e:2x2
jax: 0.10.0
libtpu: 0.0.40
codegen_flags: <defaults>
</compile_context>

<pallas_src>
import functools
import math

import numpy as np

import jax
import jax.numpy as jnp
from jax import lax
from jax.experimental import pallas as pl
from jax.experimental.pallas import tpu as pltpu

EPS = 1e-5                       # nn.BatchNorm2d default eps
_VMEM_LIMIT = 32 * 1024 * 1024   # explicit scoped-VMEM budget (safe on v5e/v6e/v7x)


def _round_up(x, m):
    return (x + m - 1) // m * m


# --------------------------------------------------------------------------
# Kernels
# --------------------------------------------------------------------------
def _gemm_stats_kernel(p_ref, w_ref, y_ref, sum_ref, ssq_ref, acc_s, acc_q):
    """Y = P @ W on the MXU (bf16 operands, f32 accumulation), fused with
    per-lane sum / sum-of-squares accumulation across the M grid axis
    (pass 1 of the two-pass training-mode BatchNorm)."""
    i = pl.program_id(1)                      # M-tile index (innermost, "arbitrary")

    y = jnp.dot(p_ref[...], w_ref[...], preferred_element_type=jnp.float32)
    y_ref[...] = y

    @pl.when(i == 0)
    def _init():
        acc_s[...] = jnp.zeros_like(acc_s)
        acc_q[...] = jnp.zeros_like(acc_q)

    acc_s[...] += jnp.sum(y, axis=0, keepdims=True)
    acc_q[...] += jnp.sum(y * y, axis=0, keepdims=True)

    @pl.when(i == pl.num_programs(1) - 1)
    def _flush():
        sum_ref[...] = acc_s[...]
        ssq_ref[...] = acc_q[...]


def _norm_act_kernel(y_ref, scale_ref, shift_ref, o_ref, *, act):
    """Pass 2: per-channel affine (BatchNorm) + optional ReLU, bf16 output."""
    y = y_ref[...] * scale_ref[...] + shift_ref[...]
    if act:
        y = jnp.maximum(y, 0.0)
    o_ref[...] = y.astype(o_ref.dtype)


# --------------------------------------------------------------------------
# One fused deconv layer: GEMM(+stats) -> stat finalize -> normalize+ReLU
# --------------------------------------------------------------------------
def _fused_deconv_layer(p, w_eff, *, cout, groups, bn, act):
    """p: [M, K] patches; w_eff: [K, Lp] packed bf16 weight.
    Returns [M, Lp] activation (bf16 if bn/act, else f32 GEMM output)."""
    m, k = p.shape
    lp = w_eff.shape[1]

    tm = min(256, _round_up(m, 8))            # M tile (multiple of 8 or full dim)
    mp = _round_up(m, tm)
    tc = math.gcd(lp, 512)                    # lane tile (multiple of 128, divides Lp)
    n_l, n_m = lp // tc, mp // tm

    if mp != m:                               # zero rows: safe for sums (divide by true M)
        p = jnp.pad(p, ((0, mp - m), (0, 0)))
    p = p.astype(jnp.bfloat16)

    cost = pl.CostEstimate(
        flops=2 * mp * k * lp,
        transcendentals=0,
        bytes_accessed=mp * k * 2 + k * lp * 2 + mp * lp * 4 + 2 * lp * 4)

    y, s_lane, q_lane = pl.pallas_call(
        _gemm_stats_kernel,
        grid=(n_l, n_m),
        in_specs=[pl.BlockSpec((tm, k), lambda j, i: (i, 0)),
                  pl.BlockSpec((k, tc), lambda j, i: (0, j))],
        out_specs=[pl.BlockSpec((tm, tc), lambda j, i: (i, j)),
                   pl.BlockSpec((1, tc), lambda j, i: (0, j)),
                   pl.BlockSpec((1, tc), lambda j, i: (0, j))],
        out_shape=[jax.ShapeDtypeStruct((mp, lp), jnp.float32),
                   jax.ShapeDtypeStruct((1, lp), jnp.float32),
                   jax.ShapeDtypeStruct((1, lp), jnp.float32)],
        scratch_shapes=[pltpu.VMEM((1, tc), jnp.float32),
                        pltpu.VMEM((1, tc), jnp.float32)],
        compiler_params=pltpu.CompilerParams(
            dimension_semantics=("parallel", "arbitrary"),
            vmem_limit_bytes=_VMEM_LIMIT),
        cost_estimate=cost,
    )(p, w_eff)

    if not (bn or act):
        return y[:m]

    gl = groups * cout
    if bn:
        # finalize batch stats (biased variance, gamma=1 / beta=0, training mode)
        s_c = s_lane[0, :gl].reshape(groups, cout).sum(axis=0)
        q_c = q_lane[0, :gl].reshape(groups, cout).sum(axis=0)
        cnt = jnp.float32(m * groups)          # = N * OH * OW
        mean = s_c / cnt
        var = q_c / cnt - mean * mean
        rstd = lax.rsqrt(var + EPS)
        scale_c, shift_c = rstd, -mean * rstd
    else:
        scale_c = jnp.ones((cout,), jnp.float32)
        shift_c = jnp.zeros((cout,), jnp.float32)

    scale = jnp.pad(jnp.tile(scale_c, groups), (0, lp - gl)).reshape(1, lp)
    shift = jnp.pad(jnp.tile(shift_c, groups), (0, lp - gl)).reshape(1, lp)

    a = pl.pallas_call(
        functools.partial(_norm_act_kernel, act=act),
        grid=(n_l, n_m),
        in_specs=[pl.BlockSpec((tm, tc), lambda j, i: (i, j)),
                  pl.BlockSpec((1, tc), lambda j, i: (0, j)),
                  pl.BlockSpec((1, tc), lambda j, i: (0, j))],
        out_specs=pl.BlockSpec((tm, tc), lambda j, i: (i, j)),
        out_shape=jax.ShapeDtypeStruct((mp, lp), jnp.bfloat16),
        compiler_params=pltpu.CompilerParams(
            dimension_semantics=("parallel", "parallel"),
            vmem_limit_bytes=_VMEM_LIMIT),
        cost_estimate=pl.CostEstimate(flops=2 * mp * lp, transcendentals=0,
                                      bytes_accessed=mp * lp * 4 + mp * lp * 2),
    )(y, scale, shift)
    return a[:m]


# --------------------------------------------------------------------------
# Patch extraction (NHWC, 3x3 / stride 1 / pad 1) for the phase-packed deconv
# --------------------------------------------------------------------------
def _im2col_3x3(x):
    # x: [N, H, W, C] -> [N*H*W, 9*C], taps ordered (dh, dw, c)
    n, h, w, c = x.shape
    xp = jnp.pad(x, ((0, 0), (1, 1), (1, 1), (0, 0)))
    cols = [xp[:, dh:dh + h, dw:dw + w, :] for dh in range(3) for dw in range(3)]
    p = jnp.stack(cols, axis=3)                 # [N, H, W, 9, C]
    return p.reshape(n * h * w, 9 * c)


# --------------------------------------------------------------------------
# Weight packing (hoisted out of the forward path; done once)
# --------------------------------------------------------------------------
def prepare_params(torch_weights):
    """Pack torch ConvTranspose2d weights [Cin, Cout, 4, 4] into MXU-ready
    bf16 [K, Lp] matrices.  Returns (weights, meta) with meta static."""
    ws = [np.asarray(w, np.float32) for w in torch_weights]

    def pack_1x1(wt):                           # k4, s1, p0 on a 1x1 input -> plain GEMM
        cin, cout, kh, kw = wt.shape
        w = wt.transpose(0, 2, 3, 1).reshape(cin, kh * kw * cout)   # [(ci),(kh,kw,co)]
        lp = _round_up(w.shape[1], 128)
        w = np.pad(w, ((0, 0), (0, lp - w.shape[1])))
        return jnp.asarray(w, jnp.bfloat16), (cout, kh * kw)

    def pack_s2(wt):                            # k4, s2, p1 -> phase-packed 3x3 GEMM
        cin, cout = wt.shape[:2]
        w = np.zeros((3, 3, cin, 2, 2, cout), np.float32)
        for dh in range(3):
            for dw in range(3):
                for rh in range(2):
                    for rw in range(2):
                        kh, kw = rh + 3 - 2 * dh, rw + 3 - 2 * dw
                        if 0 <= kh <= 3 and 0 <= kw <= 3:
                            w[dh, dw, :, rh, rw, :] = wt[:, :, kh, kw]
        w = w.reshape(9 * cin, 4 * cout)
        lp = _round_up(w.shape[1], 128)
        w = np.pad(w, ((0, 0), (0, lp - w.shape[1])))
        return jnp.asarray(w, jnp.bfloat16), (cout, 4)

    packed = [pack_1x1(ws[0]), pack_s2(ws[1]), pack_s2(ws[2]), pack_s2(ws[3])]
    weights = tuple(p[0] for p in packed)
    meta = tuple(p[1] for p in packed)
    return weights, meta


# --------------------------------------------------------------------------
# Forward pass (matches DCGAN_Generator.forward with bn=True, act=relu)
# --------------------------------------------------------------------------
def dcgan_generator(z, weights, meta):
    w1, w2, w3, w4 = weights
    (c1, g1), (c2, _), (c3, _), (c4, _) = meta
    n = z.shape[0]

    # dconv1 + bnorm1 + relu   (1x1 input => pure GEMM)
    a = _fused_deconv_layer(z, w1, cout=c1, groups=g1, bn=True, act=True)
    x = a[:, :g1 * c1].reshape(n, 4, 4, c1)                    # NHWC bf16

    # dconv2..4 (stride-2 deconv as phase-packed 3x3 GEMM)
    for w_eff, cout, bn_act in ((w2, c2, True), (w3, c3, True), (w4, c4, False)):
        n_, h, wd, _ = x.shape
        patches = _im2col_3x3(x)
        a = _fused_deconv_layer(patches, w_eff, cout=cout, groups=4,
                                bn=bn_act, act=bn_act)
        a = a[:, :4 * cout].reshape(n_, h, wd, 2, 2, cout)     # (n,q,qw,rh,rw,co)
        x = a.transpose(0, 1, 3, 2, 4, 5).reshape(n_, 2 * h, 2 * wd, cout)

    return x.astype(jnp.float32).transpose(0, 3, 1, 2)         # NCHW f32


# --------------------------------------------------------------------------
# Pure-JAX reference (ground truth)
# --------------------------------------------------------------------------
def _ref_forward(z, torch_weights):
    def deconv(x, wt, s, p):
        k = wt.shape[2]
        wf = jnp.flip(wt, (2, 3)).transpose(1, 0, 2, 3)        # [Cout, Cin, kh, kw]
        return lax.conv_general_dilated(
            x, wf, window_strides=(1, 1),
            padding=[(k - 1 - p, k - 1 - p)] * 2,
            lhs_dilation=(s, s),
            dimension_numbers=("NCHW", "OIHW", "NCHW"),
            precision=lax.Precision.HIGHEST)

    def bn_relu(y):
        mean = y.mean(axis=(0, 2, 3), keepdims=True)
        var = jnp.square(y - mean).mean(axis=(0, 2, 3), keepdims=True)
        return jnp.maximum((y - mean) * lax.rsqrt(var + EPS), 0.0)

    w1, w2, w3, w4 = torch_weights
    x = z.reshape(z.shape[0], z.shape[1], 1, 1)
    y = bn_relu(deconv(x, w1, 1, 0))
    y = bn_relu(deconv(y, w2, 2, 1))
    y = bn_relu(deconv(y, w3, 2, 1))
    return deconv(y, w4, 2, 1)


if __name__ == "__main__":
    key = jax.random.PRNGKey(0)
    kz, k1, k2, k3, k4 = jax.random.split(key, 5)

    NZ, BS = 32, 2
    z = jax.random.normal(kz, (BS, NZ), jnp.float32)
    # torch ConvTranspose2d weight layout: [in_channels, out_channels, kH, kW]
    w1 = 0.02 * jax.random.normal(k1, (NZ, 256, 4, 4), jnp.float32)
    w2 = 0.02 * jax.random.normal(k2, (256, 128, 4, 4), jnp.float32)
    w3 = 0.02 * jax.random.normal(k3, (128, 64, 4, 4), jnp.float32)
    w4 = 0.02 * jax.random.normal(k4, (64, 3, 4, 4), jnp.float32)
    torch_weights = (w1, w2, w3, w4)

    weights, meta = prepare_params(torch_weights)              # hoisted, done once
    fwd = jax.jit(dcgan_generator, static_argnums=(2,))

    out = jax.block_until_ready(fwd(z, weights, meta))
    assert out.shape == (BS, 3, 32, 32), out.shape

    ref = jax.block_until_ready(_ref_forward(z, torch_weights))
    rel = jnp.linalg.norm(out - ref) / (jnp.linalg.norm(ref) + 1e-12)
    mad = jnp.max(jnp.abs(out - ref))
    # bf16 MXU operands with f32 accumulation: allow a few % relative error
    assert rel < 3e-2 and mad < 1.5e-1, (float(rel), float(mad))

    print("KERNEL_OK")
</pallas_src>

<mosaic_0001>
module attributes {stable_mosaic.version = 11 : i64} {
  func.func @_gemm_stats_kernel(%arg0: i32, %arg1: i32, %arg2: memref<8x32xbf16, #tpu.memory_space<vmem>>, %arg3: memref<32x512xbf16, #tpu.memory_space<vmem>>, %arg4: memref<8x512xf32, #tpu.memory_space<vmem>>, %arg5: memref<1x512xf32, #tpu.memory_space<vmem>>, %arg6: memref<1x512xf32, #tpu.memory_space<vmem>>, %arg7: memref<1x512xf32, #tpu.memory_space<vmem>>, %arg8: memref<1x512xf32, #tpu.memory_space<vmem>>) attributes {dimension_semantics = [#tpu.dimension_semantics<parallel>, #tpu.dimension_semantics<arbitrary>], iteration_bounds = array<i64: 8, 1>, scalar_prefetch = 0 : i64, scratch_operands = 2 : i64, tpu.core_type = #tpu.core_type<tc>, window_params = [{transform_indices = @transform_0, window_bounds = array<i64: 8, 32>}, {transform_indices = @transform_1, window_bounds = array<i64: 32, 512>}, {transform_indices = @transform_2, window_bounds = array<i64: 8, 512>}, {transform_indices = @transform_3, window_bounds = array<i64: 1, 512>}, {transform_indices = @transform_4, window_bounds = array<i64: 1, 512>}]} {
    %c0 = arith.constant 0 : index
    %c0_0 = arith.constant 0 : index
    %0 = vector.load %arg2[%c0, %c0_0] : memref<8x32xbf16, #tpu.memory_space<vmem>>, vector<8x32xbf16>
    %c0_1 = arith.constant 0 : index
    %c0_2 = arith.constant 0 : index
    %1 = vector.load %arg3[%c0_1, %c0_2] : memref<32x512xbf16, #tpu.memory_space<vmem>>, vector<32x512xbf16>
    %cst = arith.constant dense<0.000000e+00> : vector<8x512xf32>
    %2 = tpu.matmul %0, %1, %cst {dimension_numbers = #tpu.dot_dimension_numbers<[1], [0], [0], [1], [0, 0, 1, 1], [], []>} : vector<8x32xbf16>, vector<32x512xbf16>, vector<8x512xf32> -> vector<8x512xf32>
    %c0_3 = arith.constant 0 : index
    %c0_4 = arith.constant 0 : index
    %3 = vector.load %arg4[%c0_3, %c0_4] : memref<8x512xf32, #tpu.memory_space<vmem>>, vector<8x512xf32>
    tpu.vector_store %arg4[%c0_3, %c0_4], %2 {strides = array<i32>} : memref<8x512xf32, #tpu.memory_space<vmem>>, vector<8x512xf32>,
    %c0_i32 = arith.constant 0 : i32
    %4 = arith.cmpi eq, %arg1, %c0_i32 : i32
    %5 = arith.extui %4 : i1 to i32
    %c0_i32_5 = arith.constant 0 : i32
    %6 = arith.cmpi ne, %5, %c0_i32_5 : i32
    scf.if %6 {
      %cst_18 = arith.constant 0.000000e+00 : f32
      %21 = vector.broadcast %cst_18 : f32 to vector<1x512xf32>
      %c0_19 = arith.constant 0 : index
      %c0_20 = arith.constant 0 : index
      %22 = vector.load %arg7[%c0_19, %c0_20] : memref<1x512xf32, #tpu.memory_space<vmem>>, vector<1x512xf32>
      tpu.vector_store %arg7[%c0_19, %c0_20], %21 {strides = array<i32>} : memref<1x512xf32, #tpu.memory_space<vmem>>, vector<1x512xf32>,
      %cst_21 = arith.constant 0.000000e+00 : f32
      %23 = vector.broadcast %cst_21 : f32 to vector<1x512xf32>
      %c0_22 = arith.constant 0 : index
      %c0_23 = arith.constant 0 : index
      %24 = vector.load %arg8[%c0_22, %c0_23] : memref<1x512xf32, #tpu.memory_space<vmem>>, vector<1x512xf32>
      tpu.vector_store %arg8[%c0_22, %c0_23], %23 {strides = array<i32>} : memref<1x512xf32, #tpu.memory_space<vmem>>, vector<1x512xf32>,
    } else {
    }
    %c0_6 = arith.constant 0 : index
    %c0_7 = arith.constant 0 : index
    %7 = vector.load %arg7[%c0_6, %c0_7] : memref<1x512xf32, #tpu.memory_space<vmem>>, vector<1x512xf32>
    %cst_8 = arith.constant dense<0.000000e+00> : vector<512xf32>
    %8 = vector.multi_reduction <add>, %2, %cst_8 [0] : vector<8x512xf32> to vector<512xf32>
    %9 = vector.shape_cast %8 : vector<512xf32> to vector<1x512xf32>
    %10 = arith.addf %7, %9 : vector<1x512xf32>
    %c0_9 = arith.constant 0 : index
    %c0_10 = arith.constant 0 : index
    %11 = vector.load %arg7[%c0_9, %c0_10] : memref<1x512xf32, #tpu.memory_space<vmem>>, vector<1x512xf32>
    tpu.vector_store %arg7[%c0_9, %c0_10], %10 {strides = array<i32>} : memref<1x512xf32, #tpu.memory_space<vmem>>, vector<1x512xf32>,
    %c0_11 = arith.constant 0 : index
    %c0_12 = arith.constant 0 : index
    %12 = vector.load %arg8[%c0_11, %c0_12] : memref<1x512xf32, #tpu.memory_space<vmem>>, vector<1x512xf32>
    %13 = arith.mulf %2, %2 : vector<8x512xf32>
    %cst_13 = arith.constant dense<0.000000e+00> : vector<512xf32>
    %14 = vector.multi_reduction <add>, %13, %cst_13 [0] : vector<8x512xf32> to vector<512xf32>
    %15 = vector.shape_cast %14 : vector<512xf32> to vector<1x512xf32>
    %16 = arith.addf %12, %15 : vector<1x512xf32>
    %c0_14 = arith.constant 0 : index
    %c0_15 = arith.constant 0 : index
    %17 = vector.load %arg8[%c0_14, %c0_15] : memref<1x512xf32, #tpu.memory_space<vmem>>, vector<1x512xf32>
    tpu.vector_store %arg8[%c0_14, %c0_15], %16 {strides = array<i32>} : memref<1x512xf32, #tpu.memory_space<vmem>>, vector<1x512xf32>,
    %c0_i32_16 = arith.constant 0 : i32
    %18 = arith.cmpi eq, %arg1, %c0_i32_16 : i32
    %19 = arith.extui %18 : i1 to i32
    %c0_i32_17 = arith.constant 0 : i32
    %20 = arith.cmpi ne, %19, %c0_i32_17 : i32
    scf.if %20 {
      %c0_18 = arith.constant 0 : index
      %c0_19 = arith.constant 0 : index
      %21 = vector.load %arg7[%c0_18, %c0_19] : memref<1x512xf32, #tpu.memory_space<vmem>>, vector<1x512xf32>
      %c0_20 = arith.constant 0 : index
      %c0_21 = arith.constant 0 : index
      %22 = vector.load %arg5[%c0_20, %c0_21] : memref<1x512xf32, #tpu.memory_space<vmem>>, vector<1x512xf32>
      tpu.vector_store %arg5[%c0_20, %c0_21], %21 {strides = array<i32>} : memref<1x512xf32, #tpu.memory_space<vmem>>, vector<1x512xf32>,
      %c0_22 = arith.constant 0 : index
      %c0_23 = arith.constant 0 : index
      %23 = vector.load %arg8[%c0_22, %c0_23] : memref<1x512xf32, #tpu.memory_space<vmem>>, vector<1x512xf32>
      %c0_24 = arith.constant 0 : index
      %c0_25 = arith.constant 0 : index
      %24 = vector.load %arg6[%c0_24, %c0_25] : memref<1x512xf32, #tpu.memory_space<vmem>>, vector<1x512xf32>
      tpu.vector_store %arg6[%c0_24, %c0_25], %23 {strides = array<i32>} : memref<1x512xf32, #tpu.memory_space<vmem>>, vector<1x512xf32>,
    } else {
    }
    return
  }
  func.func @transform_0(%arg0: i32, %arg1: i32) -> (i32, i32) {
    %c0_i32 = arith.constant 0 : i32
    %c0_i32_0 = arith.constant 0 : i32
    return %arg1, %c0_i32 : i32, i32
  }
  func.func @transform_1(%arg0: i32, %arg1: i32) -> (i32, i32) {
    %c0_i32 = arith.constant 0 : i32
    %c0_i32_0 = arith.constant 0 : i32
    return %c0_i32, %arg0 : i32, i32
  }
  func.func @transform_2(%arg0: i32, %arg1: i32) -> (i32, i32) {
    %c0_i32 = arith.constant 0 : i32
    return %arg1, %arg0 : i32, i32
  }
  func.func @transform_3(%arg0: i32, %arg1: i32) -> (i32, i32) {
    %c0_i32 = arith.constant 0 : i32
    %c0_i32_0 = arith.constant 0 : i32
    return %c0_i32, %arg0 : i32, i32
  }
  func.func @transform_4(%arg0: i32, %arg1: i32) -> (i32, i32) {
    %c0_i32 = arith.constant 0 : i32
    %c0_i32_0 = arith.constant 0 : i32
    return %c0_i32, %arg0 : i32, i32
  }
}

module attributes {stable_mosaic.version = 11 : i64} {
  func.func @_norm_act_kernel(%arg0: i32, %arg1: i32, %arg2: memref<8x512xf32, #tpu.memory_space<vmem>>, %arg3: memref<1x512xf32, #tpu.memory_space<vmem>>, %arg4: memref<1x512xf32, #tpu.memory_space<vmem>>, %arg5: memref<8x512xbf16, #tpu.memory_space<vmem>>) attributes {dimension_semantics = [#tpu.dimension_semantics<parallel>, #tpu.dimension_semantics<parallel>], iteration_bounds = array<i64: 8, 1>, scalar_prefetch = 0 : i64, scratch_operands = 0 : i64, tpu.core_type = #tpu.core_type<tc>, window_params = [{transform_indices = @transform_0, window_bounds = array<i64: 8, 512>}, {transform_indices = @transform_1, window_bounds = array<i64: 1, 512>}, {transform_indices = @transform_2, window_bounds = array<i64: 1, 512>}, {transform_indices = @transform_3, window_bounds = array<i64: 8, 512>}]} {
    %c0 = arith.constant 0 : index
    %c0_0 = arith.constant 0 : index
    %0 = vector.load %arg2[%c0, %c0_0] : memref<8x512xf32, #tpu.memory_space<vmem>>, vector<8x512xf32>
    %c0_1 = arith.constant 0 : index
    %c0_2 = arith.constant 0 : index
    %1 = vector.load %arg3[%c0_1, %c0_2] : memref<1x512xf32, #tpu.memory_space<vmem>>, vector<1x512xf32>
    %2 = vector.broadcast %1 : vector<1x512xf32> to vector<8x512xf32>
    %3 = arith.mulf %0, %2 : vector<8x512xf32>
    %c0_3 = arith.constant 0 : index
    %c0_4 = arith.constant 0 : index
    %4 = vector.load %arg4[%c0_3, %c0_4] : memref<1x512xf32, #tpu.memory_space<vmem>>, vector<1x512xf32>
    %5 = vector.broadcast %4 : vector<1x512xf32> to vector<8x512xf32>
    %6 = arith.addf %3, %5 : vector<8x512xf32>
    %cst = arith.constant 0.000000e+00 : f32
    %7 = vector.broadcast %cst : f32 to vector<8x512xf32>
    %8 = arith.maximumf %6, %7 : vector<8x512xf32>
    %9 = arith.truncf %8 : vector<8x512xf32> to vector<8x512xbf16>
    %c0_5 = arith.constant 0 : index
    %c0_6 = arith.constant 0 : index
    %10 = vector.load %arg5[%c0_5, %c0_6] : memref<8x512xbf16, #tpu.memory_space<vmem>>, vector<8x512xbf16>
    tpu.vector_store %arg5[%c0_5, %c0_6], %9 {strides = array<i32>} : memref<8x512xbf16, #tpu.memory_space<vmem>>, vector<8x512xbf16>,
    return
  }
  func.func @transform_0(%arg0: i32, %arg1: i32) -> (i32, i32) {
    %c0_i32 = arith.constant 0 : i32
    return %arg1, %arg0 : i32, i32
  }
  func.func @transform_1(%arg0: i32, %arg1: i32) -> (i32, i32) {
    %c0_i32 = arith.constant 0 : i32
    %c0_i32_0 = arith.constant 0 : i32
    return %c0_i32, %arg0 : i32, i32
  }
  func.func @transform_2(%arg0: i32, %arg1: i32) -> (i32, i32) {
    %c0_i32 = arith.constant 0 : i32
    %c0_i32_0 = arith.constant 0 : i32
    return %c0_i32, %arg0 : i32, i32
  }
  func.func @transform_3(%arg0: i32, %arg1: i32) -> (i32, i32) {
    %c0_i32 = arith.constant 0 : i32
    return %arg1, %arg0 : i32, i32
  }
}

module attributes {stable_mosaic.version = 11 : i64} {
  func.func @_norm_act_kernel(%arg0: i32, %arg1: i32, %arg2: memref<32x512xf32, #tpu.memory_space<vmem>>, %arg3: memref<1x512xf32, #tpu.memory_space<vmem>>, %arg4: memref<1x512xf32, #tpu.memory_space<vmem>>, %arg5: memref<32x512xbf16, #tpu.memory_space<vmem>>) attributes {dimension_semantics = [#tpu.dimension_semantics<parallel>, #tpu.dimension_semantics<parallel>], iteration_bounds = array<i64: 1, 1>, scalar_prefetch = 0 : i64, scratch_operands = 0 : i64, tpu.core_type = #tpu.core_type<tc>, window_params = [{transform_indices = @transform_0, window_bounds = array<i64: 32, 512>}, {transform_indices = @transform_1, window_bounds = array<i64: 1, 512>}, {transform_indices = @transform_2, window_bounds = array<i64: 1, 512>}, {transform_indices = @transform_3, window_bounds = array<i64: 32, 512>}]} {
    %c0 = arith.constant 0 : index
    %c0_0 = arith.constant 0 : index
    %0 = vector.load %arg2[%c0, %c0_0] : memref<32x512xf32, #tpu.memory_space<vmem>>, vector<32x512xf32>
    %c0_1 = arith.constant 0 : index
    %c0_2 = arith.constant 0 : index
    %1 = vector.load %arg3[%c0_1, %c0_2] : memref<1x512xf32, #tpu.memory_space<vmem>>, vector<1x512xf32>
    %2 = vector.broadcast %1 : vector<1x512xf32> to vector<32x512xf32>
    %3 = arith.mulf %0, %2 : vector<32x512xf32>
    %c0_3 = arith.constant 0 : index
    %c0_4 = arith.constant 0 : index
    %4 = vector.load %arg4[%c0_3, %c0_4] : memref<1x512xf32, #tpu.memory_space<vmem>>, vector<1x512xf32>
    %5 = vector.broadcast %4 : vector<1x512xf32> to vector<32x512xf32>
    %6 = arith.addf %3, %5 : vector<32x512xf32>
    %cst = arith.constant 0.000000e+00 : f32
    %7 = vector.broadcast %cst : f32 to vector<32x512xf32>
    %8 = arith.maximumf %6, %7 : vector<32x512xf32>
    %9 = arith.truncf %8 : vector<32x512xf32> to vector<32x512xbf16>
    %c0_5 = arith.constant 0 : index
    %c0_6 = arith.constant 0 : index
    %10 = vector.load %arg5[%c0_5, %c0_6] : memref<32x512xbf16, #tpu.memory_space<vmem>>, vector<32x512xbf16>
    tpu.vector_store %arg5[%c0_5, %c0_6], %9 {strides = array<i32>} : memref<32x512xbf16, #tpu.memory_space<vmem>>, vector<32x512xbf16>,
    return
  }
  func.func @transform_0(%arg0: i32, %arg1: i32) -> (i32, i32) {
    %c0_i32 = arith.constant 0 : i32
    return %arg1, %arg0 : i32, i32
  }
  func.func @transform_1(%arg0: i32, %arg1: i32) -> (i32, i32) {
    %c0_i32 = arith.constant 0 : i32
    %c0_i32_0 = arith.constant 0 : i32
    return %c0_i32, %arg0 : i32, i32
  }
  func.func @transform_2(%arg0: i32, %arg1: i32) -> (i32, i32) {
    %c0_i32 = arith.constant 0 : i32
    %c0_i32_0 = arith.constant 0 : i32
    return %c0_i32, %arg0 : i32, i32
  }
  func.func @transform_3(%arg0: i32, %arg1: i32) -> (i32, i32) {
    %c0_i32 = arith.constant 0 : i32
    return %arg1, %arg0 : i32, i32
  }
}

module attributes {stable_mosaic.version = 11 : i64} {
  func.func @_gemm_stats_kernel(%arg0: i32, %arg1: i32, %arg2: memref<32x2304xbf16, #tpu.memory_space<vmem>>, %arg3: memref<2304x512xbf16, #tpu.memory_space<vmem>>, %arg4: memref<32x512xf32, #tpu.memory_space<vmem>>, %arg5: memref<1x512xf32, #tpu.memory_space<vmem>>, %arg6: memref<1x512xf32, #tpu.memory_space<vmem>>, %arg7: memref<1x512xf32, #tpu.memory_space<vmem>>, %arg8: memref<1x512xf32, #tpu.memory_space<vmem>>) attributes {dimension_semantics = [#tpu.dimension_semantics<parallel>, #tpu.dimension_semantics<arbitrary>], iteration_bounds = array<i64: 1, 1>, scalar_prefetch = 0 : i64, scratch_operands = 2 : i64, tpu.core_type = #tpu.core_type<tc>, window_params = [{transform_indices = @transform_0, window_bounds = array<i64: 32, 2304>}, {transform_indices = @transform_1, window_bounds = array<i64: 2304, 512>}, {transform_indices = @transform_2, window_bounds = array<i64: 32, 512>}, {transform_indices = @transform_3, window_bounds = array<i64: 1, 512>}, {transform_indices = @transform_4, window_bounds = array<i64: 1, 512>}]} {
    %c0 = arith.constant 0 : index
    %c0_0 = arith.constant 0 : index
    %0 = vector.load %arg2[%c0, %c0_0] : memref<32x2304xbf16, #tpu.memory_space<vmem>>, vector<32x2304xbf16>
    %c0_1 = arith.constant 0 : index
    %c0_2 = arith.constant 0 : index
    %1 = vector.load %arg3[%c0_1, %c0_2] : memref<2304x512xbf16, #tpu.memory_space<vmem>>, vector<2304x512xbf16>
    %cst = arith.constant dense<0.000000e+00> : vector<32x512xf32>
    %2 = tpu.matmul %0, %1, %cst {dimension_numbers = #tpu.dot_dimension_numbers<[1], [0], [0], [1], [0, 0, 1, 1], [], []>} : vector<32x2304xbf16>, vector<2304x512xbf16>, vector<32x512xf32> -> vector<32x512xf32>
    %c0_3 = arith.constant 0 : index
    %c0_4 = arith.constant 0 : index
    %3 = vector.load %arg4[%c0_3, %c0_4] : memref<32x512xf32, #tpu.memory_space<vmem>>, vector<32x512xf32>
    tpu.vector_store %arg4[%c0_3, %c0_4], %2 {strides = array<i32>} : memref<32x512xf32, #tpu.memory_space<vmem>>, vector<32x512xf32>,
    %c0_i32 = arith.constant 0 : i32
    %4 = arith.cmpi eq, %arg1, %c0_i32 : i32
    %5 = arith.extui %4 : i1 to i32
    %c0_i32_5 = arith.constant 0 : i32
    %6 = arith.cmpi ne, %5, %c0_i32_5 : i32
    scf.if %6 {
      %cst_18 = arith.constant 0.000000e+00 : f32
      %21 = vector.broadcast %cst_18 : f32 to vector<1x512xf32>
      %c0_19 = arith.constant 0 : index
      %c0_20 = arith.constant 0 : index
      %22 = vector.load %arg7[%c0_19, %c0_20] : memref<1x512xf32, #tpu.memory_space<vmem>>, vector<1x512xf32>
      tpu.vector_store %arg7[%c0_19, %c0_20], %21 {strides = array<i32>} : memref<1x512xf32, #tpu.memory_space<vmem>>, vector<1x512xf32>,
      %cst_21 = arith.constant 0.000000e+00 : f32
      %23 = vector.broadcast %cst_21 : f32 to vector<1x512xf32>
      %c0_22 = arith.constant 0 : index
      %c0_23 = arith.constant 0 : index
      %24 = vector.load %arg8[%c0_22, %c0_23] : memref<1x512xf32, #tpu.memory_space<vmem>>, vector<1x512xf32>
      tpu.vector_store %arg8[%c0_22, %c0_23], %23 {strides = array<i32>} : memref<1x512xf32, #tpu.memory_space<vmem>>, vector<1x512xf32>,
    } else {
    }
    %c0_6 = arith.constant 0 : index
    %c0_7 = arith.constant 0 : index
    %7 = vector.load %arg7[%c0_6, %c0_7] : memref<1x512xf32, #tpu.memory_space<vmem>>, vector<1x512xf32>
    %cst_8 = arith.constant dense<0.000000e+00> : vector<512xf32>
    %8 = vector.multi_reduction <add>, %2, %cst_8 [0] : vector<32x512xf32> to vector<512xf32>
    %9 = vector.shape_cast %8 : vector<512xf32> to vector<1x512xf32>
    %10 = arith.addf %7, %9 : vector<1x512xf32>
    %c0_9 = arith.constant 0 : index
    %c0_10 = arith.constant 0 : index
    %11 = vector.load %arg7[%c0_9, %c0_10] : memref<1x512xf32, #tpu.memory_space<vmem>>, vector<1x512xf32>
    tpu.vector_store %arg7[%c0_9, %c0_10], %10 {strides = array<i32>} : memref<1x512xf32, #tpu.memory_space<vmem>>, vector<1x512xf32>,
    %c0_11 = arith.constant 0 : index
    %c0_12 = arith.constant 0 : index
    %12 = vector.load %arg8[%c0_11, %c0_12] : memref<1x512xf32, #tpu.memory_space<vmem>>, vector<1x512xf32>
    %13 = arith.mulf %2, %2 : vector<32x512xf32>
    %cst_13 = arith.constant dense<0.000000e+00> : vector<512xf32>
    %14 = vector.multi_reduction <add>, %13, %cst_13 [0] : vector<32x512xf32> to vector<512xf32>
    %15 = vector.shape_cast %14 : vector<512xf32> to vector<1x512xf32>
    %16 = arith.addf %12, %15 : vector<1x512xf32>
    %c0_14 = arith.constant 0 : index
    %c0_15 = arith.constant 0 : index
    %17 = vector.load %arg8[%c0_14, %c0_15] : memref<1x512xf32, #tpu.memory_space<vmem>>, vector<1x512xf32>
    tpu.vector_store %arg8[%c0_14, %c0_15], %16 {strides = array<i32>} : memref<1x512xf32, #tpu.memory_space<vmem>>, vector<1x512xf32>,
    %c0_i32_16 = arith.constant 0 : i32
    %18 = arith.cmpi eq, %arg1, %c0_i32_16 : i32
    %19 = arith.extui %18 : i1 to i32
    %c0_i32_17 = arith.constant 0 : i32
    %20 = arith.cmpi ne, %19, %c0_i32_17 : i32
    scf.if %20 {
      %c0_18 = arith.constant 0 : index
      %c0_19 = arith.constant 0 : index
      %21 = vector.load %arg7[%c0_18, %c0_19] : memref<1x512xf32, #tpu.memory_space<vmem>>, vector<1x512xf32>
      %c0_20 = arith.constant 0 : index
      %c0_21 = arith.constant 0 : index
      %22 = vector.load %arg5[%c0_20, %c0_21] : memref<1x512xf32, #tpu.memory_space<vmem>>, vector<1x512xf32>
      tpu.vector_store %arg5[%c0_20, %c0_21], %21 {strides = array<i32>} : memref<1x512xf32, #tpu.memory_space<vmem>>, vector<1x512xf32>,
      %c0_22 = arith.constant 0 : index
      %c0_23 = arith.constant 0 : index
      %23 = vector.load %arg8[%c0_22, %c0_23] : memref<1x512xf32, #tpu.memory_space<vmem>>, vector<1x512xf32>
      %c0_24 = arith.constant 0 : index
      %c0_25 = arith.constant 0 : index
      %24 = vector.load %arg6[%c0_24, %c0_25] : memref<1x512xf32, #tpu.memory_space<vmem>>, vector<1x512xf32>
      tpu.vector_store %arg6[%c0_24, %c0_25], %23 {strides = array<i32>} : memref<1x512xf32, #tpu.memory_space<vmem>>, vector<1x512xf32>,
    } else {
    }
    return
  }
  func.func @transform_0(%arg0: i32, %arg1: i32) -> (i32, i32) {
    %c0_i32 = arith.constant 0 : i32
    %c0_i32_0 = arith.constant 0 : i32
    return %arg1, %c0_i32 : i32, i32
  }
  func.func @transform_1(%arg0: i32, %arg1: i32) -> (i32, i32) {
    %c0_i32 = arith.constant 0 : i32
    %c0_i32_0 = arith.constant 0 : i32
    return %c0_i32, %arg0 : i32, i32
  }
  func.func @transform_2(%arg0: i32, %arg1: i32) -> (i32, i32) {
    %c0_i32 = arith.constant 0 : i32
    return %arg1, %arg0 : i32, i32
  }
  func.func @transform_3(%arg0: i32, %arg1: i32) -> (i32, i32) {
    %c0_i32 = arith.constant 0 : i32
    %c0_i32_0 = arith.constant 0 : i32
    return %c0_i32, %arg0 : i32, i32
  }
  func.func @transform_4(%arg0: i32, %arg1: i32) -> (i32, i32) {
    %c0_i32 = arith.constant 0 : i32
    %c0_i32_0 = arith.constant 0 : i32
    return %c0_i32, %arg0 : i32, i32
  }
}

module attributes {stable_mosaic.version = 11 : i64} {
  func.func @_gemm_stats_kernel(%arg0: i32, %arg1: i32, %arg2: memref<128x1152xbf16, #tpu.memory_space<vmem>>, %arg3: memref<1152x256xbf16, #tpu.memory_space<vmem>>, %arg4: memref<128x256xf32, #tpu.memory_space<vmem>>, %arg5: memref<1x256xf32, #tpu.memory_space<vmem>>, %arg6: memref<1x256xf32, #tpu.memory_space<vmem>>, %arg7: memref<1x256xf32, #tpu.memory_space<vmem>>, %arg8: memref<1x256xf32, #tpu.memory_space<vmem>>) attributes {dimension_semantics = [#tpu.dimension_semantics<parallel>, #tpu.dimension_semantics<arbitrary>], iteration_bounds = array<i64: 1, 1>, scalar_prefetch = 0 : i64, scratch_operands = 2 : i64, tpu.core_type = #tpu.core_type<tc>, window_params = [{transform_indices = @transform_0, window_bounds = array<i64: 128, 1152>}, {transform_indices = @transform_1, window_bounds = array<i64: 1152, 256>}, {transform_indices = @transform_2, window_bounds = array<i64: 128, 256>}, {transform_indices = @transform_3, window_bounds = array<i64: 1, 256>}, {transform_indices = @transform_4, window_bounds = array<i64: 1, 256>}]} {
    %c0 = arith.constant 0 : index
    %c0_0 = arith.constant 0 : index
    %0 = vector.load %arg2[%c0, %c0_0] : memref<128x1152xbf16, #tpu.memory_space<vmem>>, vector<128x1152xbf16>
    %c0_1 = arith.constant 0 : index
    %c0_2 = arith.constant 0 : index
    %1 = vector.load %arg3[%c0_1, %c0_2] : memref<1152x256xbf16, #tpu.memory_space<vmem>>, vector<1152x256xbf16>
    %cst = arith.constant dense<0.000000e+00> : vector<128x256xf32>
    %2 = tpu.matmul %0, %1, %cst {dimension_numbers = #tpu.dot_dimension_numbers<[1], [0], [0], [1], [0, 0, 1, 1], [], []>} : vector<128x1152xbf16>, vector<1152x256xbf16>, vector<128x256xf32> -> vector<128x256xf32>
    %c0_3 = arith.constant 0 : index
    %c0_4 = arith.constant 0 : index
    %3 = vector.load %arg4[%c0_3, %c0_4] : memref<128x256xf32, #tpu.memory_space<vmem>>, vector<128x256xf32>
    tpu.vector_store %arg4[%c0_3, %c0_4], %2 {strides = array<i32>} : memref<128x256xf32, #tpu.memory_space<vmem>>, vector<128x256xf32>,
    %c0_i32 = arith.constant 0 : i32
    %4 = arith.cmpi eq, %arg1, %c0_i32 : i32
    %5 = arith.extui %4 : i1 to i32
    %c0_i32_5 = arith.constant 0 : i32
    %6 = arith.cmpi ne, %5, %c0_i32_5 : i32
    scf.if %6 {
      %cst_18 = arith.constant 0.000000e+00 : f32
      %21 = vector.broadcast %cst_18 : f32 to vector<1x256xf32>
      %c0_19 = arith.constant 0 : index
      %c0_20 = arith.constant 0 : index
      %22 = vector.load %arg7[%c0_19, %c0_20] : memref<1x256xf32, #tpu.memory_space<vmem>>, vector<1x256xf32>
      tpu.vector_store %arg7[%c0_19, %c0_20], %21 {strides = array<i32>} : memref<1x256xf32, #tpu.memory_space<vmem>>, vector<1x256xf32>,
      %cst_21 = arith.constant 0.000000e+00 : f32
      %23 = vector.broadcast %cst_21 : f32 to vector<1x256xf32>
      %c0_22 = arith.constant 0 : index
      %c0_23 = arith.constant 0 : index
      %24 = vector.load %arg8[%c0_22, %c0_23] : memref<1x256xf32, #tpu.memory_space<vmem>>, vector<1x256xf32>
      tpu.vector_store %arg8[%c0_22, %c0_23], %23 {strides = array<i32>} : memref<1x256xf32, #tpu.memory_space<vmem>>, vector<1x256xf32>,
    } else {
    }
    %c0_6 = arith.constant 0 : index
    %c0_7 = arith.constant 0 : index
    %7 = vector.load %arg7[%c0_6, %c0_7] : memref<1x256xf32, #tpu.memory_space<vmem>>, vector<1x256xf32>
    %cst_8 = arith.constant dense<0.000000e+00> : vector<256xf32>
    %8 = vector.multi_reduction <add>, %2, %cst_8 [0] : vector<128x256xf32> to vector<256xf32>
    %9 = vector.shape_cast %8 : vector<256xf32> to vector<1x256xf32>
    %10 = arith.addf %7, %9 : vector<1x256xf32>
    %c0_9 = arith.constant 0 : index
    %c0_10 = arith.constant 0 : index
    %11 = vector.load %arg7[%c0_9, %c0_10] : memref<1x256xf32, #tpu.memory_space<vmem>>, vector<1x256xf32>
    tpu.vector_store %arg7[%c0_9, %c0_10], %10 {strides = array<i32>} : memref<1x256xf32, #tpu.memory_space<vmem>>, vector<1x256xf32>,
    %c0_11 = arith.constant 0 : index
    %c0_12 = arith.constant 0 : index
    %12 = vector.load %arg8[%c0_11, %c0_12] : memref<1x256xf32, #tpu.memory_space<vmem>>, vector<1x256xf32>
    %13 = arith.mulf %2, %2 : vector<128x256xf32>
    %cst_13 = arith.constant dense<0.000000e+00> : vector<256xf32>
    %14 = vector.multi_reduction <add>, %13, %cst_13 [0] : vector<128x256xf32> to vector<256xf32>
    %15 = vector.shape_cast %14 : vector<256xf32> to vector<1x256xf32>
    %16 = arith.addf %12, %15 : vector<1x256xf32>
    %c0_14 = arith.constant 0 : index
    %c0_15 = arith.constant 0 : index
    %17 = vector.load %arg8[%c0_14, %c0_15] : memref<1x256xf32, #tpu.memory_space<vmem>>, vector<1x256xf32>
    tpu.vector_store %arg8[%c0_14, %c0_15], %16 {strides = array<i32>} : memref<1x256xf32, #tpu.memory_space<vmem>>, vector<1x256xf32>,
    %c0_i32_16 = arith.constant 0 : i32
    %18 = arith.cmpi eq, %arg1, %c0_i32_16 : i32
    %19 = arith.extui %18 : i1 to i32
    %c0_i32_17 = arith.constant 0 : i32
    %20 = arith.cmpi ne, %19, %c0_i32_17 : i32
    scf.if %20 {
      %c0_18 = arith.constant 0 : index
      %c0_19 = arith.constant 0 : index
      %21 = vector.load %arg7[%c0_18, %c0_19] : memref<1x256xf32, #tpu.memory_space<vmem>>, vector<1x256xf32>
      %c0_20 = arith.constant 0 : index
      %c0_21 = arith.constant 0 : index
      %22 = vector.load %arg5[%c0_20, %c0_21] : memref<1x256xf32, #tpu.memory_space<vmem>>, vector<1x256xf32>
      tpu.vector_store %arg5[%c0_20, %c0_21], %21 {strides = array<i32>} : memref<1x256xf32, #tpu.memory_space<vmem>>, vector<1x256xf32>,
      %c0_22 = arith.constant 0 : index
      %c0_23 = arith.constant 0 : index
      %23 = vector.load %arg8[%c0_22, %c0_23] : memref<1x256xf32, #tpu.memory_space<vmem>>, vector<1x256xf32>
      %c0_24 = arith.constant 0 : index
      %c0_25 = arith.constant 0 : index
      %24 = vector.load %arg6[%c0_24, %c0_25] : memref<1x256xf32, #tpu.memory_space<vmem>>, vector<1x256xf32>
      tpu.vector_store %arg6[%c0_24, %c0_25], %23 {strides = array<i32>} : memref<1x256xf32, #tpu.memory_space<vmem>>, vector<1x256xf32>,
    } else {
    }
    return
  }
  func.func @transform_0(%arg0: i32, %arg1: i32) -> (i32, i32) {
    %c0_i32 = arith.constant 0 : i32
    %c0_i32_0 = arith.constant 0 : i32
    return %arg1, %c0_i32 : i32, i32
  }
  func.func @transform_1(%arg0: i32, %arg1: i32) -> (i32, i32) {
    %c0_i32 = arith.constant 0 : i32
    %c0_i32_0 = arith.constant 0 : i32
    return %c0_i32, %arg0 : i32, i32
  }
  func.func @transform_2(%arg0: i32, %arg1: i32) -> (i32, i32) {
    %c0_i32 = arith.constant 0 : i32
    return %arg1, %arg0 : i32, i32
  }
  func.func @transform_3(%arg0: i32, %arg1: i32) -> (i32, i32) {
    %c0_i32 = arith.constant 0 : i32
    %c0_i32_0 = arith.constant 0 : i32
    return %c0_i32, %arg0 : i32, i32
  }
  func.func @transform_4(%arg0: i32, %arg1: i32) -> (i32, i32) {
    %c0_i32 = arith.constant 0 : i32
    %c0_i32_0 = arith.constant 0 : i32
    return %c0_i32, %arg0 : i32, i32
  }
}

module attributes {stable_mosaic.version = 11 : i64} {
  func.func @_norm_act_kernel(%arg0: i32, %arg1: i32, %arg2: memref<128x256xf32, #tpu.memory_space<vmem>>, %arg3: memref<1x256xf32, #tpu.memory_space<vmem>>, %arg4: memref<1x256xf32, #tpu.memory_space<vmem>>, %arg5: memref<128x256xbf16, #tpu.memory_space<vmem>>) attributes {dimension_semantics = [#tpu.dimension_semantics<parallel>, #tpu.dimension_semantics<parallel>], iteration_bounds = array<i64: 1, 1>, scalar_prefetch = 0 : i64, scratch_operands = 0 : i64, tpu.core_type = #tpu.core_type<tc>, window_params = [{transform_indices = @transform_0, window_bounds = array<i64: 128, 256>}, {transform_indices = @transform_1, window_bounds = array<i64: 1, 256>}, {transform_indices = @transform_2, window_bounds = array<i64: 1, 256>}, {transform_indices = @transform_3, window_bounds = array<i64: 128, 256>}]} {
    %c0 = arith.constant 0 : index
    %c0_0 = arith.constant 0 : index
    %0 = vector.load %arg2[%c0, %c0_0] : memref<128x256xf32, #tpu.memory_space<vmem>>, vector<128x256xf32>
    %c0_1 = arith.constant 0 : index
    %c0_2 = arith.constant 0 : index
    %1 = vector.load %arg3[%c0_1, %c0_2] : memref<1x256xf32, #tpu.memory_space<vmem>>, vector<1x256xf32>
    %2 = vector.broadcast %1 : vector<1x256xf32> to vector<128x256xf32>
    %3 = arith.mulf %0, %2 : vector<128x256xf32>
    %c0_3 = arith.constant 0 : index
    %c0_4 = arith.constant 0 : index
    %4 = vector.load %arg4[%c0_3, %c0_4] : memref<1x256xf32, #tpu.memory_space<vmem>>, vector<1x256xf32>
    %5 = vector.broadcast %4 : vector<1x256xf32> to vector<128x256xf32>
    %6 = arith.addf %3, %5 : vector<128x256xf32>
    %cst = arith.constant 0.000000e+00 : f32
    %7 = vector.broadcast %cst : f32 to vector<128x256xf32>
    %8 = arith.maximumf %6, %7 : vector<128x256xf32>
    %9 = arith.truncf %8 : vector<128x256xf32> to vector<128x256xbf16>
    %c0_5 = arith.constant 0 : index
    %c0_6 = arith.constant 0 : index
    %10 = vector.load %arg5[%c0_5, %c0_6] : memref<128x256xbf16, #tpu.memory_space<vmem>>, vector<128x256xbf16>
    tpu.vector_store %arg5[%c0_5, %c0_6], %9 {strides = array<i32>} : memref<128x256xbf16, #tpu.memory_space<vmem>>, vector<128x256xbf16>,
    return
  }
  func.func @transform_0(%arg0: i32, %arg1: i32) -> (i32, i32) {
    %c0_i32 = arith.constant 0 : i32
    return %arg1, %arg0 : i32, i32
  }
  func.func @transform_1(%arg0: i32, %arg1: i32) -> (i32, i32) {
    %c0_i32 = arith.constant 0 : i32
    %c0_i32_0 = arith.constant 0 : i32
    return %c0_i32, %arg0 : i32, i32
  }
  func.func @transform_2(%arg0: i32, %arg1: i32) -> (i32, i32) {
    %c0_i32 = arith.constant 0 : i32
    %c0_i32_0 = arith.constant 0 : i32
    return %c0_i32, %arg0 : i32, i32
  }
  func.func @transform_3(%arg0: i32, %arg1: i32) -> (i32, i32) {
    %c0_i32 = arith.constant 0 : i32
    return %arg1, %arg0 : i32, i32
  }
}

module attributes {stable_mosaic.version = 11 : i64} {
  func.func @_gemm_stats_kernel(%arg0: i32, %arg1: i32, %arg2: memref<256x576xbf16, #tpu.memory_space<vmem>>, %arg3: memref<576x128xbf16, #tpu.memory_space<vmem>>, %arg4: memref<256x128xf32, #tpu.memory_space<vmem>>, %arg5: memref<1x128xf32, #tpu.memory_space<vmem>>, %arg6: memref<1x128xf32, #tpu.memory_space<vmem>>, %arg7: memref<1x128xf32, #tpu.memory_space<vmem>>, %arg8: memref<1x128xf32, #tpu.memory_space<vmem>>) attributes {dimension_semantics = [#tpu.dimension_semantics<parallel>, #tpu.dimension_semantics<arbitrary>], iteration_bounds = array<i64: 1, 2>, scalar_prefetch = 0 : i64, scratch_operands = 2 : i64, tpu.core_type = #tpu.core_type<tc>, window_params = [{transform_indices = @transform_0, window_bounds = array<i64: 256, 576>}, {transform_indices = @transform_1, window_bounds = array<i64: 576, 128>}, {transform_indices = @transform_2, window_bounds = array<i64: 256, 128>}, {transform_indices = @transform_3, window_bounds = array<i64: 1, 128>}, {transform_indices = @transform_4, window_bounds = array<i64: 1, 128>}]} {
    %c0 = arith.constant 0 : index
    %c0_0 = arith.constant 0 : index
    %0 = vector.load %arg2[%c0, %c0_0] : memref<256x576xbf16, #tpu.memory_space<vmem>>, vector<256x576xbf16>
    %c0_1 = arith.constant 0 : index
    %c0_2 = arith.constant 0 : index
    %1 = vector.load %arg3[%c0_1, %c0_2] : memref<576x128xbf16, #tpu.memory_space<vmem>>, vector<576x128xbf16>
    %cst = arith.constant dense<0.000000e+00> : vector<256x128xf32>
    %2 = tpu.matmul %0, %1, %cst {dimension_numbers = #tpu.dot_dimension_numbers<[1], [0], [0], [1], [0, 0, 1, 1], [], []>} : vector<256x576xbf16>, vector<576x128xbf16>, vector<256x128xf32> -> vector<256x128xf32>
    %c0_3 = arith.constant 0 : index
    %c0_4 = arith.constant 0 : index
    %3 = vector.load %arg4[%c0_3, %c0_4] : memref<256x128xf32, #tpu.memory_space<vmem>>, vector<256x128xf32>
    tpu.vector_store %arg4[%c0_3, %c0_4], %2 {strides = array<i32>} : memref<256x128xf32, #tpu.memory_space<vmem>>, vector<256x128xf32>,
    %c0_i32 = arith.constant 0 : i32
    %4 = arith.cmpi eq, %arg1, %c0_i32 : i32
    %5 = arith.extui %4 : i1 to i32
    %c0_i32_5 = arith.constant 0 : i32
    %6 = arith.cmpi ne, %5, %c0_i32_5 : i32
    scf.if %6 {
      %cst_17 = arith.constant 0.000000e+00 : f32
      %21 = vector.broadcast %cst_17 : f32 to vector<1x128xf32>
      %c0_18 = arith.constant 0 : index
      %c0_19 = arith.constant 0 : index
      %22 = vector.load %arg7[%c0_18, %c0_19] : memref<1x128xf32, #tpu.memory_space<vmem>>, vector<1x128xf32>
      tpu.vector_store %arg7[%c0_18, %c0_19], %21 {strides = array<i32>} : memref<1x128xf32, #tpu.memory_space<vmem>>, vector<1x128xf32>,
      %cst_20 = arith.constant 0.000000e+00 : f32
      %23 = vector.broadcast %cst_20 : f32 to vector<1x128xf32>
      %c0_21 = arith.constant 0 : index
      %c0_22 = arith.constant 0 : index
      %24 = vector.load %arg8[%c0_21, %c0_22] : memref<1x128xf32, #tpu.memory_space<vmem>>, vector<1x128xf32>
      tpu.vector_store %arg8[%c0_21, %c0_22], %23 {strides = array<i32>} : memref<1x128xf32, #tpu.memory_space<vmem>>, vector<1x128xf32>,
    } else {
    }
    %c0_6 = arith.constant 0 : index
    %c0_7 = arith.constant 0 : index
    %7 = vector.load %arg7[%c0_6, %c0_7] : memref<1x128xf32, #tpu.memory_space<vmem>>, vector<1x128xf32>
    %cst_8 = arith.constant dense<0.000000e+00> : vector<128xf32>
    %8 = vector.multi_reduction <add>, %2, %cst_8 [0] : vector<256x128xf32> to vector<128xf32>
    %9 = vector.shape_cast %8 : vector<128xf32> to vector<1x128xf32>
    %10 = arith.addf %7, %9 : vector<1x128xf32>
    %c0_9 = arith.constant 0 : index
    %c0_10 = arith.constant 0 : index
    %11 = vector.load %arg7[%c0_9, %c0_10] : memref<1x128xf32, #tpu.memory_space<vmem>>, vector<1x128xf32>
    tpu.vector_store %arg7[%c0_9, %c0_10], %10 {strides = array<i32>} : memref<1x128xf32, #tpu.memory_space<vmem>>, vector<1x128xf32>,
    %c0_11 = arith.constant 0 : index
    %c0_12 = arith.constant 0 : index
    %12 = vector.load %arg8[%c0_11, %c0_12] : memref<1x128xf32, #tpu.memory_space<vmem>>, vector<1x128xf32>
    %13 = arith.mulf %2, %2 : vector<256x128xf32>
    %cst_13 = arith.constant dense<0.000000e+00> : vector<128xf32>
    %14 = vector.multi_reduction <add>, %13, %cst_13 [0] : vector<256x128xf32> to vector<128xf32>
    %15 = vector.shape_cast %14 : vector<128xf32> to vector<1x128xf32>
    %16 = arith.addf %12, %15 : vector<1x128xf32>
    %c0_14 = arith.constant 0 : index
    %c0_15 = arith.constant 0 : index
    %17 = vector.load %arg8[%c0_14, %c0_15] : memref<1x128xf32, #tpu.memory_space<vmem>>, vector<1x128xf32>
    tpu.vector_store %arg8[%c0_14, %c0_15], %16 {strides = array<i32>} : memref<1x128xf32, #tpu.memory_space<vmem>>, vector<1x128xf32>,
    %c1_i32 = arith.constant 1 : i32
    %18 = arith.cmpi eq, %arg1, %c1_i32 : i32
    %19 = arith.extui %18 : i1 to i32
    %c0_i32_16 = arith.constant 0 : i32
    %20 = arith.cmpi ne, %19, %c0_i32_16 : i32
    scf.if %20 {
      %c0_17 = arith.constant 0 : index
      %c0_18 = arith.constant 0 : index
      %21 = vector.load %arg7[%c0_17, %c0_18] : memref<1x128xf32, #tpu.memory_space<vmem>>, vector<1x128xf32>
      %c0_19 = arith.constant 0 : index
      %c0_20 = arith.constant 0 : index
      %22 = vector.load %arg5[%c0_19, %c0_20] : memref<1x128xf32, #tpu.memory_space<vmem>>, vector<1x128xf32>
      tpu.vector_store %arg5[%c0_19, %c0_20], %21 {strides = array<i32>} : memref<1x128xf32, #tpu.memory_space<vmem>>, vector<1x128xf32>,
      %c0_21 = arith.constant 0 : index
      %c0_22 = arith.constant 0 : index
      %23 = vector.load %arg8[%c0_21, %c0_22] : memref<1x128xf32, #tpu.memory_space<vmem>>, vector<1x128xf32>
      %c0_23 = arith.constant 0 : index
      %c0_24 = arith.constant 0 : index
      %24 = vector.load %arg6[%c0_23, %c0_24] : memref<1x128xf32, #tpu.memory_space<vmem>>, vector<1x128xf32>
      tpu.vector_store %arg6[%c0_23, %c0_24], %23 {strides = array<i32>} : memref<1x128xf32, #tpu.memory_space<vmem>>, vector<1x128xf32>,
    } else {
    }
    return
  }
  func.func @transform_0(%arg0: i32, %arg1: i32) -> (i32, i32) {
    %c0_i32 = arith.constant 0 : i32
    %c0_i32_0 = arith.constant 0 : i32
    return %arg1, %c0_i32 : i32, i32
  }
  func.func @transform_1(%arg0: i32, %arg1: i32) -> (i32, i32) {
    %c0_i32 = arith.constant 0 : i32
    %c0_i32_0 = arith.constant 0 : i32
    return %c0_i32, %arg0 : i32, i32
  }
  func.func @transform_2(%arg0: i32, %arg1: i32) -> (i32, i32) {
    %c0_i32 = arith.constant 0 : i32
    return %arg1, %arg0 : i32, i32
  }
  func.func @transform_3(%arg0: i32, %arg1: i32) -> (i32, i32) {
    %c0_i32 = arith.constant 0 : i32
    %c0_i32_0 = arith.constant 0 : i32
    return %c0_i32, %arg0 : i32, i32
  }
  func.func @transform_4(%arg0: i32, %arg1: i32) -> (i32, i32) {
    %c0_i32 = arith.constant 0 : i32
    %c0_i32_0 = arith.constant 0 : i32
    return %c0_i32, %arg0 : i32, i32
  }
}

</mosaic_0001>

<llo_original>
// kernel: squeeze.7
$region0: #{squeeze.7}
  %s0 = inlined_call_operand.vmem [shape: f32[4096], index: 0, kind: input, shape index: {}]
  %s1 = inlined_call_operand.vmem [shape: f32[16,256], index: 1, kind: output, shape index: {}]
  %v2 = vld [vmem:[%s0] sm:$0xff]
  %3 = vst [vmem:[%s1] ss:$8 sm:$0x3] %v2
  %s4 = scalar_lea.vmem %s1, 4294967281
  %5 = vst [vmem:[%s4] ss:$8 sm:$0xc] %v2
  %s6 = scalar_lea.vmem %s1, 4294967266
  %7 = vst [vmem:[%s6] ss:$8 sm:$0x30] %v2
  %s8 = scalar_lea.vmem %s1, 4294967251
  %9 = vst [vmem:[%s8] ss:$8 sm:$0xc0] %v2
  %s10 = scalar_lea.vmem %s0, 8
  %v11 = vld [vmem:[%s10] sm:$0xff]
  %s12 = scalar_lea.vmem %s1, 4
  %13 = vst [vmem:[%s12] ss:$8 sm:$0x3] %v11
  %s14 = scalar_lea.vmem %s1, 4294967285
  %15 = vst [vmem:[%s14] ss:$8 sm:$0xc] %v11
  %s16 = scalar_lea.vmem %s1, 4294967270
  %17 = vst [vmem:[%s16] ss:$8 sm:$0x30] %v11
  %s18 = scalar_lea.vmem %s1, 4294967255
  %19 = vst [vmem:[%s18] ss:$8 sm:$0xc0] %v11
  %s20 = scalar_lea.vmem %s0, 16
  %v21 = vld [vmem:[%s20] sm:$0xff]
  %s22 = scalar_lea.vmem %s1, 16
  %23 = vst [vmem:[%s22] ss:$8 sm:$0x3] %v21
  %s24 = scalar_lea.vmem %s1, 1
  %25 = vst [vmem:[%s24] ss:$8 sm:$0xc] %v21
  %s26 = scalar_lea.vmem %s1, 4294967282
  %27 = vst [vmem:[%s26] ss:$8 sm:$0x30] %v21
  %s28 = scalar_lea.vmem %s1, 4294967267
  %29 = vst [vmem:[%s28] ss:$8 sm:$0xc0] %v21
  %s30 = scalar_lea.vmem %s0, 24
  %v31 = vld [vmem:[%s30] sm:$0xff]
  %s32 = scalar_lea.vmem %s1, 20
  %33 = vst [vmem:[%s32] ss:$8 sm:$0x3] %v31
  %s34 = scalar_lea.vmem %s1, 5
  %35 = vst [vmem:[%s34] ss:$8 sm:$0xc] %v31
  %s36 = scalar_lea.vmem %s1, 4294967286
  %37 = vst [vmem:[%s36] ss:$8 sm:$0x30] %v31
  %s38 = scalar_lea.vmem %s1, 4294967271
  %39 = vst [vmem:[%s38] ss:$8 sm:$0xc0] %v31

// kernel: dcgan_generator.7
$region0: #{dcgan_generator.7}
  #allocation0 [shape = 'u32[]', space=smem, size = 0x4, offset = 0x4, fixed_abs, tag = 'smem constant byte address 0x4 - core index']
  #allocation1 [shape = 'u32[72,128]{1,0:T(1,128)}', space=vmem, size = 0x9000, scoped, tag = 'internal scratch']
  #allocation2 [shape = 'f32[1,512]{1,0:T(1,128)}', space=vmem, size = 0x800, scoped, tag = 'scratch operand']
  #allocation3 [shape = 'f32[1,512]{1,0:T(1,128)}', space=vmem, size = 0x800, scoped, tag = 'scratch operand']
  %s0 = inlined_call_operand.vmem [shape: bf16[8,32], index: 0, kind: input, shape index: {}]
  %s1 = inlined_call_operand.hbm [shape: bf16[32,4096], index: 1, kind: input, shape index: {}]
  %s2 = inlined_call_operand.vmem [shape: f32[8,4096], index: 2, kind: output, shape index: {0}]
  %s3 = inlined_call_operand.vmem [shape: f32[1,4096], index: 3, kind: output, shape index: {1}]
  %s4 = inlined_call_operand.vmem [shape: f32[1,4096], index: 4, kind: output, shape index: {2}]
  %5 = xla_tuple %s2, %s3, %s4
  %s6 = sld [smem:[#allocation0]]
  $region69: #{dcgan_generator.7} parent=0
    _
  %s8 = ssub.s32 1, %s6
  %s9 = scalar_select 0, %s8, %s6
  $region1: #{dcgan_generator.7} parent=0
    #allocation4 [shape = 'u8[65536]{0}', space=vmem, size = 0x10000, scoped, tag = 'input window, operand 1']
    #allocation5 [shape = 's32[2]{0}', space=sflag, size = 0x8, scoped, tag = 'scoped memory for dcgan_generator.7']
    %10 = vsyncpa [#allocation5], 0
    %s11 = scalar_lea.sflag [#allocation5], 1
    %12 = vsyncpa %s11, 0
    loop: start=0, step=1, limit=10
    $region2: #{dcgan_generator.7} parent=1 // loop_pre_header
      _
    $region3: #{dcgan_generator.7} parent=1 // loop_header
      %s14 = sphi 0, %s18
      %p15 = scmp.ge.s32.totalorder %s14, 10
      %s21 = sphi 0, %s33
      %s22 = sphi 0, %s29
      %s23 = sphi 0, %s21
      %s24 = sphi 0, %s22
      %s25 = sphi 0, %s23
      %s26 = sphi 0, %s24
      %s36 = sphi 0, %s38
      %s39 = sphi 0, %s36
      %s40 = sphi 0, %s39
      %s56 = sphi 0, %s40
      %s62 = sphi 0, %s64
      %s65 = sphi 0, %s62
      %s66 = sphi 0, %s65
      %s82 = sphi 0, %s66
      %s90 = sphi 0, %s92
      %s93 = sphi 0, %s90
      %s94 = sphi 0, %s93
      %s110 = sphi 0, %s94
      %s116 = sphi 0, %s118
      %s119 = sphi 0, %s116
      %s120 = sphi 0, %s119
      %s136 = sphi 0, %s120
      %s142 = sphi 0, %s144
      %s145 = sphi 0, %s142
      %s146 = sphi 0, %s145
      %s162 = sphi 0, %s146
    $region4: #{dcgan_generator.7} parent=1 // loop_header_branch
      %17 = sbr.rel (%p15) target = $region8
    $region5: #{dcgan_generator.7} parent=1 // loop_body
      %s19 = ssub.s32 %s14, 1
      %s20 = ssub.s32 %s14, 2
      %s27 = sadd.s32 1, %s22
      %p28 = scmp.ge.s32.totalorder %s27, 1
      %s29 = scalar_select %p28, 0, %s27
      %s30 = sadd.s32 1, %s21
      %s31 = scalar_select %p28, %s30, %s21
      %p32 = scmp.ge.s32.totalorder %s31, 8
      %s33 = scalar_select %p32, 0, %s31
      %s34 = ssub.s32 %s22, %s29
      %p35 = scmp.eq.s32.totalorder %s34, 0
      %s37 = sadd.s32 %s36, 1
      %s38 = scalar_select %p35, %s36, %s37
      %p41 = pneg %p35
      %p42 = scmp.eq.s32.totalorder %s14, 7
      %p43 = por %p41, %p42
      %p44 = scmp.ne.s32.totalorder %s36, %s39
      %p45 = scmp.eq.s32.totalorder %s14, 0
      %p46 = por %p44, %p45
      %p47 = scmp.ne.s32.totalorder %s36, %s39
      %p48 = scmp.eq.s32.totalorder %s19, 7
      %p49 = por %p47, %p48
      %p50 = scmp.ne.s32.totalorder %s39, %s40
      %p51 = scmp.eq.s32.totalorder %s19, 0
      %p52 = por %p50, %p51
      %p53 = scmp.ne.s32.totalorder %s39, %s40
      %p54 = scmp.eq.s32.totalorder %s20, 7
      %p55 = por %p53, %p54
      %p57 = scmp.ne.s32.totalorder %s40, %s56
      %p58 = scmp.eq.s32.totalorder %s20, 0
      %p59 = por %p57, %p58
      %s60 = ssub.s32 %s21, %s33
      %p61 = scmp.eq.s32.totalorder %s60, 0
      %s63 = sadd.s32 %s62, 1
      %s64 = scalar_select %p61, %s62, %s63
      %p67 = pneg %p61
      %p68 = scmp.eq.s32.totalorder %s14, 7
      %p69 = por %p67, %p68
      %p70 = scmp.ne.s32.totalorder %s62, %s65
      %p71 = scmp.eq.s32.totalorder %s14, 0
      %p72 = por %p70, %p71
      %p73 = scmp.ne.s32.totalorder %s62, %s65
      %p74 = scmp.eq.s32.totalorder %s19, 7
      %p75 = por %p73, %p74
      %p76 = scmp.ne.s32.totalorder %s65, %s66
      %p77 = scmp.eq.s32.totalorder %s19, 0
      %p78 = por %p76, %p77
      %p79 = scmp.ne.s32.totalorder %s65, %s66
      %p80 = scmp.eq.s32.totalorder %s20, 7
      %p81 = por %p79, %p80
      %p83 = scmp.ne.s32.totalorder %s66, %s82
      %p84 = scmp.eq.s32.totalorder %s20, 0
      %p85 = por %p83, %p84
      %s86 = ssub.s32 %s22, %s29
      %s87 = ssub.s32 %s21, %s33
      %s88 = sor.u32 %s86, %s87
      %p89 = scmp.eq.s32.totalorder %s88, 0
      %s91 = sadd.s32 %s90, 1
      %s92 = scalar_select %p89, %s90, %s91
      %p95 = pneg %p89
      %p96 = scmp.eq.s32.totalorder %s14, 7
      %p97 = por %p95, %p96
      %p98 = scmp.ne.s32.totalorder %s90, %s93
      %p99 = scmp.eq.s32.totalorder %s14, 0
      %p100 = por %p98, %p99
      %p101 = scmp.ne.s32.totalorder %s90, %s93
      %p102 = scmp.eq.s32.totalorder %s19, 7
      %p103 = por %p101, %p102
      %p104 = scmp.ne.s32.totalorder %s93, %s94
      %p105 = scmp.eq.s32.totalorder %s19, 0
      %p106 = por %p104, %p105
      %p107 = scmp.ne.s32.totalorder %s93, %s94
      %p108 = scmp.eq.s32.totalorder %s20, 7
      %p109 = por %p107, %p108
      %p111 = scmp.ne.s32.totalorder %s94, %s110
      %p112 = scmp.eq.s32.totalorder %s20, 0
      %p113 = por %p111, %p112
      %s114 = ssub.s32 %s21, %s33
      %p115 = scmp.eq.s32.totalorder %s114, 0
      %s117 = sadd.s32 %s116, 1
      %s118 = scalar_select %p115, %s116, %s117
      %p121 = pneg %p115
      %p122 = scmp.eq.s32.totalorder %s14, 7
      %p123 = por %p121, %p122
      %p124 = scmp.ne.s32.totalorder %s116, %s119
      %p125 = scmp.eq.s32.totalorder %s14, 0
      %p126 = por %p124, %p125
      %p127 = scmp.ne.s32.totalorder %s116, %s119
      %p128 = scmp.eq.s32.totalorder %s19, 7
      %p129 = por %p127, %p128
      %p130 = scmp.ne.s32.totalorder %s119, %s120
      %p131 = scmp.eq.s32.totalorder %s19, 0
      %p132 = por %p130, %p131
      %p133 = scmp.ne.s32.totalorder %s119, %s120
      %p134 = scmp.eq.s32.totalorder %s20, 7
      %p135 = por %p133, %p134
      %p137 = scmp.ne.s32.totalorder %s120, %s136
      %p138 = scmp.eq.s32.totalorder %s20, 0
      %p139 = por %p137, %p138
      %s140 = ssub.s32 %s21, %s33
      %p141 = scmp.eq.s32.totalorder %s140, 0
      %s143 = sadd.s32 %s142, 1
      %s144 = scalar_select %p141, %s142, %s143
      %p147 = pneg %p141
      %p148 = scmp.eq.s32.totalorder %s14, 7
      %p149 = por %p147, %p148
      %p150 = scmp.ne.s32.totalorder %s142, %s145
      %p151 = scmp.eq.s32.totalorder %s14, 0
      %p152 = por %p150, %p151
      %p153 = scmp.ne.s32.totalorder %s142, %s145
      %p154 = scmp.eq.s32.totalorder %s19, 7
      %p155 = por %p153, %p154
      %p156 = scmp.ne.s32.totalorder %s145, %s146
      %p157 = scmp.eq.s32.totalorder %s19, 0
      %p158 = por %p156, %p157
      %p159 = scmp.ne.s32.totalorder %s145, %s146
      %p160 = scmp.eq.s32.totalorder %s20, 7
      %p161 = por %p159, %p160
      %p163 = scmp.ne.s32.totalorder %s146, %s162
      %p164 = scmp.eq.s32.totalorder %s20, 0
      %p165 = por %p163, %p164
      %p166 = scmp.le.s32.totalorder 1, %s14
      %p167 = scmp.lt.s32.totalorder %s14, 9
      %p168 = pnand %p166, %p167
      %p169 = pneg %p168
      // Predicated region
      $region9: #{dcgan_generator.7} parent=5 // pred_check
        _
      $region10: #{dcgan_generator.7} parent=5 // pred_check_branch
        %171 = sbr.rel (%p168) target = $region12
      $region11: #{dcgan_generator.7} parent=5 // pred_region
        %s172 = ssub.s32 %s14, 1
        // Predicated region
        $region13: #{dcgan_generator.7} parent=11 // pred_check
          %p173 = pneg %p52
        $region14: #{dcgan_generator.7} parent=11 // pred_check_branch
          %175 = sbr.rel (%p173) target = $region16
        $region15: #{dcgan_generator.7} parent=11 // pred_region
          %p176 = scmp.lt.s32.totalorder %s24, 0
          %s177 = scalar_select %p176, %s24, 0
          %s178 = smul.addr %s177, 4
          %s179 = scalar_lea.vmem %s0, %s178
        $region16: #{dcgan_generator.7} parent=11 // pred_fallthru
          _
      $region12: #{dcgan_generator.7} parent=5 // pred_fallthru
        _
      %p180 = scmp.lt.s32.totalorder %s14, 8
      // Predicated region
      $region17: #{dcgan_generator.7} parent=5 // pred_check
        %p181 = pneg %p180
      $region18: #{dcgan_generator.7} parent=5 // pred_check_branch
        %183 = sbr.rel (%p181) target = $region20
      $region19: #{dcgan_generator.7} parent=5 // pred_region
        // Predicated region
        $region21: #{dcgan_generator.7} parent=19 // pred_check
          %p184 = pneg %p72
        $region22: #{dcgan_generator.7} parent=19 // pred_check_branch
          %186 = sbr.rel (%p184) target = $region24
        $region23: #{dcgan_generator.7} parent=19 // pred_region
          %s187 = sand.u32 %s62, 1
          %s188 = scalar_lea.sflag [#allocation5], %s187
          %s189 = sand.u32 %s62, 1
          %s190 = smul.addr %s189, 64
          %s191 = scalar_lea.vmem [#allocation4], %s190
          %s192 = smul.u32 4, %s21
          %194 = vsyncadd %s188, 0
          %s195 = smul.addr %s192, 4
          %s196 = scalar_lea.hbm %s1, %s195
          %s197 = sshll.u32 %s196, 4
          %s198 = int_to_ptr.hbm [resolvable:$true] %s197
          %s199 = sshll.u32 %s191, 4
          %s200 = int_to_ptr.vmem [resolvable:$true] %s199
          %205 = dma.hbm_to_vmem [thread:$0]  %s198, 1024, %s200, %s188, 2048, 256, 16
        $region24: #{dcgan_generator.7} parent=19 // pred_fallthru
          _
      $region20: #{dcgan_generator.7} parent=5 // pred_fallthru
        _
      %p206 = scmp.le.s32.totalorder 1, %s14
      %p207 = scmp.lt.s32.totalorder %s14, 9
      %p208 = pnand %p206, %p207
      %p209 = pneg %p208
      // Predicated region
      $region25: #{dcgan_generator.7} parent=5 // pred_check
        _
      $region26: #{dcgan_generator.7} parent=5 // pred_check_branch
        %211 = sbr.rel (%p208) target = $region28
      $region27: #{dcgan_generator.7} parent=5 // pred_region
        %s212 = ssub.s32 %s14, 1
        %s213 = sand.u32 %s65, 1
        %s214 = scalar_lea.sflag [#allocation5], %s213
        %s215 = sand.u32 %s65, 1
        %s216 = smul.addr %s215, 64
        %s217 = scalar_lea.vmem [#allocation4], %s216
        // Predicated region
        $region29: #{dcgan_generator.7} parent=27 // pred_check
          %p218 = pneg %p78
        $region30: #{dcgan_generator.7} parent=27 // pred_check_branch
          %220 = sbr.rel (%p218) target = $region32
        $region31: #{dcgan_generator.7} parent=27 // pred_region
          %222 = dma.done %s214, 1024
        $region32: #{dcgan_generator.7} parent=27 // pred_fallthru
          _
        %p223 = scmp.lt.s32.totalorder %s24, 0
        %s224 = scalar_select %p223, %s24, 0
        %s225 = smul.addr %s224, 4
        %s226 = scalar_lea.vmem %s0, %s225
        %p227 = pneg %p52
        %p228 = pneg %p49
        %s229 = sand.u32 %s65, 1
        %s230 = scalar_lea.sflag [#allocation5], %s229
        %s231 = sand.u32 %s65, 1
        %s232 = smul.addr %s231, 64
        %s233 = scalar_lea.vmem [#allocation4], %s232
        %p234 = pneg %p78
        %p235 = pneg %p75
        %p236 = pneg %p106
        %p237 = pneg %p103
        %s238 = smul.u32 4, %s23
        %p239 = scmp.lt.s32.totalorder %s24, 0
        %s240 = scalar_select %p239, %s24, 0
        %p241 = scmp.lt.s32.totalorder %s238, 31
        %s242 = scalar_select %p241, %s238, 31
        %s243 = smul.addr %s240, 32
        %s244 = sadd.s32 %s242, %s243
        %s245 = smul.addr %s244, 8
        %s246 = scalar_lea.vmem %s2, %s245
        %p247 = pneg %p132
        %p248 = pneg %p129
        %s249 = smul.u32 4, %s23
        %p250 = scmp.lt.s32.totalorder %s249, 31
        %s251 = scalar_select %p250, %s249, 31
        %s252 = scalar_lea.vmem %s3, %s251
        %p253 = pneg %p158
        %p254 = pneg %p155
        %s255 = smul.u32 4, %s23
        %p256 = scmp.lt.s32.totalorder %s255, 31
        %s257 = scalar_select %p256, %s255, 31
        %s258 = scalar_lea.vmem %s4, %s257
        %p259 = scmp.lt.s32.totalorder %s24, 0
        %s260 = scalar_select %p259, %s24, 0
        %s261 = smul.addr %s260, 4
        %s262 = scalar_lea.vmem %s0, %s261
        %s263 = smul.u32 4, %s23
        %s264 = smul.u32 4, %s23
        %p265 = scmp.lt.s32.totalorder %s24, 0
        %s266 = scalar_select %p265, %s24, 0
        %p267 = scmp.lt.s32.totalorder %s264, 31
        %s268 = scalar_select %p267, %s264, 31
        %s269 = smul.addr %s266, 32
        %s270 = sadd.s32 %s268, %s269
        %s271 = smul.addr %s270, 8
        %s272 = scalar_lea.vmem %s2, %s271
        %s273 = smul.u32 4, %s23
        %s274 = smul.u32 4, %s23
        %p275 = scmp.lt.s32.totalorder %s274, 31
        %s276 = scalar_select %p275, %s274, 31
        %s277 = scalar_lea.vmem %s3, %s276
        %s278 = smul.u32 4, %s23
        %s279 = smul.u32 4, %s23
        %p280 = scmp.lt.s32.totalorder %s279, 31
        %s281 = scalar_select %p280, %s279, 31
        %s282 = scalar_lea.vmem %s4, %s281
        %s283 = smul.u32 4, %s23
        %v285 = vld [vmem:[%s262] sm:$0xf]
        %v286 = vld [vmem:[%s217] sm:$0xff]
        %v287 = vld [vmem:[%s217 + $0x8] sm:$0xff]
        %v288 = vld [vmem:[%s217 + $0x10] sm:$0xff]
        %v289 = vld [vmem:[%s217 + $0x18] sm:$0xff]
        %v290 = vld [vmem:[%s217 + $0x20] sm:$0xff]
        %v291 = vld [vmem:[%s217 + $0x28] sm:$0xff]
        %v292 = vld [vmem:[%s217 + $0x30] sm:$0xff]
        %v293 = vld [vmem:[%s217 + $0x38] sm:$0xff]
        %v302 = vunpack.c.l.b16 %v286
        %v303 = vunpack.c.h.b16 %v286
        %v304 = vunpack.c.l.b16 %v287
        %v305 = vunpack.c.h.b16 %v287
        %v306 = vunpack.c.l.b16 %v288
        %v307 = vunpack.c.h.b16 %v288
        %v308 = vunpack.c.l.b16 %v289
        %v309 = vunpack.c.h.b16 %v289
        %v310 = vunpack.c.l.b16 %v290
        %v311 = vunpack.c.h.b16 %v290
        %v312 = vunpack.c.l.b16 %v291
        %v313 = vunpack.c.h.b16 %v291
        %v314 = vunpack.c.l.b16 %v292
        %v315 = vunpack.c.h.b16 %v292
        %v316 = vunpack.c.l.b16 %v293
        %v317 = vunpack.c.h.b16 %v293
        %v318 = vpack.c.b16 %v306, %v302
        %v319 = vpack.c.b16 %v307, %v303
        %v320 = vpack.c.b16 %v308, %v304
        %v321 = vpack.c.b16 %v309, %v305
        %v322 = vpack.c.b16 %v314, %v310
        %v323 = vpack.c.b16 %v315, %v311
        %v324 = vpack.c.b16 %v316, %v312
        %v325 = vpack.c.b16 %v317, %v313
        %vm334 = vcmask 261120
        %v336 = vsel %vm334, %v285, 0
        %338 = vmatpush.bf16.msra.mxu0 0
        %339 = vmatpush.bf16.msra.mxu0 0
        %340 = vmatpush.bf16.msra.mxu0 0
        %341 = vmatpush.bf16.msra.mxu0 0
        %342 = vmatpush.bf16.msra.mxu0 0
        %343 = vmatpush.bf16.msra.mxu0 0
        %344 = vmatpush.bf16.msra.mxu0 %v322
        %345 = vmatpush.bf16.msra.mxu0 %v318
        %346 = vmatmul.bf16.gmra.mxu0 %v336
        %v347 = vpop.f32.mrf.mxu0
        %v348 = vadd.f32 0.0, %v347
        %v349 = vpop.f32.mrf.mxu0
        %350 = vdwg.mxu0
        %351 = vmatpush.bf16.msra.mxu0 0
        %352 = vmatpush.bf16.msra.mxu0 0
        %353 = vmatpush.bf16.msra.mxu0 0
        %354 = vmatpush.bf16.msra.mxu0 0
        %355 = vmatpush.bf16.msra.mxu0 0
        %356 = vmatpush.bf16.msra.mxu0 0
        %357 = vmatpush.bf16.msra.mxu0 %v323
        %358 = vmatpush.bf16.msra.mxu0 %v319
        %359 = vmatmul.bf16.gmra.mxu0 %v336
        %v360 = vpop.f32.mrf.mxu0
        %v361 = vadd.f32 0.0, %v360
        %v362 = vpop.f32.mrf.mxu0
        %363 = vdwg.mxu0
        %364 = vmatpush.bf16.msra.mxu0 0
        %365 = vmatpush.bf16.msra.mxu0 0
        %366 = vmatpush.bf16.msra.mxu0 0
        %367 = vmatpush.bf16.msra.mxu0 0
        %368 = vmatpush.bf16.msra.mxu0 0
        %369 = vmatpush.bf16.msra.mxu0 0
        %370 = vmatpush.bf16.msra.mxu0 %v324
        %371 = vmatpush.bf16.msra.mxu0 %v320
        %372 = vmatmul.bf16.gmra.mxu0 %v336
        %v373 = vpop.f32.mrf.mxu0
        %v374 = vadd.f32 0.0, %v373
        %v375 = vpop.f32.mrf.mxu0
        %376 = vdwg.mxu0
        %377 = vmatpush.bf16.msra.mxu0 0
        %378 = vmatpush.bf16.msra.mxu0 0
        %379 = vmatpush.bf16.msra.mxu0 0
        %380 = vmatpush.bf16.msra.mxu0 0
        %381 = vmatpush.bf16.msra.mxu0 0
        %382 = vmatpush.bf16.msra.mxu0 0
        %383 = vmatpush.bf16.msra.mxu0 %v325
        %384 = vmatpush.bf16.msra.mxu0 %v321
        %385 = vmatmul.bf16.gmra.mxu0 %v336
        %v386 = vpop.f32.mrf.mxu0
        %v387 = vadd.f32 0.0, %v386
        %v388 = vpop.f32.mrf.mxu0
        %389 = vdwg.mxu0
        %390 = vst [vmem:[%s272] sm:$0xff] %v348
        %391 = vst [vmem:[%s272 + $0x8] sm:$0xff] %v361
        %392 = vst [vmem:[%s272 + $0x10] sm:$0xff] %v374
        %393 = vst [vmem:[%s272 + $0x18] sm:$0xff] %v387
        %p394 = scmp.eq.s32.totalorder %s24, 0
        // Predicated region
        $region33: #{dcgan_generator.7} parent=27 // pred_check
          %p395 = pneg %p394
        $region34: #{dcgan_generator.7} parent=27 // pred_check_branch
          %397 = sbr.rel (%p395) target = $region36
        $region35: #{dcgan_generator.7} parent=27 // pred_region
          %v398 = vlaneseq
          %vm399 = vcmp.ge.s32.totalorder %v398, 0
          %vm400 = vcmp.lt.s32.totalorder %v398, 512
          %vm401 = vmand %vm399, %vm400
          %402 = vst.msk [vmem:[#allocation2] sm:$0xf] %vm401, 0.0
          %403 = vst.msk [vmem:[#allocation3] sm:$0xf] %vm401, 0.0
        $region36: #{dcgan_generator.7} parent=27 // pred_fallthru
          _
        %v404 = vld [vmem:[#allocation2] sm:$0xf]
        %v405 = vrot.slane %v348, 4
        %v406 = vadd.f32 %v348, %v405
        %v407 = vrot.slane %v406, 2
        %v408 = vadd.f32 %v406, %v407
        %v409 = vrot.slane %v408, 1
        %v410 = vadd.f32 %v408, %v409
        %v411 = vrot.slane %v361, 4
        %v412 = vadd.f32 %v361, %v411
        %v413 = vrot.slane %v412, 2
        %v414 = vadd.f32 %v412, %v413
        %v415 = vrot.slane %v414, 1
        %v416 = vadd.f32 %v414, %v415
        %v417 = vrot.slane %v374, 4
        %v418 = vadd.f32 %v374, %v417
        %v419 = vrot.slane %v418, 2
        %v420 = vadd.f32 %v418, %v419
        %v421 = vrot.slane %v420, 1
        %v422 = vadd.f32 %v420, %v421
        %v423 = vrot.slane %v387, 4
        %v424 = vadd.f32 %v387, %v423
        %v425 = vrot.slane %v424, 2
        %v426 = vadd.f32 %v424, %v425
        %v427 = vrot.slane %v426, 1
        %v428 = vadd.f32 %v426, %v427
        %v433 = vrot.slane %v416, 7
        %v434 = vrot.slane %v422, 6
        %v435 = vrot.slane %v428, 5
        %vm436 = vcmask 1040384
        %v437 = vsel %vm436, %v410, %v433
        %vm438 = vcmask 1042434
        %v439 = vsel %vm438, %v434, %v435
        %vm440 = vcmask 1041408
        %v441 = vsel %vm440, %v437, %v439
        %v443 = vadd.f32 %v404, %v441
        %v444 = vlaneseq
        %vm445 = vcmp.ge.s32.totalorder %v444, 0
        %vm446 = vcmp.lt.s32.totalorder %v444, 512
        %vm447 = vmand %vm445, %vm446
        %448 = vst.msk [vmem:[#allocation2] sm:$0xf] %vm447, %v443
        %v449 = vld [vmem:[#allocation3] sm:$0xf]
        %v450 = vmul.f32 %v348, %v348
        %v451 = vmul.f32 %v361, %v361
        %v452 = vmul.f32 %v374, %v374
        %v453 = vmul.f32 %v387, %v387
        %v454 = vrot.slane %v450, 4
        %v455 = vadd.f32 %v450, %v454
        %v456 = vrot.slane %v455, 2
        %v457 = vadd.f32 %v455, %v456
        %v458 = vrot.slane %v457, 1
        %v459 = vadd.f32 %v457, %v458
        %v460 = vrot.slane %v451, 4
        %v461 = vadd.f32 %v451, %v460
        %v462 = vrot.slane %v461, 2
        %v463 = vadd.f32 %v461, %v462
        %v464 = vrot.slane %v463, 1
        %v465 = vadd.f32 %v463, %v464
        %v466 = vrot.slane %v452, 4
        %v467 = vadd.f32 %v452, %v466
        %v468 = vrot.slane %v467, 2
        %v469 = vadd.f32 %v467, %v468
        %v470 = vrot.slane %v469, 1
        %v471 = vadd.f32 %v469, %v470
        %v472 = vrot.slane %v453, 4
        %v473 = vadd.f32 %v453, %v472
        %v474 = vrot.slane %v473, 2
        %v475 = vadd.f32 %v473, %v474
        %v476 = vrot.slane %v475, 1
        %v477 = vadd.f32 %v475, %v476
        %v482 = vrot.slane %v465, 7
        %v483 = vrot.slane %v471, 6
        %v484 = vrot.slane %v477, 5
        %v485 = vsel %vm436, %v459, %v482
        %v486 = vsel %vm438, %v483, %v484
        %v487 = vsel %vm440, %v485, %v486
        %v489 = vadd.f32 %v449, %v487
        %490 = vst.msk [vmem:[#allocation3] sm:$0xf] %vm447, %v489
        // Predicated region
        $region37: #{dcgan_generator.7} parent=27 // pred_check
          %p491 = pneg %p394
        $region38: #{dcgan_generator.7} parent=27 // pred_check_branch
          %493 = sbr.rel (%p491) target = $region40
        $region39: #{dcgan_generator.7} parent=27 // pred_region
          %v494 = vld [vmem:[#allocation2] sm:$0xf]
          %495 = vst.msk [vmem:[%s277] sm:$0xf] %vm447, %v494
          %v496 = vld [vmem:[#allocation3] sm:$0xf]
          %497 = vst.msk [vmem:[%s282] sm:$0xf] %vm447, %v496
        $region40: #{dcgan_generator.7} parent=27 // pred_fallthru
          _
        %s498 = smul.u32 4, %s23
        %p499 = scmp.lt.s32.totalorder %s24, 0
        %s500 = scalar_select %p499, %s24, 0
        %p501 = scmp.lt.s32.totalorder %s498, 31
        %s502 = scalar_select %p501, %s498, 31
        %s503 = smul.addr %s500, 32
        %s504 = sadd.s32 %s502, %s503
        %s505 = smul.addr %s504, 8
        %s506 = scalar_lea.vmem %s2, %s505
        %s507 = smul.u32 4, %s23
        %p508 = scmp.lt.s32.totalorder %s507, 31
        %s509 = scalar_select %p508, %s507, 31
        %s510 = scalar_lea.vmem %s3, %s509
        %s511 = smul.u32 4, %s23
        %p512 = scmp.lt.s32.totalorder %s511, 31
        %s513 = scalar_select %p512, %s511, 31
        %s514 = scalar_lea.vmem %s4, %s513
        // Predicated region
        $region41: #{dcgan_generator.7} parent=27 // pred_check
          %p515 = pneg %p103
        $region42: #{dcgan_generator.7} parent=27 // pred_check_branch
          %517 = sbr.rel (%p515) target = $region44
        $region43: #{dcgan_generator.7} parent=27 // pred_region
          %s518 = smul.u32 4, %s23
        $region44: #{dcgan_generator.7} parent=27 // pred_fallthru
          _
        // Predicated region
        $region45: #{dcgan_generator.7} parent=27 // pred_check
          %p519 = pneg %p129
        $region46: #{dcgan_generator.7} parent=27 // pred_check_branch
          %521 = sbr.rel (%p519) target = $region48
        $region47: #{dcgan_generator.7} parent=27 // pred_region
          %s522 = smul.u32 4, %s23
        $region48: #{dcgan_generator.7} parent=27 // pred_fallthru
          _
        // Predicated region
        $region49: #{dcgan_generator.7} parent=27 // pred_check
          %p523 = pneg %p155
        $region50: #{dcgan_generator.7} parent=27 // pred_check_branch
          %525 = sbr.rel (%p523) target = $region52
        $region51: #{dcgan_generator.7} parent=27 // pred_region
          %s526 = smul.u32 4, %s23
        $region52: #{dcgan_generator.7} parent=27 // pred_fallthru
          _
      $region28: #{dcgan_generator.7} parent=5 // pred_fallthru
        _
      %p527 = scmp.le.s32.totalorder 2, %s14
      // Predicated region
      $region53: #{dcgan_generator.7} parent=5 // pred_check
        %p528 = pneg %p527
      $region54: #{dcgan_generator.7} parent=5 // pred_check_branch
        %530 = sbr.rel (%p528) target = $region56
      $region55: #{dcgan_generator.7} parent=5 // pred_region
        %s531 = ssub.s32 %s14, 2
        // Predicated region
        $region57: #{dcgan_generator.7} parent=55 // pred_check
          %p532 = pneg %p109
        $region58: #{dcgan_generator.7} parent=55 // pred_check_branch
          %534 = sbr.rel (%p532) target = $region60
        $region59: #{dcgan_generator.7} parent=55 // pred_region
          %s535 = smul.u32 4, %s25
          %p536 = scmp.lt.s32.totalorder %s26, 0
          %s537 = scalar_select %p536, %s26, 0
          %p538 = scmp.lt.s32.totalorder %s535, 31
          %s539 = scalar_select %p538, %s535, 31
          %s540 = smul.addr %s537, 32
          %s541 = sadd.s32 %s539, %s540
          %s542 = smul.addr %s541, 8
          %s543 = scalar_lea.vmem %s2, %s542
        $region60: #{dcgan_generator.7} parent=55 // pred_fallthru
          _
        // Predicated region
        $region61: #{dcgan_generator.7} parent=55 // pred_check
          %p544 = pneg %p135
        $region62: #{dcgan_generator.7} parent=55 // pred_check_branch
          %546 = sbr.rel (%p544) target = $region64
        $region63: #{dcgan_generator.7} parent=55 // pred_region
          %s547 = smul.u32 4, %s25
          %p548 = scmp.lt.s32.totalorder %s547, 31
          %s549 = scalar_select %p548, %s547, 31
          %s550 = scalar_lea.vmem %s3, %s549
        $region64: #{dcgan_generator.7} parent=55 // pred_fallthru
          _
        // Predicated region
        $region65: #{dcgan_generator.7} parent=55 // pred_check
          %p551 = pneg %p161
        $region66: #{dcgan_generator.7} parent=55 // pred_check_branch
          %553 = sbr.rel (%p551) target = $region68
        $region67: #{dcgan_generator.7} parent=55 // pred_region
          %s554 = smul.u32 4, %s25
          %p555 = scmp.lt.s32.totalorder %s554, 31
          %s556 = scalar_select %p555, %s554, 31
          %s557 = scalar_lea.vmem %s4, %s556
        $region68: #{dcgan_generator.7} parent=55 // pred_fallthru
          _
      $region56: #{dcgan_generator.7} parent=5 // pred_fallthru
        _
    $region6: #{dcgan_generator.7} parent=1 // loop_footer
      %s18 = sadd.s32 1, %s14
    $region7: #{dcgan_generator.7} parent=1 // loop_footer_branch
      %13 = sbr.rel target = $region3
    $region8: #{dcgan_generator.7} parent=1 // loop_exit
      _
    %558 = vsyncpa [#allocation5], 1
    %s559 = scalar_lea.sflag [#allocation5], 1
    %560 = vsyncpa %s559, 1

// kernel: dcgan_generator.8
$region0: #{dcgan_generator.8}
  #allocation0 [shape = 'u32[]', space=smem, size = 0x4, offset = 0x4, fixed_abs, tag = 'smem constant byte address 0x4 - core index']
  #allocation1 [shape = 'u32[72,128]{1,0:T(1,128)}', space=vmem, size = 0x9000, scoped, tag = 'internal scratch']
  %s0 = inlined_call_operand.vmem [shape: f32[8,4096], index: 0, kind: input, shape index: {}]
  %s1 = inlined_call_operand.vmem [shape: f32[1,4096], index: 1, kind: input, shape index: {}]
  %s2 = inlined_call_operand.vmem [shape: f32[1,4096], index: 2, kind: input, shape index: {}]
  %s3 = inlined_call_operand.vmem [shape: bf16[8,4096], index: 3, kind: output, shape index: {}]
  %s4 = sld [smem:[#allocation0]]
  $region45: #{dcgan_generator.8} parent=0
    _
  %s6 = ssub.s32 1, %s4
  %s7 = scalar_select 0, %s6, %s4
  loop: start=0, step=1, limit=10
  $region2: #{dcgan_generator.8} parent=0 // loop_pre_header
    _
  $region3: #{dcgan_generator.8} parent=0 // loop_header
    %s9 = sphi 0, %s13
    %p10 = scmp.ge.s32.totalorder %s9, 10
    %s16 = sphi 0, %s28
    %s17 = sphi 0, %s24
    %s18 = sphi 0, %s16
    %s19 = sphi 0, %s17
    %s20 = sphi 0, %s18
    %s21 = sphi 0, %s19
    %s33 = sphi 0, %s35
    %s36 = sphi 0, %s33
    %s37 = sphi 0, %s36
    %s53 = sphi 0, %s37
    %s59 = sphi 0, %s61
    %s62 = sphi 0, %s59
    %s63 = sphi 0, %s62
    %s79 = sphi 0, %s63
    %s85 = sphi 0, %s87
    %s88 = sphi 0, %s85
    %s89 = sphi 0, %s88
    %s105 = sphi 0, %s89
    %s113 = sphi 0, %s115
    %s116 = sphi 0, %s113
    %s117 = sphi 0, %s116
    %s133 = sphi 0, %s117
  $region4: #{dcgan_generator.8} parent=0 // loop_header_branch
    %12 = sbr.rel (%p10) target = $region8
  $region5: #{dcgan_generator.8} parent=0 // loop_body
    %s14 = ssub.s32 %s9, 1
    %s15 = ssub.s32 %s9, 2
    %s22 = sadd.s32 1, %s17
    %p23 = scmp.ge.s32.totalorder %s22, 1
    %s24 = scalar_select %p23, 0, %s22
    %s25 = sadd.s32 1, %s16
    %s26 = scalar_select %p23, %s25, %s16
    %p27 = scmp.ge.s32.totalorder %s26, 8
    %s28 = scalar_select %p27, 0, %s26
    %s29 = ssub.s32 %s17, %s24
    %s30 = ssub.s32 %s16, %s28
    %s31 = sor.u32 %s29, %s30
    %p32 = scmp.eq.s32.totalorder %s31, 0
    %s34 = sadd.s32 %s33, 1
    %s35 = scalar_select %p32, %s33, %s34
    %p38 = pneg %p32
    %p39 = scmp.eq.s32.totalorder %s9, 7
    %p40 = por %p38, %p39
    %p41 = scmp.ne.s32.totalorder %s33, %s36
    %p42 = scmp.eq.s32.totalorder %s9, 0
    %p43 = por %p41, %p42
    %p44 = scmp.ne.s32.totalorder %s33, %s36
    %p45 = scmp.eq.s32.totalorder %s14, 7
    %p46 = por %p44, %p45
    %p47 = scmp.ne.s32.totalorder %s36, %s37
    %p48 = scmp.eq.s32.totalorder %s14, 0
    %p49 = por %p47, %p48
    %p50 = scmp.ne.s32.totalorder %s36, %s37
    %p51 = scmp.eq.s32.totalorder %s15, 7
    %p52 = por %p50, %p51
    %p54 = scmp.ne.s32.totalorder %s37, %s53
    %p55 = scmp.eq.s32.totalorder %s15, 0
    %p56 = por %p54, %p55
    %s57 = ssub.s32 %s16, %s28
    %p58 = scmp.eq.s32.totalorder %s57, 0
    %s60 = sadd.s32 %s59, 1
    %s61 = scalar_select %p58, %s59, %s60
    %p64 = pneg %p58
    %p65 = scmp.eq.s32.totalorder %s9, 7
    %p66 = por %p64, %p65
    %p67 = scmp.ne.s32.totalorder %s59, %s62
    %p68 = scmp.eq.s32.totalorder %s9, 0
    %p69 = por %p67, %p68
    %p70 = scmp.ne.s32.totalorder %s59, %s62
    %p71 = scmp.eq.s32.totalorder %s14, 7
    %p72 = por %p70, %p71
    %p73 = scmp.ne.s32.totalorder %s62, %s63
    %p74 = scmp.eq.s32.totalorder %s14, 0
    %p75 = por %p73, %p74
    %p76 = scmp.ne.s32.totalorder %s62, %s63
    %p77 = scmp.eq.s32.totalorder %s15, 7
    %p78 = por %p76, %p77
    %p80 = scmp.ne.s32.totalorder %s63, %s79
    %p81 = scmp.eq.s32.totalorder %s15, 0
    %p82 = por %p80, %p81
    %s83 = ssub.s32 %s16, %s28
    %p84 = scmp.eq.s32.totalorder %s83, 0
    %s86 = sadd.s32 %s85, 1
    %s87 = scalar_select %p84, %s85, %s86
    %p90 = pneg %p84
    %p91 = scmp.eq.s32.totalorder %s9, 7
    %p92 = por %p90, %p91
    %p93 = scmp.ne.s32.totalorder %s85, %s88
    %p94 = scmp.eq.s32.totalorder %s9, 0
    %p95 = por %p93, %p94
    %p96 = scmp.ne.s32.totalorder %s85, %s88
    %p97 = scmp.eq.s32.totalorder %s14, 7
    %p98 = por %p96, %p97
    %p99 = scmp.ne.s32.totalorder %s88, %s89
    %p100 = scmp.eq.s32.totalorder %s14, 0
    %p101 = por %p99, %p100
    %p102 = scmp.ne.s32.totalorder %s88, %s89
    %p103 = scmp.eq.s32.totalorder %s15, 7
    %p104 = por %p102, %p103
    %p106 = scmp.ne.s32.totalorder %s89, %s105
    %p107 = scmp.eq.s32.totalorder %s15, 0
    %p108 = por %p106, %p107
    %s109 = ssub.s32 %s17, %s24
    %s110 = ssub.s32 %s16, %s28
    %s111 = sor.u32 %s109, %s110
    %p112 = scmp.eq.s32.totalorder %s111, 0
    %s114 = sadd.s32 %s113, 1
    %s115 = scalar_select %p112, %s113, %s114
    %p118 = pneg %p112
    %p119 = scmp.eq.s32.totalorder %s9, 7
    %p120 = por %p118, %p119
    %p121 = scmp.ne.s32.totalorder %s113, %s116
    %p122 = scmp.eq.s32.totalorder %s9, 0
    %p123 = por %p121, %p122
    %p124 = scmp.ne.s32.totalorder %s113, %s116
    %p125 = scmp.eq.s32.totalorder %s14, 7
    %p126 = por %p124, %p125
    %p127 = scmp.ne.s32.totalorder %s116, %s117
    %p128 = scmp.eq.s32.totalorder %s14, 0
    %p129 = por %p127, %p128
    %p130 = scmp.ne.s32.totalorder %s116, %s117
    %p131 = scmp.eq.s32.totalorder %s15, 7
    %p132 = por %p130, %p131
    %p134 = scmp.ne.s32.totalorder %s117, %s133
    %p135 = scmp.eq.s32.totalorder %s15, 0
    %p136 = por %p134, %p135
    %p137 = scmp.le.s32.totalorder 1, %s9
    %p138 = scmp.lt.s32.totalorder %s9, 9
    %p139 = pnand %p137, %p138
    %p140 = pneg %p139
    // Predicated region
    $region9: #{dcgan_generator.8} parent=5 // pred_check
      _
    $region10: #{dcgan_generator.8} parent=5 // pred_check_branch
      %142 = sbr.rel (%p139) target = $region12
    $region11: #{dcgan_generator.8} parent=5 // pred_region
      %s143 = ssub.s32 %s9, 1
    $region12: #{dcgan_generator.8} parent=5 // pred_fallthru
      _
    %p144 = scmp.lt.s32.totalorder %s9, 8
    // Predicated region
    $region13: #{dcgan_generator.8} parent=5 // pred_check
      %p145 = pneg %p144
    $region14: #{dcgan_generator.8} parent=5 // pred_check_branch
      %147 = sbr.rel (%p145) target = $region16
    $region15: #{dcgan_generator.8} parent=5 // pred_region
      // Predicated region
      $region17: #{dcgan_generator.8} parent=15 // pred_check
        %p148 = pneg %p43
      $region18: #{dcgan_generator.8} parent=15 // pred_check_branch
        %150 = sbr.rel (%p148) target = $region20
      $region19: #{dcgan_generator.8} parent=15 // pred_region
        %s151 = smul.u32 4, %s16
        %p152 = scmp.lt.s32.totalorder %s17, 0
        %s153 = scalar_select %p152, %s17, 0
        %p154 = scmp.lt.s32.totalorder %s151, 31
        %s155 = scalar_select %p154, %s151, 31
        %s156 = smul.addr %s153, 32
        %s157 = sadd.s32 %s155, %s156
        %s158 = smul.addr %s157, 8
        %s159 = scalar_lea.vmem %s0, %s158
        %s160 = smul.u32 4, %s16
      $region20: #{dcgan_generator.8} parent=15 // pred_fallthru
        _
      // Predicated region
      $region21: #{dcgan_generator.8} parent=15 // pred_check
        %p161 = pneg %p69
      $region22: #{dcgan_generator.8} parent=15 // pred_check_branch
        %163 = sbr.rel (%p161) target = $region24
      $region23: #{dcgan_generator.8} parent=15 // pred_region
        %s164 = smul.u32 4, %s16
        %p165 = scmp.lt.s32.totalorder %s164, 31
        %s166 = scalar_select %p165, %s164, 31
        %s167 = scalar_lea.vmem %s1, %s166
        %s168 = smul.u32 4, %s16
      $region24: #{dcgan_generator.8} parent=15 // pred_fallthru
        _
      // Predicated region
      $region25: #{dcgan_generator.8} parent=15 // pred_check
        %p169 = pneg %p95
      $region26: #{dcgan_generator.8} parent=15 // pred_check_branch
        %171 = sbr.rel (%p169) target = $region28
      $region27: #{dcgan_generator.8} parent=15 // pred_region
        %s172 = smul.u32 4, %s16
        %p173 = scmp.lt.s32.totalorder %s172, 31
        %s174 = scalar_select %p173, %s172, 31
        %s175 = scalar_lea.vmem %s2, %s174
        %s176 = smul.u32 4, %s16
      $region28: #{dcgan_generator.8} parent=15 // pred_fallthru
        _
    $region16: #{dcgan_generator.8} parent=5 // pred_fallthru
      _
    %p177 = scmp.le.s32.totalorder 1, %s9
    %p178 = scmp.lt.s32.totalorder %s9, 9
    %p179 = pnand %p177, %p178
    %p180 = pneg %p179
    // Predicated region
    $region29: #{dcgan_generator.8} parent=5 // pred_check
      _
    $region30: #{dcgan_generator.8} parent=5 // pred_check_branch
      %182 = sbr.rel (%p179) target = $region32
    $region31: #{dcgan_generator.8} parent=5 // pred_region
      %s183 = ssub.s32 %s9, 1
      %s184 = smul.u32 4, %s18
      %p185 = scmp.lt.s32.totalorder %s19, 0
      %s186 = scalar_select %p185, %s19, 0
      %p187 = scmp.lt.s32.totalorder %s184, 31
      %s188 = scalar_select %p187, %s184, 31
      %s189 = smul.addr %s186, 32
      %s190 = sadd.s32 %s188, %s189
      %s191 = smul.addr %s190, 8
      %s192 = scalar_lea.vmem %s0, %s191
      %p193 = pneg %p49
      %p194 = pneg %p46
      %s195 = smul.u32 4, %s18
      %p196 = scmp.lt.s32.totalorder %s195, 31
      %s197 = scalar_select %p196, %s195, 31
      %s198 = scalar_lea.vmem %s1, %s197
      %p199 = pneg %p75
      %p200 = pneg %p72
      %s201 = smul.u32 4, %s18
      %p202 = scmp.lt.s32.totalorder %s201, 31
      %s203 = scalar_select %p202, %s201, 31
      %s204 = scalar_lea.vmem %s2, %s203
      %p205 = pneg %p101
      %p206 = pneg %p98
      %p207 = pneg %p129
      %p208 = pneg %p126
      %s209 = smul.u32 4, %s18
      %p210 = scmp.lt.s32.totalorder %s19, 0
      %s211 = scalar_select %p210, %s19, 0
      %p212 = scmp.lt.s32.totalorder %s209, 31
      %s213 = scalar_select %p212, %s209, 31
      %s214 = smul.addr %s211, 32
      %s215 = sadd.s32 %s213, %s214
      %s216 = smul.addr %s215, 4
      %s217 = scalar_lea.vmem %s3, %s216
      %s218 = smul.u32 4, %s18
      %p219 = scmp.lt.s32.totalorder %s19, 0
      %s220 = scalar_select %p219, %s19, 0
      %p221 = scmp.lt.s32.totalorder %s218, 31
      %s222 = scalar_select %p221, %s218, 31
      %s223 = smul.addr %s220, 32
      %s224 = sadd.s32 %s222, %s223
      %s225 = smul.addr %s224, 8
      %s226 = scalar_lea.vmem %s0, %s225
      %s227 = smul.u32 4, %s18
      %s228 = smul.u32 4, %s18
      %p229 = scmp.lt.s32.totalorder %s228, 31
      %s230 = scalar_select %p229, %s228, 31
      %s231 = scalar_lea.vmem %s1, %s230
      %s232 = smul.u32 4, %s18
      %s233 = smul.u32 4, %s18
      %p234 = scmp.lt.s32.totalorder %s233, 31
      %s235 = scalar_select %p234, %s233, 31
      %s236 = scalar_lea.vmem %s2, %s235
      %s237 = smul.u32 4, %s18
      %s238 = smul.u32 4, %s18
      %p239 = scmp.lt.s32.totalorder %s19, 0
      %s240 = scalar_select %p239, %s19, 0
      %p241 = scmp.lt.s32.totalorder %s238, 31
      %s242 = scalar_select %p241, %s238, 31
      %s243 = smul.addr %s240, 32
      %s244 = sadd.s32 %s242, %s243
      %s245 = smul.addr %s244, 4
      %s246 = scalar_lea.vmem %s3, %s245
      %s247 = smul.u32 4, %s18
      %v248 = vld [vmem:[%s226] sm:$0xff]
      %v249 = vld [vmem:[%s226 + $0x8] sm:$0xff]
      %v250 = vld [vmem:[%s226 + $0x10] sm:$0xff]
      %v251 = vld [vmem:[%s226 + $0x18] sm:$0xff]
      %v252 = vld [vmem:[%s231] sm:$0xf]
      %v254 = vperm.slane %v252, 0
      %v255 = vperm.slane %v252, 1
      %v256 = vperm.slane %v252, 2
      %v257 = vperm.slane %v252, 3
      %v262 = vmul.f32 %v248, %v254
      %v263 = vmul.f32 %v249, %v255
      %v264 = vmul.f32 %v250, %v256
      %v265 = vmul.f32 %v251, %v257
      %v266 = vld [vmem:[%s236] sm:$0xf]
      %v268 = vperm.slane %v266, 0
      %v269 = vperm.slane %v266, 1
      %v270 = vperm.slane %v266, 2
      %v271 = vperm.slane %v266, 3
      %v276 = vadd.f32 %v262, %v268
      %v277 = vadd.f32 %v263, %v269
      %v278 = vadd.f32 %v264, %v270
      %v279 = vadd.f32 %v265, %v271
      %v280 = vmax.f32 %v276, 0.0
      %v281 = vmax.f32 %v277, 0.0
      %v282 = vmax.f32 %v278, 0.0
      %v283 = vmax.f32 %v279, 0.0
      %v284 = vpack.c.bf16 %v281, %v280
      %v285 = vpack.c.bf16 %v283, %v282
      %286 = vst [vmem:[%s246] sm:$0xff] %v284
      %287 = vst [vmem:[%s246 + $0x8] sm:$0xff] %v285
      %s288 = smul.u32 4, %s18
      %p289 = scmp.lt.s32.totalorder %s19, 0
      %s290 = scalar_select %p289, %s19, 0
      %p291 = scmp.lt.s32.totalorder %s288, 31
      %s292 = scalar_select %p291, %s288, 31
      %s293 = smul.addr %s290, 32
      %s294 = sadd.s32 %s292, %s293
      %s295 = smul.addr %s294, 4
      %s296 = scalar_lea.vmem %s3, %s295
      // Predicated region
      $region33: #{dcgan_generator.8} parent=31 // pred_check
        %p297 = pneg %p126
      $region34: #{dcgan_generator.8} parent=31 // pred_check_branch
        %299 = sbr.rel (%p297) target = $region36
      $region35: #{dcgan_generator.8} parent=31 // pred_region
        %s300 = smul.u32 4, %s18
      $region36: #{dcgan_generator.8} parent=31 // pred_fallthru
        _
    $region32: #{dcgan_generator.8} parent=5 // pred_fallthru
      _
    %p301 = scmp.le.s32.totalorder 2, %s9
    // Predicated region
    $region37: #{dcgan_generator.8} parent=5 // pred_check
      %p302 = pneg %p301
    $region38: #{dcgan_generator.8} parent=5 // pred_check_branch
      %304 = sbr.rel (%p302) target = $region40
    $region39: #{dcgan_generator.8} parent=5 // pred_region
      %s305 = ssub.s32 %s9, 2
      // Predicated region
      $region41: #{dcgan_generator.8} parent=39 // pred_check
        %p306 = pneg %p132
      $region42: #{dcgan_generator.8} parent=39 // pred_check_branch
        %308 = sbr.rel (%p306) target = $region44
      $region43: #{dcgan_generator.8} parent=39 // pred_region
        %s309 = smul.u32 4, %s20
        %p310 = scmp.lt.s32.totalorder %s21, 0
        %s311 = scalar_select %p310, %s21, 0
        %p312 = scmp.lt.s32.totalorder %s309, 31
        %s313 = scalar_select %p312, %s309, 31
        %s314 = smul.addr %s311, 32
        %s315 = sadd.s32 %s313, %s314
        %s316 = smul.addr %s315, 4
        %s317 = scalar_lea.vmem %s3, %s316
      $region44: #{dcgan_generator.8} parent=39 // pred_fallthru
        _
    $region40: #{dcgan_generator.8} parent=5 // pred_fallthru
      _
  $region6: #{dcgan_generator.8} parent=0 // loop_footer
    %s13 = sadd.s32 1, %s9
  $region7: #{dcgan_generator.8} parent=0 // loop_footer_branch
    %8 = sbr.rel target = $region3
  $region8: #{dcgan_generator.8} parent=0 // loop_exit
    _

// kernel: tile.48
$region0: #{tile.48}
  #allocation0 [shape = 's32[1]{0}', space=sflag, size = 0x4, scoped, tag = 'scoped memory for tile.48']
  %s0 = inlined_call_operand.vmem [shape: f32[128], index: 0, kind: input, shape index: {}]
  %s1 = inlined_call_operand.vmem [shape: f32[4,128], index: 1, kind: output, shape index: {}]
  // Predicated region
  $region2: #{tile.48} parent=0 // pred_check
    _
  $region3: #{tile.48} parent=0 // pred_check_branch
    %3 = sbr.rel (0) target = $region5
  $region4: #{tile.48} parent=0 // pred_region
    _
  $region5: #{tile.48} parent=0 // pred_fallthru
    _
  %v4 = vld [vmem:[%s0] ss:$0 sm:$0xff]
  %5 = vst [vmem:[%s1] sm:$0xf] %v4

// kernel: dcgan_generator.10
$region0: #{dcgan_generator.10}
  #allocation0 [shape = 'u32[]', space=smem, size = 0x4, offset = 0x4, fixed_abs, tag = 'smem constant byte address 0x4 - core index']
  #allocation1 [shape = 'u32[72,128]{1,0:T(1,128)}', space=vmem, size = 0x9000, scoped, tag = 'internal scratch']
  %s0 = inlined_call_operand.vmem [shape: f32[32,512], index: 0, kind: input, shape index: {}]
  %s1 = inlined_call_operand.vmem [shape: f32[1,512], index: 1, kind: input, shape index: {}]
  %s2 = inlined_call_operand.vmem [shape: f32[1,512], index: 2, kind: input, shape index: {}]
  %s3 = inlined_call_operand.vmem [shape: bf16[32,512], index: 3, kind: output, shape index: {}]
  %s4 = sld [smem:[#allocation0]]
  $region22: #{dcgan_generator.10} parent=0
    _
  %s6 = ssub.s32 1, %s4
  %s7 = scalar_select 0, %s6, %s4
  // Predicated region
  $region2: #{dcgan_generator.10} parent=0 // pred_check
    _
  $region3: #{dcgan_generator.10} parent=0 // pred_check_branch
    %9 = sbr.rel (0) target = $region5
  $region4: #{dcgan_generator.10} parent=0 // pred_region
    _
  $region5: #{dcgan_generator.10} parent=0 // pred_fallthru
    _
  // Predicated region
  $region6: #{dcgan_generator.10} parent=0 // pred_check
    _
  $region7: #{dcgan_generator.10} parent=0 // pred_check_branch
    %11 = sbr.rel (0) target = $region9
  $region8: #{dcgan_generator.10} parent=0 // pred_region
    _
  $region9: #{dcgan_generator.10} parent=0 // pred_fallthru
    _
  // Predicated region
  $region10: #{dcgan_generator.10} parent=0 // pred_check
    _
  $region11: #{dcgan_generator.10} parent=0 // pred_check_branch
    %13 = sbr.rel (0) target = $region13
  $region12: #{dcgan_generator.10} parent=0 // pred_region
    _
  $region13: #{dcgan_generator.10} parent=0 // pred_fallthru
    _
  %v14 = vld [vmem:[%s0] sm:$0xff]
  %v15 = vld [vmem:[%s0 + $0x8] sm:$0xff]
  %v16 = vld [vmem:[%s0 + $0x10] sm:$0xff]
  %v17 = vld [vmem:[%s0 + $0x18] sm:$0xff]
  %v18 = vld [vmem:[%s0 + $0x20] sm:$0xff]
  %v19 = vld [vmem:[%s0 + $0x28] sm:$0xff]
  %v20 = vld [vmem:[%s0 + $0x30] sm:$0xff]
  %v21 = vld [vmem:[%s0 + $0x38] sm:$0xff]
  %v22 = vld [vmem:[%s0 + $0x40] sm:$0xff]
  %v23 = vld [vmem:[%s0 + $0x48] sm:$0xff]
  %v24 = vld [vmem:[%s0 + $0x50] sm:$0xff]
  %v25 = vld [vmem:[%s0 + $0x58] sm:$0xff]
  %v26 = vld [vmem:[%s0 + $0x60] sm:$0xff]
  %v27 = vld [vmem:[%s0 + $0x68] sm:$0xff]
  %v28 = vld [vmem:[%s0 + $0x70] sm:$0xff]
  %v29 = vld [vmem:[%s0 + $0x78] sm:$0xff]
  %v30 = vld [vmem:[%s1] sm:$0xf]
  %v32 = vperm.slane %v30, 0
  %v33 = vperm.slane %v30, 1
  %v34 = vperm.slane %v30, 2
  %v35 = vperm.slane %v30, 3
  %v40 = vmul.f32 %v14, %v32
  %v41 = vmul.f32 %v15, %v33
  %v42 = vmul.f32 %v16, %v34
  %v43 = vmul.f32 %v17, %v35
  %v44 = vmul.f32 %v18, %v32
  %v45 = vmul.f32 %v19, %v33
  %v46 = vmul.f32 %v20, %v34
  %v47 = vmul.f32 %v21, %v35
  %v48 = vmul.f32 %v22, %v32
  %v49 = vmul.f32 %v23, %v33
  %v50 = vmul.f32 %v24, %v34
  %v51 = vmul.f32 %v25, %v35
  %v52 = vmul.f32 %v26, %v32
  %v53 = vmul.f32 %v27, %v33
  %v54 = vmul.f32 %v28, %v34
  %v55 = vmul.f32 %v29, %v35
  %v56 = vld [vmem:[%s2] sm:$0xf]
  %v58 = vperm.slane %v56, 0
  %v59 = vperm.slane %v56, 1
  %v60 = vperm.slane %v56, 2
  %v61 = vperm.slane %v56, 3
  %v66 = vadd.f32 %v40, %v58
  %v67 = vadd.f32 %v41, %v59
  %v68 = vadd.f32 %v42, %v60
  %v69 = vadd.f32 %v43, %v61
  %v70 = vadd.f32 %v44, %v58
  %v71 = vadd.f32 %v45, %v59
  %v72 = vadd.f32 %v46, %v60
  %v73 = vadd.f32 %v47, %v61
  %v74 = vadd.f32 %v48, %v58
  %v75 = vadd.f32 %v49, %v59
  %v76 = vadd.f32 %v50, %v60
  %v77 = vadd.f32 %v51, %v61
  %v78 = vadd.f32 %v52, %v58
  %v79 = vadd.f32 %v53, %v59
  %v80 = vadd.f32 %v54, %v60
  %v81 = vadd.f32 %v55, %v61
  %v82 = vmax.f32 %v66, 0.0
  %v83 = vmax.f32 %v67, 0.0
  %v84 = vmax.f32 %v68, 0.0
  %v85 = vmax.f32 %v69, 0.0
  %v86 = vmax.f32 %v70, 0.0
  %v87 = vmax.f32 %v71, 0.0
  %v88 = vmax.f32 %v72, 0.0
  %v89 = vmax.f32 %v73, 0.0
  %v90 = vmax.f32 %v74, 0.0
  %v91 = vmax.f32 %v75, 0.0
  %v92 = vmax.f32 %v76, 0.0
  %v93 = vmax.f32 %v77, 0.0
  %v94 = vmax.f32 %v78, 0.0
  %v95 = vmax.f32 %v79, 0.0
  %v96 = vmax.f32 %v80, 0.0
  %v97 = vmax.f32 %v81, 0.0
  %v98 = vpack.c.bf16 %v83, %v82
  %v99 = vpack.c.bf16 %v85, %v84
  %v100 = vpack.c.bf16 %v87, %v86
  %v101 = vpack.c.bf16 %v89, %v88
  %v102 = vpack.c.bf16 %v91, %v90
  %v103 = vpack.c.bf16 %v93, %v92
  %v104 = vpack.c.bf16 %v95, %v94
  %v105 = vpack.c.bf16 %v97, %v96
  %106 = vst [vmem:[%s3] sm:$0xff] %v98
  %107 = vst [vmem:[%s3 + $0x8] sm:$0xff] %v99
  %108 = vst [vmem:[%s3 + $0x10] sm:$0xff] %v100
  %109 = vst [vmem:[%s3 + $0x18] sm:$0xff] %v101
  %110 = vst [vmem:[%s3 + $0x20] sm:$0xff] %v102
  %111 = vst [vmem:[%s3 + $0x28] sm:$0xff] %v103
  %112 = vst [vmem:[%s3 + $0x30] sm:$0xff] %v104
  %113 = vst [vmem:[%s3 + $0x38] sm:$0xff] %v105
  // Predicated region
  $region14: #{dcgan_generator.10} parent=0 // pred_check
    _
  $region15: #{dcgan_generator.10} parent=0 // pred_check_branch
    %115 = sbr.rel (0) target = $region17
  $region16: #{dcgan_generator.10} parent=0 // pred_region
    _
  $region17: #{dcgan_generator.10} parent=0 // pred_fallthru
    _
  // Predicated region
  $region18: #{dcgan_generator.10} parent=0 // pred_check
    _
  $region19: #{dcgan_generator.10} parent=0 // pred_check_branch
    %117 = sbr.rel (0) target = $region21
  $region20: #{dcgan_generator.10} parent=0 // pred_region
    _
  $region21: #{dcgan_generator.10} parent=0 // pred_fallthru
    _

// kernel: squeeze.10
$region0: #{squeeze.10}
  %s0 = inlined_call_operand.vmem [shape: f32[256], index: 0, kind: input, shape index: {}]
  %s1 = inlined_call_operand.vmem [shape: f32[4,64], index: 1, kind: output, shape index: {}]
  $region1: #{squeeze.10} parent=0
    #allocation0 [shape = 'u8[4096]{0}', space=vmem, size = 0x1000, scoped, tag = 'scoped mem for output reshape']
    #allocation1 [shape = 'u8[4096]{0}', space=vmem, size = 0x1000, scoped, tag = 'scoped mem for input reshape']
    %s3 = ssub.s32 4, 1
    %v4 = vld [vmem:[%s0] sm:%s3]
    %5 = vst [vmem:[#allocation1] sm:%s3] %v4
    %v6 = vld [vmem:[#allocation1] sm:$0x3]
    %vm7 = vcmask 523264
    %8 = vst.msk [vmem:[#allocation0] ss:$2 sm:$0x3] %vm7, %v6
    %v9 = vld [vmem:[#allocation1] sm:$0x3]
    %10 = vrot.lane.b32.xlu0 %v9, 64
    %v11 = vpop.permute.xlu0 %10
    %vm12 = vcmask 523264
    %s13 = scalar_lea.vmem [#allocation0], 1
    %14 = vst.msk [vmem:[%s13] ss:$2 sm:$0x3] %vm12, %v11
    %s16 = ssub.s32 16, 1
    %v17 = vld [vmem:[#allocation0] sm:%s16]
    %s19 = ssub.s32 16, 1
    %20 = vst [vmem:[%s1] sm:%s19] %v17

// kernel: tile.58
$region0: #{tile.58}
  #allocation0 [shape = 's32[1]{0}', space=sflag, size = 0x4, scoped, tag = 'scoped memory for tile.58']
  %s0 = inlined_call_operand.vmem [shape: f32[64], index: 0, kind: input, shape index: {}]
  %s1 = inlined_call_operand.vmem [shape: f32[4,64], index: 1, kind: output, shape index: {}]
  // Predicated region
  $region2: #{tile.58} parent=0 // pred_check
    _
  $region3: #{tile.58} parent=0 // pred_check_branch
    %3 = sbr.rel (0) target = $region5
  $region4: #{tile.58} parent=0 // pred_region
    _
  $region5: #{tile.58} parent=0 // pred_fallthru
    _
  %v4 = vld [vmem:[%s0] ss:$0 sm:$0xff]
  %5 = vst [vmem:[%s1] sm:$0xf] %v4

// kernel: dcgan_generator.12
$region0: #{dcgan_generator.12}
  #allocation0 [shape = 'u32[]', space=smem, size = 0x4, offset = 0x4, fixed_abs, tag = 'smem constant byte address 0x4 - core index']
  #allocation1 [shape = 'u32[72,128]{1,0:T(1,128)}', space=vmem, size = 0x9000, scoped, tag = 'internal scratch']
  %s0 = inlined_call_operand.vmem [shape: f32[128,256], index: 0, kind: input, shape index: {}]
  %s1 = inlined_call_operand.vmem [shape: f32[1,256], index: 1, kind: input, shape index: {}]
  %s2 = inlined_call_operand.vmem [shape: f32[1,256], index: 2, kind: input, shape index: {}]
  %s3 = inlined_call_operand.vmem [shape: bf16[128,256], index: 3, kind: output, shape index: {}]
  %s4 = sld [smem:[#allocation0]]
  $region22: #{dcgan_generator.12} parent=0
    _
  %s6 = ssub.s32 1, %s4
  %s7 = scalar_select 0, %s6, %s4
  // Predicated region
  $region2: #{dcgan_generator.12} parent=0 // pred_check
    _
  $region3: #{dcgan_generator.12} parent=0 // pred_check_branch
    %9 = sbr.rel (0) target = $region5
  $region4: #{dcgan_generator.12} parent=0 // pred_region
    _
  $region5: #{dcgan_generator.12} parent=0 // pred_fallthru
    _
  // Predicated region
  $region6: #{dcgan_generator.12} parent=0 // pred_check
    _
  $region7: #{dcgan_generator.12} parent=0 // pred_check_branch
    %11 = sbr.rel (0) target = $region9
  $region8: #{dcgan_generator.12} parent=0 // pred_region
    _
  $region9: #{dcgan_generator.12} parent=0 // pred_fallthru
    _
  // Predicated region
  $region10: #{dcgan_generator.12} parent=0 // pred_check
    _
  $region11: #{dcgan_generator.12} parent=0 // pred_check_branch
    %13 = sbr.rel (0) target = $region13
  $region12: #{dcgan_generator.12} parent=0 // pred_region
    _
  $region13: #{dcgan_generator.12} parent=0 // pred_fallthru
    _
  %v14 = vld [vmem:[%s0] sm:$0xff]
  %v15 = vld [vmem:[%s0 + $0x8] sm:$0xff]
  %v16 = vld [vmem:[%s0 + $0x10] sm:$0xff]
  %v17 = vld [vmem:[%s0 + $0x18] sm:$0xff]
  %v18 = vld [vmem:[%s0 + $0x20] sm:$0xff]
  %v19 = vld [vmem:[%s0 + $0x28] sm:$0xff]
  %v20 = vld [vmem:[%s0 + $0x30] sm:$0xff]
  %v21 = vld [vmem:[%s0 + $0x38] sm:$0xff]
  %v22 = vld [vmem:[%s0 + $0x40] sm:$0xff]
  %v23 = vld [vmem:[%s0 + $0x48] sm:$0xff]
  %v24 = vld [vmem:[%s0 + $0x50] sm:$0xff]
  %v25 = vld [vmem:[%s0 + $0x58] sm:$0xff]
  %v26 = vld [vmem:[%s0 + $0x60] sm:$0xff]
  %v27 = vld [vmem:[%s0 + $0x68] sm:$0xff]
  %v28 = vld [vmem:[%s0 + $0x70] sm:$0xff]
  %v29 = vld [vmem:[%s0 + $0x78] sm:$0xff]
  %v30 = vld [vmem:[%s0 + $0x80] sm:$0xff]
  %v31 = vld [vmem:[%s0 + $0x88] sm:$0xff]
  %v32 = vld [vmem:[%s0 + $0x90] sm:$0xff]
  %v33 = vld [vmem:[%s0 + $0x98] sm:$0xff]
  %v34 = vld [vmem:[%s0 + $0xa0] sm:$0xff]
  %v35 = vld [vmem:[%s0 + $0xa8] sm:$0xff]
  %v36 = vld [vmem:[%s0 + $0xb0] sm:$0xff]
  %v37 = vld [vmem:[%s0 + $0xb8] sm:$0xff]
  %v38 = vld [vmem:[%s0 + $0xc0] sm:$0xff]
  %v39 = vld [vmem:[%s0 + $0xc8] sm:$0xff]
  %v40 = vld [vmem:[%s0 + $0xd0] sm:$0xff]
  %v41 = vld [vmem:[%s0 + $0xd8] sm:$0xff]
  %v42 = vld [vmem:[%s0 + $0xe0] sm:$0xff]
  %v43 = vld [vmem:[%s0 + $0xe8] sm:$0xff]
  %v44 = vld [vmem:[%s0 + $0xf0] sm:$0xff]
  %v45 = vld [vmem:[%s0 + $0xf8] sm:$0xff]
  %v46 = vld [vmem:[%s1] sm:$0x3]
  %v48 = vperm.slane %v46, 0
  %v49 = vperm.slane %v46, 1
  %v52 = vmul.f32 %v14, %v48
  %v53 = vmul.f32 %v15, %v49
  %v54 = vmul.f32 %v16, %v48
  %v55 = vmul.f32 %v17, %v49
  %v56 = vmul.f32 %v18, %v48
  %v57 = vmul.f32 %v19, %v49
  %v58 = vmul.f32 %v20, %v48
  %v59 = vmul.f32 %v21, %v49
  %v60 = vmul.f32 %v22, %v48
  %v61 = vmul.f32 %v23, %v49
  %v62 = vmul.f32 %v24, %v48
  %v63 = vmul.f32 %v25, %v49
  %v64 = vmul.f32 %v26, %v48
  %v65 = vmul.f32 %v27, %v49
  %v66 = vmul.f32 %v28, %v48
  %v67 = vmul.f32 %v29, %v49
  %v68 = vmul.f32 %v30, %v48
  %v69 = vmul.f32 %v31, %v49
  %v70 = vmul.f32 %v32, %v48
  %v71 = vmul.f32 %v33, %v49
  %v72 = vmul.f32 %v34, %v48
  %v73 = vmul.f32 %v35, %v49
  %v74 = vmul.f32 %v36, %v48
  %v75 = vmul.f32 %v37, %v49
  %v76 = vmul.f32 %v38, %v48
  %v77 = vmul.f32 %v39, %v49
  %v78 = vmul.f32 %v40, %v48
  %v79 = vmul.f32 %v41, %v49
  %v80 = vmul.f32 %v42, %v48
  %v81 = vmul.f32 %v43, %v49
  %v82 = vmul.f32 %v44, %v48
  %v83 = vmul.f32 %v45, %v49
  %v84 = vld [vmem:[%s2] sm:$0x3]
  %v86 = vperm.slane %v84, 0
  %v87 = vperm.slane %v84, 1
  %v90 = vadd.f32 %v52, %v86
  %v91 = vadd.f32 %v53, %v87
  %v92 = vadd.f32 %v54, %v86
  %v93 = vadd.f32 %v55, %v87
  %v94 = vadd.f32 %v56, %v86
  %v95 = vadd.f32 %v57, %v87
  %v96 = vadd.f32 %v58, %v86
  %v97 = vadd.f32 %v59, %v87
  %v98 = vadd.f32 %v60, %v86
  %v99 = vadd.f32 %v61, %v87
  %v100 = vadd.f32 %v62, %v86
  %v101 = vadd.f32 %v63, %v87
  %v102 = vadd.f32 %v64, %v86
  %v103 = vadd.f32 %v65, %v87
  %v104 = vadd.f32 %v66, %v86
  %v105 = vadd.f32 %v67, %v87
  %v106 = vadd.f32 %v68, %v86
  %v107 = vadd.f32 %v69, %v87
  %v108 = vadd.f32 %v70, %v86
  %v109 = vadd.f32 %v71, %v87
  %v110 = vadd.f32 %v72, %v86
  %v111 = vadd.f32 %v73, %v87
  %v112 = vadd.f32 %v74, %v86
  %v113 = vadd.f32 %v75, %v87
  %v114 = vadd.f32 %v76, %v86
  %v115 = vadd.f32 %v77, %v87
  %v116 = vadd.f32 %v78, %v86
  %v117 = vadd.f32 %v79, %v87
  %v118 = vadd.f32 %v80, %v86
  %v119 = vadd.f32 %v81, %v87
  %v120 = vadd.f32 %v82, %v86
  %v121 = vadd.f32 %v83, %v87
  %v122 = vmax.f32 %v90, 0.0
  %v123 = vmax.f32 %v91, 0.0
  %v124 = vmax.f32 %v92, 0.0
  %v125 = vmax.f32 %v93, 0.0
  %v126 = vmax.f32 %v94, 0.0
  %v127 = vmax.f32 %v95, 0.0
  %v128 = vmax.f32 %v96, 0.0
  %v129 = vmax.f32 %v97, 0.0
  %v130 = vmax.f32 %v98, 0.0
  %v131 = vmax.f32 %v99, 0.0
  %v132 = vmax.f32 %v100, 0.0
  %v133 = vmax.f32 %v101, 0.0
  %v134 = vmax.f32 %v102, 0.0
  %v135 = vmax.f32 %v103, 0.0
  %v136 = vmax.f32 %v104, 0.0
  %v137 = vmax.f32 %v105, 0.0
  %v138 = vmax.f32 %v106, 0.0
  %v139 = vmax.f32 %v107, 0.0
  %v140 = vmax.f32 %v108, 0.0
  %v141 = vmax.f32 %v109, 0.0
  %v142 = vmax.f32 %v110, 0.0
  %v143 = vmax.f32 %v111, 0.0
  %v144 = vmax.f32 %v112, 0.0
  %v145 = vmax.f32 %v113, 0.0
  %v146 = vmax.f32 %v114, 0.0
  %v147 = vmax.f32 %v115, 0.0
  %v148 = vmax.f32 %v116, 0.0
  %v149 = vmax.f32 %v117, 0.0
  %v150 = vmax.f32 %v118, 0.0
  %v151 = vmax.f32 %v119, 0.0
  %v152 = vmax.f32 %v120, 0.0
  %v153 = vmax.f32 %v121, 0.0
  %v154 = vpack.c.bf16 %v123, %v122
  %v155 = vpack.c.bf16 %v125, %v124
  %v156 = vpack.c.bf16 %v127, %v126
  %v157 = vpack.c.bf16 %v129, %v128
  %v158 = vpack.c.bf16 %v131, %v130
  %v159 = vpack.c.bf16 %v133, %v132
  %v160 = vpack.c.bf16 %v135, %v134
  %v161 = vpack.c.bf16 %v137, %v136
  %v162 = vpack.c.bf16 %v139, %v138
  %v163 = vpack.c.bf16 %v141, %v140
  %v164 = vpack.c.bf16 %v143, %v142
  %v165 = vpack.c.bf16 %v145, %v144
  %v166 = vpack.c.bf16 %v147, %v146
  %v167 = vpack.c.bf16 %v149, %v148
  %v168 = vpack.c.bf16 %v151, %v150
  %v169 = vpack.c.bf16 %v153, %v152
  %170 = vst [vmem:[%s3] sm:$0xff] %v154
  %171 = vst [vmem:[%s3 + $0x8] sm:$0xff] %v155
  %172 = vst [vmem:[%s3 + $0x10] sm:$0xff] %v156
  %173 = vst [vmem:[%s3 + $0x18] sm:$0xff] %v157
  %174 = vst [vmem:[%s3 + $0x20] sm:$0xff] %v158
  %175 = vst [vmem:[%s3 + $0x28] sm:$0xff] %v159
  %176 = vst [vmem:[%s3 + $0x30] sm:$0xff] %v160
  %177 = vst [vmem:[%s3 + $0x38] sm:$0xff] %v161
  %178 = vst [vmem:[%s3 + $0x40] sm:$0xff] %v162
  %179 = vst [vmem:[%s3 + $0x48] sm:$0xff] %v163
  %180 = vst [vmem:[%s3 + $0x50] sm:$0xff] %v164
  %181 = vst [vmem:[%s3 + $0x58] sm:$0xff] %v165
  %182 = vst [vmem:[%s3 + $0x60] sm:$0xff] %v166
  %183 = vst [vmem:[%s3 + $0x68] sm:$0xff] %v167
  %184 = vst [vmem:[%s3 + $0x70] sm:$0xff] %v168
  %185 = vst [vmem:[%s3 + $0x78] sm:$0xff] %v169
  // Predicated region
  $region14: #{dcgan_generator.12} parent=0 // pred_check
    _
  $region15: #{dcgan_generator.12} parent=0 // pred_check_branch
    %187 = sbr.rel (0) target = $region17
  $region16: #{dcgan_generator.12} parent=0 // pred_region
    _
  $region17: #{dcgan_generator.12} parent=0 // pred_fallthru
    _
  // Predicated region
  $region18: #{dcgan_generator.12} parent=0 // pred_check
    _
  $region19: #{dcgan_generator.12} parent=0 // pred_check_branch
    %189 = sbr.rel (0) target = $region21
  $region20: #{dcgan_generator.12} parent=0 // pred_region
    _
  $region21: #{dcgan_generator.12} parent=0 // pred_fallthru
    _

// kernel: dcgan_generator.11
$region0: #{dcgan_generator.11}
  #allocation0 [shape = 'u32[]', space=smem, size = 0x4, offset = 0x4, fixed_abs, tag = 'smem constant byte address 0x4 - core index']
  #allocation1 [shape = 'u32[72,128]{1,0:T(1,128)}', space=vmem, size = 0x9000, scoped, tag = 'internal scratch']
  #allocation2 [shape = 'f32[1,256]{1,0:T(1,128)}', space=vmem, size = 0x400, scoped, tag = 'scratch operand']
  #allocation3 [shape = 'f32[1,256]{1,0:T(1,128)}', space=vmem, size = 0x400, scoped, tag = 'scratch operand']
  %s0 = inlined_call_operand.vmem [shape: bf16[128,1152], index: 0, kind: input, shape index: {}]
  %s1 = inlined_call_operand.vmem [shape: bf16[1152,256], index: 1, kind: input, shape index: {}]
  %s2 = inlined_call_operand.vmem [shape: f32[128,256], index: 2, kind: output, shape index: {0}]
  %s3 = inlined_call_operand.vmem [shape: f32[1,256], index: 3, kind: output, shape index: {1}]
  %s4 = inlined_call_operand.vmem [shape: f32[1,256], index: 4, kind: output, shape index: {2}]
  %5 = xla_tuple %s2, %s3, %s4
  %s6 = sld [smem:[#allocation0]]
  $region42: #{dcgan_generator.11} parent=0
    _
  %s8 = ssub.s32 1, %s6
  %s9 = scalar_select 0, %s8, %s6
  // Predicated region
  $region2: #{dcgan_generator.11} parent=0 // pred_check
    _
  $region3: #{dcgan_generator.11} parent=0 // pred_check_branch
    %11 = sbr.rel (0) target = $region5
  $region4: #{dcgan_generator.11} parent=0 // pred_region
    _
  $region5: #{dcgan_generator.11} parent=0 // pred_fallthru
    _
  // Predicated region
  $region6: #{dcgan_generator.11} parent=0 // pred_check
    _
  $region7: #{dcgan_generator.11} parent=0 // pred_check_branch
    %13 = sbr.rel (0) target = $region9
  $region8: #{dcgan_generator.11} parent=0 // pred_region
    _
  $region9: #{dcgan_generator.11} parent=0 // pred_fallthru
    _
  %v14 = vld [vmem:[%s0] sm:$0xff]
  %v15 = vld [vmem:[%s0 + $0x8] sm:$0xff]
  %v16 = vld [vmem:[%s0 + $0x10] sm:$0xff]
  %v17 = vld [vmem:[%s0 + $0x18] sm:$0xff]
  %v18 = vld [vmem:[%s0 + $0x20] sm:$0xf]
  %v19 = vld [vmem:[%s0 + $0x24] sm:$0xff]
  %v20 = vld [vmem:[%s0 + $0x2c] sm:$0xff]
  %v21 = vld [vmem:[%s0 + $0x34] sm:$0xff]
  %v22 = vld [vmem:[%s0 + $0x3c] sm:$0xff]
  %v23 = vld [vmem:[%s0 + $0x44] sm:$0xf]
  %v24 = vld [vmem:[%s0 + $0x48] sm:$0xff]
  %v25 = vld [vmem:[%s0 + $0x50] sm:$0xff]
  %v26 = vld [vmem:[%s0 + $0x58] sm:$0xff]
  %v27 = vld [vmem:[%s0 + $0x60] sm:$0xff]
  %v28 = vld [vmem:[%s0 + $0x68] sm:$0xf]
  %v29 = vld [vmem:[%s0 + $0x6c] sm:$0xff]
  %v30 = vld [vmem:[%s0 + $0x74] sm:$0xff]
  %v31 = vld [vmem:[%s0 + $0x7c] sm:$0xff]
  %v32 = vld [vmem:[%s0 + $0x84] sm:$0xff]
  %v33 = vld [vmem:[%s0 + $0x8c] sm:$0xf]
  %v34 = vld [vmem:[%s0 + $0x90] sm:$0xff]
  %v35 = vld [vmem:[%s0 + $0x98] sm:$0xff]
  %v36 = vld [vmem:[%s0 + $0xa0] sm:$0xff]
  %v37 = vld [vmem:[%s0 + $0xa8] sm:$0xff]
  %v38 = vld [vmem:[%s0 + $0xb0] sm:$0xf]
  %v39 = vld [vmem:[%s0 + $0xb4] sm:$0xff]
  %v40 = vld [vmem:[%s0 + $0xbc] sm:$0xff]
  %v41 = vld [vmem:[%s0 + $0xc4] sm:$0xff]
  %v42 = vld [vmem:[%s0 + $0xcc] sm:$0xff]
  %v43 = vld [vmem:[%s0 + $0xd4] sm:$0xf]
  %v44 = vld [vmem:[%s0 + $0xd8] sm:$0xff]
  %v45 = vld [vmem:[%s0 + $0xe0] sm:$0xff]
  %v46 = vld [vmem:[%s0 + $0xe8] sm:$0xff]
  %v47 = vld [vmem:[%s0 + $0xf0] sm:$0xff]
  %v48 = vld [vmem:[%s0 + $0xf8] sm:$0xf]
  %v49 = vld [vmem:[%s0 + $0xfc] sm:$0xff]
  %v50 = vld [vmem:[%s0 + $0x104] sm:$0xff]
  %v51 = vld [vmem:[%s0 + $0x10c] sm:$0xff]
  %v52 = vld [vmem:[%s0 + $0x114] sm:$0xff]
  %v53 = vld [vmem:[%s0 + $0x11c] sm:$0xf]
  %v54 = vld [vmem:[%s0 + $0x120] sm:$0xff]
  %v55 = vld [vmem:[%s0 + $0x128] sm:$0xff]
  %v56 = vld [vmem:[%s0 + $0x130] sm:$0xff]
  %v57 = vld [vmem:[%s0 + $0x138] sm:$0xff]
  %v58 = vld [vmem:[%s0 + $0x140] sm:$0xf]
  %v59 = vld [vmem:[%s0 + $0x144] sm:$0xff]
  %v60 = vld [vmem:[%s0 + $0x14c] sm:$0xff]
  %v61 = vld [vmem:[%s0 + $0x154] sm:$0xff]
  %v62 = vld [vmem:[%s0 + $0x15c] sm:$0xff]
  %v63 = vld [vmem:[%s0 + $0x164] sm:$0xf]
  %v64 = vld [vmem:[%s0 + $0x168] sm:$0xff]
  %v65 = vld [vmem:[%s0 + $0x170] sm:$0xff]
  %v66 = vld [vmem:[%s0 + $0x178] sm:$0xff]
  %v67 = vld [vmem:[%s0 + $0x180] sm:$0xff]
  %v68 = vld [vmem:[%s0 + $0x188] sm:$0xf]
  %v69 = vld [vmem:[%s0 + $0x18c] sm:$0xff]
  %v70 = vld [vmem:[%s0 + $0x194] sm:$0xff]
  %v71 = vld [vmem:[%s0 + $0x19c] sm:$0xff]
  %v72 = vld [vmem:[%s0 + $0x1a4] sm:$0xff]
  %v73 = vld [vmem:[%s0 + $0x1ac] sm:$0xf]
  %v74 = vld [vmem:[%s0 + $0x1b0] sm:$0xff]
  %v75 = vld [vmem:[%s0 + $0x1b8] sm:$0xff]
  %v76 = vld [vmem:[%s0 + $0x1c0] sm:$0xff]
  %v77 = vld [vmem:[%s0 + $0x1c8] sm:$0xff]
  %v78 = vld [vmem:[%s0 + $0x1d0] sm:$0xf]
  %v79 = vld [vmem:[%s0 + $0x1d4] sm:$0xff]
  %v80 = vld [vmem:[%s0 + $0x1dc] sm:$0xff]
  %v81 = vld [vmem:[%s0 + $0x1e4] sm:$0xff]
  %v82 = vld [vmem:[%s0 + $0x1ec] sm:$0xff]
  %v83 = vld [vmem:[%s0 + $0x1f4] sm:$0xf]
  %v84 = vld [vmem:[%s0 + $0x1f8] sm:$0xff]
  %v85 = vld [vmem:[%s0 + $0x200] sm:$0xff]
  %v86 = vld [vmem:[%s0 + $0x208] sm:$0xff]
  %v87 = vld [vmem:[%s0 + $0x210] sm:$0xff]
  %v88 = vld [vmem:[%s0 + $0x218] sm:$0xf]
  %v89 = vld [vmem:[%s0 + $0x21c] sm:$0xff]
  %v90 = vld [vmem:[%s0 + $0x224] sm:$0xff]
  %v91 = vld [vmem:[%s0 + $0x22c] sm:$0xff]
  %v92 = vld [vmem:[%s0 + $0x234] sm:$0xff]
  %v93 = vld [vmem:[%s0 + $0x23c] sm:$0xf]
  %v94 = vld [vmem:[%s1] sm:$0xff]
  %v95 = vld [vmem:[%s1 + $0x8] sm:$0xff]
  %v96 = vld [vmem:[%s1 + $0x10] sm:$0xff]
  %v97 = vld [vmem:[%s1 + $0x18] sm:$0xff]
  %v98 = vld [vmem:[%s1 + $0x20] sm:$0xff]
  %v99 = vld [vmem:[%s1 + $0x28] sm:$0xff]
  %v100 = vld [vmem:[%s1 + $0x30] sm:$0xff]
  %v101 = vld [vmem:[%s1 + $0x38] sm:$0xff]
  %v102 = vld [vmem:[%s1 + $0x40] sm:$0xff]
  %v103 = vld [vmem:[%s1 + $0x48] sm:$0xff]
  %v104 = vld [vmem:[%s1 + $0x50] sm:$0xff]
  %v105 = vld [vmem:[%s1 + $0x58] sm:$0xff]
  %v106 = vld [vmem:[%s1 + $0x60] sm:$0xff]
  %v107 = vld [vmem:[%s1 + $0x68] sm:$0xff]
  %v108 = vld [vmem:[%s1 + $0x70] sm:$0xff]
  %v109 = vld [vmem:[%s1 + $0x78] sm:$0xff]
  %v110 = vld [vmem:[%s1 + $0x80] sm:$0xff]
  %v111 = vld [vmem:[%s1 + $0x88] sm:$0xff]
  %v112 = vld [vmem:[%s1 + $0x90] sm:$0xff]
  %v113 = vld [vmem:[%s1 + $0x98] sm:$0xff]
  %v114 = vld [vmem:[%s1 + $0xa0] sm:$0xff]
  %v115 = vld [vmem:[%s1 + $0xa8] sm:$0xff]
  %v116 = vld [vmem:[%s1 + $0xb0] sm:$0xff]
  %v117 = vld [vmem:[%s1 + $0xb8] sm:$0xff]
  %v118 = vld [vmem:[%s1 + $0xc0] sm:$0xff]
  %v119 = vld [vmem:[%s1 + $0xc8] sm:$0xff]
  %v120 = vld [vmem:[%s1 + $0xd0] sm:$0xff]
  %v121 = vld [vmem:[%s1 + $0xd8] sm:$0xff]
  %v122 = vld [vmem:[%s1 + $0xe0] sm:$0xff]
  %v123 = vld [vmem:[%s1 + $0xe8] sm:$0xff]
  %v124 = vld [vmem:[%s1 + $0xf0] sm:$0xff]
  %v125 = vld [vmem:[%s1 + $0xf8] sm:$0xff]
  %v126 = vld [vmem:[%s1 + $0x100] sm:$0xff]
  %v127 = vld [vmem:[%s1 + $0x108] sm:$0xff]
  %v128 = vld [vmem:[%s1 + $0x110] sm:$0xff]
  %v129 = vld [vmem:[%s1 + $0x118] sm:$0xff]
  %v130 = vld [vmem:[%s1 + $0x120] sm:$0xff]
  %v131 = vld [vmem:[%s1 + $0x128] sm:$0xff]
  %v132 = vld [vmem:[%s1 + $0x130] sm:$0xff]
  %v133 = vld [vmem:[%s1 + $0x138] sm:$0xff]
  %v134 = vld [vmem:[%s1 + $0x140] sm:$0xff]
  %v135 = vld [vmem:[%s1 + $0x148] sm:$0xff]
  %v136 = vld [vmem:[%s1 + $0x150] sm:$0xff]
  %v137 = vld [vmem:[%s1 + $0x158] sm:$0xff]
  %v138 = vld [vmem:[%s1 + $0x160] sm:$0xff]
  %v139 = vld [vmem:[%s1 + $0x168] sm:$0xff]
  %v140 = vld [vmem:[%s1 + $0x170] sm:$0xff]
  %v141 = vld [vmem:[%s1 + $0x178] sm:$0xff]
  %v142 = vld [vmem:[%s1 + $0x180] sm:$0xff]
  %v143 = vld [vmem:[%s1 + $0x188] sm:$0xff]
  %v144 = vld [vmem:[%s1 + $0x190] sm:$0xff]
  %v145 = vld [vmem:[%s1 + $0x198] sm:$0xff]
  %v146 = vld [vmem:[%s1 + $0x1a0] sm:$0xff]
  %v147 = vld [vmem:[%s1 + $0x1a8] sm:$0xff]
  %v148 = vld [vmem:[%s1 + $0x1b0] sm:$0xff]
  %v149 = vld [vmem:[%s1 + $0x1b8] sm:$0xff]
  %v150 = vld [vmem:[%s1 + $0x1c0] sm:$0xff]
  %v151 = vld [vmem:[%s1 + $0x1c8] sm:$0xff]
  %v152 = vld [vmem:[%s1 + $0x1d0] sm:$0xff]
  %v153 = vld [vmem:[%s1 + $0x1d8] sm:$0xff]
  %v154 = vld [vmem:[%s1 + $0x1e0] sm:$0xff]
  %v155 = vld [vmem:[%s1 + $0x1e8] sm:$0xff]
  %v156 = vld [vmem:[%s1 + $0x1f0] sm:$0xff]
  %v157 = vld [vmem:[%s1 + $0x1f8] sm:$0xff]
  %v158 = vld [vmem:[%s1 + $0x200] sm:$0xff]
  %v159 = vld [vmem:[%s1 + $0x208] sm:$0xff]
  %v160 = vld [vmem:[%s1 + $0x210] sm:$0xff]
  %v161 = vld [vmem:[%s1 + $0x218] sm:$0xff]
  %v162 = vld [vmem:[%s1 + $0x220] sm:$0xff]
  %v163 = vld [vmem:[%s1 + $0x228] sm:$0xff]
  %v164 = vld [vmem:[%s1 + $0x230] sm:$0xff]
  %v165 = vld [vmem:[%s1 + $0x238] sm:$0xff]
  %v166 = vld [vmem:[%s1 + $0x240] sm:$0xff]
  %v167 = vld [vmem:[%s1 + $0x248] sm:$0xff]
  %v168 = vld [vmem:[%s1 + $0x250] sm:$0xff]
  %v169 = vld [vmem:[%s1 + $0x258] sm:$0xff]
  %v170 = vld [vmem:[%s1 + $0x260] sm:$0xff]
  %v171 = vld [vmem:[%s1 + $0x268] sm:$0xff]
  %v172 = vld [vmem:[%s1 + $0x270] sm:$0xff]
  %v173 = vld [vmem:[%s1 + $0x278] sm:$0xff]
  %v174 = vld [vmem:[%s1 + $0x280] sm:$0xff]
  %v175 = vld [vmem:[%s1 + $0x288] sm:$0xff]
  %v176 = vld [vmem:[%s1 + $0x290] sm:$0xff]
  %v177 = vld [vmem:[%s1 + $0x298] sm:$0xff]
  %v178 = vld [vmem:[%s1 + $0x2a0] sm:$0xff]
  %v179 = vld [vmem:[%s1 + $0x2a8] sm:$0xff]
  %v180 = vld [vmem:[%s1 + $0x2b0] sm:$0xff]
  %v181 = vld [vmem:[%s1 + $0x2b8] sm:$0xff]
  %v182 = vld [vmem:[%s1 + $0x2c0] sm:$0xff]
  %v183 = vld [vmem:[%s1 + $0x2c8] sm:$0xff]
  %v184 = vld [vmem:[%s1 + $0x2d0] sm:$0xff]
  %v185 = vld [vmem:[%s1 + $0x2d8] sm:$0xff]
  %v186 = vld [vmem:[%s1 + $0x2e0] sm:$0xff]
  %v187 = vld [vmem:[%s1 + $0x2e8] sm:$0xff]
  %v188 = vld [vmem:[%s1 + $0x2f0] sm:$0xff]
  %v189 = vld [vmem:[%s1 + $0x2f8] sm:$0xff]
  %v190 = vld [vmem:[%s1 + $0x300] sm:$0xff]
  %v191 = vld [vmem:[%s1 + $0x308] sm:$0xff]
  %v192 = vld [vmem:[%s1 + $0x310] sm:$0xff]
  %v193 = vld [vmem:[%s1 + $0x318] sm:$0xff]
  %v194 = vld [vmem:[%s1 + $0x320] sm:$0xff]
  %v195 = vld [vmem:[%s1 + $0x328] sm:$0xff]
  %v196 = vld [vmem:[%s1 + $0x330] sm:$0xff]
  %v197 = vld [vmem:[%s1 + $0x338] sm:$0xff]
  %v198 = vld [vmem:[%s1 + $0x340] sm:$0xff]
  %v199 = vld [vmem:[%s1 + $0x348] sm:$0xff]
  %v200 = vld [vmem:[%s1 + $0x350] sm:$0xff]
  %v201 = vld [vmem:[%s1 + $0x358] sm:$0xff]
  %v202 = vld [vmem:[%s1 + $0x360] sm:$0xff]
  %v203 = vld [vmem:[%s1 + $0x368] sm:$0xff]
  %v204 = vld [vmem:[%s1 + $0x370] sm:$0xff]
  %v205 = vld [vmem:[%s1 + $0x378] sm:$0xff]
  %v206 = vld [vmem:[%s1 + $0x380] sm:$0xff]
  %v207 = vld [vmem:[%s1 + $0x388] sm:$0xff]
  %v208 = vld [vmem:[%s1 + $0x390] sm:$0xff]
  %v209 = vld [vmem:[%s1 + $0x398] sm:$0xff]
  %v210 = vld [vmem:[%s1 + $0x3a0] sm:$0xff]
  %v211 = vld [vmem:[%s1 + $0x3a8] sm:$0xff]
  %v212 = vld [vmem:[%s1 + $0x3b0] sm:$0xff]
  %v213 = vld [vmem:[%s1 + $0x3b8] sm:$0xff]
  %v214 = vld [vmem:[%s1 + $0x3c0] sm:$0xff]
  %v215 = vld [vmem:[%s1 + $0x3c8] sm:$0xff]
  %v216 = vld [vmem:[%s1 + $0x3d0] sm:$0xff]
  %v217 = vld [vmem:[%s1 + $0x3d8] sm:$0xff]
  %v218 = vld [vmem:[%s1 + $0x3e0] sm:$0xff]
  %v219 = vld [vmem:[%s1 + $0x3e8] sm:$0xff]
  %v220 = vld [vmem:[%s1 + $0x3f0] sm:$0xff]
  %v221 = vld [vmem:[%s1 + $0x3f8] sm:$0xff]
  %v222 = vld [vmem:[%s1 + $0x400] sm:$0xff]
  %v223 = vld [vmem:[%s1 + $0x408] sm:$0xff]
  %v224 = vld [vmem:[%s1 + $0x410] sm:$0xff]
  %v225 = vld [vmem:[%s1 + $0x418] sm:$0xff]
  %v226 = vld [vmem:[%s1 + $0x420] sm:$0xff]
  %v227 = vld [vmem:[%s1 + $0x428] sm:$0xff]
  %v228 = vld [vmem:[%s1 + $0x430] sm:$0xff]
  %v229 = vld [vmem:[%s1 + $0x438] sm:$0xff]
  %v230 = vld [vmem:[%s1 + $0x440] sm:$0xff]
  %v231 = vld [vmem:[%s1 + $0x448] sm:$0xff]
  %v232 = vld [vmem:[%s1 + $0x450] sm:$0xff]
  %v233 = vld [vmem:[%s1 + $0x458] sm:$0xff]
  %v234 = vld [vmem:[%s1 + $0x460] sm:$0xff]
  %v235 = vld [vmem:[%s1 + $0x468] sm:$0xff]
  %v236 = vld [vmem:[%s1 + $0x470] sm:$0xff]
  %v237 = vld [vmem:[%s1 + $0x478] sm:$0xff]
  %v318 = vunpack.c.l.b16 %v14
  %v319 = vunpack.c.h.b16 %v14
  %v320 = vunpack.c.l.b16 %v15
  %v321 = vunpack.c.h.b16 %v15
  %v322 = vunpack.c.l.b16 %v16
  %v323 = vunpack.c.h.b16 %v16
  %v324 = vunpack.c.l.b16 %v17
  %v325 = vunpack.c.h.b16 %v17
  %v326 = vunpack.c.l.b16 %v18
  %v327 = vunpack.c.l.b16 %v19
  %v328 = vunpack.c.h.b16 %v19
  %v329 = vunpack.c.l.b16 %v20
  %v330 = vunpack.c.h.b16 %v20
  %v331 = vunpack.c.l.b16 %v21
  %v332 = vunpack.c.h.b16 %v21
  %v333 = vunpack.c.l.b16 %v22
  %v334 = vunpack.c.h.b16 %v22
  %v335 = vunpack.c.l.b16 %v23
  %v336 = vunpack.c.l.b16 %v24
  %v337 = vunpack.c.h.b16 %v24
  %v338 = vunpack.c.l.b16 %v25
  %v339 = vunpack.c.h.b16 %v25
  %v340 = vunpack.c.l.b16 %v26
  %v341 = vunpack.c.h.b16 %v26
  %v342 = vunpack.c.l.b16 %v27
  %v343 = vunpack.c.h.b16 %v27
  %v344 = vunpack.c.l.b16 %v28
  %v345 = vunpack.c.l.b16 %v29
  %v346 = vunpack.c.h.b16 %v29
  %v347 = vunpack.c.l.b16 %v30
  %v348 = vunpack.c.h.b16 %v30
  %v349 = vunpack.c.l.b16 %v31
  %v350 = vunpack.c.h.b16 %v31
  %v351 = vunpack.c.l.b16 %v32
  %v352 = vunpack.c.h.b16 %v32
  %v353 = vunpack.c.l.b16 %v33
  %v354 = vunpack.c.l.b16 %v34
  %v355 = vunpack.c.h.b16 %v34
  %v356 = vunpack.c.l.b16 %v35
  %v357 = vunpack.c.h.b16 %v35
  %v358 = vunpack.c.l.b16 %v36
  %v359 = vunpack.c.h.b16 %v36
  %v360 = vunpack.c.l.b16 %v37
  %v361 = vunpack.c.h.b16 %v37
  %v362 = vunpack.c.l.b16 %v38
  %v363 = vunpack.c.l.b16 %v39
  %v364 = vunpack.c.h.b16 %v39
  %v365 = vunpack.c.l.b16 %v40
  %v366 = vunpack.c.h.b16 %v40
  %v367 = vunpack.c.l.b16 %v41
  %v368 = vunpack.c.h.b16 %v41
  %v369 = vunpack.c.l.b16 %v42
  %v370 = vunpack.c.h.b16 %v42
  %v371 = vunpack.c.l.b16 %v43
  %v372 = vunpack.c.l.b16 %v44
  %v373 = vunpack.c.h.b16 %v44
  %v374 = vunpack.c.l.b16 %v45
  %v375 = vunpack.c.h.b16 %v45
  %v376 = vunpack.c.l.b16 %v46
  %v377 = vunpack.c.h.b16 %v46
  %v378 = vunpack.c.l.b16 %v47
  %v379 = vunpack.c.h.b16 %v47
  %v380 = vunpack.c.l.b16 %v48
  %v381 = vunpack.c.l.b16 %v49
  %v382 = vunpack.c.h.b16 %v49
  %v383 = vunpack.c.l.b16 %v50
  %v384 = vunpack.c.h.b16 %v50
  %v385 = vunpack.c.l.b16 %v51
  %v386 = vunpack.c.h.b16 %v51
  %v387 = vunpack.c.l.b16 %v52
  %v388 = vunpack.c.h.b16 %v52
  %v389 = vunpack.c.l.b16 %v53
  %v390 = vunpack.c.l.b16 %v54
  %v391 = vunpack.c.h.b16 %v54
  %v392 = vunpack.c.l.b16 %v55
  %v393 = vunpack.c.h.b16 %v55
  %v394 = vunpack.c.l.b16 %v56
  %v395 = vunpack.c.h.b16 %v56
  %v396 = vunpack.c.l.b16 %v57
  %v397 = vunpack.c.h.b16 %v57
  %v398 = vunpack.c.l.b16 %v58
  %v399 = vunpack.c.l.b16 %v59
  %v400 = vunpack.c.h.b16 %v59
  %v401 = vunpack.c.l.b16 %v60
  %v402 = vunpack.c.h.b16 %v60
  %v403 = vunpack.c.l.b16 %v61
  %v404 = vunpack.c.h.b16 %v61
  %v405 = vunpack.c.l.b16 %v62
  %v406 = vunpack.c.h.b16 %v62
  %v407 = vunpack.c.l.b16 %v63
  %v408 = vunpack.c.l.b16 %v64
  %v409 = vunpack.c.h.b16 %v64
  %v410 = vunpack.c.l.b16 %v65
  %v411 = vunpack.c.h.b16 %v65
  %v412 = vunpack.c.l.b16 %v66
  %v413 = vunpack.c.h.b16 %v66
  %v414 = vunpack.c.l.b16 %v67
  %v415 = vunpack.c.h.b16 %v67
  %v416 = vunpack.c.l.b16 %v68
  %v417 = vunpack.c.l.b16 %v69
  %v418 = vunpack.c.h.b16 %v69
  %v419 = vunpack.c.l.b16 %v70
  %v420 = vunpack.c.h.b16 %v70
  %v421 = vunpack.c.l.b16 %v71
  %v422 = vunpack.c.h.b16 %v71
  %v423 = vunpack.c.l.b16 %v72
  %v424 = vunpack.c.h.b16 %v72
  %v425 = vunpack.c.l.b16 %v73
  %v426 = vunpack.c.l.b16 %v74
  %v427 = vunpack.c.h.b16 %v74
  %v428 = vunpack.c.l.b16 %v75
  %v429 = vunpack.c.h.b16 %v75
  %v430 = vunpack.c.l.b16 %v76
  %v431 = vunpack.c.h.b16 %v76
  %v432 = vunpack.c.l.b16 %v77
  %v433 = vunpack.c.h.b16 %v77
  %v434 = vunpack.c.l.b16 %v78
  %v435 = vunpack.c.l.b16 %v79
  %v436 = vunpack.c.h.b16 %v79
  %v437 = vunpack.c.l.b16 %v80
  %v438 = vunpack.c.h.b16 %v80
  %v439 = vunpack.c.l.b16 %v81
  %v440 = vunpack.c.h.b16 %v81
  %v441 = vunpack.c.l.b16 %v82
  %v442 = vunpack.c.h.b16 %v82
  %v443 = vunpack.c.l.b16 %v83
  %v444 = vunpack.c.l.b16 %v84
  %v445 = vunpack.c.h.b16 %v84
  %v446 = vunpack.c.l.b16 %v85
  %v447 = vunpack.c.h.b16 %v85
  %v448 = vunpack.c.l.b16 %v86
  %v449 = vunpack.c.h.b16 %v86
  %v450 = vunpack.c.l.b16 %v87
  %v451 = vunpack.c.h.b16 %v87
  %v452 = vunpack.c.l.b16 %v88
  %v453 = vunpack.c.l.b16 %v89
  %v454 = vunpack.c.h.b16 %v89
  %v455 = vunpack.c.l.b16 %v90
  %v456 = vunpack.c.h.b16 %v90
  %v457 = vunpack.c.l.b16 %v91
  %v458 = vunpack.c.h.b16 %v91
  %v459 = vunpack.c.l.b16 %v92
  %v460 = vunpack.c.h.b16 %v92
  %v461 = vunpack.c.l.b16 %v93
  %v462 = vpack.c.b16 %v327, %v318
  %v463 = vpack.c.b16 %v328, %v319
  %v464 = vpack.c.b16 %v329, %v320
  %v465 = vpack.c.b16 %v330, %v321
  %v466 = vpack.c.b16 %v331, %v322
  %v467 = vpack.c.b16 %v332, %v323
  %v468 = vpack.c.b16 %v333, %v324
  %v469 = vpack.c.b16 %v334, %v325
  %v470 = vpack.c.b16 %v335, %v326
  %v471 = vpack.c.b16 %v345, %v336
  %v472 = vpack.c.b16 %v346, %v337
  %v473 = vpack.c.b16 %v347, %v338
  %v474 = vpack.c.b16 %v348, %v339
  %v475 = vpack.c.b16 %v349, %v340
  %v476 = vpack.c.b16 %v350, %v341
  %v477 = vpack.c.b16 %v351, %v342
  %v478 = vpack.c.b16 %v352, %v343
  %v479 = vpack.c.b16 %v353, %v344
  %v480 = vpack.c.b16 %v363, %v354
  %v481 = vpack.c.b16 %v364, %v355
  %v482 = vpack.c.b16 %v365, %v356
  %v483 = vpack.c.b16 %v366, %v357
  %v484 = vpack.c.b16 %v367, %v358
  %v485 = vpack.c.b16 %v368, %v359
  %v486 = vpack.c.b16 %v369, %v360
  %v487 = vpack.c.b16 %v370, %v361
  %v488 = vpack.c.b16 %v371, %v362
  %v489 = vpack.c.b16 %v381, %v372
  %v490 = vpack.c.b16 %v382, %v373
  %v491 = vpack.c.b16 %v383, %v374
  %v492 = vpack.c.b16 %v384, %v375
  %v493 = vpack.c.b16 %v385, %v376
  %v494 = vpack.c.b16 %v386, %v377
  %v495 = vpack.c.b16 %v387, %v378
  %v496 = vpack.c.b16 %v388, %v379
  %v497 = vpack.c.b16 %v389, %v380
  %v498 = vpack.c.b16 %v399, %v390
  %v499 = vpack.c.b16 %v400, %v391
  %v500 = vpack.c.b16 %v401, %v392
  %v501 = vpack.c.b16 %v402, %v393
  %v502 = vpack.c.b16 %v403, %v394
  %v503 = vpack.c.b16 %v404, %v395
  %v504 = vpack.c.b16 %v405, %v396
  %v505 = vpack.c.b16 %v406, %v397
  %v506 = vpack.c.b16 %v407, %v398
  %v507 = vpack.c.b16 %v417, %v408
  %v508 = vpack.c.b16 %v418, %v409
  %v509 = vpack.c.b16 %v419, %v410
  %v510 = vpack.c.b16 %v420, %v411
  %v511 = vpack.c.b16 %v421, %v412
  %v512 = vpack.c.b16 %v422, %v413
  %v513 = vpack.c.b16 %v423, %v414
  %v514 = vpack.c.b16 %v424, %v415
  %v515 = vpack.c.b16 %v425, %v416
  %v516 = vpack.c.b16 %v435, %v426
  %v517 = vpack.c.b16 %v436, %v427
  %v518 = vpack.c.b16 %v437, %v428
  %v519 = vpack.c.b16 %v438, %v429
  %v520 = vpack.c.b16 %v439, %v430
  %v521 = vpack.c.b16 %v440, %v431
  %v522 = vpack.c.b16 %v441, %v432
  %v523 = vpack.c.b16 %v442, %v433
  %v524 = vpack.c.b16 %v443, %v434
  %v525 = vpack.c.b16 %v453, %v444
  %v526 = vpack.c.b16 %v454, %v445
  %v527 = vpack.c.b16 %v455, %v446
  %v528 = vpack.c.b16 %v456, %v447
  %v529 = vpack.c.b16 %v457, %v448
  %v530 = vpack.c.b16 %v458, %v449
  %v531 = vpack.c.b16 %v459, %v450
  %v532 = vpack.c.b16 %v460, %v451
  %v533 = vpack.c.b16 %v461, %v452
  %v750 = vunpack.c.l.b16 %v94
  %v751 = vunpack.c.h.b16 %v94
  %v752 = vunpack.c.l.b16 %v95
  %v753 = vunpack.c.h.b16 %v95
  %v754 = vunpack.c.l.b16 %v96
  %v755 = vunpack.c.h.b16 %v96
  %v756 = vunpack.c.l.b16 %v97
  %v757 = vunpack.c.h.b16 %v97
  %v758 = vunpack.c.l.b16 %v98
  %v759 = vunpack.c.h.b16 %v98
  %v760 = vunpack.c.l.b16 %v99
  %v761 = vunpack.c.h.b16 %v99
  %v762 = vunpack.c.l.b16 %v100
  %v763 = vunpack.c.h.b16 %v100
  %v764 = vunpack.c.l.b16 %v101
  %v765 = vunpack.c.h.b16 %v101
  %v766 = vunpack.c.l.b16 %v102
  %v767 = vunpack.c.h.b16 %v102
  %v768 = vunpack.c.l.b16 %v103
  %v769 = vunpack.c.h.b16 %v103
  %v770 = vunpack.c.l.b16 %v104
  %v771 = vunpack.c.h.b16 %v104
  %v772 = vunpack.c.l.b16 %v105
  %v773 = vunpack.c.h.b16 %v105
  %v774 = vunpack.c.l.b16 %v106
  %v775 = vunpack.c.h.b16 %v106
  %v776 = vunpack.c.l.b16 %v107
  %v777 = vunpack.c.h.b16 %v107
  %v778 = vunpack.c.l.b16 %v108
  %v779 = vunpack.c.h.b16 %v108
  %v780 = vunpack.c.l.b16 %v109
  %v781 = vunpack.c.h.b16 %v109
  %v782 = vunpack.c.l.b16 %v110
  %v783 = vunpack.c.h.b16 %v110
  %v784 = vunpack.c.l.b16 %v111
  %v785 = vunpack.c.h.b16 %v111
  %v786 = vunpack.c.l.b16 %v112
  %v787 = vunpack.c.h.b16 %v112
  %v788 = vunpack.c.l.b16 %v113
  %v789 = vunpack.c.h.b16 %v113
  %v790 = vunpack.c.l.b16 %v114
  %v791 = vunpack.c.h.b16 %v114
  %v792 = vunpack.c.l.b16 %v115
  %v793 = vunpack.c.h.b16 %v115
  %v794 = vunpack.c.l.b16 %v116
  %v795 = vunpack.c.h.b16 %v116
  %v796 = vunpack.c.l.b16 %v117
  %v797 = vunpack.c.h.b16 %v117
  %v798 = vunpack.c.l.b16 %v118
  %v799 = vunpack.c.h.b16 %v118
  %v800 = vunpack.c.l.b16 %v119
  %v801 = vunpack.c.h.b16 %v119
  %v802 = vunpack.c.l.b16 %v120
  %v803 = vunpack.c.h.b16 %v120
  %v804 = vunpack.c.l.b16 %v121
  %v805 = vunpack.c.h.b16 %v121
  %v806 = vunpack.c.l.b16 %v122
  %v807 = vunpack.c.h.b16 %v122
  %v808 = vunpack.c.l.b16 %v123
  %v809 = vunpack.c.h.b16 %v123
  %v810 = vunpack.c.l.b16 %v124
  %v811 = vunpack.c.h.b16 %v124
  %v812 = vunpack.c.l.b16 %v125
  %v813 = vunpack.c.h.b16 %v125
  %v814 = vunpack.c.l.b16 %v126
  %v815 = vunpack.c.h.b16 %v126
  %v816 = vunpack.c.l.b16 %v127
  %v817 = vunpack.c.h.b16 %v127
  %v818 = vunpack.c.l.b16 %v128
  %v819 = vunpack.c.h.b16 %v128
  %v820 = vunpack.c.l.b16 %v129
  %v821 = vunpack.c.h.b16 %v129
  %v822 = vunpack.c.l.b16 %v130
  %v823 = vunpack.c.h.b16 %v130
  %v824 = vunpack.c.l.b16 %v131
  %v825 = vunpack.c.h.b16 %v131
  %v826 = vunpack.c.l.b16 %v132
  %v827 = vunpack.c.h.b16 %v132
  %v828 = vunpack.c.l.b16 %v133
  %v829 = vunpack.c.h.b16 %v133
  %v830 = vunpack.c.l.b16 %v134
  %v831 = vunpack.c.h.b16 %v134
  %v832 = vunpack.c.l.b16 %v135
  %v833 = vunpack.c.h.b16 %v135
  %v834 = vunpack.c.l.b16 %v136
  %v835 = vunpack.c.h.b16 %v136
  %v836 = vunpack.c.l.b16 %v137
  %v837 = vunpack.c.h.b16 %v137
  %v838 = vunpack.c.l.b16 %v138
  %v839 = vunpack.c.h.b16 %v138
  %v840 = vunpack.c.l.b16 %v139
  %v841 = vunpack.c.h.b16 %v139
  %v842 = vunpack.c.l.b16 %v140
  %v843 = vunpack.c.h.b16 %v140
  %v844 = vunpack.c.l.b16 %v141
  %v845 = vunpack.c.h.b16 %v141
  %v846 = vunpack.c.l.b16 %v142
  %v847 = vunpack.c.h.b16 %v142
  %v848 = vunpack.c.l.b16 %v143
  %v849 = vunpack.c.h.b16 %v143
  %v850 = vunpack.c.l.b16 %v144
  %v851 = vunpack.c.h.b16 %v144
  %v852 = vunpack.c.l.b16 %v145
  %v853 = vunpack.c.h.b16 %v145
  %v854 = vunpack.c.l.b16 %v146
  %v855 = vunpack.c.h.b16 %v146
  %v856 = vunpack.c.l.b16 %v147
  %v857 = vunpack.c.h.b16 %v147
  %v858 = vunpack.c.l.b16 %v148
  %v859 = vunpack.c.h.b16 %v148
  %v860 = vunpack.c.l.b16 %v149
  %v861 = vunpack.c.h.b16 %v149
  %v862 = vunpack.c.l.b16 %v150
  %v863 = vunpack.c.h.b16 %v150
  %v864 = vunpack.c.l.b16 %v151
  %v865 = vunpack.c.h.b16 %v151
  %v866 = vunpack.c.l.b16 %v152
  %v867 = vunpack.c.h.b16 %v152
  %v868 = vunpack.c.l.b16 %v153
  %v869 = vunpack.c.h.b16 %v153
  %v870 = vunpack.c.l.b16 %v154
  %v871 = vunpack.c.h.b16 %v154
  %v872 = vunpack.c.l.b16 %v155
  %v873 = vunpack.c.h.b16 %v155
  %v874 = vunpack.c.l.b16 %v156
  %v875 = vunpack.c.h.b16 %v156
  %v876 = vunpack.c.l.b16 %v157
  %v877 = vunpack.c.h.b16 %v157
  %v878 = vunpack.c.l.b16 %v158
  %v879 = vunpack.c.h.b16 %v158
  %v880 = vunpack.c.l.b16 %v159
  %v881 = vunpack.c.h.b16 %v159
  %v882 = vunpack.c.l.b16 %v160
  %v883 = vunpack.c.h.b16 %v160
  %v884 = vunpack.c.l.b16 %v161
  %v885 = vunpack.c.h.b16 %v161
  %v886 = vunpack.c.l.b16 %v162
  %v887 = vunpack.c.h.b16 %v162
  %v888 = vunpack.c.l.b16 %v163
  %v889 = vunpack.c.h.b16 %v163
  %v890 = vunpack.c.l.b16 %v164
  %v891 = vunpack.c.h.b16 %v164
  %v892 = vunpack.c.l.b16 %v165
  %v893 = vunpack.c.h.b16 %v165
  %v894 = vunpack.c.l.b16 %v166
  %v895 = vunpack.c.h.b16 %v166
  %v896 = vunpack.c.l.b16 %v167
  %v897 = vunpack.c.h.b16 %v167
  %v898 = vunpack.c.l.b16 %v168
  %v899 = vunpack.c.h.b16 %v168
  %v900 = vunpack.c.l.b16 %v169
  %v901 = vunpack.c.h.b16 %v169
  %v902 = vunpack.c.l.b16 %v170
  %v903 = vunpack.c.h.b16 %v170
  %v904 = vunpack.c.l.b16 %v171
  %v905 = vunpack.c.h.b16 %v171
  %v906 = vunpack.c.l.b16 %v172
  %v907 = vunpack.c.h.b16 %v172
  %v908 = vunpack.c.l.b16 %v173
  %v909 = vunpack.c.h.b16 %v173
  %v910 = vunpack.c.l.b16 %v174
  %v911 = vunpack.c.h.b16 %v174
  %v912 = vunpack.c.l.b16 %v175
  %v913 = vunpack.c.h.b16 %v175
  %v914 = vunpack.c.l.b16 %v176
  %v915 = vunpack.c.h.b16 %v176
  %v916 = vunpack.c.l.b16 %v177
  %v917 = vunpack.c.h.b16 %v177
  %v918 = vunpack.c.l.b16 %v178
  %v919 = vunpack.c.h.b16 %v178
  %v920 = vunpack.c.l.b16 %v179
  %v921 = vunpack.c.h.b16 %v179
  %v922 = vunpack.c.l.b16 %v180
  %v923 = vunpack.c.h.b16 %v180
  %v924 = vunpack.c.l.b16 %v181
  %v925 = vunpack.c.h.b16 %v181
  %v926 = vunpack.c.l.b16 %v182
  %v927 = vunpack.c.h.b16 %v182
  %v928 = vunpack.c.l.b16 %v183
  %v929 = vunpack.c.h.b16 %v183
  %v930 = vunpack.c.l.b16 %v184
  %v931 = vunpack.c.h.b16 %v184
  %v932 = vunpack.c.l.b16 %v185
  %v933 = vunpack.c.h.b16 %v185
  %v934 = vunpack.c.l.b16 %v186
  %v935 = vunpack.c.h.b16 %v186
  %v936 = vunpack.c.l.b16 %v187
  %v937 = vunpack.c.h.b16 %v187
  %v938 = vunpack.c.l.b16 %v188
  %v939 = vunpack.c.h.b16 %v188
  %v940 = vunpack.c.l.b16 %v189
  %v941 = vunpack.c.h.b16 %v189
  %v942 = vunpack.c.l.b16 %v190
  %v943 = vunpack.c.h.b16 %v190
  %v944 = vunpack.c.l.b16 %v191
  %v945 = vunpack.c.h.b16 %v191
  %v946 = vunpack.c.l.b16 %v192
  %v947 = vunpack.c.h.b16 %v192
  %v948 = vunpack.c.l.b16 %v193
  %v949 = vunpack.c.h.b16 %v193
  %v950 = vunpack.c.l.b16 %v194
  %v951 = vunpack.c.h.b16 %v194
  %v952 = vunpack.c.l.b16 %v195
  %v953 = vunpack.c.h.b16 %v195
  %v954 = vunpack.c.l.b16 %v196
  %v955 = vunpack.c.h.b16 %v196
  %v956 = vunpack.c.l.b16 %v197
  %v957 = vunpack.c.h.b16 %v197
  %v958 = vunpack.c.l.b16 %v198
  %v959 = vunpack.c.h.b16 %v198
  %v960 = vunpack.c.l.b16 %v199
  %v961 = vunpack.c.h.b16 %v199
  %v962 = vunpack.c.l.b16 %v200
  %v963 = vunpack.c.h.b16 %v200
  %v964 = vunpack.c.l.b16 %v201
  %v965 = vunpack.c.h.b16 %v201
  %v966 = vunpack.c.l.b16 %v202
  %v967 = vunpack.c.h.b16 %v202
  %v968 = vunpack.c.l.b16 %v203
  %v969 = vunpack.c.h.b16 %v203
  %v970 = vunpack.c.l.b16 %v204
  %v971 = vunpack.c.h.b16 %v204
  %v972 = vunpack.c.l.b16 %v205
  %v973 = vunpack.c.h.b16 %v205
  %v974 = vunpack.c.l.b16 %v206
  %v975 = vunpack.c.h.b16 %v206
  %v976 = vunpack.c.l.b16 %v207
  %v977 = vunpack.c.h.b16 %v207
  %v978 = vunpack.c.l.b16 %v208
  %v979 = vunpack.c.h.b16 %v208
  %v980 = vunpack.c.l.b16 %v209
  %v981 = vunpack.c.h.b16 %v209
  %v982 = vunpack.c.l.b16 %v210
  %v983 = vunpack.c.h.b16 %v210
  %v984 = vunpack.c.l.b16 %v211
  %v985 = vunpack.c.h.b16 %v211
  %v986 = vunpack.c.l.b16 %v212
  %v987 = vunpack.c.h.b16 %v212
  %v988 = vunpack.c.l.b16 %v213
  %v989 = vunpack.c.h.b16 %v213
  %v990 = vunpack.c.l.b16 %v214
  %v991 = vunpack.c.h.b16 %v214
  %v992 = vunpack.c.l.b16 %v215
  %v993 = vunpack.c.h.b16 %v215
  %v994 = vunpack.c.l.b16 %v216
  %v995 = vunpack.c.h.b16 %v216
  %v996 = vunpack.c.l.b16 %v217
  %v997 = vunpack.c.h.b16 %v217
  %v998 = vunpack.c.l.b16 %v218
  %v999 = vunpack.c.h.b16 %v218
  %v1000 = vunpack.c.l.b16 %v219
  %v1001 = vunpack.c.h.b16 %v219
  %v1002 = vunpack.c.l.b16 %v220
  %v1003 = vunpack.c.h.b16 %v220
  %v1004 = vunpack.c.l.b16 %v221
  %v1005 = vunpack.c.h.b16 %v221
  %v1006 = vunpack.c.l.b16 %v222
  %v1007 = vunpack.c.h.b16 %v222
  %v1008 = vunpack.c.l.b16 %v223
  %v1009 = vunpack.c.h.b16 %v223
  %v1010 = vunpack.c.l.b16 %v224
  %v1011 = vunpack.c.h.b16 %v224
  %v1012 = vunpack.c.l.b16 %v225
  %v1013 = vunpack.c.h.b16 %v225
  %v1014 = vunpack.c.l.b16 %v226
  %v1015 = vunpack.c.h.b16 %v226
  %v1016 = vunpack.c.l.b16 %v227
  %v1017 = vunpack.c.h.b16 %v227
  %v1018 = vunpack.c.l.b16 %v228
  %v1019 = vunpack.c.h.b16 %v228
  %v1020 = vunpack.c.l.b16 %v229
  %v1021 = vunpack.c.h.b16 %v229
  %v1022 = vunpack.c.l.b16 %v230
  %v1023 = vunpack.c.h.b16 %v230
  %v1024 = vunpack.c.l.b16 %v231
  %v1025 = vunpack.c.h.b16 %v231
  %v1026 = vunpack.c.l.b16 %v232
  %v1027 = vunpack.c.h.b16 %v232
  %v1028 = vunpack.c.l.b16 %v233
  %v1029 = vunpack.c.h.b16 %v233
  %v1030 = vunpack.c.l.b16 %v234
  %v1031 = vunpack.c.h.b16 %v234
  %v1032 = vunpack.c.l.b16 %v235
  %v1033 = vunpack.c.h.b16 %v235
  %v1034 = vunpack.c.l.b16 %v236
  %v1035 = vunpack.c.h.b16 %v236
  %v1036 = vunpack.c.l.b16 %v237
  %v1037 = vunpack.c.h.b16 %v237
  %v1038 = vpack.c.b16 %v752, %v750
  %v1039 = vpack.c.b16 %v753, %v751
  %v1040 = vpack.c.b16 %v756, %v754
  %v1041 = vpack.c.b16 %v757, %v755
  %v1042 = vpack.c.b16 %v760, %v758
  %v1043 = vpack.c.b16 %v761, %v759
  %v1044 = vpack.c.b16 %v764, %v762
  %v1045 = vpack.c.b16 %v765, %v763
  %v1046 = vpack.c.b16 %v768, %v766
  %v1047 = vpack.c.b16 %v769, %v767
  %v1048 = vpack.c.b16 %v772, %v770
  %v1049 = vpack.c.b16 %v773, %v771
  %v1050 = vpack.c.b16 %v776, %v774
  %v1051 = vpack.c.b16 %v777, %v775
  %v1052 = vpack.c.b16 %v780, %v778
  %v1053 = vpack.c.b16 %v781, %v779
  %v1054 = vpack.c.b16 %v784, %v782
  %v1055 = vpack.c.b16 %v785, %v783
  %v1056 = vpack.c.b16 %v788, %v786
  %v1057 = vpack.c.b16 %v789, %v787
  %v1058 = vpack.c.b16 %v792, %v790
  %v1059 = vpack.c.b16 %v793, %v791
  %v1060 = vpack.c.b16 %v796, %v794
  %v1061 = vpack.c.b16 %v797, %v795
  %v1062 = vpack.c.b16 %v800, %v798
  %v1063 = vpack.c.b16 %v801, %v799
  %v1064 = vpack.c.b16 %v804, %v802
  %v1065 = vpack.c.b16 %v805, %v803
  %v1066 = vpack.c.b16 %v808, %v806
  %v1067 = vpack.c.b16 %v809, %v807
  %v1068 = vpack.c.b16 %v812, %v810
  %v1069 = vpack.c.b16 %v813, %v811
  %v1070 = vpack.c.b16 %v816, %v814
  %v1071 = vpack.c.b16 %v817, %v815
  %v1072 = vpack.c.b16 %v820, %v818
  %v1073 = vpack.c.b16 %v821, %v819
  %v1074 = vpack.c.b16 %v824, %v822
  %v1075 = vpack.c.b16 %v825, %v823
  %v1076 = vpack.c.b16 %v828, %v826
  %v1077 = vpack.c.b16 %v829, %v827
  %v1078 = vpack.c.b16 %v832, %v830
  %v1079 = vpack.c.b16 %v833, %v831
  %v1080 = vpack.c.b16 %v836, %v834
  %v1081 = vpack.c.b16 %v837, %v835
  %v1082 = vpack.c.b16 %v840, %v838
  %v1083 = vpack.c.b16 %v841, %v839
  %v1084 = vpack.c.b16 %v844, %v842
  %v1085 = vpack.c.b16 %v845, %v843
  %v1086 = vpack.c.b16 %v848, %v846
  %v1087 = vpack.c.b16 %v849, %v847
  %v1088 = vpack.c.b16 %v852, %v850
  %v1089 = vpack.c.b16 %v853, %v851
  %v1090 = vpack.c.b16 %v856, %v854
  %v1091 = vpack.c.b16 %v857, %v855
  %v1092 = vpack.c.b16 %v860, %v858
  %v1093 = vpack.c.b16 %v861, %v859
  %v1094 = vpack.c.b16 %v864, %v862
  %v1095 = vpack.c.b16 %v865, %v863
  %v1096 = vpack.c.b16 %v868, %v866
  %v1097 = vpack.c.b16 %v869, %v867
  %v1098 = vpack.c.b16 %v872, %v870
  %v1099 = vpack.c.b16 %v873, %v871
  %v1100 = vpack.c.b16 %v876, %v874
  %v1101 = vpack.c.b16 %v877, %v875
  %v1102 = vpack.c.b16 %v880, %v878
  %v1103 = vpack.c.b16 %v881, %v879
  %v1104 = vpack.c.b16 %v884, %v882
  %v1105 = vpack.c.b16 %v885, %v883
  %v1106 = vpack.c.b16 %v888, %v886
  %v1107 = vpack.c.b16 %v889, %v887
  %v1108 = vpack.c.b16 %v892, %v890
  %v1109 = vpack.c.b16 %v893, %v891
  %v1110 = vpack.c.b16 %v896, %v894
  %v1111 = vpack.c.b16 %v897, %v895
  %v1112 = vpack.c.b16 %v900, %v898
  %v1113 = vpack.c.b16 %v901, %v899
  %v1114 = vpack.c.b16 %v904, %v902
  %v1115 = vpack.c.b16 %v905, %v903
  %v1116 = vpack.c.b16 %v908, %v906
  %v1117 = vpack.c.b16 %v909, %v907
  %v1118 = vpack.c.b16 %v912, %v910
  %v1119 = vpack.c.b16 %v913, %v911
  %v1120 = vpack.c.b16 %v916, %v914
  %v1121 = vpack.c.b16 %v917, %v915
  %v1122 = vpack.c.b16 %v920, %v918
  %v1123 = vpack.c.b16 %v921, %v919
  %v1124 = vpack.c.b16 %v924, %v922
  %v1125 = vpack.c.b16 %v925, %v923
  %v1126 = vpack.c.b16 %v928, %v926
  %v1127 = vpack.c.b16 %v929, %v927
  %v1128 = vpack.c.b16 %v932, %v930
  %v1129 = vpack.c.b16 %v933, %v931
  %v1130 = vpack.c.b16 %v936, %v934
  %v1131 = vpack.c.b16 %v937, %v935
  %v1132 = vpack.c.b16 %v940, %v938
  %v1133 = vpack.c.b16 %v941, %v939
  %v1134 = vpack.c.b16 %v944, %v942
  %v1135 = vpack.c.b16 %v945, %v943
  %v1136 = vpack.c.b16 %v948, %v946
  %v1137 = vpack.c.b16 %v949, %v947
  %v1138 = vpack.c.b16 %v952, %v950
  %v1139 = vpack.c.b16 %v953, %v951
  %v1140 = vpack.c.b16 %v956, %v954
  %v1141 = vpack.c.b16 %v957, %v955
  %v1142 = vpack.c.b16 %v960, %v958
  %v1143 = vpack.c.b16 %v961, %v959
  %v1144 = vpack.c.b16 %v964, %v962
  %v1145 = vpack.c.b16 %v965, %v963
  %v1146 = vpack.c.b16 %v968, %v966
  %v1147 = vpack.c.b16 %v969, %v967
  %v1148 = vpack.c.b16 %v972, %v970
  %v1149 = vpack.c.b16 %v973, %v971
  %v1150 = vpack.c.b16 %v976, %v974
  %v1151 = vpack.c.b16 %v977, %v975
  %v1152 = vpack.c.b16 %v980, %v978
  %v1153 = vpack.c.b16 %v981, %v979
  %v1154 = vpack.c.b16 %v984, %v982
  %v1155 = vpack.c.b16 %v985, %v983
  %v1156 = vpack.c.b16 %v988, %v986
  %v1157 = vpack.c.b16 %v989, %v987
  %v1158 = vpack.c.b16 %v992, %v990
  %v1159 = vpack.c.b16 %v993, %v991
  %v1160 = vpack.c.b16 %v996, %v994
  %v1161 = vpack.c.b16 %v997, %v995
  %v1162 = vpack.c.b16 %v1000, %v998
  %v1163 = vpack.c.b16 %v1001, %v999
  %v1164 = vpack.c.b16 %v1004, %v1002
  %v1165 = vpack.c.b16 %v1005, %v1003
  %v1166 = vpack.c.b16 %v1008, %v1006
  %v1167 = vpack.c.b16 %v1009, %v1007
  %v1168 = vpack.c.b16 %v1012, %v1010
  %v1169 = vpack.c.b16 %v1013, %v1011
  %v1170 = vpack.c.b16 %v1016, %v1014
  %v1171 = vpack.c.b16 %v1017, %v1015
  %v1172 = vpack.c.b16 %v1020, %v1018
  %v1173 = vpack.c.b16 %v1021, %v1019
  %v1174 = vpack.c.b16 %v1024, %v1022
  %v1175 = vpack.c.b16 %v1025, %v1023
  %v1176 = vpack.c.b16 %v1028, %v1026
  %v1177 = vpack.c.b16 %v1029, %v1027
  %v1178 = vpack.c.b16 %v1032, %v1030
  %v1179 = vpack.c.b16 %v1033, %v1031
  %v1180 = vpack.c.b16 %v1036, %v1034
  %v1181 = vpack.c.b16 %v1037, %v1035
  %1326 = vmatpush.bf16.msra.mxu0 %v1052
  %1327 = vmatpush.bf16.msra.mxu0 %v1050
  %1328 = vmatpush.bf16.msra.mxu0 %v1048
  %1329 = vmatpush.bf16.msra.mxu0 %v1046
  %1330 = vmatpush.bf16.msra.mxu0 %v1044
  %1331 = vmatpush.bf16.msra.mxu0 %v1042
  %1332 = vmatpush.bf16.msra.mxu0 %v1040
  %1333 = vmatpush.bf16.msra.mxu0 %v1038
  %1334 = vmatmul.bf16.gmra.mxu0 %v462
  %v1335 = vpop.f32.mrf.mxu0
  %v1336 = vadd.f32 0.0, %v1335
  %v1337 = vpop.f32.mrf.mxu0
  %v1338 = vadd.f32 0.0, %v1337
  %1339 = vmatmul.bf16.gmra.mxu0 %v471
  %v1340 = vpop.f32.mrf.mxu0
  %v1341 = vadd.f32 0.0, %v1340
  %v1342 = vpop.f32.mrf.mxu0
  %v1343 = vadd.f32 0.0, %v1342
  %1344 = vmatmul.bf16.gmra.mxu0 %v480
  %v1345 = vpop.f32.mrf.mxu0
  %v1346 = vadd.f32 0.0, %v1345
  %v1347 = vpop.f32.mrf.mxu0
  %v1348 = vadd.f32 0.0, %v1347
  %1349 = vmatmul.bf16.gmra.mxu0 %v489
  %v1350 = vpop.f32.mrf.mxu0
  %v1351 = vadd.f32 0.0, %v1350
  %v1352 = vpop.f32.mrf.mxu0
  %v1353 = vadd.f32 0.0, %v1352
  %1354 = vmatmul.bf16.gmra.mxu0 %v498
  %v1355 = vpop.f32.mrf.mxu0
  %v1356 = vadd.f32 0.0, %v1355
  %v1357 = vpop.f32.mrf.mxu0
  %v1358 = vadd.f32 0.0, %v1357
  %1359 = vmatmul.bf16.gmra.mxu0 %v507
  %v1360 = vpop.f32.mrf.mxu0
  %v1361 = vadd.f32 0.0, %v1360
  %v1362 = vpop.f32.mrf.mxu0
  %v1363 = vadd.f32 0.0, %v1362
  %1364 = vmatmul.bf16.gmra.mxu0 %v516
  %v1365 = vpop.f32.mrf.mxu0
  %v1366 = vadd.f32 0.0, %v1365
  %v1367 = vpop.f32.mrf.mxu0
  %v1368 = vadd.f32 0.0, %v1367
  %1369 = vmatmul.bf16.gmra.mxu0 %v525
  %v1370 = vpop.f32.mrf.mxu0
  %v1371 = vadd.f32 0.0, %v1370
  %v1372 = vpop.f32.mrf.mxu0
  %v1373 = vadd.f32 0.0, %v1372
  %1374 = vdwg.mxu0
  %1375 = vmatpush.bf16.msra.mxu0 %v1068
  %1376 = vmatpush.bf16.msra.mxu0 %v1066
  %1377 = vmatpush.bf16.msra.mxu0 %v1064
  %1378 = vmatpush.bf16.msra.mxu0 %v1062
  %1379 = vmatpush.bf16.msra.mxu0 %v1060
  %1380 = vmatpush.bf16.msra.mxu0 %v1058
  %1381 = vmatpush.bf16.msra.mxu0 %v1056
  %1382 = vmatpush.bf16.msra.mxu0 %v1054
  %1383 = vmatmul.bf16.gmra.mxu0 %v463
  %v1384 = vpop.f32.mrf.mxu0
  %v1385 = vadd.f32 %v1336, %v1384
  %v1386 = vpop.f32.mrf.mxu0
  %v1387 = vadd.f32 %v1338, %v1386
  %1388 = vmatmul.bf16.gmra.mxu0 %v472
  %v1389 = vpop.f32.mrf.mxu0
  %v1390 = vadd.f32 %v1341, %v1389
  %v1391 = vpop.f32.mrf.mxu0
  %v1392 = vadd.f32 %v1343, %v1391
  %1393 = vmatmul.bf16.gmra.mxu0 %v481
  %v1394 = vpop.f32.mrf.mxu0
  %v1395 = vadd.f32 %v1346, %v1394
  %v1396 = vpop.f32.mrf.mxu0
  %v1397 = vadd.f32 %v1348, %v1396
  %1398 = vmatmul.bf16.gmra.mxu0 %v490
  %v1399 = vpop.f32.mrf.mxu0
  %v1400 = vadd.f32 %v1351, %v1399
  %v1401 = vpop.f32.mrf.mxu0
  %v1402 = vadd.f32 %v1353, %v1401
  %1403 = vmatmul.bf16.gmra.mxu0 %v499
  %v1404 = vpop.f32.mrf.mxu0
  %v1405 = vadd.f32 %v1356, %v1404
  %v1406 = vpop.f32.mrf.mxu0
  %v1407 = vadd.f32 %v1358, %v1406
  %1408 = vmatmul.bf16.gmra.mxu0 %v508
  %v1409 = vpop.f32.mrf.mxu0
  %v1410 = vadd.f32 %v1361, %v1409
  %v1411 = vpop.f32.mrf.mxu0
  %v1412 = vadd.f32 %v1363, %v1411
  %1413 = vmatmul.bf16.gmra.mxu0 %v517
  %v1414 = vpop.f32.mrf.mxu0
  %v1415 = vadd.f32 %v1366, %v1414
  %v1416 = vpop.f32.mrf.mxu0
  %v1417 = vadd.f32 %v1368, %v1416
  %1418 = vmatmul.bf16.gmra.mxu0 %v526
  %v1419 = vpop.f32.mrf.mxu0
  %v1420 = vadd.f32 %v1371, %v1419
  %v1421 = vpop.f32.mrf.mxu0
  %v1422 = vadd.f32 %v1373, %v1421
  %1423 = vdwg.mxu0
  %1424 = vmatpush.bf16.msra.mxu0 %v1084
  %1425 = vmatpush.bf16.msra.mxu0 %v1082
  %1426 = vmatpush.bf16.msra.mxu0 %v1080
  %1427 = vmatpush.bf16.msra.mxu0 %v1078
  %1428 = vmatpush.bf16.msra.mxu0 %v1076
  %1429 = vmatpush.bf16.msra.mxu0 %v1074
  %1430 = vmatpush.bf16.msra.mxu0 %v1072
  %1431 = vmatpush.bf16.msra.mxu0 %v1070
  %1432 = vmatmul.bf16.gmra.mxu0 %v464
  %v1433 = vpop.f32.mrf.mxu0
  %v1434 = vadd.f32 %v1385, %v1433
  %v1435 = vpop.f32.mrf.mxu0
  %v1436 = vadd.f32 %v1387, %v1435
  %1437 = vmatmul.bf16.gmra.mxu0 %v473
  %v1438 = vpop.f32.mrf.mxu0
  %v1439 = vadd.f32 %v1390, %v1438
  %v1440 = vpop.f32.mrf.mxu0
  %v1441 = vadd.f32 %v1392, %v1440
  %1442 = vmatmul.bf16.gmra.mxu0 %v482
  %v1443 = vpop.f32.mrf.mxu0
  %v1444 = vadd.f32 %v1395, %v1443
  %v1445 = vpop.f32.mrf.mxu0
  %v1446 = vadd.f32 %v1397, %v1445
  %1447 = vmatmul.bf16.gmra.mxu0 %v491
  %v1448 = vpop.f32.mrf.mxu0
  %v1449 = vadd.f32 %v1400, %v1448
  %v1450 = vpop.f32.mrf.mxu0
  %v1451 = vadd.f32 %v1402, %v1450
  %1452 = vmatmul.bf16.gmra.mxu0 %v500
  %v1453 = vpop.f32.mrf.mxu0
  %v1454 = vadd.f32 %v1405, %v1453
  %v1455 = vpop.f32.mrf.mxu0
  %v1456 = vadd.f32 %v1407, %v1455
  %1457 = vmatmul.bf16.gmra.mxu0 %v509
  %v1458 = vpop.f32.mrf.mxu0
  %v1459 = vadd.f32 %v1410, %v1458
  %v1460 = vpop.f32.mrf.mxu0
  %v1461 = vadd.f32 %v1412, %v1460
  %1462 = vmatmul.bf16.gmra.mxu0 %v518
  %v1463 = vpop.f32.mrf.mxu0
  %v1464 = vadd.f32 %v1415, %v1463
  %v1465 = vpop.f32.mrf.mxu0
  %v1466 = vadd.f32 %v1417, %v1465
  %1467 = vmatmul.bf16.gmra.mxu0 %v527
  %v1468 = vpop.f32.mrf.mxu0
  %v1469 = vadd.f32 %v1420, %v1468
  %v1470 = vpop.f32.mrf.mxu0
  %v1471 = vadd.f32 %v1422, %v1470
  %1472 = vdwg.mxu0
  %1473 = vmatpush.bf16.msra.mxu0 %v1100
  %1474 = vmatpush.bf16.msra.mxu0 %v1098
  %1475 = vmatpush.bf16.msra.mxu0 %v1096
  %1476 = vmatpush.bf16.msra.mxu0 %v1094
  %1477 = vmatpush.bf16.msra.mxu0 %v1092
  %1478 = vmatpush.bf16.msra.mxu0 %v1090
  %1479 = vmatpush.bf16.msra.mxu0 %v1088
  %1480 = vmatpush.bf16.msra.mxu0 %v1086
  %1481 = vmatmul.bf16.gmra.mxu0 %v465
  %v1482 = vpop.f32.mrf.mxu0
  %v1483 = vadd.f32 %v1434, %v1482
  %v1484 = vpop.f32.mrf.mxu0
  %v1485 = vadd.f32 %v1436, %v1484
  %1486 = vmatmul.bf16.gmra.mxu0 %v474
  %v1487 = vpop.f32.mrf.mxu0
  %v1488 = vadd.f32 %v1439, %v1487
  %v1489 = vpop.f32.mrf.mxu0
  %v1490 = vadd.f32 %v1441, %v1489
  %1491 = vmatmul.bf16.gmra.mxu0 %v483
  %v1492 = vpop.f32.mrf.mxu0
  %v1493 = vadd.f32 %v1444, %v1492
  %v1494 = vpop.f32.mrf.mxu0
  %v1495 = vadd.f32 %v1446, %v1494
  %1496 = vmatmul.bf16.gmra.mxu0 %v492
  %v1497 = vpop.f32.mrf.mxu0
  %v1498 = vadd.f32 %v1449, %v1497
  %v1499 = vpop.f32.mrf.mxu0
  %v1500 = vadd.f32 %v1451, %v1499
  %1501 = vmatmul.bf16.gmra.mxu0 %v501
  %v1502 = vpop.f32.mrf.mxu0
  %v1503 = vadd.f32 %v1454, %v1502
  %v1504 = vpop.f32.mrf.mxu0
  %v1505 = vadd.f32 %v1456, %v1504
  %1506 = vmatmul.bf16.gmra.mxu0 %v510
  %v1507 = vpop.f32.mrf.mxu0
  %v1508 = vadd.f32 %v1459, %v1507
  %v1509 = vpop.f32.mrf.mxu0
  %v1510 = vadd.f32 %v1461, %v1509
  %1511 = vmatmul.bf16.gmra.mxu0 %v519
  %v1512 = vpop.f32.mrf.mxu0
  %v1513 = vadd.f32 %v1464, %v1512
  %v1514 = vpop.f32.mrf.mxu0
  %v1515 = vadd.f32 %v1466, %v1514
  %1516 = vmatmul.bf16.gmra.mxu0 %v528
  %v1517 = vpop.f32.mrf.mxu0
  %v1518 = vadd.f32 %v1469, %v1517
  %v1519 = vpop.f32.mrf.mxu0
  %v1520 = vadd.f32 %v1471, %v1519
  %1521 = vdwg.mxu0
  %1522 = vmatpush.bf16.msra.mxu0 %v1116
  %1523 = vmatpush.bf16.msra.mxu0 %v1114
  %1524 = vmatpush.bf16.msra.mxu0 %v1112
  %1525 = vmatpush.bf16.msra.mxu0 %v1110
  %1526 = vmatpush.bf16.msra.mxu0 %v1108
  %1527 = vmatpush.bf16.msra.mxu0 %v1106
  %1528 = vmatpush.bf16.msra.mxu0 %v1104
  %1529 = vmatpush.bf16.msra.mxu0 %v1102
  %1530 = vmatmul.bf16.gmra.mxu0 %v466
  %v1531 = vpop.f32.mrf.mxu0
  %v1532 = vadd.f32 %v1483, %v1531
  %v1533 = vpop.f32.mrf.mxu0
  %v1534 = vadd.f32 %v1485, %v1533
  %1535 = vmatmul.bf16.gmra.mxu0 %v475
  %v1536 = vpop.f32.mrf.mxu0
  %v1537 = vadd.f32 %v1488, %v1536
  %v1538 = vpop.f32.mrf.mxu0
  %v1539 = vadd.f32 %v1490, %v1538
  %1540 = vmatmul.bf16.gmra.mxu0 %v484
  %v1541 = vpop.f32.mrf.mxu0
  %v1542 = vadd.f32 %v1493, %v1541
  %v1543 = vpop.f32.mrf.mxu0
  %v1544 = vadd.f32 %v1495, %v1543
  %1545 = vmatmul.bf16.gmra.mxu0 %v493
  %v1546 = vpop.f32.mrf.mxu0
  %v1547 = vadd.f32 %v1498, %v1546
  %v1548 = vpop.f32.mrf.mxu0
  %v1549 = vadd.f32 %v1500, %v1548
  %1550 = vmatmul.bf16.gmra.mxu0 %v502
  %v1551 = vpop.f32.mrf.mxu0
  %v1552 = vadd.f32 %v1503, %v1551
  %v1553 = vpop.f32.mrf.mxu0
  %v1554 = vadd.f32 %v1505, %v1553
  %1555 = vmatmul.bf16.gmra.mxu0 %v511
  %v1556 = vpop.f32.mrf.mxu0
  %v1557 = vadd.f32 %v1508, %v1556
  %v1558 = vpop.f32.mrf.mxu0
  %v1559 = vadd.f32 %v1510, %v1558
  %1560 = vmatmul.bf16.gmra.mxu0 %v520
  %v1561 = vpop.f32.mrf.mxu0
  %v1562 = vadd.f32 %v1513, %v1561
  %v1563 = vpop.f32.mrf.mxu0
  %v1564 = vadd.f32 %v1515, %v1563
  %1565 = vmatmul.bf16.gmra.mxu0 %v529
  %v1566 = vpop.f32.mrf.mxu0
  %v1567 = vadd.f32 %v1518, %v1566
  %v1568 = vpop.f32.mrf.mxu0
  %v1569 = vadd.f32 %v1520, %v1568
  %1570 = vdwg.mxu0
  %1571 = vmatpush.bf16.msra.mxu0 %v1132
  %1572 = vmatpush.bf16.msra.mxu0 %v1130
  %1573 = vmatpush.bf16.msra.mxu0 %v1128
  %1574 = vmatpush.bf16.msra.mxu0 %v1126
  %1575 = vmatpush.bf16.msra.mxu0 %v1124
  %1576 = vmatpush.bf16.msra.mxu0 %v1122
  %1577 = vmatpush.bf16.msra.mxu0 %v1120
  %1578 = vmatpush.bf16.msra.mxu0 %v1118
  %1579 = vmatmul.bf16.gmra.mxu0 %v467
  %v1580 = vpop.f32.mrf.mxu0
  %v1581 = vadd.f32 %v1532, %v1580
  %v1582 = vpop.f32.mrf.mxu0
  %v1583 = vadd.f32 %v1534, %v1582
  %1584 = vmatmul.bf16.gmra.mxu0 %v476
  %v1585 = vpop.f32.mrf.mxu0
  %v1586 = vadd.f32 %v1537, %v1585
  %v1587 = vpop.f32.mrf.mxu0
  %v1588 = vadd.f32 %v1539, %v1587
  %1589 = vmatmul.bf16.gmra.mxu0 %v485
  %v1590 = vpop.f32.mrf.mxu0
  %v1591 = vadd.f32 %v1542, %v1590
  %v1592 = vpop.f32.mrf.mxu0
  %v1593 = vadd.f32 %v1544, %v1592
  %1594 = vmatmul.bf16.gmra.mxu0 %v494
  %v1595 = vpop.f32.mrf.mxu0
  %v1596 = vadd.f32 %v1547, %v1595
  %v1597 = vpop.f32.mrf.mxu0
  %v1598 = vadd.f32 %v1549, %v1597
  %1599 = vmatmul.bf16.gmra.mxu0 %v503
  %v1600 = vpop.f32.mrf.mxu0
  %v1601 = vadd.f32 %v1552, %v1600
  %v1602 = vpop.f32.mrf.mxu0
  %v1603 = vadd.f32 %v1554, %v1602
  %1604 = vmatmul.bf16.gmra.mxu0 %v512
  %v1605 = vpop.f32.mrf.mxu0
  %v1606 = vadd.f32 %v1557, %v1605
  %v1607 = vpop.f32.mrf.mxu0
  %v1608 = vadd.f32 %v1559, %v1607
  %1609 = vmatmul.bf16.gmra.mxu0 %v521
  %v1610 = vpop.f32.mrf.mxu0
  %v1611 = vadd.f32 %v1562, %v1610
  %v1612 = vpop.f32.mrf.mxu0
  %v1613 = vadd.f32 %v1564, %v1612
  %1614 = vmatmul.bf16.gmra.mxu0 %v530
  %v1615 = vpop.f32.mrf.mxu0
  %v1616 = vadd.f32 %v1567, %v1615
  %v1617 = vpop.f32.mrf.mxu0
  %v1618 = vadd.f32 %v1569, %v1617
  %1619 = vdwg.mxu0
  %1620 = vmatpush.bf16.msra.mxu0 %v1148
  %1621 = vmatpush.bf16.msra.mxu0 %v1146
  %1622 = vmatpush.bf16.msra.mxu0 %v1144
  %1623 = vmatpush.bf16.msra.mxu0 %v1142
  %1624 = vmatpush.bf16.msra.mxu0 %v1140
  %1625 = vmatpush.bf16.msra.mxu0 %v1138
  %1626 = vmatpush.bf16.msra.mxu0 %v1136
  %1627 = vmatpush.bf16.msra.mxu0 %v1134
  %1628 = vmatmul.bf16.gmra.mxu0 %v468
  %v1629 = vpop.f32.mrf.mxu0
  %v1630 = vadd.f32 %v1581, %v1629
  %v1631 = vpop.f32.mrf.mxu0
  %v1632 = vadd.f32 %v1583, %v1631
  %1633 = vmatmul.bf16.gmra.mxu0 %v477
  %v1634 = vpop.f32.mrf.mxu0
  %v1635 = vadd.f32 %v1586, %v1634
  %v1636 = vpop.f32.mrf.mxu0
  %v1637 = vadd.f32 %v1588, %v1636
  %1638 = vmatmul.bf16.gmra.mxu0 %v486
  %v1639 = vpop.f32.mrf.mxu0
  %v1640 = vadd.f32 %v1591, %v1639
  %v1641 = vpop.f32.mrf.mxu0
  %v1642 = vadd.f32 %v1593, %v1641
  %1643 = vmatmul.bf16.gmra.mxu0 %v495
  %v1644 = vpop.f32.mrf.mxu0
  %v1645 = vadd.f32 %v1596, %v1644
  %v1646 = vpop.f32.mrf.mxu0
  %v1647 = vadd.f32 %v1598, %v1646
  %1648 = vmatmul.bf16.gmra.mxu0 %v504
  %v1649 = vpop.f32.mrf.mxu0
  %v1650 = vadd.f32 %v1601, %v1649
  %v1651 = vpop.f32.mrf.mxu0
  %v1652 = vadd.f32 %v1603, %v1651
  %1653 = vmatmul.bf16.gmra.mxu0 %v513
  %v1654 = vpop.f32.mrf.mxu0
  %v1655 = vadd.f32 %v1606, %v1654
  %v1656 = vpop.f32.mrf.mxu0
  %v1657 = vadd.f32 %v1608, %v1656
  %1658 = vmatmul.bf16.gmra.mxu0 %v522
  %v1659 = vpop.f32.mrf.mxu0
  %v1660 = vadd.f32 %v1611, %v1659
  %v1661 = vpop.f32.mrf.mxu0
  %v1662 = vadd.f32 %v1613, %v1661
  %1663 = vmatmul.bf16.gmra.mxu0 %v531
  %v1664 = vpop.f32.mrf.mxu0
  %v1665 = vadd.f32 %v1616, %v1664
  %v1666 = vpop.f32.mrf.mxu0
  %v1667 = vadd.f32 %v1618, %v1666
  %1668 = vdwg.mxu0
  %1669 = vmatpush.bf16.msra.mxu0 %v1164
  %1670 = vmatpush.bf16.msra.mxu0 %v1162
  %1671 = vmatpush.bf16.msra.mxu0 %v1160
  %1672 = vmatpush.bf16.msra.mxu0 %v1158
  %1673 = vmatpush.bf16.msra.mxu0 %v1156
  %1674 = vmatpush.bf16.msra.mxu0 %v1154
  %1675 = vmatpush.bf16.msra.mxu0 %v1152
  %1676 = vmatpush.bf16.msra.mxu0 %v1150
  %1677 = vmatmul.bf16.gmra.mxu0 %v469
  %v1678 = vpop.f32.mrf.mxu0
  %v1679 = vadd.f32 %v1630, %v1678
  %v1680 = vpop.f32.mrf.mxu0
  %v1681 = vadd.f32 %v1632, %v1680
  %1682 = vmatmul.bf16.gmra.mxu0 %v478
  %v1683 = vpop.f32.mrf.mxu0
  %v1684 = vadd.f32 %v1635, %v1683
  %v1685 = vpop.f32.mrf.mxu0
  %v1686 = vadd.f32 %v1637, %v1685
  %1687 = vmatmul.bf16.gmra.mxu0 %v487
  %v1688 = vpop.f32.mrf.mxu0
  %v1689 = vadd.f32 %v1640, %v1688
  %v1690 = vpop.f32.mrf.mxu0
  %v1691 = vadd.f32 %v1642, %v1690
  %1692 = vmatmul.bf16.gmra.mxu0 %v496
  %v1693 = vpop.f32.mrf.mxu0
  %v1694 = vadd.f32 %v1645, %v1693
  %v1695 = vpop.f32.mrf.mxu0
  %v1696 = vadd.f32 %v1647, %v1695
  %1697 = vmatmul.bf16.gmra.mxu0 %v505
  %v1698 = vpop.f32.mrf.mxu0
  %v1699 = vadd.f32 %v1650, %v1698
  %v1700 = vpop.f32.mrf.mxu0
  %v1701 = vadd.f32 %v1652, %v1700
  %1702 = vmatmul.bf16.gmra.mxu0 %v514
  %v1703 = vpop.f32.mrf.mxu0
  %v1704 = vadd.f32 %v1655, %v1703
  %v1705 = vpop.f32.mrf.mxu0
  %v1706 = vadd.f32 %v1657, %v1705
  %1707 = vmatmul.bf16.gmra.mxu0 %v523
  %v1708 = vpop.f32.mrf.mxu0
  %v1709 = vadd.f32 %v1660, %v1708
  %v1710 = vpop.f32.mrf.mxu0
  %v1711 = vadd.f32 %v1662, %v1710
  %1712 = vmatmul.bf16.gmra.mxu0 %v532
  %v1713 = vpop.f32.mrf.mxu0
  %v1714 = vadd.f32 %v1665, %v1713
  %v1715 = vpop.f32.mrf.mxu0
  %v1716 = vadd.f32 %v1667, %v1715
  %1717 = vdwg.mxu0
  %1718 = vmatpush.bf16.msra.mxu0 %v1180
  %1719 = vmatpush.bf16.msra.mxu0 %v1178
  %1720 = vmatpush.bf16.msra.mxu0 %v1176
  %1721 = vmatpush.bf16.msra.mxu0 %v1174
  %1722 = vmatpush.bf16.msra.mxu0 %v1172
  %1723 = vmatpush.bf16.msra.mxu0 %v1170
  %1724 = vmatpush.bf16.msra.mxu0 %v1168
  %1725 = vmatpush.bf16.msra.mxu0 %v1166
  %1726 = vmatmul.bf16.gmra.mxu0 %v470
  %v1727 = vpop.f32.mrf.mxu0
  %v1728 = vadd.f32 %v1679, %v1727
  %v1729 = vpop.f32.mrf.mxu0
  %v1730 = vadd.f32 %v1681, %v1729
  %1731 = vmatmul.bf16.gmra.mxu0 %v479
  %v1732 = vpop.f32.mrf.mxu0
  %v1733 = vadd.f32 %v1684, %v1732
  %v1734 = vpop.f32.mrf.mxu0
  %v1735 = vadd.f32 %v1686, %v1734
  %1736 = vmatmul.bf16.gmra.mxu0 %v488
  %v1737 = vpop.f32.mrf.mxu0
  %v1738 = vadd.f32 %v1689, %v1737
  %v1739 = vpop.f32.mrf.mxu0
  %v1740 = vadd.f32 %v1691, %v1739
  %1741 = vmatmul.bf16.gmra.mxu0 %v497
  %v1742 = vpop.f32.mrf.mxu0
  %v1743 = vadd.f32 %v1694, %v1742
  %v1744 = vpop.f32.mrf.mxu0
  %v1745 = vadd.f32 %v1696, %v1744
  %1746 = vmatmul.bf16.gmra.mxu0 %v506
  %v1747 = vpop.f32.mrf.mxu0
  %v1748 = vadd.f32 %v1699, %v1747
  %v1749 = vpop.f32.mrf.mxu0
  %v1750 = vadd.f32 %v1701, %v1749
  %1751 = vmatmul.bf16.gmra.mxu0 %v515
  %v1752 = vpop.f32.mrf.mxu0
  %v1753 = vadd.f32 %v1704, %v1752
  %v1754 = vpop.f32.mrf.mxu0
  %v1755 = vadd.f32 %v1706, %v1754
  %1756 = vmatmul.bf16.gmra.mxu0 %v524
  %v1757 = vpop.f32.mrf.mxu0
  %v1758 = vadd.f32 %v1709, %v1757
  %v1759 = vpop.f32.mrf.mxu0
  %v1760 = vadd.f32 %v1711, %v1759
  %1761 = vmatmul.bf16.gmra.mxu0 %v533
  %v1762 = vpop.f32.mrf.mxu0
  %v1763 = vadd.f32 %v1714, %v1762
  %v1764 = vpop.f32.mrf.mxu0
  %v1765 = vadd.f32 %v1716, %v1764
  %1766 = vdwg.mxu0
  %1767 = vmatpush.bf16.msra.mxu0 %v1053
  %1768 = vmatpush.bf16.msra.mxu0 %v1051
  %1769 = vmatpush.bf16.msra.mxu0 %v1049
  %1770 = vmatpush.bf16.msra.mxu0 %v1047
  %1771 = vmatpush.bf16.msra.mxu0 %v1045
  %1772 = vmatpush.bf16.msra.mxu0 %v1043
  %1773 = vmatpush.bf16.msra.mxu0 %v1041
  %1774 = vmatpush.bf16.msra.mxu0 %v1039
  %1775 = vmatmul.bf16.gmra.mxu0 %v462
  %v1776 = vpop.f32.mrf.mxu0
  %v1777 = vadd.f32 0.0, %v1776
  %v1778 = vpop.f32.mrf.mxu0
  %v1779 = vadd.f32 0.0, %v1778
  %1780 = vmatmul.bf16.gmra.mxu0 %v471
  %v1781 = vpop.f32.mrf.mxu0
  %v1782 = vadd.f32 0.0, %v1781
  %v1783 = vpop.f32.mrf.mxu0
  %v1784 = vadd.f32 0.0, %v1783
  %1785 = vmatmul.bf16.gmra.mxu0 %v480
  %v1786 = vpop.f32.mrf.mxu0
  %v1787 = vadd.f32 0.0, %v1786
  %v1788 = vpop.f32.mrf.mxu0
  %v1789 = vadd.f32 0.0, %v1788
  %1790 = vmatmul.bf16.gmra.mxu0 %v489
  %v1791 = vpop.f32.mrf.mxu0
  %v1792 = vadd.f32 0.0, %v1791
  %v1793 = vpop.f32.mrf.mxu0
  %v1794 = vadd.f32 0.0, %v1793
  %1795 = vmatmul.bf16.gmra.mxu0 %v498
  %v1796 = vpop.f32.mrf.mxu0
  %v1797 = vadd.f32 0.0, %v1796
  %v1798 = vpop.f32.mrf.mxu0
  %v1799 = vadd.f32 0.0, %v1798
  %1800 = vmatmul.bf16.gmra.mxu0 %v507
  %v1801 = vpop.f32.mrf.mxu0
  %v1802 = vadd.f32 0.0, %v1801
  %v1803 = vpop.f32.mrf.mxu0
  %v1804 = vadd.f32 0.0, %v1803
  %1805 = vmatmul.bf16.gmra.mxu0 %v516
  %v1806 = vpop.f32.mrf.mxu0
  %v1807 = vadd.f32 0.0, %v1806
  %v1808 = vpop.f32.mrf.mxu0
  %v1809 = vadd.f32 0.0, %v1808
  %1810 = vmatmul.bf16.gmra.mxu0 %v525
  %v1811 = vpop.f32.mrf.mxu0
  %v1812 = vadd.f32 0.0, %v1811
  %v1813 = vpop.f32.mrf.mxu0
  %v1814 = vadd.f32 0.0, %v1813
  %1815 = vdwg.mxu0
  %1816 = vmatpush.bf16.msra.mxu0 %v1069
  %1817 = vmatpush.bf16.msra.mxu0 %v1067
  %1818 = vmatpush.bf16.msra.mxu0 %v1065
  %1819 = vmatpush.bf16.msra.mxu0 %v1063
  %1820 = vmatpush.bf16.msra.mxu0 %v1061
  %1821 = vmatpush.bf16.msra.mxu0 %v1059
  %1822 = vmatpush.bf16.msra.mxu0 %v1057
  %1823 = vmatpush.bf16.msra.mxu0 %v1055
  %1824 = vmatmul.bf16.gmra.mxu0 %v463
  %v1825 = vpop.f32.mrf.mxu0
  %v1826 = vadd.f32 %v1777, %v1825
  %v1827 = vpop.f32.mrf.mxu0
  %v1828 = vadd.f32 %v1779, %v1827
  %1829 = vmatmul.bf16.gmra.mxu0 %v472
  %v1830 = vpop.f32.mrf.mxu0
  %v1831 = vadd.f32 %v1782, %v1830
  %v1832 = vpop.f32.mrf.mxu0
  %v1833 = vadd.f32 %v1784, %v1832
  %1834 = vmatmul.bf16.gmra.mxu0 %v481
  %v1835 = vpop.f32.mrf.mxu0
  %v1836 = vadd.f32 %v1787, %v1835
  %v1837 = vpop.f32.mrf.mxu0
  %v1838 = vadd.f32 %v1789, %v1837
  %1839 = vmatmul.bf16.gmra.mxu0 %v490
  %v1840 = vpop.f32.mrf.mxu0
  %v1841 = vadd.f32 %v1792, %v1840
  %v1842 = vpop.f32.mrf.mxu0
  %v1843 = vadd.f32 %v1794, %v1842
  %1844 = vmatmul.bf16.gmra.mxu0 %v499
  %v1845 = vpop.f32.mrf.mxu0
  %v1846 = vadd.f32 %v1797, %v1845
  %v1847 = vpop.f32.mrf.mxu0
  %v1848 = vadd.f32 %v1799, %v1847
  %1849 = vmatmul.bf16.gmra.mxu0 %v508
  %v1850 = vpop.f32.mrf.mxu0
  %v1851 = vadd.f32 %v1802, %v1850
  %v1852 = vpop.f32.mrf.mxu0
  %v1853 = vadd.f32 %v1804, %v1852
  %1854 = vmatmul.bf16.gmra.mxu0 %v517
  %v1855 = vpop.f32.mrf.mxu0
  %v1856 = vadd.f32 %v1807, %v1855
  %v1857 = vpop.f32.mrf.mxu0
  %v1858 = vadd.f32 %v1809, %v1857
  %1859 = vmatmul.bf16.gmra.mxu0 %v526
  %v1860 = vpop.f32.mrf.mxu0
  %v1861 = vadd.f32 %v1812, %v1860
  %v1862 = vpop.f32.mrf.mxu0
  %v1863 = vadd.f32 %v1814, %v1862
  %1864 = vdwg.mxu0
  %1865 = vmatpush.bf16.msra.mxu0 %v1085
  %1866 = vmatpush.bf16.msra.mxu0 %v1083
  %1867 = vmatpush.bf16.msra.mxu0 %v1081
  %1868 = vmatpush.bf16.msra.mxu0 %v1079
  %1869 = vmatpush.bf16.msra.mxu0 %v1077
  %1870 = vmatpush.bf16.msra.mxu0 %v1075
  %1871 = vmatpush.bf16.msra.mxu0 %v1073
  %1872 = vmatpush.bf16.msra.mxu0 %v1071
  %1873 = vmatmul.bf16.gmra.mxu0 %v464
  %v1874 = vpop.f32.mrf.mxu0
  %v1875 = vadd.f32 %v1826, %v1874
  %v1876 = vpop.f32.mrf.mxu0
  %v1877 = vadd.f32 %v1828, %v1876
  %1878 = vmatmul.bf16.gmra.mxu0 %v473
  %v1879 = vpop.f32.mrf.mxu0
  %v1880 = vadd.f32 %v1831, %v1879
  %v1881 = vpop.f32.mrf.mxu0
  %v1882 = vadd.f32 %v1833, %v1881
  %1883 = vmatmul.bf16.gmra.mxu0 %v482
  %v1884 = vpop.f32.mrf.mxu0
  %v1885 = vadd.f32 %v1836, %v1884
  %v1886 = vpop.f32.mrf.mxu0
  %v1887 = vadd.f32 %v1838, %v1886
  %1888 = vmatmul.bf16.gmra.mxu0 %v491
  %v1889 = vpop.f32.mrf.mxu0
  %v1890 = vadd.f32 %v1841, %v1889
  %v1891 = vpop.f32.mrf.mxu0
  %v1892 = vadd.f32 %v1843, %v1891
  %1893 = vmatmul.bf16.gmra.mxu0 %v500
  %v1894 = vpop.f32.mrf.mxu0
  %v1895 = vadd.f32 %v1846, %v1894
  %v1896 = vpop.f32.mrf.mxu0
  %v1897 = vadd.f32 %v1848, %v1896
  %1898 = vmatmul.bf16.gmra.mxu0 %v509
  %v1899 = vpop.f32.mrf.mxu0
  %v1900 = vadd.f32 %v1851, %v1899
  %v1901 = vpop.f32.mrf.mxu0
  %v1902 = vadd.f32 %v1853, %v1901
  %1903 = vmatmul.bf16.gmra.mxu0 %v518
  %v1904 = vpop.f32.mrf.mxu0
  %v1905 = vadd.f32 %v1856, %v1904
  %v1906 = vpop.f32.mrf.mxu0
  %v1907 = vadd.f32 %v1858, %v1906
  %1908 = vmatmul.bf16.gmra.mxu0 %v527
  %v1909 = vpop.f32.mrf.mxu0
  %v1910 = vadd.f32 %v1861, %v1909
  %v1911 = vpop.f32.mrf.mxu0
  %v1912 = vadd.f32 %v1863, %v1911
  %1913 = vdwg.mxu0
  %1914 = vmatpush.bf16.msra.mxu0 %v1101
  %1915 = vmatpush.bf16.msra.mxu0 %v1099
  %1916 = vmatpush.bf16.msra.mxu0 %v1097
  %1917 = vmatpush.bf16.msra.mxu0 %v1095
  %1918 = vmatpush.bf16.msra.mxu0 %v1093
  %1919 = vmatpush.bf16.msra.mxu0 %v1091
  %1920 = vmatpush.bf16.msra.mxu0 %v1089
  %1921 = vmatpush.bf16.msra.mxu0 %v1087
  %1922 = vmatmul.bf16.gmra.mxu0 %v465
  %v1923 = vpop.f32.mrf.mxu0
  %v1924 = vadd.f32 %v1875, %v1923
  %v1925 = vpop.f32.mrf.mxu0
  %v1926 = vadd.f32 %v1877, %v1925
  %1927 = vmatmul.bf16.gmra.mxu0 %v474
  %v1928 = vpop.f32.mrf.mxu0
  %v1929 = vadd.f32 %v1880, %v1928
  %v1930 = vpop.f32.mrf.mxu0
  %v1931 = vadd.f32 %v1882, %v1930
  %1932 = vmatmul.bf16.gmra.mxu0 %v483
  %v1933 = vpop.f32.mrf.mxu0
  %v1934 = vadd.f32 %v1885, %v1933
  %v1935 = vpop.f32.mrf.mxu0
  %v1936 = vadd.f32 %v1887, %v1935
  %1937 = vmatmul.bf16.gmra.mxu0 %v492
  %v1938 = vpop.f32.mrf.mxu0
  %v1939 = vadd.f32 %v1890, %v1938
  %v1940 = vpop.f32.mrf.mxu0
  %v1941 = vadd.f32 %v1892, %v1940
  %1942 = vmatmul.bf16.gmra.mxu0 %v501
  %v1943 = vpop.f32.mrf.mxu0
  %v1944 = vadd.f32 %v1895, %v1943
  %v1945 = vpop.f32.mrf.mxu0
  %v1946 = vadd.f32 %v1897, %v1945
  %1947 = vmatmul.bf16.gmra.mxu0 %v510
  %v1948 = vpop.f32.mrf.mxu0
  %v1949 = vadd.f32 %v1900, %v1948
  %v1950 = vpop.f32.mrf.mxu0
  %v1951 = vadd.f32 %v1902, %v1950
  %1952 = vmatmul.bf16.gmra.mxu0 %v519
  %v1953 = vpop.f32.mrf.mxu0
  %v1954 = vadd.f32 %v1905, %v1953
  %v1955 = vpop.f32.mrf.mxu0
  %v1956 = vadd.f32 %v1907, %v1955
  %1957 = vmatmul.bf16.gmra.mxu0 %v528
  %v1958 = vpop.f32.mrf.mxu0
  %v1959 = vadd.f32 %v1910, %v1958
  %v1960 = vpop.f32.mrf.mxu0
  %v1961 = vadd.f32 %v1912, %v1960
  %1962 = vdwg.mxu0
  %1963 = vmatpush.bf16.msra.mxu0 %v1117
  %1964 = vmatpush.bf16.msra.mxu0 %v1115
  %1965 = vmatpush.bf16.msra.mxu0 %v1113
  %1966 = vmatpush.bf16.msra.mxu0 %v1111
  %1967 = vmatpush.bf16.msra.mxu0 %v1109
  %1968 = vmatpush.bf16.msra.mxu0 %v1107
  %1969 = vmatpush.bf16.msra.mxu0 %v1105
  %1970 = vmatpush.bf16.msra.mxu0 %v1103
  %1971 = vmatmul.bf16.gmra.mxu0 %v466
  %v1972 = vpop.f32.mrf.mxu0
  %v1973 = vadd.f32 %v1924, %v1972
  %v1974 = vpop.f32.mrf.mxu0
  %v1975 = vadd.f32 %v1926, %v1974
  %1976 = vmatmul.bf16.gmra.mxu0 %v475
  %v1977 = vpop.f32.mrf.mxu0
  %v1978 = vadd.f32 %v1929, %v1977
  %v1979 = vpop.f32.mrf.mxu0
  %v1980 = vadd.f32 %v1931, %v1979
  %1981 = vmatmul.bf16.gmra.mxu0 %v484
  %v1982 = vpop.f32.mrf.mxu0
  %v1983 = vadd.f32 %v1934, %v1982
  %v1984 = vpop.f32.mrf.mxu0
  %v1985 = vadd.f32 %v1936, %v1984
  %1986 = vmatmul.bf16.gmra.mxu0 %v493
  %v1987 = vpop.f32.mrf.mxu0
  %v1988 = vadd.f32 %v1939, %v1987
  %v1989 = vpop.f32.mrf.mxu0
  %v1990 = vadd.f32 %v1941, %v1989
  %1991 = vmatmul.bf16.gmra.mxu0 %v502
  %v1992 = vpop.f32.mrf.mxu0
  %v1993 = vadd.f32 %v1944, %v1992
  %v1994 = vpop.f32.mrf.mxu0
  %v1995 = vadd.f32 %v1946, %v1994
  %1996 = vmatmul.bf16.gmra.mxu0 %v511
  %v1997 = vpop.f32.mrf.mxu0
  %v1998 = vadd.f32 %v1949, %v1997
  %v1999 = vpop.f32.mrf.mxu0
  %v2000 = vadd.f32 %v1951, %v1999
  %2001 = vmatmul.bf16.gmra.mxu0 %v520
  %v2002 = vpop.f32.mrf.mxu0
  %v2003 = vadd.f32 %v1954, %v2002
  %v2004 = vpop.f32.mrf.mxu0
  %v2005 = vadd.f32 %v1956, %v2004
  %2006 = vmatmul.bf16.gmra.mxu0 %v529
  %v2007 = vpop.f32.mrf.mxu0
  %v2008 = vadd.f32 %v1959, %v2007
  %v2009 = vpop.f32.mrf.mxu0
  %v2010 = vadd.f32 %v1961, %v2009
  %2011 = vdwg.mxu0
  %2012 = vmatpush.bf16.msra.mxu0 %v1133
  %2013 = vmatpush.bf16.msra.mxu0 %v1131
  %2014 = vmatpush.bf16.msra.mxu0 %v1129
  %2015 = vmatpush.bf16.msra.mxu0 %v1127
  %2016 = vmatpush.bf16.msra.mxu0 %v1125
  %2017 = vmatpush.bf16.msra.mxu0 %v1123
  %2018 = vmatpush.bf16.msra.mxu0 %v1121
  %2019 = vmatpush.bf16.msra.mxu0 %v1119
  %2020 = vmatmul.bf16.gmra.mxu0 %v467
  %v2021 = vpop.f32.mrf.mxu0
  %v2022 = vadd.f32 %v1973, %v2021
  %v2023 = vpop.f32.mrf.mxu0
  %v2024 = vadd.f32 %v1975, %v2023
  %2025 = vmatmul.bf16.gmra.mxu0 %v476
  %v2026 = vpop.f32.mrf.mxu0
  %v2027 = vadd.f32 %v1978, %v2026
  %v2028 = vpop.f32.mrf.mxu0
  %v2029 = vadd.f32 %v1980, %v2028
  %2030 = vmatmul.bf16.gmra.mxu0 %v485
  %v2031 = vpop.f32.mrf.mxu0
  %v2032 = vadd.f32 %v1983, %v2031
  %v2033 = vpop.f32.mrf.mxu0
  %v2034 = vadd.f32 %v1985, %v2033
  %2035 = vmatmul.bf16.gmra.mxu0 %v494
  %v2036 = vpop.f32.mrf.mxu0
  %v2037 = vadd.f32 %v1988, %v2036
  %v2038 = vpop.f32.mrf.mxu0
  %v2039 = vadd.f32 %v1990, %v2038
  %2040 = vmatmul.bf16.gmra.mxu0 %v503
  %v2041 = vpop.f32.mrf.mxu0
  %v2042 = vadd.f32 %v1993, %v2041
  %v2043 = vpop.f32.mrf.mxu0
  %v2044 = vadd.f32 %v1995, %v2043
  %2045 = vmatmul.bf16.gmra.mxu0 %v512
  %v2046 = vpop.f32.mrf.mxu0
  %v2047 = vadd.f32 %v1998, %v2046
  %v2048 = vpop.f32.mrf.mxu0
  %v2049 = vadd.f32 %v2000, %v2048
  %2050 = vmatmul.bf16.gmra.mxu0 %v521
  %v2051 = vpop.f32.mrf.mxu0
  %v2052 = vadd.f32 %v2003, %v2051
  %v2053 = vpop.f32.mrf.mxu0
  %v2054 = vadd.f32 %v2005, %v2053
  %2055 = vmatmul.bf16.gmra.mxu0 %v530
  %v2056 = vpop.f32.mrf.mxu0
  %v2057 = vadd.f32 %v2008, %v2056
  %v2058 = vpop.f32.mrf.mxu0
  %v2059 = vadd.f32 %v2010, %v2058
  %2060 = vdwg.mxu0
  %2061 = vmatpush.bf16.msra.mxu0 %v1149
  %2062 = vmatpush.bf16.msra.mxu0 %v1147
  %2063 = vmatpush.bf16.msra.mxu0 %v1145
  %2064 = vmatpush.bf16.msra.mxu0 %v1143
  %2065 = vmatpush.bf16.msra.mxu0 %v1141
  %2066 = vmatpush.bf16.msra.mxu0 %v1139
  %2067 = vmatpush.bf16.msra.mxu0 %v1137
  %2068 = vmatpush.bf16.msra.mxu0 %v1135
  %2069 = vmatmul.bf16.gmra.mxu0 %v468
  %v2070 = vpop.f32.mrf.mxu0
  %v2071 = vadd.f32 %v2022, %v2070
  %v2072 = vpop.f32.mrf.mxu0
  %v2073 = vadd.f32 %v2024, %v2072
  %2074 = vmatmul.bf16.gmra.mxu0 %v477
  %v2075 = vpop.f32.mrf.mxu0
  %v2076 = vadd.f32 %v2027, %v2075
  %v2077 = vpop.f32.mrf.mxu0
  %v2078 = vadd.f32 %v2029, %v2077
  %2079 = vmatmul.bf16.gmra.mxu0 %v486
  %v2080 = vpop.f32.mrf.mxu0
  %v2081 = vadd.f32 %v2032, %v2080
  %v2082 = vpop.f32.mrf.mxu0
  %v2083 = vadd.f32 %v2034, %v2082
  %2084 = vmatmul.bf16.gmra.mxu0 %v495
  %v2085 = vpop.f32.mrf.mxu0
  %v2086 = vadd.f32 %v2037, %v2085
  %v2087 = vpop.f32.mrf.mxu0
  %v2088 = vadd.f32 %v2039, %v2087
  %2089 = vmatmul.bf16.gmra.mxu0 %v504
  %v2090 = vpop.f32.mrf.mxu0
  %v2091 = vadd.f32 %v2042, %v2090
  %v2092 = vpop.f32.mrf.mxu0
  %v2093 = vadd.f32 %v2044, %v2092
  %2094 = vmatmul.bf16.gmra.mxu0 %v513
  %v2095 = vpop.f32.mrf.mxu0
  %v2096 = vadd.f32 %v2047, %v2095
  %v2097 = vpop.f32.mrf.mxu0
  %v2098 = vadd.f32 %v2049, %v2097
  %2099 = vmatmul.bf16.gmra.mxu0 %v522
  %v2100 = vpop.f32.mrf.mxu0
  %v2101 = vadd.f32 %v2052, %v2100
  %v2102 = vpop.f32.mrf.mxu0
  %v2103 = vadd.f32 %v2054, %v2102
  %2104 = vmatmul.bf16.gmra.mxu0 %v531
  %v2105 = vpop.f32.mrf.mxu0
  %v2106 = vadd.f32 %v2057, %v2105
  %v2107 = vpop.f32.mrf.mxu0
  %v2108 = vadd.f32 %v2059, %v2107
  %2109 = vdwg.mxu0
  %2110 = vmatpush.bf16.msra.mxu0 %v1165
  %2111 = vmatpush.bf16.msra.mxu0 %v1163
  %2112 = vmatpush.bf16.msra.mxu0 %v1161
  %2113 = vmatpush.bf16.msra.mxu0 %v1159
  %2114 = vmatpush.bf16.msra.mxu0 %v1157
  %2115 = vmatpush.bf16.msra.mxu0 %v1155
  %2116 = vmatpush.bf16.msra.mxu0 %v1153
  %2117 = vmatpush.bf16.msra.mxu0 %v1151
  %2118 = vmatmul.bf16.gmra.mxu0 %v469
  %v2119 = vpop.f32.mrf.mxu0
  %v2120 = vadd.f32 %v2071, %v2119
  %v2121 = vpop.f32.mrf.mxu0
  %v2122 = vadd.f32 %v2073, %v2121
  %2123 = vmatmul.bf16.gmra.mxu0 %v478
  %v2124 = vpop.f32.mrf.mxu0
  %v2125 = vadd.f32 %v2076, %v2124
  %v2126 = vpop.f32.mrf.mxu0
  %v2127 = vadd.f32 %v2078, %v2126
  %2128 = vmatmul.bf16.gmra.mxu0 %v487
  %v2129 = vpop.f32.mrf.mxu0
  %v2130 = vadd.f32 %v2081, %v2129
  %v2131 = vpop.f32.mrf.mxu0
  %v2132 = vadd.f32 %v2083, %v2131
  %2133 = vmatmul.bf16.gmra.mxu0 %v496
  %v2134 = vpop.f32.mrf.mxu0
  %v2135 = vadd.f32 %v2086, %v2134
  %v2136 = vpop.f32.mrf.mxu0
  %v2137 = vadd.f32 %v2088, %v2136
  %2138 = vmatmul.bf16.gmra.mxu0 %v505
  %v2139 = vpop.f32.mrf.mxu0
  %v2140 = vadd.f32 %v2091, %v2139
  %v2141 = vpop.f32.mrf.mxu0
  %v2142 = vadd.f32 %v2093, %v2141
  %2143 = vmatmul.bf16.gmra.mxu0 %v514
  %v2144 = vpop.f32.mrf.mxu0
  %v2145 = vadd.f32 %v2096, %v2144
  %v2146 = vpop.f32.mrf.mxu0
  %v2147 = vadd.f32 %v2098, %v2146
  %2148 = vmatmul.bf16.gmra.mxu0 %v523
  %v2149 = vpop.f32.mrf.mxu0
  %v2150 = vadd.f32 %v2101, %v2149
  %v2151 = vpop.f32.mrf.mxu0
  %v2152 = vadd.f32 %v2103, %v2151
  %2153 = vmatmul.bf16.gmra.mxu0 %v532
  %v2154 = vpop.f32.mrf.mxu0
  %v2155 = vadd.f32 %v2106, %v2154
  %v2156 = vpop.f32.mrf.mxu0
  %v2157 = vadd.f32 %v2108, %v2156
  %2158 = vdwg.mxu0
  %2159 = vmatpush.bf16.msra.mxu0 %v1181
  %2160 = vmatpush.bf16.msra.mxu0 %v1179
  %2161 = vmatpush.bf16.msra.mxu0 %v1177
  %2162 = vmatpush.bf16.msra.mxu0 %v1175
  %2163 = vmatpush.bf16.msra.mxu0 %v1173
  %2164 = vmatpush.bf16.msra.mxu0 %v1171
  %2165 = vmatpush.bf16.msra.mxu0 %v1169
  %2166 = vmatpush.bf16.msra.mxu0 %v1167
  %2167 = vmatmul.bf16.gmra.mxu0 %v470
  %v2168 = vpop.f32.mrf.mxu0
  %v2169 = vadd.f32 %v2120, %v2168
  %v2170 = vpop.f32.mrf.mxu0
  %v2171 = vadd.f32 %v2122, %v2170
  %2172 = vmatmul.bf16.gmra.mxu0 %v479
  %v2173 = vpop.f32.mrf.mxu0
  %v2174 = vadd.f32 %v2125, %v2173
  %v2175 = vpop.f32.mrf.mxu0
  %v2176 = vadd.f32 %v2127, %v2175
  %2177 = vmatmul.bf16.gmra.mxu0 %v488
  %v2178 = vpop.f32.mrf.mxu0
  %v2179 = vadd.f32 %v2130, %v2178
  %v2180 = vpop.f32.mrf.mxu0
  %v2181 = vadd.f32 %v2132, %v2180
  %2182 = vmatmul.bf16.gmra.mxu0 %v497
  %v2183 = vpop.f32.mrf.mxu0
  %v2184 = vadd.f32 %v2135, %v2183
  %v2185 = vpop.f32.mrf.mxu0
  %v2186 = vadd.f32 %v2137, %v2185
  %2187 = vmatmul.bf16.gmra.mxu0 %v506
  %v2188 = vpop.f32.mrf.mxu0
  %v2189 = vadd.f32 %v2140, %v2188
  %v2190 = vpop.f32.mrf.mxu0
  %v2191 = vadd.f32 %v2142, %v2190
  %2192 = vmatmul.bf16.gmra.mxu0 %v515
  %v2193 = vpop.f32.mrf.mxu0
  %v2194 = vadd.f32 %v2145, %v2193
  %v2195 = vpop.f32.mrf.mxu0
  %v2196 = vadd.f32 %v2147, %v2195
  %2197 = vmatmul.bf16.gmra.mxu0 %v524
  %v2198 = vpop.f32.mrf.mxu0
  %v2199 = vadd.f32 %v2150, %v2198
  %v2200 = vpop.f32.mrf.mxu0
  %v2201 = vadd.f32 %v2152, %v2200
  %2202 = vmatmul.bf16.gmra.mxu0 %v533
  %v2203 = vpop.f32.mrf.mxu0
  %v2204 = vadd.f32 %v2155, %v2203
  %v2205 = vpop.f32.mrf.mxu0
  %v2206 = vadd.f32 %v2157, %v2205
  %2207 = vdwg.mxu0
  %2208 = vst [vmem:[%s2] sm:$0xff] %v1728
  %2209 = vst [vmem:[%s2 + $0x8] sm:$0xff] %v2169
  %2210 = vst [vmem:[%s2 + $0x10] sm:$0xff] %v1730
  %2211 = vst [vmem:[%s2 + $0x18] sm:$0xff] %v2171
  %2212 = vst [vmem:[%s2 + $0x20] sm:$0xff] %v1733
  %2213 = vst [vmem:[%s2 + $0x28] sm:$0xff] %v2174
  %2214 = vst [vmem:[%s2 + $0x30] sm:$0xff] %v1735
  %2215 = vst [vmem:[%s2 + $0x38] sm:$0xff] %v2176
  %2216 = vst [vmem:[%s2 + $0x40] sm:$0xff] %v1738
  %2217 = vst [vmem:[%s2 + $0x48] sm:$0xff] %v2179
  %2218 = vst [vmem:[%s2 + $0x50] sm:$0xff] %v1740
  %2219 = vst [vmem:[%s2 + $0x58] sm:$0xff] %v2181
  %2220 = vst [vmem:[%s2 + $0x60] sm:$0xff] %v1743
  %2221 = vst [vmem:[%s2 + $0x68] sm:$0xff] %v2184
  %2222 = vst [vmem:[%s2 + $0x70] sm:$0xff] %v1745
  %2223 = vst [vmem:[%s2 + $0x78] sm:$0xff] %v2186
  %2224 = vst [vmem:[%s2 + $0x80] sm:$0xff] %v1748
  %2225 = vst [vmem:[%s2 + $0x88] sm:$0xff] %v2189
  %2226 = vst [vmem:[%s2 + $0x90] sm:$0xff] %v1750
  %2227 = vst [vmem:[%s2 + $0x98] sm:$0xff] %v2191
  %2228 = vst [vmem:[%s2 + $0xa0] sm:$0xff] %v1753
  %2229 = vst [vmem:[%s2 + $0xa8] sm:$0xff] %v2194
  %2230 = vst [vmem:[%s2 + $0xb0] sm:$0xff] %v1755
  %2231 = vst [vmem:[%s2 + $0xb8] sm:$0xff] %v2196
  %2232 = vst [vmem:[%s2 + $0xc0] sm:$0xff] %v1758
  %2233 = vst [vmem:[%s2 + $0xc8] sm:$0xff] %v2199
  %2234 = vst [vmem:[%s2 + $0xd0] sm:$0xff] %v1760
  %2235 = vst [vmem:[%s2 + $0xd8] sm:$0xff] %v2201
  %2236 = vst [vmem:[%s2 + $0xe0] sm:$0xff] %v1763
  %2237 = vst [vmem:[%s2 + $0xe8] sm:$0xff] %v2204
  %2238 = vst [vmem:[%s2 + $0xf0] sm:$0xff] %v1765
  %2239 = vst [vmem:[%s2 + $0xf8] sm:$0xff] %v2206
  %p2240 = scmp.eq.s32.totalorder 0, 0
  // Predicated region
  $region10: #{dcgan_generator.11} parent=0 // pred_check
    %p2241 = pneg %p2240
  $region11: #{dcgan_generator.11} parent=0 // pred_check_branch
    %2243 = sbr.rel (%p2241) target = $region13
  $region12: #{dcgan_generator.11} parent=0 // pred_region
    %v2244 = vlaneseq
    %vm2245 = vcmp.ge.s32.totalorder %v2244, 0
    %vm2246 = vcmp.lt.s32.totalorder %v2244, 256
    %vm2247 = vmand %vm2245, %vm2246
    %2248 = vst.msk [vmem:[#allocation2] sm:$0x3] %vm2247, 0.0
    %2249 = vst.msk [vmem:[#allocation3] sm:$0x3] %vm2247, 0.0
  $region13: #{dcgan_generator.11} parent=0 // pred_fallthru
    _
  %v2250 = vld [vmem:[#allocation2] sm:$0x3]
  %v2251 = vadd.f32 %v1728, %v1730
  %v2252 = vadd.f32 %v2251, %v1733
  %v2253 = vadd.f32 %v2252, %v1735
  %v2254 = vadd.f32 %v2253, %v1738
  %v2255 = vadd.f32 %v2254, %v1740
  %v2256 = vadd.f32 %v2255, %v1743
  %v2257 = vadd.f32 %v2256, %v1745
  %v2258 = vadd.f32 %v2257, %v1748
  %v2259 = vadd.f32 %v2258, %v1750
  %v2260 = vadd.f32 %v2259, %v1753
  %v2261 = vadd.f32 %v2260, %v1755
  %v2262 = vadd.f32 %v2261, %v1758
  %v2263 = vadd.f32 %v2262, %v1760
  %v2264 = vadd.f32 %v2263, %v1763
  %v2265 = vadd.f32 %v2264, %v1765
  %v2266 = vrot.slane %v2265, 4
  %v2267 = vadd.f32 %v2265, %v2266
  %v2268 = vrot.slane %v2267, 2
  %v2269 = vadd.f32 %v2267, %v2268
  %v2270 = vrot.slane %v2269, 1
  %v2271 = vadd.f32 %v2269, %v2270
  %v2272 = vadd.f32 %v2169, %v2171
  %v2273 = vadd.f32 %v2272, %v2174
  %v2274 = vadd.f32 %v2273, %v2176
  %v2275 = vadd.f32 %v2274, %v2179
  %v2276 = vadd.f32 %v2275, %v2181
  %v2277 = vadd.f32 %v2276, %v2184
  %v2278 = vadd.f32 %v2277, %v2186
  %v2279 = vadd.f32 %v2278, %v2189
  %v2280 = vadd.f32 %v2279, %v2191
  %v2281 = vadd.f32 %v2280, %v2194
  %v2282 = vadd.f32 %v2281, %v2196
  %v2283 = vadd.f32 %v2282, %v2199
  %v2284 = vadd.f32 %v2283, %v2201
  %v2285 = vadd.f32 %v2284, %v2204
  %v2286 = vadd.f32 %v2285, %v2206
  %v2287 = vrot.slane %v2286, 4
  %v2288 = vadd.f32 %v2286, %v2287
  %v2289 = vrot.slane %v2288, 2
  %v2290 = vadd.f32 %v2288, %v2289
  %v2291 = vrot.slane %v2290, 1
  %v2292 = vadd.f32 %v2290, %v2291
  %v2295 = vrot.slane %v2292, 7
  %vm2296 = vcmask 1040384
  %v2297 = vsel %vm2296, %v2271, %v2295
  %v2299 = vadd.f32 %v2250, %v2297
  %v2300 = vlaneseq
  %vm2301 = vcmp.ge.s32.totalorder %v2300, 0
  %vm2302 = vcmp.lt.s32.totalorder %v2300, 256
  %vm2303 = vmand %vm2301, %vm2302
  %2304 = vst.msk [vmem:[#allocation2] sm:$0x3] %vm2303, %v2299
  %v2305 = vld [vmem:[#allocation3] sm:$0x3]
  %v2306 = vmul.f32 %v1728, %v1728
  %v2307 = vmul.f32 %v2169, %v2169
  %v2308 = vmul.f32 %v1730, %v1730
  %v2309 = vmul.f32 %v2171, %v2171
  %v2310 = vmul.f32 %v1733, %v1733
  %v2311 = vmul.f32 %v2174, %v2174
  %v2312 = vmul.f32 %v1735, %v1735
  %v2313 = vmul.f32 %v2176, %v2176
  %v2314 = vmul.f32 %v1738, %v1738
  %v2315 = vmul.f32 %v2179, %v2179
  %v2316 = vmul.f32 %v1740, %v1740
  %v2317 = vmul.f32 %v2181, %v2181
  %v2318 = vmul.f32 %v1743, %v1743
  %v2319 = vmul.f32 %v2184, %v2184
  %v2320 = vmul.f32 %v1745, %v1745
  %v2321 = vmul.f32 %v2186, %v2186
  %v2322 = vmul.f32 %v1748, %v1748
  %v2323 = vmul.f32 %v2189, %v2189
  %v2324 = vmul.f32 %v1750, %v1750
  %v2325 = vmul.f32 %v2191, %v2191
  %v2326 = vmul.f32 %v1753, %v1753
  %v2327 = vmul.f32 %v2194, %v2194
  %v2328 = vmul.f32 %v1755, %v1755
  %v2329 = vmul.f32 %v2196, %v2196
  %v2330 = vmul.f32 %v1758, %v1758
  %v2331 = vmul.f32 %v2199, %v2199
  %v2332 = vmul.f32 %v1760, %v1760
  %v2333 = vmul.f32 %v2201, %v2201
  %v2334 = vmul.f32 %v1763, %v1763
  %v2335 = vmul.f32 %v2204, %v2204
  %v2336 = vmul.f32 %v1765, %v1765
  %v2337 = vmul.f32 %v2206, %v2206
  %v2338 = vadd.f32 %v2306, %v2308
  %v2339 = vadd.f32 %v2338, %v2310
  %v2340 = vadd.f32 %v2339, %v2312
  %v2341 = vadd.f32 %v2340, %v2314
  %v2342 = vadd.f32 %v2341, %v2316
  %v2343 = vadd.f32 %v2342, %v2318
  %v2344 = vadd.f32 %v2343, %v2320
  %v2345 = vadd.f32 %v2344, %v2322
  %v2346 = vadd.f32 %v2345, %v2324
  %v2347 = vadd.f32 %v2346, %v2326
  %v2348 = vadd.f32 %v2347, %v2328
  %v2349 = vadd.f32 %v2348, %v2330
  %v2350 = vadd.f32 %v2349, %v2332
  %v2351 = vadd.f32 %v2350, %v2334
  %v2352 = vadd.f32 %v2351, %v2336
  %v2353 = vrot.slane %v2352, 4
  %v2354 = vadd.f32 %v2352, %v2353
  %v2355 = vrot.slane %v2354, 2
  %v2356 = vadd.f32 %v2354, %v2355
  %v2357 = vrot.slane %v2356, 1
  %v2358 = vadd.f32 %v2356, %v2357
  %v2359 = vadd.f32 %v2307, %v2309
  %v2360 = vadd.f32 %v2359, %v2311
  %v2361 = vadd.f32 %v2360, %v2313
  %v2362 = vadd.f32 %v2361, %v2315
  %v2363 = vadd.f32 %v2362, %v2317
  %v2364 = vadd.f32 %v2363, %v2319
  %v2365 = vadd.f32 %v2364, %v2321
  %v2366 = vadd.f32 %v2365, %v2323
  %v2367 = vadd.f32 %v2366, %v2325
  %v2368 = vadd.f32 %v2367, %v2327
  %v2369 = vadd.f32 %v2368, %v2329
  %v2370 = vadd.f32 %v2369, %v2331
  %v2371 = vadd.f32 %v2370, %v2333
  %v2372 = vadd.f32 %v2371, %v2335
  %v2373 = vadd.f32 %v2372, %v2337
  %v2374 = vrot.slane %v2373, 4
  %v2375 = vadd.f32 %v2373, %v2374
  %v2376 = vrot.slane %v2375, 2
  %v2377 = vadd.f32 %v2375, %v2376
  %v2378 = vrot.slane %v2377, 1
  %v2379 = vadd.f32 %v2377, %v2378
  %v2382 = vrot.slane %v2379, 7
  %v2383 = vsel %vm2296, %v2358, %v2382
  %v2385 = vadd.f32 %v2305, %v2383
  %2386 = vst.msk [vmem:[#allocation3] sm:$0x3] %vm2303, %v2385
  // Predicated region
  $region14: #{dcgan_generator.11} parent=0 // pred_check
    %p2387 = pneg %p2240
  $region15: #{dcgan_generator.11} parent=0 // pred_check_branch
    %2389 = sbr.rel (%p2387) target = $region17
  $region16: #{dcgan_generator.11} parent=0 // pred_region
    %v2390 = vld [vmem:[#allocation2] sm:$0x3]
    %2391 = vst.msk [vmem:[%s3] sm:$0x3] %vm2303, %v2390
    %v2392 = vld [vmem:[#allocation3] sm:$0x3]
    %2393 = vst.msk [vmem:[%s4] sm:$0x3] %vm2303, %v2392
  $region17: #{dcgan_generator.11} parent=0 // pred_fallthru
    _
  // Predicated region
  $region18: #{dcgan_generator.11} parent=0 // pred_check
    _
  $region19: #{dcgan_generator.11} parent=0 // pred_check_branch
    %2395 = sbr.rel (0) target = $region21
  $region20: #{dcgan_generator.11} parent=0 // pred_region
    _
  $region21: #{dcgan_generator.11} parent=0 // pred_fallthru
    _
  // Predicated region
  $region22: #{dcgan_generator.11} parent=0 // pred_check
    _
  $region23: #{dcgan_generator.11} parent=0 // pred_check_branch
    %2397 = sbr.rel (0) target = $region25
  $region24: #{dcgan_generator.11} parent=0 // pred_region
    _
  $region25: #{dcgan_generator.11} parent=0 // pred_fallthru
    _
  // Predicated region
  $region26: #{dcgan_generator.11} parent=0 // pred_check
    _
  $region27: #{dcgan_generator.11} parent=0 // pred_check_branch
    %2399 = sbr.rel (0) target = $region29
  $region28: #{dcgan_generator.11} parent=0 // pred_region
    _
  $region29: #{dcgan_generator.11} parent=0 // pred_fallthru
    _
  // Predicated region
  $region30: #{dcgan_generator.11} parent=0 // pred_check
    _
  $region31: #{dcgan_generator.11} parent=0 // pred_check_branch
    %2401 = sbr.rel (0) target = $region33
  $region32: #{dcgan_generator.11} parent=0 // pred_region
    _
  $region33: #{dcgan_generator.11} parent=0 // pred_fallthru
    _
  // Predicated region
  $region34: #{dcgan_generator.11} parent=0 // pred_check
    _
  $region35: #{dcgan_generator.11} parent=0 // pred_check_branch
    %2403 = sbr.rel (0) target = $region37
  $region36: #{dcgan_generator.11} parent=0 // pred_region
    _
  $region37: #{dcgan_generator.11} parent=0 // pred_fallthru
    _
  // Predicated region
  $region38: #{dcgan_generator.11} parent=0 // pred_check
    _
  $region39: #{dcgan_generator.11} parent=0 // pred_check_branch
    %2405 = sbr.rel (0) target = $region41
  $region40: #{dcgan_generator.11} parent=0 // pred_region
    _
  $region41: #{dcgan_generator.11} parent=0 // pred_fallthru
    _

// kernel: dcgan_generator.9
$region0: #{dcgan_generator.9}
  #allocation0 [shape = 'u32[]', space=smem, size = 0x4, offset = 0x4, fixed_abs, tag = 'smem constant byte address 0x4 - core index']
  #allocation1 [shape = 'u32[72,128]{1,0:T(1,128)}', space=vmem, size = 0x9000, scoped, tag = 'internal scratch']
  #allocation2 [shape = 'f32[1,512]{1,0:T(1,128)}', space=vmem, size = 0x800, scoped, tag = 'scratch operand']
  #allocation3 [shape = 'f32[1,512]{1,0:T(1,128)}', space=vmem, size = 0x800, scoped, tag = 'scratch operand']
  %s0 = inlined_call_operand.vmem [shape: bf16[32,2304], index: 0, kind: input, shape index: {}]
  %s1 = inlined_call_operand.hbm [shape: bf16[2304,512], index: 1, kind: input, shape index: {}]
  %s2 = inlined_call_operand.vmem [shape: f32[32,512], index: 2, kind: output, shape index: {0}]
  %s3 = inlined_call_operand.vmem [shape: f32[1,512], index: 3, kind: output, shape index: {1}]
  %s4 = inlined_call_operand.vmem [shape: f32[1,512], index: 4, kind: output, shape index: {2}]
  %5 = xla_tuple %s2, %s3, %s4
  %s6 = sld [smem:[#allocation0]]
  $region46: #{dcgan_generator.9} parent=0
    _
  %s8 = ssub.s32 1, %s6
  %s9 = scalar_select 0, %s8, %s6
  $region1: #{dcgan_generator.9} parent=0
    #allocation4 [shape = 'u8[2359296]{0}', space=vmem, size = 0x240000, scoped, tag = 'input window, operand 1, single buffered']
    #allocation5 [shape = 's32[1]{0}', space=sflag, size = 0x4, scoped, tag = 'scoped memory for dcgan_generator.9']
    %10 = vsyncpa [#allocation5], 0
    // Predicated region
    $region2: #{dcgan_generator.9} parent=1 // pred_check
      _
    $region3: #{dcgan_generator.9} parent=1 // pred_check_branch
      %12 = sbr.rel (0) target = $region5
    $region4: #{dcgan_generator.9} parent=1 // pred_region
      _
    $region5: #{dcgan_generator.9} parent=1 // pred_fallthru
      _
    // Predicated region
    $region6: #{dcgan_generator.9} parent=1 // pred_check
      _
    $region7: #{dcgan_generator.9} parent=1 // pred_check_branch
      %14 = sbr.rel (0) target = $region9
    $region8: #{dcgan_generator.9} parent=1 // pred_region
      %16 = vsyncadd [#allocation5], 0
      %s17 = sshll.u32 %s1, 4
      %s18 = int_to_ptr.hbm [resolvable:$true] %s17
      %s19 = sshll.u32 [#allocation4], 4
      %s20 = int_to_ptr.vmem [resolvable:$true] %s19
      %25 = dma.hbm_to_vmem [thread:$0]  %s18, 73728, %s20, [#allocation5], 256, 256, 16
    $region9: #{dcgan_generator.9} parent=1 // pred_fallthru
      _
    // Predicated region
    $region10: #{dcgan_generator.9} parent=1 // pred_check
      _
    $region11: #{dcgan_generator.9} parent=1 // pred_check_branch
      %27 = sbr.rel (0) target = $region13
    $region12: #{dcgan_generator.9} parent=1 // pred_region
      %29 = dma.done [#allocation5], 73728
    $region13: #{dcgan_generator.9} parent=1 // pred_fallthru
      _
    %v30 = vld [vmem:[%s0] sm:$0xff]
    %v31 = vld [vmem:[%s0 + $0x8] sm:$0xff]
    %v32 = vld [vmem:[%s0 + $0x10] sm:$0xff]
    %v33 = vld [vmem:[%s0 + $0x18] sm:$0xff]
    %v34 = vld [vmem:[%s0 + $0x20] sm:$0xff]
    %v35 = vld [vmem:[%s0 + $0x28] sm:$0xff]
    %v36 = vld [vmem:[%s0 + $0x30] sm:$0xff]
    %v37 = vld [vmem:[%s0 + $0x38] sm:$0xff]
    %v38 = vld [vmem:[%s0 + $0x40] sm:$0xff]
    %v39 = vld [vmem:[%s0 + $0x48] sm:$0xff]
    %v40 = vld [vmem:[%s0 + $0x50] sm:$0xff]
    %v41 = vld [vmem:[%s0 + $0x58] sm:$0xff]
    %v42 = vld [vmem:[%s0 + $0x60] sm:$0xff]
    %v43 = vld [vmem:[%s0 + $0x68] sm:$0xff]
    %v44 = vld [vmem:[%s0 + $0x70] sm:$0xff]
    %v45 = vld [vmem:[%s0 + $0x78] sm:$0xff]
    %v46 = vld [vmem:[%s0 + $0x80] sm:$0xff]
    %v47 = vld [vmem:[%s0 + $0x88] sm:$0xff]
    %v48 = vld [vmem:[%s0 + $0x90] sm:$0xff]
    %v49 = vld [vmem:[%s0 + $0x98] sm:$0xff]
    %v50 = vld [vmem:[%s0 + $0xa0] sm:$0xff]
    %v51 = vld [vmem:[%s0 + $0xa8] sm:$0xff]
    %v52 = vld [vmem:[%s0 + $0xb0] sm:$0xff]
    %v53 = vld [vmem:[%s0 + $0xb8] sm:$0xff]
    %v54 = vld [vmem:[%s0 + $0xc0] sm:$0xff]
    %v55 = vld [vmem:[%s0 + $0xc8] sm:$0xff]
    %v56 = vld [vmem:[%s0 + $0xd0] sm:$0xff]
    %v57 = vld [vmem:[%s0 + $0xd8] sm:$0xff]
    %v58 = vld [vmem:[%s0 + $0xe0] sm:$0xff]
    %v59 = vld [vmem:[%s0 + $0xe8] sm:$0xff]
    %v60 = vld [vmem:[%s0 + $0xf0] sm:$0xff]
    %v61 = vld [vmem:[%s0 + $0xf8] sm:$0xff]
    %v62 = vld [vmem:[%s0 + $0x100] sm:$0xff]
    %v63 = vld [vmem:[%s0 + $0x108] sm:$0xff]
    %v64 = vld [vmem:[%s0 + $0x110] sm:$0xff]
    %v65 = vld [vmem:[%s0 + $0x118] sm:$0xff]
    %v66 = vld [vmem:[#allocation4] sm:$0xff]
    %v67 = vld [vmem:[#allocation4 + $0x8] sm:$0xff]
    %v68 = vld [vmem:[#allocation4 + $0x10] sm:$0xff]
    %v69 = vld [vmem:[#allocation4 + $0x18] sm:$0xff]
    %v70 = vld [vmem:[#allocation4 + $0x20] sm:$0xff]
    %v71 = vld [vmem:[#allocation4 + $0x28] sm:$0xff]
    %v72 = vld [vmem:[#allocation4 + $0x30] sm:$0xff]
    %v73 = vld [vmem:[#allocation4 + $0x38] sm:$0xff]
    %v74 = vld [vmem:[#allocation4 + $0x40] sm:$0xff]
    %v75 = vld [vmem:[#allocation4 + $0x48] sm:$0xff]
    %v76 = vld [vmem:[#allocation4 + $0x50] sm:$0xff]
    %v77 = vld [vmem:[#allocation4 + $0x58] sm:$0xff]
    %v78 = vld [vmem:[#allocation4 + $0x60] sm:$0xff]
    %v79 = vld [vmem:[#allocation4 + $0x68] sm:$0xff]
    %v80 = vld [vmem:[#allocation4 + $0x70] sm:$0xff]
    %v81 = vld [vmem:[#allocation4 + $0x78] sm:$0xff]
    %v82 = vld [vmem:[#allocation4 + $0x80] sm:$0xff]
    %v83 = vld [vmem:[#allocation4 + $0x88] sm:$0xff]
    %v84 = vld [vmem:[#allocation4 + $0x90] sm:$0xff]
    %v85 = vld [vmem:[#allocation4 + $0x98] sm:$0xff]
    %v86 = vld [vmem:[#allocation4 + $0xa0] sm:$0xff]
    %v87 = vld [vmem:[#allocation4 + $0xa8] sm:$0xff]
    %v88 = vld [vmem:[#allocation4 + $0xb0] sm:$0xff]
    %v89 = vld [vmem:[#allocation4 + $0xb8] sm:$0xff]
    %v90 = vld [vmem:[#allocation4 + $0xc0] sm:$0xff]
    %v91 = vld [vmem:[#allocation4 + $0xc8] sm:$0xff]
    %v92 = vld [vmem:[#allocation4 + $0xd0] sm:$0xff]
    %v93 = vld [vmem:[#allocation4 + $0xd8] sm:$0xff]
    %v94 = vld [vmem:[#allocation4 + $0xe0] sm:$0xff]
    %v95 = vld [vmem:[#allocation4 + $0xe8] sm:$0xff]
    %v96 = vld [vmem:[#allocation4 + $0xf0] sm:$0xff]
    %v97 = vld [vmem:[#allocation4 + $0xf8] sm:$0xff]
    %v98 = vld [vmem:[#allocation4 + $0x100] sm:$0xff]
    %v99 = vld [vmem:[#allocation4 + $0x108] sm:$0xff]
    %v100 = vld [vmem:[#allocation4 + $0x110] sm:$0xff]
    %v101 = vld [vmem:[#allocation4 + $0x118] sm:$0xff]
    %v102 = vld [vmem:[#allocation4 + $0x120] sm:$0xff]
    %v103 = vld [vmem:[#allocation4 + $0x128] sm:$0xff]
    %v104 = vld [vmem:[#allocation4 + $0x130] sm:$0xff]
    %v105 = vld [vmem:[#allocation4 + $0x138] sm:$0xff]
    %v106 = vld [vmem:[#allocation4 + $0x140] sm:$0xff]
    %v107 = vld [vmem:[#allocation4 + $0x148] sm:$0xff]
    %v108 = vld [vmem:[#allocation4 + $0x150] sm:$0xff]
    %v109 = vld [vmem:[#allocation4 + $0x158] sm:$0xff]
    %v110 = vld [vmem:[#allocation4 + $0x160] sm:$0xff]
    %v111 = vld [vmem:[#allocation4 + $0x168] sm:$0xff]
    %v112 = vld [vmem:[#allocation4 + $0x170] sm:$0xff]
    %v113 = vld [vmem:[#allocation4 + $0x178] sm:$0xff]
    %v114 = vld [vmem:[#allocation4 + $0x180] sm:$0xff]
    %v115 = vld [vmem:[#allocation4 + $0x188] sm:$0xff]
    %v116 = vld [vmem:[#allocation4 + $0x190] sm:$0xff]
    %v117 = vld [vmem:[#allocation4 + $0x198] sm:$0xff]
    %v118 = vld [vmem:[#allocation4 + $0x1a0] sm:$0xff]
    %v119 = vld [vmem:[#allocation4 + $0x1a8] sm:$0xff]
    %v120 = vld [vmem:[#allocation4 + $0x1b0] sm:$0xff]
    %v121 = vld [vmem:[#allocation4 + $0x1b8] sm:$0xff]
    %v122 = vld [vmem:[#allocation4 + $0x1c0] sm:$0xff]
    %v123 = vld [vmem:[#allocation4 + $0x1c8] sm:$0xff]
    %v124 = vld [vmem:[#allocation4 + $0x1d0] sm:$0xff]
    %v125 = vld [vmem:[#allocation4 + $0x1d8] sm:$0xff]
    %v126 = vld [vmem:[#allocation4 + $0x1e0] sm:$0xff]
    %v127 = vld [vmem:[#allocation4 + $0x1e8] sm:$0xff]
    %v128 = vld [vmem:[#allocation4 + $0x1f0] sm:$0xff]
    %v129 = vld [vmem:[#allocation4 + $0x1f8] sm:$0xff]
    %v130 = vld [vmem:[#allocation4 + $0x200] sm:$0xff]
    %v131 = vld [vmem:[#allocation4 + $0x208] sm:$0xff]
    %v132 = vld [vmem:[#allocation4 + $0x210] sm:$0xff]
    %v133 = vld [vmem:[#allocation4 + $0x218] sm:$0xff]
    %v134 = vld [vmem:[#allocation4 + $0x220] sm:$0xff]
    %v135 = vld [vmem:[#allocation4 + $0x228] sm:$0xff]
    %v136 = vld [vmem:[#allocation4 + $0x230] sm:$0xff]
    %v137 = vld [vmem:[#allocation4 + $0x238] sm:$0xff]
    %v138 = vld [vmem:[#allocation4 + $0x240] sm:$0xff]
    %v139 = vld [vmem:[#allocation4 + $0x248] sm:$0xff]
    %v140 = vld [vmem:[#allocation4 + $0x250] sm:$0xff]
    %v141 = vld [vmem:[#allocation4 + $0x258] sm:$0xff]
    %v142 = vld [vmem:[#allocation4 + $0x260] sm:$0xff]
    %v143 = vld [vmem:[#allocation4 + $0x268] sm:$0xff]
    %v144 = vld [vmem:[#allocation4 + $0x270] sm:$0xff]
    %v145 = vld [vmem:[#allocation4 + $0x278] sm:$0xff]
    %v146 = vld [vmem:[#allocation4 + $0x280] sm:$0xff]
    %v147 = vld [vmem:[#allocation4 + $0x288] sm:$0xff]
    %v148 = vld [vmem:[#allocation4 + $0x290] sm:$0xff]
    %v149 = vld [vmem:[#allocation4 + $0x298] sm:$0xff]
    %v150 = vld [vmem:[#allocation4 + $0x2a0] sm:$0xff]
    %v151 = vld [vmem:[#allocation4 + $0x2a8] sm:$0xff]
    %v152 = vld [vmem:[#allocation4 + $0x2b0] sm:$0xff]
    %v153 = vld [vmem:[#allocation4 + $0x2b8] sm:$0xff]
    %v154 = vld [vmem:[#allocation4 + $0x2c0] sm:$0xff]
    %v155 = vld [vmem:[#allocation4 + $0x2c8] sm:$0xff]
    %v156 = vld [vmem:[#allocation4 + $0x2d0] sm:$0xff]
    %v157 = vld [vmem:[#allocation4 + $0x2d8] sm:$0xff]
    %v158 = vld [vmem:[#allocation4 + $0x2e0] sm:$0xff]
    %v159 = vld [vmem:[#allocation4 + $0x2e8] sm:$0xff]
    %v160 = vld [vmem:[#allocation4 + $0x2f0] sm:$0xff]
    %v161 = vld [vmem:[#allocation4 + $0x2f8] sm:$0xff]
    %v162 = vld [vmem:[#allocation4 + $0x300] sm:$0xff]
    %v163 = vld [vmem:[#allocation4 + $0x308] sm:$0xff]
    %v164 = vld [vmem:[#allocation4 + $0x310] sm:$0xff]
    %v165 = vld [vmem:[#allocation4 + $0x318] sm:$0xff]
    %v166 = vld [vmem:[#allocation4 + $0x320] sm:$0xff]
    %v167 = vld [vmem:[#allocation4 + $0x328] sm:$0xff]
    %v168 = vld [vmem:[#allocation4 + $0x330] sm:$0xff]
    %v169 = vld [vmem:[#allocation4 + $0x338] sm:$0xff]
    %v170 = vld [vmem:[#allocation4 + $0x340] sm:$0xff]
    %v171 = vld [vmem:[#allocation4 + $0x348] sm:$0xff]
    %v172 = vld [vmem:[#allocation4 + $0x350] sm:$0xff]
    %v173 = vld [vmem:[#allocation4 + $0x358] sm:$0xff]
    %v174 = vld [vmem:[#allocation4 + $0x360] sm:$0xff]
    %v175 = vld [vmem:[#allocation4 + $0x368] sm:$0xff]
    %v176 = vld [vmem:[#allocation4 + $0x370] sm:$0xff]
    %v177 = vld [vmem:[#allocation4 + $0x378] sm:$0xff]
    %v178 = vld [vmem:[#allocation4 + $0x380] sm:$0xff]
    %v179 = vld [vmem:[#allocation4 + $0x388] sm:$0xff]
    %v180 = vld [vmem:[#allocation4 + $0x390] sm:$0xff]
    %v181 = vld [vmem:[#allocation4 + $0x398] sm:$0xff]
    %v182 = vld [vmem:[#allocation4 + $0x3a0] sm:$0xff]
    %v183 = vld [vmem:[#allocation4 + $0x3a8] sm:$0xff]
    %v184 = vld [vmem:[#allocation4 + $0x3b0] sm:$0xff]
    %v185 = vld [vmem:[#allocation4 + $0x3b8] sm:$0xff]
    %v186 = vld [vmem:[#allocation4 + $0x3c0] sm:$0xff]
    %v187 = vld [vmem:[#allocation4 + $0x3c8] sm:$0xff]
    %v188 = vld [vmem:[#allocation4 + $0x3d0] sm:$0xff]
    %v189 = vld [vmem:[#allocation4 + $0x3d8] sm:$0xff]
    %v190 = vld [vmem:[#allocation4 + $0x3e0] sm:$0xff]
    %v191 = vld [vmem:[#allocation4 + $0x3e8] sm:$0xff]
    %v192 = vld [vmem:[#allocation4 + $0x3f0] sm:$0xff]
    %v193 = vld [vmem:[#allocation4 + $0x3f8] sm:$0xff]
    %v194 = vld [vmem:[#allocation4 + $0x400] sm:$0xff]
    %v195 = vld [vmem:[#allocation4 + $0x408] sm:$0xff]
    %v196 = vld [vmem:[#allocation4 + $0x410] sm:$0xff]
    %v197 = vld [vmem:[#allocation4 + $0x418] sm:$0xff]
    %v198 = vld [vmem:[#allocation4 + $0x420] sm:$0xff]
    %v199 = vld [vmem:[#allocation4 + $0x428] sm:$0xff]
    %v200 = vld [vmem:[#allocation4 + $0x430] sm:$0xff]
    %v201 = vld [vmem:[#allocation4 + $0x438] sm:$0xff]
    %v202 = vld [vmem:[#allocation4 + $0x440] sm:$0xff]
    %v203 = vld [vmem:[#allocation4 + $0x448] sm:$0xff]
    %v204 = vld [vmem:[#allocation4 + $0x450] sm:$0xff]
    %v205 = vld [vmem:[#allocation4 + $0x458] sm:$0xff]
    %v206 = vld [vmem:[#allocation4 + $0x460] sm:$0xff]
    %v207 = vld [vmem:[#allocation4 + $0x468] sm:$0xff]
    %v208 = vld [vmem:[#allocation4 + $0x470] sm:$0xff]
    %v209 = vld [vmem:[#allocation4 + $0x478] sm:$0xff]
    %v210 = vld [vmem:[#allocation4 + $0x480] sm:$0xff]
    %v211 = vld [vmem:[#allocation4 + $0x488] sm:$0xff]
    %v212 = vld [vmem:[#allocation4 + $0x490] sm:$0xff]
    %v213 = vld [vmem:[#allocation4 + $0x498] sm:$0xff]
    %v214 = vld [vmem:[#allocation4 + $0x4a0] sm:$0xff]
    %v215 = vld [vmem:[#allocation4 + $0x4a8] sm:$0xff]
    %v216 = vld [vmem:[#allocation4 + $0x4b0] sm:$0xff]
    %v217 = vld [vmem:[#allocation4 + $0x4b8] sm:$0xff]
    %v218 = vld [vmem:[#allocation4 + $0x4c0] sm:$0xff]
    %v219 = vld [vmem:[#allocation4 + $0x4c8] sm:$0xff]
    %v220 = vld [vmem:[#allocation4 + $0x4d0] sm:$0xff]
    %v221 = vld [vmem:[#allocation4 + $0x4d8] sm:$0xff]
    %v222 = vld [vmem:[#allocation4 + $0x4e0] sm:$0xff]
    %v223 = vld [vmem:[#allocation4 + $0x4e8] sm:$0xff]
    %v224 = vld [vmem:[#allocation4 + $0x4f0] sm:$0xff]
    %v225 = vld [vmem:[#allocation4 + $0x4f8] sm:$0xff]
    %v226 = vld [vmem:[#allocation4 + $0x500] sm:$0xff]
    %v227 = vld [vmem:[#allocation4 + $0x508] sm:$0xff]
    %v228 = vld [vmem:[#allocation4 + $0x510] sm:$0xff]
    %v229 = vld [vmem:[#allocation4 + $0x518] sm:$0xff]
    %v230 = vld [vmem:[#allocation4 + $0x520] sm:$0xff]
    %v231 = vld [vmem:[#allocation4 + $0x528] sm:$0xff]
    %v232 = vld [vmem:[#allocation4 + $0x530] sm:$0xff]
    %v233 = vld [vmem:[#allocation4 + $0x538] sm:$0xff]
    %v234 = vld [vmem:[#allocation4 + $0x540] sm:$0xff]
    %v235 = vld [vmem:[#allocation4 + $0x548] sm:$0xff]
    %v236 = vld [vmem:[#allocation4 + $0x550] sm:$0xff]
    %v237 = vld [vmem:[#allocation4 + $0x558] sm:$0xff]
    %v238 = vld [vmem:[#allocation4 + $0x560] sm:$0xff]
    %v239 = vld [vmem:[#allocation4 + $0x568] sm:$0xff]
    %v240 = vld [vmem:[#allocation4 + $0x570] sm:$0xff]
    %v241 = vld [vmem:[#allocation4 + $0x578] sm:$0xff]
    %v242 = vld [vmem:[#allocation4 + $0x580] sm:$0xff]
    %v243 = vld [vmem:[#allocation4 + $0x588] sm:$0xff]
    %v244 = vld [vmem:[#allocation4 + $0x590] sm:$0xff]
    %v245 = vld [vmem:[#allocation4 + $0x598] sm:$0xff]
    %v246 = vld [vmem:[#allocation4 + $0x5a0] sm:$0xff]
    %v247 = vld [vmem:[#allocation4 + $0x5a8] sm:$0xff]
    %v248 = vld [vmem:[#allocation4 + $0x5b0] sm:$0xff]
    %v249 = vld [vmem:[#allocation4 + $0x5b8] sm:$0xff]
    %v250 = vld [vmem:[#allocation4 + $0x5c0] sm:$0xff]
    %v251 = vld [vmem:[#allocation4 + $0x5c8] sm:$0xff]
    %v252 = vld [vmem:[#allocation4 + $0x5d0] sm:$0xff]
    %v253 = vld [vmem:[#allocation4 + $0x5d8] sm:$0xff]
    %v254 = vld [vmem:[#allocation4 + $0x5e0] sm:$0xff]
    %v255 = vld [vmem:[#allocation4 + $0x5e8] sm:$0xff]
    %v256 = vld [vmem:[#allocation4 + $0x5f0] sm:$0xff]
    %v257 = vld [vmem:[#allocation4 + $0x5f8] sm:$0xff]
    %v258 = vld [vmem:[#allocation4 + $0x600] sm:$0xff]
    %v259 = vld [vmem:[#allocation4 + $0x608] sm:$0xff]
    %v260 = vld [vmem:[#allocation4 + $0x610] sm:$0xff]
    %v261 = vld [vmem:[#allocation4 + $0x618] sm:$0xff]
    %v262 = vld [vmem:[#allocation4 + $0x620] sm:$0xff]
    %v263 = vld [vmem:[#allocation4 + $0x628] sm:$0xff]
    %v264 = vld [vmem:[#allocation4 + $0x630] sm:$0xff]
    %v265 = vld [vmem:[#allocation4 + $0x638] sm:$0xff]
    %v266 = vld [vmem:[#allocation4 + $0x640] sm:$0xff]
    %v267 = vld [vmem:[#allocation4 + $0x648] sm:$0xff]
    %v268 = vld [vmem:[#allocation4 + $0x650] sm:$0xff]
    %v269 = vld [vmem:[#allocation4 + $0x658] sm:$0xff]
    %v270 = vld [vmem:[#allocation4 + $0x660] sm:$0xff]
    %v271 = vld [vmem:[#allocation4 + $0x668] sm:$0xff]
    %v272 = vld [vmem:[#allocation4 + $0x670] sm:$0xff]
    %v273 = vld [vmem:[#allocation4 + $0x678] sm:$0xff]
    %v274 = vld [vmem:[#allocation4 + $0x680] sm:$0xff]
    %v275 = vld [vmem:[#allocation4 + $0x688] sm:$0xff]
    %v276 = vld [vmem:[#allocation4 + $0x690] sm:$0xff]
    %v277 = vld [vmem:[#allocation4 + $0x698] sm:$0xff]
    %v278 = vld [vmem:[#allocation4 + $0x6a0] sm:$0xff]
    %v279 = vld [vmem:[#allocation4 + $0x6a8] sm:$0xff]
    %v280 = vld [vmem:[#allocation4 + $0x6b0] sm:$0xff]
    %v281 = vld [vmem:[#allocation4 + $0x6b8] sm:$0xff]
    %v282 = vld [vmem:[#allocation4 + $0x6c0] sm:$0xff]
    %v283 = vld [vmem:[#allocation4 + $0x6c8] sm:$0xff]
    %v284 = vld [vmem:[#allocation4 + $0x6d0] sm:$0xff]
    %v285 = vld [vmem:[#allocation4 + $0x6d8] sm:$0xff]
    %v286 = vld [vmem:[#allocation4 + $0x6e0] sm:$0xff]
    %v287 = vld [vmem:[#allocation4 + $0x6e8] sm:$0xff]
    %v288 = vld [vmem:[#allocation4 + $0x6f0] sm:$0xff]
    %v289 = vld [vmem:[#allocation4 + $0x6f8] sm:$0xff]
    %v290 = vld [vmem:[#allocation4 + $0x700] sm:$0xff]
    %v291 = vld [vmem:[#allocation4 + $0x708] sm:$0xff]
    %v292 = vld [vmem:[#allocation4 + $0x710] sm:$0xff]
    %v293 = vld [vmem:[#allocation4 + $0x718] sm:$0xff]
    %v294 = vld [vmem:[#allocation4 + $0x720] sm:$0xff]
    %v295 = vld [vmem:[#allocation4 + $0x728] sm:$0xff]
    %v296 = vld [vmem:[#allocation4 + $0x730] sm:$0xff]
    %v297 = vld [vmem:[#allocation4 + $0x738] sm:$0xff]
    %v298 = vld [vmem:[#allocation4 + $0x740] sm:$0xff]
    %v299 = vld [vmem:[#allocation4 + $0x748] sm:$0xff]
    %v300 = vld [vmem:[#allocation4 + $0x750] sm:$0xff]
    %v301 = vld [vmem:[#allocation4 + $0x758] sm:$0xff]
    %v302 = vld [vmem:[#allocation4 + $0x760] sm:$0xff]
    %v303 = vld [vmem:[#allocation4 + $0x768] sm:$0xff]
    %v304 = vld [vmem:[#allocation4 + $0x770] sm:$0xff]
    %v305 = vld [vmem:[#allocation4 + $0x778] sm:$0xff]
    %v306 = vld [vmem:[#allocation4 + $0x780] sm:$0xff]
    %v307 = vld [vmem:[#allocation4 + $0x788] sm:$0xff]
    %v308 = vld [vmem:[#allocation4 + $0x790] sm:$0xff]
    %v309 = vld [vmem:[#allocation4 + $0x798] sm:$0xff]
    %v310 = vld [vmem:[#allocation4 + $0x7a0] sm:$0xff]
    %v311 = vld [vmem:[#allocation4 + $0x7a8] sm:$0xff]
    %v312 = vld [vmem:[#allocation4 + $0x7b0] sm:$0xff]
    %v313 = vld [vmem:[#allocation4 + $0x7b8] sm:$0xff]
    %v314 = vld [vmem:[#allocation4 + $0x7c0] sm:$0xff]
    %v315 = vld [vmem:[#allocation4 + $0x7c8] sm:$0xff]
    %v316 = vld [vmem:[#allocation4 + $0x7d0] sm:$0xff]
    %v317 = vld [vmem:[#allocation4 + $0x7d8] sm:$0xff]
    %v318 = vld [vmem:[#allocation4 + $0x7e0] sm:$0xff]
    %v319 = vld [vmem:[#allocation4 + $0x7e8] sm:$0xff]
    %v320 = vld [vmem:[#allocation4 + $0x7f0] sm:$0xff]
    %v321 = vld [vmem:[#allocation4 + $0x7f8] sm:$0xff]
    %v322 = vld [vmem:[#allocation4 + $0x800] sm:$0xff]
    %v323 = vld [vmem:[#allocation4 + $0x808] sm:$0xff]
    %v324 = vld [vmem:[#allocation4 + $0x810] sm:$0xff]
    %v325 = vld [vmem:[#allocation4 + $0x818] sm:$0xff]
    %v326 = vld [vmem:[#allocation4 + $0x820] sm:$0xff]
    %v327 = vld [vmem:[#allocation4 + $0x828] sm:$0xff]
    %v328 = vld [vmem:[#allocation4 + $0x830] sm:$0xff]
    %v329 = vld [vmem:[#allocation4 + $0x838] sm:$0xff]
    %v330 = vld [vmem:[#allocation4 + $0x840] sm:$0xff]
    %v331 = vld [vmem:[#allocation4 + $0x848] sm:$0xff]
    %v332 = vld [vmem:[#allocation4 + $0x850] sm:$0xff]
    %v333 = vld [vmem:[#allocation4 + $0x858] sm:$0xff]
    %v334 = vld [vmem:[#allocation4 + $0x860] sm:$0xff]
    %v335 = vld [vmem:[#allocation4 + $0x868] sm:$0xff]
    %v336 = vld [vmem:[#allocation4 + $0x870] sm:$0xff]
    %v337 = vld [vmem:[#allocation4 + $0x878] sm:$0xff]
    %v338 = vld [vmem:[#allocation4 + $0x880] sm:$0xff]
    %v339 = vld [vmem:[#allocation4 + $0x888] sm:$0xff]
    %v340 = vld [vmem:[#allocation4 + $0x890] sm:$0xff]
    %v341 = vld [vmem:[#allocation4 + $0x898] sm:$0xff]
    %v342 = vld [vmem:[#allocation4 + $0x8a0] sm:$0xff]
    %v343 = vld [vmem:[#allocation4 + $0x8a8] sm:$0xff]
    %v344 = vld [vmem:[#allocation4 + $0x8b0] sm:$0xff]
    %v345 = vld [vmem:[#allocation4 + $0x8b8] sm:$0xff]
    %v346 = vld [vmem:[#allocation4 + $0x8c0] sm:$0xff]
    %v347 = vld [vmem:[#allocation4 + $0x8c8] sm:$0xff]
    %v348 = vld [vmem:[#allocation4 + $0x8d0] sm:$0xff]
    %v349 = vld [vmem:[#allocation4 + $0x8d8] sm:$0xff]
    %v350 = vld [vmem:[#allocation4 + $0x8e0] sm:$0xff]
    %v351 = vld [vmem:[#allocation4 + $0x8e8] sm:$0xff]
    %v352 = vld [vmem:[#allocation4 + $0x8f0] sm:$0xff]
    %v353 = vld [vmem:[#allocation4 + $0x8f8] sm:$0xff]
    %v354 = vld [vmem:[#allocation4 + $0x900] sm:$0xff]
    %v355 = vld [vmem:[#allocation4 + $0x908] sm:$0xff]
    %v356 = vld [vmem:[#allocation4 + $0x910] sm:$0xff]
    %v357 = vld [vmem:[#allocation4 + $0x918] sm:$0xff]
    %v358 = vld [vmem:[#allocation4 + $0x920] sm:$0xff]
    %v359 = vld [vmem:[#allocation4 + $0x928] sm:$0xff]
    %v360 = vld [vmem:[#allocation4 + $0x930] sm:$0xff]
    %v361 = vld [vmem:[#allocation4 + $0x938] sm:$0xff]
    %v362 = vld [vmem:[#allocation4 + $0x940] sm:$0xff]
    %v363 = vld [vmem:[#allocation4 + $0x948] sm:$0xff]
    %v364 = vld [vmem:[#allocation4 + $0x950] sm:$0xff]
    %v365 = vld [vmem:[#allocation4 + $0x958] sm:$0xff]
    %v366 = vld [vmem:[#allocation4 + $0x960] sm:$0xff]
    %v367 = vld [vmem:[#allocation4 + $0x968] sm:$0xff]
    %v368 = vld [vmem:[#allocation4 + $0x970] sm:$0xff]
    %v369 = vld [vmem:[#allocation4 + $0x978] sm:$0xff]
    %v370 = vld [vmem:[#allocation4 + $0x980] sm:$0xff]
    %v371 = vld [vmem:[#allocation4 + $0x988] sm:$0xff]
    %v372 = vld [vmem:[#allocation4 + $0x990] sm:$0xff]
    %v373 = vld [vmem:[#allocation4 + $0x998] sm:$0xff]
    %v374 = vld [vmem:[#allocation4 + $0x9a0] sm:$0xff]
    %v375 = vld [vmem:[#allocation4 + $0x9a8] sm:$0xff]
    %v376 = vld [vmem:[#allocation4 + $0x9b0] sm:$0xff]
    %v377 = vld [vmem:[#allocation4 + $0x9b8] sm:$0xff]
    %v378 = vld [vmem:[#allocation4 + $0x9c0] sm:$0xff]
    %v379 = vld [vmem:[#allocation4 + $0x9c8] sm:$0xff]
    %v380 = vld [vmem:[#allocation4 + $0x9d0] sm:$0xff]
    %v381 = vld [vmem:[#allocation4 + $0x9d8] sm:$0xff]
    %v382 = vld [vmem:[#allocation4 + $0x9e0] sm:$0xff]
    %v383 = vld [vmem:[#allocation4 + $0x9e8] sm:$0xff]
    %v384 = vld [vmem:[#allocation4 + $0x9f0] sm:$0xff]
    %v385 = vld [vmem:[#allocation4 + $0x9f8] sm:$0xff]
    %v386 = vld [vmem:[#allocation4 + $0xa00] sm:$0xff]
    %v387 = vld [vmem:[#allocation4 + $0xa08] sm:$0xff]
    %v388 = vld [vmem:[#allocation4 + $0xa10] sm:$0xff]
    %v389 = vld [vmem:[#allocation4 + $0xa18] sm:$0xff]
    %v390 = vld [vmem:[#allocation4 + $0xa20] sm:$0xff]
    %v391 = vld [vmem:[#allocation4 + $0xa28] sm:$0xff]
    %v392 = vld [vmem:[#allocation4 + $0xa30] sm:$0xff]
    %v393 = vld [vmem:[#allocation4 + $0xa38] sm:$0xff]
    %v394 = vld [vmem:[#allocation4 + $0xa40] sm:$0xff]
    %v395 = vld [vmem:[#allocation4 + $0xa48] sm:$0xff]
    %v396 = vld [vmem:[#allocation4 + $0xa50] sm:$0xff]
    %v397 = vld [vmem:[#allocation4 + $0xa58] sm:$0xff]
    %v398 = vld [vmem:[#allocation4 + $0xa60] sm:$0xff]
    %v399 = vld [vmem:[#allocation4 + $0xa68] sm:$0xff]
    %v400 = vld [vmem:[#allocation4 + $0xa70] sm:$0xff]
    %v401 = vld [vmem:[#allocation4 + $0xa78] sm:$0xff]
    %v402 = vld [vmem:[#allocation4 + $0xa80] sm:$0xff]
    %v403 = vld [vmem:[#allocation4 + $0xa88] sm:$0xff]
    %v404 = vld [vmem:[#allocation4 + $0xa90] sm:$0xff]
    %v405 = vld [vmem:[#allocation4 + $0xa98] sm:$0xff]
    %v406 = vld [vmem:[#allocation4 + $0xaa0] sm:$0xff]
    %v407 = vld [vmem:[#allocation4 + $0xaa8] sm:$0xff]
    %v408 = vld [vmem:[#allocation4 + $0xab0] sm:$0xff]
    %v409 = vld [vmem:[#allocation4 + $0xab8] sm:$0xff]
    %v410 = vld [vmem:[#allocation4 + $0xac0] sm:$0xff]
    %v411 = vld [vmem:[#allocation4 + $0xac8] sm:$0xff]
    %v412 = vld [vmem:[#allocation4 + $0xad0] sm:$0xff]
    %v413 = vld [vmem:[#allocation4 + $0xad8] sm:$0xff]
    %v414 = vld [vmem:[#allocation4 + $0xae0] sm:$0xff]
    %v415 = vld [vmem:[#allocation4 + $0xae8] sm:$0xff]
    %v416 = vld [vmem:[#allocation4 + $0xaf0] sm:$0xff]
    %v417 = vld [vmem:[#allocation4 + $0xaf8] sm:$0xff]
    %v418 = vld [vmem:[#allocation4 + $0xb00] sm:$0xff]
    %v419 = vld [vmem:[#allocation4 + $0xb08] sm:$0xff]
    %v420 = vld [vmem:[#allocation4 + $0xb10] sm:$0xff]
    %v421 = vld [vmem:[#allocation4 + $0xb18] sm:$0xff]
    %v422 = vld [vmem:[#allocation4 + $0xb20] sm:$0xff]
    %v423 = vld [vmem:[#allocation4 + $0xb28] sm:$0xff]
    %v424 = vld [vmem:[#allocation4 + $0xb30] sm:$0xff]
    %v425 = vld [vmem:[#allocation4 + $0xb38] sm:$0xff]
    %v426 = vld [vmem:[#allocation4 + $0xb40] sm:$0xff]
    %v427 = vld [vmem:[#allocation4 + $0xb48] sm:$0xff]
    %v428 = vld [vmem:[#allocation4 + $0xb50] sm:$0xff]
    %v429 = vld [vmem:[#allocation4 + $0xb58] sm:$0xff]
    %v430 = vld [vmem:[#allocation4 + $0xb60] sm:$0xff]
    %v431 = vld [vmem:[#allocation4 + $0xb68] sm:$0xff]
    %v432 = vld [vmem:[#allocation4 + $0xb70] sm:$0xff]
    %v433 = vld [vmem:[#allocation4 + $0xb78] sm:$0xff]
    %v434 = vld [vmem:[#allocation4 + $0xb80] sm:$0xff]
    %v435 = vld [vmem:[#allocation4 + $0xb88] sm:$0xff]
    %v436 = vld [vmem:[#allocation4 + $0xb90] sm:$0xff]
    %v437 = vld [vmem:[#allocation4 + $0xb98] sm:$0xff]
    %v438 = vld [vmem:[#allocation4 + $0xba0] sm:$0xff]
    %v439 = vld [vmem:[#allocation4 + $0xba8] sm:$0xff]
    %v440 = vld [vmem:[#allocation4 + $0xbb0] sm:$0xff]
    %v441 = vld [vmem:[#allocation4 + $0xbb8] sm:$0xff]
    %v442 = vld [vmem:[#allocation4 + $0xbc0] sm:$0xff]
    %v443 = vld [vmem:[#allocation4 + $0xbc8] sm:$0xff]
    %v444 = vld [vmem:[#allocation4 + $0xbd0] sm:$0xff]
    %v445 = vld [vmem:[#allocation4 + $0xbd8] sm:$0xff]
    %v446 = vld [vmem:[#allocation4 + $0xbe0] sm:$0xff]
    %v447 = vld [vmem:[#allocation4 + $0xbe8] sm:$0xff]
    %v448 = vld [vmem:[#allocation4 + $0xbf0] sm:$0xff]
    %v449 = vld [vmem:[#allocation4 + $0xbf8] sm:$0xff]
    %v450 = vld [vmem:[#allocation4 + $0xc00] sm:$0xff]
    %v451 = vld [vmem:[#allocation4 + $0xc08] sm:$0xff]
    %v452 = vld [vmem:[#allocation4 + $0xc10] sm:$0xff]
    %v453 = vld [vmem:[#allocation4 + $0xc18] sm:$0xff]
    %v454 = vld [vmem:[#allocation4 + $0xc20] sm:$0xff]
    %v455 = vld [vmem:[#allocation4 + $0xc28] sm:$0xff]
    %v456 = vld [vmem:[#allocation4 + $0xc30] sm:$0xff]
    %v457 = vld [vmem:[#allocation4 + $0xc38] sm:$0xff]
    %v458 = vld [vmem:[#allocation4 + $0xc40] sm:$0xff]
    %v459 = vld [vmem:[#allocation4 + $0xc48] sm:$0xff]
    %v460 = vld [vmem:[#allocation4 + $0xc50] sm:$0xff]
    %v461 = vld [vmem:[#allocation4 + $0xc58] sm:$0xff]
    %v462 = vld [vmem:[#allocation4 + $0xc60] sm:$0xff]
    %v463 = vld [vmem:[#allocation4 + $0xc68] sm:$0xff]
    %v464 = vld [vmem:[#allocation4 + $0xc70] sm:$0xff]
    %v465 = vld [vmem:[#allocation4 + $0xc78] sm:$0xff]
    %v466 = vld [vmem:[#allocation4 + $0xc80] sm:$0xff]
    %v467 = vld [vmem:[#allocation4 + $0xc88] sm:$0xff]
    %v468 = vld [vmem:[#allocation4 + $0xc90] sm:$0xff]
    %v469 = vld [vmem:[#allocation4 + $0xc98] sm:$0xff]
    %v470 = vld [vmem:[#allocation4 + $0xca0] sm:$0xff]
    %v471 = vld [vmem:[#allocation4 + $0xca8] sm:$0xff]
    %v472 = vld [vmem:[#allocation4 + $0xcb0] sm:$0xff]
    %v473 = vld [vmem:[#allocation4 + $0xcb8] sm:$0xff]
    %v474 = vld [vmem:[#allocation4 + $0xcc0] sm:$0xff]
    %v475 = vld [vmem:[#allocation4 + $0xcc8] sm:$0xff]
    %v476 = vld [vmem:[#allocation4 + $0xcd0] sm:$0xff]
    %v477 = vld [vmem:[#allocation4 + $0xcd8] sm:$0xff]
    %v478 = vld [vmem:[#allocation4 + $0xce0] sm:$0xff]
    %v479 = vld [vmem:[#allocation4 + $0xce8] sm:$0xff]
    %v480 = vld [vmem:[#allocation4 + $0xcf0] sm:$0xff]
    %v481 = vld [vmem:[#allocation4 + $0xcf8] sm:$0xff]
    %v482 = vld [vmem:[#allocation4 + $0xd00] sm:$0xff]
    %v483 = vld [vmem:[#allocation4 + $0xd08] sm:$0xff]
    %v484 = vld [vmem:[#allocation4 + $0xd10] sm:$0xff]
    %v485 = vld [vmem:[#allocation4 + $0xd18] sm:$0xff]
    %v486 = vld [vmem:[#allocation4 + $0xd20] sm:$0xff]
    %v487 = vld [vmem:[#allocation4 + $0xd28] sm:$0xff]
    %v488 = vld [vmem:[#allocation4 + $0xd30] sm:$0xff]
    %v489 = vld [vmem:[#allocation4 + $0xd38] sm:$0xff]
    %v490 = vld [vmem:[#allocation4 + $0xd40] sm:$0xff]
    %v491 = vld [vmem:[#allocation4 + $0xd48] sm:$0xff]
    %v492 = vld [vmem:[#allocation4 + $0xd50] sm:$0xff]
    %v493 = vld [vmem:[#allocation4 + $0xd58] sm:$0xff]
    %v494 = vld [vmem:[#allocation4 + $0xd60] sm:$0xff]
    %v495 = vld [vmem:[#allocation4 + $0xd68] sm:$0xff]
    %v496 = vld [vmem:[#allocation4 + $0xd70] sm:$0xff]
    %v497 = vld [vmem:[#allocation4 + $0xd78] sm:$0xff]
    %v498 = vld [vmem:[#allocation4 + $0xd80] sm:$0xff]
    %v499 = vld [vmem:[#allocation4 + $0xd88] sm:$0xff]
    %v500 = vld [vmem:[#allocation4 + $0xd90] sm:$0xff]
    %v501 = vld [vmem:[#allocation4 + $0xd98] sm:$0xff]
    %v502 = vld [vmem:[#allocation4 + $0xda0] sm:$0xff]
    %v503 = vld [vmem:[#allocation4 + $0xda8] sm:$0xff]
    %v504 = vld [vmem:[#allocation4 + $0xdb0] sm:$0xff]
    %v505 = vld [vmem:[#allocation4 + $0xdb8] sm:$0xff]
    %v506 = vld [vmem:[#allocation4 + $0xdc0] sm:$0xff]
    %v507 = vld [vmem:[#allocation4 + $0xdc8] sm:$0xff]
    %v508 = vld [vmem:[#allocation4 + $0xdd0] sm:$0xff]
    %v509 = vld [vmem:[#allocation4 + $0xdd8] sm:$0xff]
    %v510 = vld [vmem:[#allocation4 + $0xde0] sm:$0xff]
    %v511 = vld [vmem:[#allocation4 + $0xde8] sm:$0xff]
    %v512 = vld [vmem:[#allocation4 + $0xdf0] sm:$0xff]
    %v513 = vld [vmem:[#allocation4 + $0xdf8] sm:$0xff]
    %v514 = vld [vmem:[#allocation4 + $0xe00] sm:$0xff]
    %v515 = vld [vmem:[#allocation4 + $0xe08] sm:$0xff]
    %v516 = vld [vmem:[#allocation4 + $0xe10] sm:$0xff]
    %v517 = vld [vmem:[#allocation4 + $0xe18] sm:$0xff]
    %v518 = vld [vmem:[#allocation4 + $0xe20] sm:$0xff]
    %v519 = vld [vmem:[#allocation4 + $0xe28] sm:$0xff]
    %v520 = vld [vmem:[#allocation4 + $0xe30] sm:$0xff]
    %v521 = vld [vmem:[#allocation4 + $0xe38] sm:$0xff]
    %v522 = vld [vmem:[#allocation4 + $0xe40] sm:$0xff]
    %v523 = vld [vmem:[#allocation4 + $0xe48] sm:$0xff]
    %v524 = vld [vmem:[#allocation4 + $0xe50] sm:$0xff]
    %v525 = vld [vmem:[#allocation4 + $0xe58] sm:$0xff]
    %v526 = vld [vmem:[#allocation4 + $0xe60] sm:$0xff]
    %v527 = vld [vmem:[#allocation4 + $0xe68] sm:$0xff]
    %v528 = vld [vmem:[#allocation4 + $0xe70] sm:$0xff]
    %v529 = vld [vmem:[#allocation4 + $0xe78] sm:$0xff]
    %v530 = vld [vmem:[#allocation4 + $0xe80] sm:$0xff]
    %v531 = vld [vmem:[#allocation4 + $0xe88] sm:$0xff]
    %v532 = vld [vmem:[#allocation4 + $0xe90] sm:$0xff]
    %v533 = vld [vmem:[#allocation4 + $0xe98] sm:$0xff]
    %v534 = vld [vmem:[#allocation4 + $0xea0] sm:$0xff]
    %v535 = vld [vmem:[#allocation4 + $0xea8] sm:$0xff]
    %v536 = vld [vmem:[#allocation4 + $0xeb0] sm:$0xff]
    %v537 = vld [vmem:[#allocation4 + $0xeb8] sm:$0xff]
    %v538 = vld [vmem:[#allocation4 + $0xec0] sm:$0xff]
    %v539 = vld [vmem:[#allocation4 + $0xec8] sm:$0xff]
    %v540 = vld [vmem:[#allocation4 + $0xed0] sm:$0xff]
    %v541 = vld [vmem:[#allocation4 + $0xed8] sm:$0xff]
    %v542 = vld [vmem:[#allocation4 + $0xee0] sm:$0xff]
    %v543 = vld [vmem:[#allocation4 + $0xee8] sm:$0xff]
    %v544 = vld [vmem:[#allocation4 + $0xef0] sm:$0xff]
    %v545 = vld [vmem:[#allocation4 + $0xef8] sm:$0xff]
    %v546 = vld [vmem:[#allocation4 + $0xf00] sm:$0xff]
    %v547 = vld [vmem:[#allocation4 + $0xf08] sm:$0xff]
    %v548 = vld [vmem:[#allocation4 + $0xf10] sm:$0xff]
    %v549 = vld [vmem:[#allocation4 + $0xf18] sm:$0xff]
    %v550 = vld [vmem:[#allocation4 + $0xf20] sm:$0xff]
    %v551 = vld [vmem:[#allocation4 + $0xf28] sm:$0xff]
    %v552 = vld [vmem:[#allocation4 + $0xf30] sm:$0xff]
    %v553 = vld [vmem:[#allocation4 + $0xf38] sm:$0xff]
    %v554 = vld [vmem:[#allocation4 + $0xf40] sm:$0xff]
    %v555 = vld [vmem:[#allocation4 + $0xf48] sm:$0xff]
    %v556 = vld [vmem:[#allocation4 + $0xf50] sm:$0xff]
    %v557 = vld [vmem:[#allocation4 + $0xf58] sm:$0xff]
    %v558 = vld [vmem:[#allocation4 + $0xf60] sm:$0xff]
    %v559 = vld [vmem:[#allocation4 + $0xf68] sm:$0xff]
    %v560 = vld [vmem:[#allocation4 + $0xf70] sm:$0xff]
    %v561 = vld [vmem:[#allocation4 + $0xf78] sm:$0xff]
    %v562 = vld [vmem:[#allocation4 + $0xf80] sm:$0xff]
    %v563 = vld [vmem:[#allocation4 + $0xf88] sm:$0xff]
    %v564 = vld [vmem:[#allocation4 + $0xf90] sm:$0xff]
    %v565 = vld [vmem:[#allocation4 + $0xf98] sm:$0xff]
    %v566 = vld [vmem:[#allocation4 + $0xfa0] sm:$0xff]
    %v567 = vld [vmem:[#allocation4 + $0xfa8] sm:$0xff]
    %v568 = vld [vmem:[#allocation4 + $0xfb0] sm:$0xff]
    %v569 = vld [vmem:[#allocation4 + $0xfb8] sm:$0xff]
    %v570 = vld [vmem:[#allocation4 + $0xfc0] sm:$0xff]
    %v571 = vld [vmem:[#allocation4 + $0xfc8] sm:$0xff]
    %v572 = vld [vmem:[#allocation4 + $0xfd0] sm:$0xff]
    %v573 = vld [vmem:[#allocation4 + $0xfd8] sm:$0xff]
    %v574 = vld [vmem:[#allocation4 + $0xfe0] sm:$0xff]
    %v575 = vld [vmem:[#allocation4 + $0xfe8] sm:$0xff]
    %v576 = vld [vmem:[#allocation4 + $0xff0] sm:$0xff]
    %v577 = vld [vmem:[#allocation4 + $0xff8] sm:$0xff]
    %v578 = vld [vmem:[#allocation4 + $0x1000] sm:$0xff]
    %v579 = vld [vmem:[#allocation4 + $0x1008] sm:$0xff]
    %v580 = vld [vmem:[#allocation4 + $0x1010] sm:$0xff]
    %v581 = vld [vmem:[#allocation4 + $0x1018] sm:$0xff]
    %v582 = vld [vmem:[#allocation4 + $0x1020] sm:$0xff]
    %v583 = vld [vmem:[#allocation4 + $0x1028] sm:$0xff]
    %v584 = vld [vmem:[#allocation4 + $0x1030] sm:$0xff]
    %v585 = vld [vmem:[#allocation4 + $0x1038] sm:$0xff]
    %v586 = vld [vmem:[#allocation4 + $0x1040] sm:$0xff]
    %v587 = vld [vmem:[#allocation4 + $0x1048] sm:$0xff]
    %v588 = vld [vmem:[#allocation4 + $0x1050] sm:$0xff]
    %v589 = vld [vmem:[#allocation4 + $0x1058] sm:$0xff]
    %v590 = vld [vmem:[#allocation4 + $0x1060] sm:$0xff]
    %v591 = vld [vmem:[#allocation4 + $0x1068] sm:$0xff]
    %v592 = vld [vmem:[#allocation4 + $0x1070] sm:$0xff]
    %v593 = vld [vmem:[#allocation4 + $0x1078] sm:$0xff]
    %v594 = vld [vmem:[#allocation4 + $0x1080] sm:$0xff]
    %v595 = vld [vmem:[#allocation4 + $0x1088] sm:$0xff]
    %v596 = vld [vmem:[#allocation4 + $0x1090] sm:$0xff]
    %v597 = vld [vmem:[#allocation4 + $0x1098] sm:$0xff]
    %v598 = vld [vmem:[#allocation4 + $0x10a0] sm:$0xff]
    %v599 = vld [vmem:[#allocation4 + $0x10a8] sm:$0xff]
    %v600 = vld [vmem:[#allocation4 + $0x10b0] sm:$0xff]
    %v601 = vld [vmem:[#allocation4 + $0x10b8] sm:$0xff]
    %v602 = vld [vmem:[#allocation4 + $0x10c0] sm:$0xff]
    %v603 = vld [vmem:[#allocation4 + $0x10c8] sm:$0xff]
    %v604 = vld [vmem:[#allocation4 + $0x10d0] sm:$0xff]
    %v605 = vld [vmem:[#allocation4 + $0x10d8] sm:$0xff]
    %v606 = vld [vmem:[#allocation4 + $0x10e0] sm:$0xff]
    %v607 = vld [vmem:[#allocation4 + $0x10e8] sm:$0xff]
    %v608 = vld [vmem:[#allocation4 + $0x10f0] sm:$0xff]
    %v609 = vld [vmem:[#allocation4 + $0x10f8] sm:$0xff]
    %v610 = vld [vmem:[#allocation4 + $0x1100] sm:$0xff]
    %v611 = vld [vmem:[#allocation4 + $0x1108] sm:$0xff]
    %v612 = vld [vmem:[#allocation4 + $0x1110] sm:$0xff]
    %v613 = vld [vmem:[#allocation4 + $0x1118] sm:$0xff]
    %v614 = vld [vmem:[#allocation4 + $0x1120] sm:$0xff]
    %v615 = vld [vmem:[#allocation4 + $0x1128] sm:$0xff]
    %v616 = vld [vmem:[#allocation4 + $0x1130] sm:$0xff]
    %v617 = vld [vmem:[#allocation4 + $0x1138] sm:$0xff]
    %v618 = vld [vmem:[#allocation4 + $0x1140] sm:$0xff]
    %v619 = vld [vmem:[#allocation4 + $0x1148] sm:$0xff]
    %v620 = vld [vmem:[#allocation4 + $0x1150] sm:$0xff]
    %v621 = vld [vmem:[#allocation4 + $0x1158] sm:$0xff]
    %v622 = vld [vmem:[#allocation4 + $0x1160] sm:$0xff]
    %v623 = vld [vmem:[#allocation4 + $0x1168] sm:$0xff]
    %v624 = vld [vmem:[#allocation4 + $0x1170] sm:$0xff]
    %v625 = vld [vmem:[#allocation4 + $0x1178] sm:$0xff]
    %v626 = vld [vmem:[#allocation4 + $0x1180] sm:$0xff]
    %v627 = vld [vmem:[#allocation4 + $0x1188] sm:$0xff]
    %v628 = vld [vmem:[#allocation4 + $0x1190] sm:$0xff]
    %v629 = vld [vmem:[#allocation4 + $0x1198] sm:$0xff]
    %v630 = vld [vmem:[#allocation4 + $0x11a0] sm:$0xff]
    %v631 = vld [vmem:[#allocation4 + $0x11a8] sm:$0xff]
    %v632 = vld [vmem:[#allocation4 + $0x11b0] sm:$0xff]
    %v633 = vld [vmem:[#allocation4 + $0x11b8] sm:$0xff]
    %v634 = vld [vmem:[#allocation4 + $0x11c0] sm:$0xff]
    %v635 = vld [vmem:[#allocation4 + $0x11c8] sm:$0xff]
    %v636 = vld [vmem:[#allocation4 + $0x11d0] sm:$0xff]
    %v637 = vld [vmem:[#allocation4 + $0x11d8] sm:$0xff]
    %v638 = vld [vmem:[#allocation4 + $0x11e0] sm:$0xff]
    %v639 = vld [vmem:[#allocation4 + $0x11e8] sm:$0xff]
    %v640 = vld [vmem:[#allocation4 + $0x11f0] sm:$0xff]
    %v641 = vld [vmem:[#allocation4 + $0x11f8] sm:$0xff]
    %v678 = vunpack.c.l.b16 %v30
    %v679 = vunpack.c.h.b16 %v30
    %v680 = vunpack.c.l.b16 %v31
    %v681 = vunpack.c.h.b16 %v31
    %v682 = vunpack.c.l.b16 %v32
    %v683 = vunpack.c.h.b16 %v32
    %v684 = vunpack.c.l.b16 %v33
    %v685 = vunpack.c.h.b16 %v33
    %v686 = vunpack.c.l.b16 %v34
    %v687 = vunpack.c.h.b16 %v34
    %v688 = vunpack.c.l.b16 %v35
    %v689 = vunpack.c.h.b16 %v35
    %v690 = vunpack.c.l.b16 %v36
    %v691 = vunpack.c.h.b16 %v36
    %v692 = vunpack.c.l.b16 %v37
    %v693 = vunpack.c.h.b16 %v37
    %v694 = vunpack.c.l.b16 %v38
    %v695 = vunpack.c.h.b16 %v38
    %v696 = vunpack.c.l.b16 %v39
    %v697 = vunpack.c.h.b16 %v39
    %v698 = vunpack.c.l.b16 %v40
    %v699 = vunpack.c.h.b16 %v40
    %v700 = vunpack.c.l.b16 %v41
    %v701 = vunpack.c.h.b16 %v41
    %v702 = vunpack.c.l.b16 %v42
    %v703 = vunpack.c.h.b16 %v42
    %v704 = vunpack.c.l.b16 %v43
    %v705 = vunpack.c.h.b16 %v43
    %v706 = vunpack.c.l.b16 %v44
    %v707 = vunpack.c.h.b16 %v44
    %v708 = vunpack.c.l.b16 %v45
    %v709 = vunpack.c.h.b16 %v45
    %v710 = vunpack.c.l.b16 %v46
    %v711 = vunpack.c.h.b16 %v46
    %v712 = vunpack.c.l.b16 %v47
    %v713 = vunpack.c.h.b16 %v47
    %v714 = vunpack.c.l.b16 %v48
    %v715 = vunpack.c.h.b16 %v48
    %v716 = vunpack.c.l.b16 %v49
    %v717 = vunpack.c.h.b16 %v49
    %v718 = vunpack.c.l.b16 %v50
    %v719 = vunpack.c.h.b16 %v50
    %v720 = vunpack.c.l.b16 %v51
    %v721 = vunpack.c.h.b16 %v51
    %v722 = vunpack.c.l.b16 %v52
    %v723 = vunpack.c.h.b16 %v52
    %v724 = vunpack.c.l.b16 %v53
    %v725 = vunpack.c.h.b16 %v53
    %v726 = vunpack.c.l.b16 %v54
    %v727 = vunpack.c.h.b16 %v54
    %v728 = vunpack.c.l.b16 %v55
    %v729 = vunpack.c.h.b16 %v55
    %v730 = vunpack.c.l.b16 %v56
    %v731 = vunpack.c.h.b16 %v56
    %v732 = vunpack.c.l.b16 %v57
    %v733 = vunpack.c.h.b16 %v57
    %v734 = vunpack.c.l.b16 %v58
    %v735 = vunpack.c.h.b16 %v58
    %v736 = vunpack.c.l.b16 %v59
    %v737 = vunpack.c.h.b16 %v59
    %v738 = vunpack.c.l.b16 %v60
    %v739 = vunpack.c.h.b16 %v60
    %v740 = vunpack.c.l.b16 %v61
    %v741 = vunpack.c.h.b16 %v61
    %v742 = vunpack.c.l.b16 %v62
    %v743 = vunpack.c.h.b16 %v62
    %v744 = vunpack.c.l.b16 %v63
    %v745 = vunpack.c.h.b16 %v63
    %v746 = vunpack.c.l.b16 %v64
    %v747 = vunpack.c.h.b16 %v64
    %v748 = vunpack.c.l.b16 %v65
    %v749 = vunpack.c.h.b16 %v65
    %v750 = vpack.c.b16 %v696, %v678
    %v751 = vpack.c.b16 %v697, %v679
    %v752 = vpack.c.b16 %v698, %v680
    %v753 = vpack.c.b16 %v699, %v681
    %v754 = vpack.c.b16 %v700, %v682
    %v755 = vpack.c.b16 %v701, %v683
    %v756 = vpack.c.b16 %v702, %v684
    %v757 = vpack.c.b16 %v703, %v685
    %v758 = vpack.c.b16 %v704, %v686
    %v759 = vpack.c.b16 %v705, %v687
    %v760 = vpack.c.b16 %v706, %v688
    %v761 = vpack.c.b16 %v707, %v689
    %v762 = vpack.c.b16 %v708, %v690
    %v763 = vpack.c.b16 %v709, %v691
    %v764 = vpack.c.b16 %v710, %v692
    %v765 = vpack.c.b16 %v711, %v693
    %v766 = vpack.c.b16 %v712, %v694
    %v767 = vpack.c.b16 %v713, %v695
    %v768 = vpack.c.b16 %v732, %v714
    %v769 = vpack.c.b16 %v733, %v715
    %v770 = vpack.c.b16 %v734, %v716
    %v771 = vpack.c.b16 %v735, %v717
    %v772 = vpack.c.b16 %v736, %v718
    %v773 = vpack.c.b16 %v737, %v719
    %v774 = vpack.c.b16 %v738, %v720
    %v775 = vpack.c.b16 %v739, %v721
    %v776 = vpack.c.b16 %v740, %v722
    %v777 = vpack.c.b16 %v741, %v723
    %v778 = vpack.c.b16 %v742, %v724
    %v779 = vpack.c.b16 %v743, %v725
    %v780 = vpack.c.b16 %v744, %v726
    %v781 = vpack.c.b16 %v745, %v727
    %v782 = vpack.c.b16 %v746, %v728
    %v783 = vpack.c.b16 %v747, %v729
    %v784 = vpack.c.b16 %v748, %v730
    %v785 = vpack.c.b16 %v749, %v731
    %v1398 = vunpack.c.l.b16 %v66
    %v1399 = vunpack.c.h.b16 %v66
    %v1400 = vunpack.c.l.b16 %v67
    %v1401 = vunpack.c.h.b16 %v67
    %v1402 = vunpack.c.l.b16 %v68
    %v1403 = vunpack.c.h.b16 %v68
    %v1404 = vunpack.c.l.b16 %v69
    %v1405 = vunpack.c.h.b16 %v69
    %v1406 = vunpack.c.l.b16 %v70
    %v1407 = vunpack.c.h.b16 %v70
    %v1408 = vunpack.c.l.b16 %v71
    %v1409 = vunpack.c.h.b16 %v71
    %v1410 = vunpack.c.l.b16 %v72
    %v1411 = vunpack.c.h.b16 %v72
    %v1412 = vunpack.c.l.b16 %v73
    %v1413 = vunpack.c.h.b16 %v73
    %v1414 = vunpack.c.l.b16 %v74
    %v1415 = vunpack.c.h.b16 %v74
    %v1416 = vunpack.c.l.b16 %v75
    %v1417 = vunpack.c.h.b16 %v75
    %v1418 = vunpack.c.l.b16 %v76
    %v1419 = vunpack.c.h.b16 %v76
    %v1420 = vunpack.c.l.b16 %v77
    %v1421 = vunpack.c.h.b16 %v77
    %v1422 = vunpack.c.l.b16 %v78
    %v1423 = vunpack.c.h.b16 %v78
    %v1424 = vunpack.c.l.b16 %v79
    %v1425 = vunpack.c.h.b16 %v79
    %v1426 = vunpack.c.l.b16 %v80
    %v1427 = vunpack.c.h.b16 %v80
    %v1428 = vunpack.c.l.b16 %v81
    %v1429 = vunpack.c.h.b16 %v81
    %v1430 = vunpack.c.l.b16 %v82
    %v1431 = vunpack.c.h.b16 %v82
    %v1432 = vunpack.c.l.b16 %v83
    %v1433 = vunpack.c.h.b16 %v83
    %v1434 = vunpack.c.l.b16 %v84
    %v1435 = vunpack.c.h.b16 %v84
    %v1436 = vunpack.c.l.b16 %v85
    %v1437 = vunpack.c.h.b16 %v85
    %v1438 = vunpack.c.l.b16 %v86
    %v1439 = vunpack.c.h.b16 %v86
    %v1440 = vunpack.c.l.b16 %v87
    %v1441 = vunpack.c.h.b16 %v87
    %v1442 = vunpack.c.l.b16 %v88
    %v1443 = vunpack.c.h.b16 %v88
    %v1444 = vunpack.c.l.b16 %v89
    %v1445 = vunpack.c.h.b16 %v89
    %v1446 = vunpack.c.l.b16 %v90
    %v1447 = vunpack.c.h.b16 %v90
    %v1448 = vunpack.c.l.b16 %v91
    %v1449 = vunpack.c.h.b16 %v91
    %v1450 = vunpack.c.l.b16 %v92
    %v1451 = vunpack.c.h.b16 %v92
    %v1452 = vunpack.c.l.b16 %v93
    %v1453 = vunpack.c.h.b16 %v93
    %v1454 = vunpack.c.l.b16 %v94
    %v1455 = vunpack.c.h.b16 %v94
    %v1456 = vunpack.c.l.b16 %v95
    %v1457 = vunpack.c.h.b16 %v95
    %v1458 = vunpack.c.l.b16 %v96
    %v1459 = vunpack.c.h.b16 %v96
    %v1460 = vunpack.c.l.b16 %v97
    %v1461 = vunpack.c.h.b16 %v97
    %v1462 = vunpack.c.l.b16 %v98
    %v1463 = vunpack.c.h.b16 %v98
    %v1464 = vunpack.c.l.b16 %v99
    %v1465 = vunpack.c.h.b16 %v99
    %v1466 = vunpack.c.l.b16 %v100
    %v1467 = vunpack.c.h.b16 %v100
    %v1468 = vunpack.c.l.b16 %v101
    %v1469 = vunpack.c.h.b16 %v101
    %v1470 = vunpack.c.l.b16 %v102
    %v1471 = vunpack.c.h.b16 %v102
    %v1472 = vunpack.c.l.b16 %v103
    %v1473 = vunpack.c.h.b16 %v103
    %v1474 = vunpack.c.l.b16 %v104
    %v1475 = vunpack.c.h.b16 %v104
    %v1476 = vunpack.c.l.b16 %v105
    %v1477 = vunpack.c.h.b16 %v105
    %v1478 = vunpack.c.l.b16 %v106
    %v1479 = vunpack.c.h.b16 %v106
    %v1480 = vunpack.c.l.b16 %v107
    %v1481 = vunpack.c.h.b16 %v107
    %v1482 = vunpack.c.l.b16 %v108
    %v1483 = vunpack.c.h.b16 %v108
    %v1484 = vunpack.c.l.b16 %v109
    %v1485 = vunpack.c.h.b16 %v109
    %v1486 = vunpack.c.l.b16 %v110
    %v1487 = vunpack.c.h.b16 %v110
    %v1488 = vunpack.c.l.b16 %v111
    %v1489 = vunpack.c.h.b16 %v111
    %v1490 = vunpack.c.l.b16 %v112
    %v1491 = vunpack.c.h.b16 %v112
    %v1492 = vunpack.c.l.b16 %v113
    %v1493 = vunpack.c.h.b16 %v113
    %v1494 = vunpack.c.l.b16 %v114
    %v1495 = vunpack.c.h.b16 %v114
    %v1496 = vunpack.c.l.b16 %v115
    %v1497 = vunpack.c.h.b16 %v115
    %v1498 = vunpack.c.l.b16 %v116
    %v1499 = vunpack.c.h.b16 %v116
    %v1500 = vunpack.c.l.b16 %v117
    %v1501 = vunpack.c.h.b16 %v117
    %v1502 = vunpack.c.l.b16 %v118
    %v1503 = vunpack.c.h.b16 %v118
    %v1504 = vunpack.c.l.b16 %v119
    %v1505 = vunpack.c.h.b16 %v119
    %v1506 = vunpack.c.l.b16 %v120
    %v1507 = vunpack.c.h.b16 %v120
    %v1508 = vunpack.c.l.b16 %v121
    %v1509 = vunpack.c.h.b16 %v121
    %v1510 = vunpack.c.l.b16 %v122
    %v1511 = vunpack.c.h.b16 %v122
    %v1512 = vunpack.c.l.b16 %v123
    %v1513 = vunpack.c.h.b16 %v123
    %v1514 = vunpack.c.l.b16 %v124
    %v1515 = vunpack.c.h.b16 %v124
    %v1516 = vunpack.c.l.b16 %v125
    %v1517 = vunpack.c.h.b16 %v125
    %v1518 = vunpack.c.l.b16 %v126
    %v1519 = vunpack.c.h.b16 %v126
    %v1520 = vunpack.c.l.b16 %v127
    %v1521 = vunpack.c.h.b16 %v127
    %v1522 = vunpack.c.l.b16 %v128
    %v1523 = vunpack.c.h.b16 %v128
    %v1524 = vunpack.c.l.b16 %v129
    %v1525 = vunpack.c.h.b16 %v129
    %v1526 = vunpack.c.l.b16 %v130
    %v1527 = vunpack.c.h.b16 %v130
    %v1528 = vunpack.c.l.b16 %v131
    %v1529 = vunpack.c.h.b16 %v131
    %v1530 = vunpack.c.l.b16 %v132
    %v1531 = vunpack.c.h.b16 %v132
    %v1532 = vunpack.c.l.b16 %v133
    %v1533 = vunpack.c.h.b16 %v133
    %v1534 = vunpack.c.l.b16 %v134
    %v1535 = vunpack.c.h.b16 %v134
    %v1536 = vunpack.c.l.b16 %v135
    %v1537 = vunpack.c.h.b16 %v135
    %v1538 = vunpack.c.l.b16 %v136
    %v1539 = vunpack.c.h.b16 %v136
    %v1540 = vunpack.c.l.b16 %v137
    %v1541 = vunpack.c.h.b16 %v137
    %v1542 = vunpack.c.l.b16 %v138
    %v1543 = vunpack.c.h.b16 %v138
    %v1544 = vunpack.c.l.b16 %v139
    %v1545 = vunpack.c.h.b16 %v139
    %v1546 = vunpack.c.l.b16 %v140
    %v1547 = vunpack.c.h.b16 %v140
    %v1548 = vunpack.c.l.b16 %v141
    %v1549 = vunpack.c.h.b16 %v141
    %v1550 = vunpack.c.l.b16 %v142
    %v1551 = vunpack.c.h.b16 %v142
    %v1552 = vunpack.c.l.b16 %v143
    %v1553 = vunpack.c.h.b16 %v143
    %v1554 = vunpack.c.l.b16 %v144
    %v1555 = vunpack.c.h.b16 %v144
    %v1556 = vunpack.c.l.b16 %v145
    %v1557 = vunpack.c.h.b16 %v145
    %v1558 = vunpack.c.l.b16 %v146
    %v1559 = vunpack.c.h.b16 %v146
    %v1560 = vunpack.c.l.b16 %v147
    %v1561 = vunpack.c.h.b16 %v147
    %v1562 = vunpack.c.l.b16 %v148
    %v1563 = vunpack.c.h.b16 %v148
    %v1564 = vunpack.c.l.b16 %v149
    %v1565 = vunpack.c.h.b16 %v149
    %v1566 = vunpack.c.l.b16 %v150
    %v1567 = vunpack.c.h.b16 %v150
    %v1568 = vunpack.c.l.b16 %v151
    %v1569 = vunpack.c.h.b16 %v151
    %v1570 = vunpack.c.l.b16 %v152
    %v1571 = vunpack.c.h.b16 %v152
    %v1572 = vunpack.c.l.b16 %v153
    %v1573 = vunpack.c.h.b16 %v153
    %v1574 = vunpack.c.l.b16 %v154
    %v1575 = vunpack.c.h.b16 %v154
    %v1576 = vunpack.c.l.b16 %v155
    %v1577 = vunpack.c.h.b16 %v155
    %v1578 = vunpack.c.l.b16 %v156
    %v1579 = vunpack.c.h.b16 %v156
    %v1580 = vunpack.c.l.b16 %v157
    %v1581 = vunpack.c.h.b16 %v157
    %v1582 = vunpack.c.l.b16 %v158
    %v1583 = vunpack.c.h.b16 %v158
    %v1584 = vunpack.c.l.b16 %v159
    %v1585 = vunpack.c.h.b16 %v159
    %v1586 = vunpack.c.l.b16 %v160
    %v1587 = vunpack.c.h.b16 %v160
    %v1588 = vunpack.c.l.b16 %v161
    %v1589 = vunpack.c.h.b16 %v161
    %v1590 = vunpack.c.l.b16 %v162
    %v1591 = vunpack.c.h.b16 %v162
    %v1592 = vunpack.c.l.b16 %v163
    %v1593 = vunpack.c.h.b16 %v163
    %v1594 = vunpack.c.l.b16 %v164
    %v1595 = vunpack.c.h.b16 %v164
    %v1596 = vunpack.c.l.b16 %v165
    %v1597 = vunpack.c.h.b16 %v165
    %v1598 = vunpack.c.l.b16 %v166
    %v1599 = vunpack.c.h.b16 %v166
    %v1600 = vunpack.c.l.b16 %v167
    %v1601 = vunpack.c.h.b16 %v167
    %v1602 = vunpack.c.l.b16 %v168
    %v1603 = vunpack.c.h.b16 %v168
    %v1604 = vunpack.c.l.b16 %v169
    %v1605 = vunpack.c.h.b16 %v169
    %v1606 = vunpack.c.l.b16 %v170
    %v1607 = vunpack.c.h.b16 %v170
    %v1608 = vunpack.c.l.b16 %v171
    %v1609 = vunpack.c.h.b16 %v171
    %v1610 = vunpack.c.l.b16 %v172
    %v1611 = vunpack.c.h.b16 %v172
    %v1612 = vunpack.c.l.b16 %v173
    %v1613 = vunpack.c.h.b16 %v173
    %v1614 = vunpack.c.l.b16 %v174
    %v1615 = vunpack.c.h.b16 %v174
    %v1616 = vunpack.c.l.b16 %v175
    %v1617 = vunpack.c.h.b16 %v175
    %v1618 = vunpack.c.l.b16 %v176
    %v1619 = vunpack.c.h.b16 %v176
    %v1620 = vunpack.c.l.b16 %v177
    %v1621 = vunpack.c.h.b16 %v177
    %v1622 = vunpack.c.l.b16 %v178
    %v1623 = vunpack.c.h.b16 %v178
    %v1624 = vunpack.c.l.b16 %v179
    %v1625 = vunpack.c.h.b16 %v179
    %v1626 = vunpack.c.l.b16 %v180
    %v1627 = vunpack.c.h.b16 %v180
    %v1628 = vunpack.c.l.b16 %v181
    %v1629 = vunpack.c.h.b16 %v181
    %v1630 = vunpack.c.l.b16 %v182
    %v1631 = vunpack.c.h.b16 %v182
    %v1632 = vunpack.c.l.b16 %v183
    %v1633 = vunpack.c.h.b16 %v183
    %v1634 = vunpack.c.l.b16 %v184
    %v1635 = vunpack.c.h.b16 %v184
    %v1636 = vunpack.c.l.b16 %v185
    %v1637 = vunpack.c.h.b16 %v185
    %v1638 = vunpack.c.l.b16 %v186
    %v1639 = vunpack.c.h.b16 %v186
    %v1640 = vunpack.c.l.b16 %v187
    %v1641 = vunpack.c.h.b16 %v187
    %v1642 = vunpack.c.l.b16 %v188
    %v1643 = vunpack.c.h.b16 %v188
    %v1644 = vunpack.c.l.b16 %v189
    %v1645 = vunpack.c.h.b16 %v189
    %v1646 = vunpack.c.l.b16 %v190
    %v1647 = vunpack.c.h.b16 %v190
    %v1648 = vunpack.c.l.b16 %v191
    %v1649 = vunpack.c.h.b16 %v191
    %v1650 = vunpack.c.l.b16 %v192
    %v1651 = vunpack.c.h.b16 %v192
    %v1652 = vunpack.c.l.b16 %v193
    %v1653 = vunpack.c.h.b16 %v193
    %v1654 = vunpack.c.l.b16 %v194
    %v1655 = vunpack.c.h.b16 %v194
    %v1656 = vunpack.c.l.b16 %v195
    %v1657 = vunpack.c.h.b16 %v195
    %v1658 = vunpack.c.l.b16 %v196
    %v1659 = vunpack.c.h.b16 %v196
    %v1660 = vunpack.c.l.b16 %v197
    %v1661 = vunpack.c.h.b16 %v197
    %v1662 = vunpack.c.l.b16 %v198
    %v1663 = vunpack.c.h.b16 %v198
    %v1664 = vunpack.c.l.b16 %v199
    %v1665 = vunpack.c.h.b16 %v199
    %v1666 = vunpack.c.l.b16 %v200
    %v1667 = vunpack.c.h.b16 %v200
    %v1668 = vunpack.c.l.b16 %v201
    %v1669 = vunpack.c.h.b16 %v201
    %v1670 = vunpack.c.l.b16 %v202
    %v1671 = vunpack.c.h.b16 %v202
    %v1672 = vunpack.c.l.b16 %v203
    %v1673 = vunpack.c.h.b16 %v203
    %v1674 = vunpack.c.l.b16 %v204
    %v1675 = vunpack.c.h.b16 %v204
    %v1676 = vunpack.c.l.b16 %v205
    %v1677 = vunpack.c.h.b16 %v205
    %v1678 = vunpack.c.l.b16 %v206
    %v1679 = vunpack.c.h.b16 %v206
    %v1680 = vunpack.c.l.b16 %v207
    %v1681 = vunpack.c.h.b16 %v207
    %v1682 = vunpack.c.l.b16 %v208
    %v1683 = vunpack.c.h.b16 %v208
    %v1684 = vunpack.c.l.b16 %v209
    %v1685 = vunpack.c.h.b16 %v209
    %v1686 = vunpack.c.l.b16 %v210
    %v1687 = vunpack.c.h.b16 %v210
    %v1688 = vunpack.c.l.b16 %v211
    %v1689 = vunpack.c.h.b16 %v211
    %v1690 = vunpack.c.l.b16 %v212
    %v1691 = vunpack.c.h.b16 %v212
    %v1692 = vunpack.c.l.b16 %v213
    %v1693 = vunpack.c.h.b16 %v213
    %v1694 = vunpack.c.l.b16 %v214
    %v1695 = vunpack.c.h.b16 %v214
    %v1696 = vunpack.c.l.b16 %v215
    %v1697 = vunpack.c.h.b16 %v215
    %v1698 = vunpack.c.l.b16 %v216
    %v1699 = vunpack.c.h.b16 %v216
    %v1700 = vunpack.c.l.b16 %v217
    %v1701 = vunpack.c.h.b16 %v217
    %v1702 = vunpack.c.l.b16 %v218
    %v1703 = vunpack.c.h.b16 %v218
    %v1704 = vunpack.c.l.b16 %v219
    %v1705 = vunpack.c.h.b16 %v219
    %v1706 = vunpack.c.l.b16 %v220
    %v1707 = vunpack.c.h.b16 %v220
    %v1708 = vunpack.c.l.b16 %v221
    %v1709 = vunpack.c.h.b16 %v221
    %v1710 = vunpack.c.l.b16 %v222
    %v1711 = vunpack.c.h.b16 %v222
    %v1712 = vunpack.c.l.b16 %v223
    %v1713 = vunpack.c.h.b16 %v223
    %v1714 = vunpack.c.l.b16 %v224
    %v1715 = vunpack.c.h.b16 %v224
    %v1716 = vunpack.c.l.b16 %v225
    %v1717 = vunpack.c.h.b16 %v225
    %v1718 = vunpack.c.l.b16 %v226
    %v1719 = vunpack.c.h.b16 %v226
    %v1720 = vunpack.c.l.b16 %v227
    %v1721 = vunpack.c.h.b16 %v227
    %v1722 = vunpack.c.l.b16 %v228
    %v1723 = vunpack.c.h.b16 %v228
    %v1724 = vunpack.c.l.b16 %v229
    %v1725 = vunpack.c.h.b16 %v229
    %v1726 = vunpack.c.l.b16 %v230
    %v1727 = vunpack.c.h.b16 %v230
    %v1728 = vunpack.c.l.b16 %v231
    %v1729 = vunpack.c.h.b16 %v231
    %v1730 = vunpack.c.l.b16 %v232
    %v1731 = vunpack.c.h.b16 %v232
    %v1732 = vunpack.c.l.b16 %v233
    %v1733 = vunpack.c.h.b16 %v233
    %v1734 = vunpack.c.l.b16 %v234
    %v1735 = vunpack.c.h.b16 %v234
    %v1736 = vunpack.c.l.b16 %v235
    %v1737 = vunpack.c.h.b16 %v235
    %v1738 = vunpack.c.l.b16 %v236
    %v1739 = vunpack.c.h.b16 %v236
    %v1740 = vunpack.c.l.b16 %v237
    %v1741 = vunpack.c.h.b16 %v237
    %v1742 = vunpack.c.l.b16 %v238
    %v1743 = vunpack.c.h.b16 %v238
    %v1744 = vunpack.c.l.b16 %v239
    %v1745 = vunpack.c.h.b16 %v239
    %v1746 = vunpack.c.l.b16 %v240
    %v1747 = vunpack.c.h.b16 %v240
    %v1748 = vunpack.c.l.b16 %v241
    %v1749 = vunpack.c.h.b16 %v241
    %v1750 = vunpack.c.l.b16 %v242
    %v1751 = vunpack.c.h.b16 %v242
    %v1752 = vunpack.c.l.b16 %v243
    %v1753 = vunpack.c.h.b16 %v243
    %v1754 = vunpack.c.l.b16 %v244
    %v1755 = vunpack.c.h.b16 %v244
    %v1756 = vunpack.c.l.b16 %v245
    %v1757 = vunpack.c.h.b16 %v245
    %v1758 = vunpack.c.l.b16 %v246
    %v1759 = vunpack.c.h.b16 %v246
    %v1760 = vunpack.c.l.b16 %v247
    %v1761 = vunpack.c.h.b16 %v247
    %v1762 = vunpack.c.l.b16 %v248
    %v1763 = vunpack.c.h.b16 %v248
    %v1764 = vunpack.c.l.b16 %v249
    %v1765 = vunpack.c.h.b16 %v249
    %v1766 = vunpack.c.l.b16 %v250
    %v1767 = vunpack.c.h.b16 %v250
    %v1768 = vunpack.c.l.b16 %v251
    %v1769 = vunpack.c.h.b16 %v251
    %v1770 = vunpack.c.l.b16 %v252
    %v1771 = vunpack.c.h.b16 %v252
    %v1772 = vunpack.c.l.b16 %v253
    %v1773 = vunpack.c.h.b16 %v253
    %v1774 = vunpack.c.l.b16 %v254
    %v1775 = vunpack.c.h.b16 %v254
    %v1776 = vunpack.c.l.b16 %v255
    %v1777 = vunpack.c.h.b16 %v255
    %v1778 = vunpack.c.l.b16 %v256
    %v1779 = vunpack.c.h.b16 %v256
    %v1780 = vunpack.c.l.b16 %v257
    %v1781 = vunpack.c.h.b16 %v257
    %v1782 = vunpack.c.l.b16 %v258
    %v1783 = vunpack.c.h.b16 %v258
    %v1784 = vunpack.c.l.b16 %v259
    %v1785 = vunpack.c.h.b16 %v259
    %v1786 = vunpack.c.l.b16 %v260
    %v1787 = vunpack.c.h.b16 %v260
    %v1788 = vunpack.c.l.b16 %v261
    %v1789 = vunpack.c.h.b16 %v261
    %v1790 = vunpack.c.l.b16 %v262
    %v1791 = vunpack.c.h.b16 %v262
    %v1792 = vunpack.c.l.b16 %v263
    %v1793 = vunpack.c.h.b16 %v263
    %v1794 = vunpack.c.l.b16 %v264
    %v1795 = vunpack.c.h.b16 %v264
    %v1796 = vunpack.c.l.b16 %v265
    %v1797 = vunpack.c.h.b16 %v265
    %v1798 = vunpack.c.l.b16 %v266
    %v1799 = vunpack.c.h.b16 %v266
    %v1800 = vunpack.c.l.b16 %v267
    %v1801 = vunpack.c.h.b16 %v267
    %v1802 = vunpack.c.l.b16 %v268
    %v1803 = vunpack.c.h.b16 %v268
    %v1804 = vunpack.c.l.b16 %v269
    %v1805 = vunpack.c.h.b16 %v269
    %v1806 = vunpack.c.l.b16 %v270
    %v1807 = vunpack.c.h.b16 %v270
    %v1808 = vunpack.c.l.b16 %v271
    %v1809 = vunpack.c.h.b16 %v271
    %v1810 = vunpack.c.l.b16 %v272
    %v1811 = vunpack.c.h.b16 %v272
    %v1812 = vunpack.c.l.b16 %v273
    %v1813 = vunpack.c.h.b16 %v273
    %v1814 = vunpack.c.l.b16 %v274
    %v1815 = vunpack.c.h.b16 %v274
    %v1816 = vunpack.c.l.b16 %v275
    %v1817 = vunpack.c.h.b16 %v275
    %v1818 = vunpack.c.l.b16 %v276
    %v1819 = vunpack.c.h.b16 %v276
    %v1820 = vunpack.c.l.b16 %v277
    %v1821 = vunpack.c.h.b16 %v277
    %v1822 = vunpack.c.l.b16 %v278
    %v1823 = vunpack.c.h.b16 %v278
    %v1824 = vunpack.c.l.b16 %v279
    %v1825 = vunpack.c.h.b16 %v279
    %v1826 = vunpack.c.l.b16 %v280
    %v1827 = vunpack.c.h.b16 %v280
    %v1828 = vunpack.c.l.b16 %v281
    %v1829 = vunpack.c.h.b16 %v281
    %v1830 = vunpack.c.l.b16 %v282
    %v1831 = vunpack.c.h.b16 %v282
    %v1832 = vunpack.c.l.b16 %v283
    %v1833 = vunpack.c.h.b16 %v283
    %v1834 = vunpack.c.l.b16 %v284
    %v1835 = vunpack.c.h.b16 %v284
    %v1836 = vunpack.c.l.b16 %v285
    %v1837 = vunpack.c.h.b16 %v285
    %v1838 = vunpack.c.l.b16 %v286
    %v1839 = vunpack.c.h.b16 %v286
    %v1840 = vunpack.c.l.b16 %v287
    %v1841 = vunpack.c.h.b16 %v287
    %v1842 = vunpack.c.l.b16 %v288
    %v1843 = vunpack.c.h.b16 %v288
    %v1844 = vunpack.c.l.b16 %v289
    %v1845 = vunpack.c.h.b16 %v289
    %v1846 = vunpack.c.l.b16 %v290
    %v1847 = vunpack.c.h.b16 %v290
    %v1848 = vunpack.c.l.b16 %v291
    %v1849 = vunpack.c.h.b16 %v291
    %v1850 = vunpack.c.l.b16 %v292
    %v1851 = vunpack.c.h.b16 %v292
    %v1852 = vunpack.c.l.b16 %v293
    %v1853 = vunpack.c.h.b16 %v293
    %v1854 = vunpack.c.l.b16 %v294
    %v1855 = vunpack.c.h.b16 %v294
    %v1856 = vunpack.c.l.b16 %v295
    %v1857 = vunpack.c.h.b16 %v295
    %v1858 = vunpack.c.l.b16 %v296
    %v1859 = vunpack.c.h.b16 %v296
    %v1860 = vunpack.c.l.b16 %v297
    %v1861 = vunpack.c.h.b16 %v297
    %v1862 = vunpack.c.l.b16 %v298
    %v1863 = vunpack.c.h.b16 %v298
    %v1864 = vunpack.c.l.b16 %v299
    %v1865 = vunpack.c.h.b16 %v299
    %v1866 = vunpack.c.l.b16 %v300
    %v1867 = vunpack.c.h.b16 %v300
    %v1868 = vunpack.c.l.b16 %v301
    %v1869 = vunpack.c.h.b16 %v301
    %v1870 = vunpack.c.l.b16 %v302
    %v1871 = vunpack.c.h.b16 %v302
    %v1872 = vunpack.c.l.b16 %v303
    %v1873 = vunpack.c.h.b16 %v303
    %v1874 = vunpack.c.l.b16 %v304
    %v1875 = vunpack.c.h.b16 %v304
    %v1876 = vunpack.c.l.b16 %v305
    %v1877 = vunpack.c.h.b16 %v305
    %v1878 = vunpack.c.l.b16 %v306
    %v1879 = vunpack.c.h.b16 %v306
    %v1880 = vunpack.c.l.b16 %v307
    %v1881 = vunpack.c.h.b16 %v307
    %v1882 = vunpack.c.l.b16 %v308
    %v1883 = vunpack.c.h.b16 %v308
    %v1884 = vunpack.c.l.b16 %v309
    %v1885 = vunpack.c.h.b16 %v309
    %v1886 = vunpack.c.l.b16 %v310
    %v1887 = vunpack.c.h.b16 %v310
    %v1888 = vunpack.c.l.b16 %v311
    %v1889 = vunpack.c.h.b16 %v311
    %v1890 = vunpack.c.l.b16 %v312
    %v1891 = vunpack.c.h.b16 %v312
    %v1892 = vunpack.c.l.b16 %v313
    %v1893 = vunpack.c.h.b16 %v313
    %v1894 = vunpack.c.l.b16 %v314
    %v1895 = vunpack.c.h.b16 %v314
    %v1896 = vunpack.c.l.b16 %v315
    %v1897 = vunpack.c.h.b16 %v315
    %v1898 = vunpack.c.l.b16 %v316
    %v1899 = vunpack.c.h.b16 %v316
    %v1900 = vunpack.c.l.b16 %v317
    %v1901 = vunpack.c.h.b16 %v317
    %v1902 = vunpack.c.l.b16 %v318
    %v1903 = vunpack.c.h.b16 %v318
    %v1904 = vunpack.c.l.b16 %v319
    %v1905 = vunpack.c.h.b16 %v319
    %v1906 = vunpack.c.l.b16 %v320
    %v1907 = vunpack.c.h.b16 %v320
    %v1908 = vunpack.c.l.b16 %v321
    %v1909 = vunpack.c.h.b16 %v321
    %v1910 = vunpack.c.l.b16 %v322
    %v1911 = vunpack.c.h.b16 %v322
    %v1912 = vunpack.c.l.b16 %v323
    %v1913 = vunpack.c.h.b16 %v323
    %v1914 = vunpack.c.l.b16 %v324
    %v1915 = vunpack.c.h.b16 %v324
    %v1916 = vunpack.c.l.b16 %v325
    %v1917 = vunpack.c.h.b16 %v325
    %v1918 = vunpack.c.l.b16 %v326
    %v1919 = vunpack.c.h.b16 %v326
    %v1920 = vunpack.c.l.b16 %v327
    %v1921 = vunpack.c.h.b16 %v327
    %v1922 = vunpack.c.l.b16 %v328
    %v1923 = vunpack.c.h.b16 %v328
    %v1924 = vunpack.c.l.b16 %v329
    %v1925 = vunpack.c.h.b16 %v329
    %v1926 = vunpack.c.l.b16 %v330
    %v1927 = vunpack.c.h.b16 %v330
    %v1928 = vunpack.c.l.b16 %v331
    %v1929 = vunpack.c.h.b16 %v331
    %v1930 = vunpack.c.l.b16 %v332
    %v1931 = vunpack.c.h.b16 %v332
    %v1932 = vunpack.c.l.b16 %v333
    %v1933 = vunpack.c.h.b16 %v333
    %v1934 = vunpack.c.l.b16 %v334
    %v1935 = vunpack.c.h.b16 %v334
    %v1936 = vunpack.c.l.b16 %v335
    %v1937 = vunpack.c.h.b16 %v335
    %v1938 = vunpack.c.l.b16 %v336
    %v1939 = vunpack.c.h.b16 %v336
    %v1940 = vunpack.c.l.b16 %v337
    %v1941 = vunpack.c.h.b16 %v337
    %v1942 = vunpack.c.l.b16 %v338
    %v1943 = vunpack.c.h.b16 %v338
    %v1944 = vunpack.c.l.b16 %v339
    %v1945 = vunpack.c.h.b16 %v339
    %v1946 = vunpack.c.l.b16 %v340
    %v1947 = vunpack.c.h.b16 %v340
    %v1948 = vunpack.c.l.b16 %v341
    %v1949 = vunpack.c.h.b16 %v341
    %v1950 = vunpack.c.l.b16 %v342
    %v1951 = vunpack.c.h.b16 %v342
    %v1952 = vunpack.c.l.b16 %v343
    %v1953 = vunpack.c.h.b16 %v343
    %v1954 = vunpack.c.l.b16 %v344
    %v1955 = vunpack.c.h.b16 %v344
    %v1956 = vunpack.c.l.b16 %v345
    %v1957 = vunpack.c.h.b16 %v345
    %v1958 = vunpack.c.l.b16 %v346
    %v1959 = vunpack.c.h.b16 %v346
    %v1960 = vunpack.c.l.b16 %v347
    %v1961 = vunpack.c.h.b16 %v347
    %v1962 = vunpack.c.l.b16 %v348
    %v1963 = vunpack.c.h.b16 %v348
    %v1964 = vunpack.c.l.b16 %v349
    %v1965 = vunpack.c.h.b16 %v349
    %v1966 = vunpack.c.l.b16 %v350
    %v1967 = vunpack.c.h.b16 %v350
    %v1968 = vunpack.c.l.b16 %v351
    %v1969 = vunpack.c.h.b16 %v351
    %v1970 = vunpack.c.l.b16 %v352
    %v1971 = vunpack.c.h.b16 %v352
    %v1972 = vunpack.c.l.b16 %v353
    %v1973 = vunpack.c.h.b16 %v353
    %v1974 = vunpack.c.l.b16 %v354
    %v1975 = vunpack.c.h.b16 %v354
    %v1976 = vunpack.c.l.b16 %v355
    %v1977 = vunpack.c.h.b16 %v355
    %v1978 = vunpack.c.l.b16 %v356
    %v1979 = vunpack.c.h.b16 %v356
    %v1980 = vunpack.c.l.b16 %v357
    %v1981 = vunpack.c.h.b16 %v357
    %v1982 = vunpack.c.l.b16 %v358
    %v1983 = vunpack.c.h.b16 %v358
    %v1984 = vunpack.c.l.b16 %v359
    %v1985 = vunpack.c.h.b16 %v359
    %v1986 = vunpack.c.l.b16 %v360
    %v1987 = vunpack.c.h.b16 %v360
    %v1988 = vunpack.c.l.b16 %v361
    %v1989 = vunpack.c.h.b16 %v361
    %v1990 = vunpack.c.l.b16 %v362
    %v1991 = vunpack.c.h.b16 %v362
    %v1992 = vunpack.c.l.b16 %v363
    %v1993 = vunpack.c.h.b16 %v363
    %v1994 = vunpack.c.l.b16 %v364
    %v1995 = vunpack.c.h.b16 %v364
    %v1996 = vunpack.c.l.b16 %v365
    %v1997 = vunpack.c.h.b16 %v365
    %v1998 = vunpack.c.l.b16 %v366
    %v1999 = vunpack.c.h.b16 %v366
    %v2000 = vunpack.c.l.b16 %v367
    %v2001 = vunpack.c.h.b16 %v367
    %v2002 = vunpack.c.l.b16 %v368
    %v2003 = vunpack.c.h.b16 %v368
    %v2004 = vunpack.c.l.b16 %v369
    %v2005 = vunpack.c.h.b16 %v369
    %v2006 = vunpack.c.l.b16 %v370
    %v2007 = vunpack.c.h.b16 %v370
    %v2008 = vunpack.c.l.b16 %v371
    %v2009 = vunpack.c.h.b16 %v371
    %v2010 = vunpack.c.l.b16 %v372
    %v2011 = vunpack.c.h.b16 %v372
    %v2012 = vunpack.c.l.b16 %v373
    %v2013 = vunpack.c.h.b16 %v373
    %v2014 = vunpack.c.l.b16 %v374
    %v2015 = vunpack.c.h.b16 %v374
    %v2016 = vunpack.c.l.b16 %v375
    %v2017 = vunpack.c.h.b16 %v375
    %v2018 = vunpack.c.l.b16 %v376
    %v2019 = vunpack.c.h.b16 %v376
    %v2020 = vunpack.c.l.b16 %v377
    %v2021 = vunpack.c.h.b16 %v377
    %v2022 = vunpack.c.l.b16 %v378
    %v2023 = vunpack.c.h.b16 %v378
    %v2024 = vunpack.c.l.b16 %v379
    %v2025 = vunpack.c.h.b16 %v379
    %v2026 = vunpack.c.l.b16 %v380
    %v2027 = vunpack.c.h.b16 %v380
    %v2028 = vunpack.c.l.b16 %v381
    %v2029 = vunpack.c.h.b16 %v381
    %v2030 = vunpack.c.l.b16 %v382
    %v2031 = vunpack.c.h.b16 %v382
    %v2032 = vunpack.c.l.b16 %v383
    %v2033 = vunpack.c.h.b16 %v383
    %v2034 = vunpack.c.l.b16 %v384
    %v2035 = vunpack.c.h.b16 %v384
    %v2036 = vunpack.c.l.b16 %v385
    %v2037 = vunpack.c.h.b16 %v385
    %v2038 = vunpack.c.l.b16 %v386
    %v2039 = vunpack.c.h.b16 %v386
    %v2040 = vunpack.c.l.b16 %v387
    %v2041 = vunpack.c.h.b16 %v387
    %v2042 = vunpack.c.l.b16 %v388
    %v2043 = vunpack.c.h.b16 %v388
    %v2044 = vunpack.c.l.b16 %v389
    %v2045 = vunpack.c.h.b16 %v389
    %v2046 = vunpack.c.l.b16 %v390
    %v2047 = vunpack.c.h.b16 %v390
    %v2048 = vunpack.c.l.b16 %v391
    %v2049 = vunpack.c.h.b16 %v391
    %v2050 = vunpack.c.l.b16 %v392
    %v2051 = vunpack.c.h.b16 %v392
    %v2052 = vunpack.c.l.b16 %v393
    %v2053 = vunpack.c.h.b16 %v393
    %v2054 = vunpack.c.l.b16 %v394
    %v2055 = vunpack.c.h.b16 %v394
    %v2056 = vunpack.c.l.b16 %v395
    %v2057 = vunpack.c.h.b16 %v395
    %v2058 = vunpack.c.l.b16 %v396
    %v2059 = vunpack.c.h.b16 %v396
    %v2060 = vunpack.c.l.b16 %v397
    %v2061 = vunpack.c.h.b16 %v397
    %v2062 = vunpack.c.l.b16 %v398
    %v2063 = vunpack.c.h.b16 %v398
    %v2064 = vunpack.c.l.b16 %v399
    %v2065 = vunpack.c.h.b16 %v399
    %v2066 = vunpack.c.l.b16 %v400
    %v2067 = vunpack.c.h.b16 %v400
    %v2068 = vunpack.c.l.b16 %v401
    %v2069 = vunpack.c.h.b16 %v401
    %v2070 = vunpack.c.l.b16 %v402
    %v2071 = vunpack.c.h.b16 %v402
    %v2072 = vunpack.c.l.b16 %v403
    %v2073 = vunpack.c.h.b16 %v403
    %v2074 = vunpack.c.l.b16 %v404
    %v2075 = vunpack.c.h.b16 %v404
    %v2076 = vunpack.c.l.b16 %v405
    %v2077 = vunpack.c.h.b16 %v405
    %v2078 = vunpack.c.l.b16 %v406
    %v2079 = vunpack.c.h.b16 %v406
    %v2080 = vunpack.c.l.b16 %v407
    %v2081 = vunpack.c.h.b16 %v407
    %v2082 = vunpack.c.l.b16 %v408
    %v2083 = vunpack.c.h.b16 %v408
    %v2084 = vunpack.c.l.b16 %v409
    %v2085 = vunpack.c.h.b16 %v409
    %v2086 = vunpack.c.l.b16 %v410
    %v2087 = vunpack.c.h.b16 %v410
    %v2088 = vunpack.c.l.b16 %v411
    %v2089 = vunpack.c.h.b16 %v411
    %v2090 = vunpack.c.l.b16 %v412
    %v2091 = vunpack.c.h.b16 %v412
    %v2092 = vunpack.c.l.b16 %v413
    %v2093 = vunpack.c.h.b16 %v413
    %v2094 = vunpack.c.l.b16 %v414
    %v2095 = vunpack.c.h.b16 %v414
    %v2096 = vunpack.c.l.b16 %v415
    %v2097 = vunpack.c.h.b16 %v415
    %v2098 = vunpack.c.l.b16 %v416
    %v2099 = vunpack.c.h.b16 %v416
    %v2100 = vunpack.c.l.b16 %v417
    %v2101 = vunpack.c.h.b16 %v417
    %v2102 = vunpack.c.l.b16 %v418
    %v2103 = vunpack.c.h.b16 %v418
    %v2104 = vunpack.c.l.b16 %v419
    %v2105 = vunpack.c.h.b16 %v419
    %v2106 = vunpack.c.l.b16 %v420
    %v2107 = vunpack.c.h.b16 %v420
    %v2108 = vunpack.c.l.b16 %v421
    %v2109 = vunpack.c.h.b16 %v421
    %v2110 = vunpack.c.l.b16 %v422
    %v2111 = vunpack.c.h.b16 %v422
    %v2112 = vunpack.c.l.b16 %v423
    %v2113 = vunpack.c.h.b16 %v423
    %v2114 = vunpack.c.l.b16 %v424
    %v2115 = vunpack.c.h.b16 %v424
    %v2116 = vunpack.c.l.b16 %v425
    %v2117 = vunpack.c.h.b16 %v425
    %v2118 = vunpack.c.l.b16 %v426
    %v2119 = vunpack.c.h.b16 %v426
    %v2120 = vunpack.c.l.b16 %v427
    %v2121 = vunpack.c.h.b16 %v427
    %v2122 = vunpack.c.l.b16 %v428
    %v2123 = vunpack.c.h.b16 %v428
    %v2124 = vunpack.c.l.b16 %v429
    %v2125 = vunpack.c.h.b16 %v429
    %v2126 = vunpack.c.l.b16 %v430
    %v2127 = vunpack.c.h.b16 %v430
    %v2128 = vunpack.c.l.b16 %v431
    %v2129 = vunpack.c.h.b16 %v431
    %v2130 = vunpack.c.l.b16 %v432
    %v2131 = vunpack.c.h.b16 %v432
    %v2132 = vunpack.c.l.b16 %v433
    %v2133 = vunpack.c.h.b16 %v433
    %v2134 = vunpack.c.l.b16 %v434
    %v2135 = vunpack.c.h.b16 %v434
    %v2136 = vunpack.c.l.b16 %v435
    %v2137 = vunpack.c.h.b16 %v435
    %v2138 = vunpack.c.l.b16 %v436
    %v2139 = vunpack.c.h.b16 %v436
    %v2140 = vunpack.c.l.b16 %v437
    %v2141 = vunpack.c.h.b16 %v437
    %v2142 = vunpack.c.l.b16 %v438
    %v2143 = vunpack.c.h.b16 %v438
    %v2144 = vunpack.c.l.b16 %v439
    %v2145 = vunpack.c.h.b16 %v439
    %v2146 = vunpack.c.l.b16 %v440
    %v2147 = vunpack.c.h.b16 %v440
    %v2148 = vunpack.c.l.b16 %v441
    %v2149 = vunpack.c.h.b16 %v441
    %v2150 = vunpack.c.l.b16 %v442
    %v2151 = vunpack.c.h.b16 %v442
    %v2152 = vunpack.c.l.b16 %v443
    %v2153 = vunpack.c.h.b16 %v443
    %v2154 = vunpack.c.l.b16 %v444
    %v2155 = vunpack.c.h.b16 %v444
    %v2156 = vunpack.c.l.b16 %v445
    %v2157 = vunpack.c.h.b16 %v445
    %v2158 = vunpack.c.l.b16 %v446
    %v2159 = vunpack.c.h.b16 %v446
    %v2160 = vunpack.c.l.b16 %v447
    %v2161 = vunpack.c.h.b16 %v447
    %v2162 = vunpack.c.l.b16 %v448
    %v2163 = vunpack.c.h.b16 %v448
    %v2164 = vunpack.c.l.b16 %v449
    %v2165 = vunpack.c.h.b16 %v449
    %v2166 = vunpack.c.l.b16 %v450
    %v2167 = vunpack.c.h.b16 %v450
    %v2168 = vunpack.c.l.b16 %v451
    %v2169 = vunpack.c.h.b16 %v451
    %v2170 = vunpack.c.l.b16 %v452
    %v2171 = vunpack.c.h.b16 %v452
    %v2172 = vunpack.c.l.b16 %v453
    %v2173 = vunpack.c.h.b16 %v453
    %v2174 = vunpack.c.l.b16 %v454
    %v2175 = vunpack.c.h.b16 %v454
    %v2176 = vunpack.c.l.b16 %v455
    %v2177 = vunpack.c.h.b16 %v455
    %v2178 = vunpack.c.l.b16 %v456
    %v2179 = vunpack.c.h.b16 %v456
    %v2180 = vunpack.c.l.b16 %v457
    %v2181 = vunpack.c.h.b16 %v457
    %v2182 = vunpack.c.l.b16 %v458
    %v2183 = vunpack.c.h.b16 %v458
    %v2184 = vunpack.c.l.b16 %v459
    %v2185 = vunpack.c.h.b16 %v459
    %v2186 = vunpack.c.l.b16 %v460
    %v2187 = vunpack.c.h.b16 %v460
    %v2188 = vunpack.c.l.b16 %v461
    %v2189 = vunpack.c.h.b16 %v461
    %v2190 = vunpack.c.l.b16 %v462
    %v2191 = vunpack.c.h.b16 %v462
    %v2192 = vunpack.c.l.b16 %v463
    %v2193 = vunpack.c.h.b16 %v463
    %v2194 = vunpack.c.l.b16 %v464
    %v2195 = vunpack.c.h.b16 %v464
    %v2196 = vunpack.c.l.b16 %v465
    %v2197 = vunpack.c.h.b16 %v465
    %v2198 = vunpack.c.l.b16 %v466
    %v2199 = vunpack.c.h.b16 %v466
    %v2200 = vunpack.c.l.b16 %v467
    %v2201 = vunpack.c.h.b16 %v467
    %v2202 = vunpack.c.l.b16 %v468
    %v2203 = vunpack.c.h.b16 %v468
    %v2204 = vunpack.c.l.b16 %v469
    %v2205 = vunpack.c.h.b16 %v469
    %v2206 = vunpack.c.l.b16 %v470
    %v2207 = vunpack.c.h.b16 %v470
    %v2208 = vunpack.c.l.b16 %v471
    %v2209 = vunpack.c.h.b16 %v471
    %v2210 = vunpack.c.l.b16 %v472
    %v2211 = vunpack.c.h.b16 %v472
    %v2212 = vunpack.c.l.b16 %v473
    %v2213 = vunpack.c.h.b16 %v473
    %v2214 = vunpack.c.l.b16 %v474
    %v2215 = vunpack.c.h.b16 %v474
    %v2216 = vunpack.c.l.b16 %v475
    %v2217 = vunpack.c.h.b16 %v475
    %v2218 = vunpack.c.l.b16 %v476
    %v2219 = vunpack.c.h.b16 %v476
    %v2220 = vunpack.c.l.b16 %v477
    %v2221 = vunpack.c.h.b16 %v477
    %v2222 = vunpack.c.l.b16 %v478
    %v2223 = vunpack.c.h.b16 %v478
    %v2224 = vunpack.c.l.b16 %v479
    %v2225 = vunpack.c.h.b16 %v479
    %v2226 = vunpack.c.l.b16 %v480
    %v2227 = vunpack.c.h.b16 %v480
    %v2228 = vunpack.c.l.b16 %v481
    %v2229 = vunpack.c.h.b16 %v481
    %v2230 = vunpack.c.l.b16 %v482
    %v2231 = vunpack.c.h.b16 %v482
    %v2232 = vunpack.c.l.b16 %v483
    %v2233 = vunpack.c.h.b16 %v483
    %v2234 = vunpack.c.l.b16 %v484
    %v2235 = vunpack.c.h.b16 %v484
    %v2236 = vunpack.c.l.b16 %v485
    %v2237 = vunpack.c.h.b16 %v485
    %v2238 = vunpack.c.l.b16 %v486
    %v2239 = vunpack.c.h.b16 %v486
    %v2240 = vunpack.c.l.b16 %v487
    %v2241 = vunpack.c.h.b16 %v487
    %v2242 = vunpack.c.l.b16 %v488
    %v2243 = vunpack.c.h.b16 %v488
    %v2244 = vunpack.c.l.b16 %v489
    %v2245 = vunpack.c.h.b16 %v489
    %v2246 = vunpack.c.l.b16 %v490
    %v2247 = vunpack.c.h.b16 %v490
    %v2248 = vunpack.c.l.b16 %v491
    %v2249 = vunpack.c.h.b16 %v491
    %v2250 = vunpack.c.l.b16 %v492
    %v2251 = vunpack.c.h.b16 %v492
    %v2252 = vunpack.c.l.b16 %v493
    %v2253 = vunpack.c.h.b16 %v493
    %v2254 = vunpack.c.l.b16 %v494
    %v2255 = vunpack.c.h.b16 %v494
    %v2256 = vunpack.c.l.b16 %v495
    %v2257 = vunpack.c.h.b16 %v495
    %v2258 = vunpack.c.l.b16 %v496
    %v2259 = vunpack.c.h.b16 %v496
    %v2260 = vunpack.c.l.b16 %v497
    %v2261 = vunpack.c.h.b16 %v497
    %v2262 = vunpack.c.l.b16 %v498
    %v2263 = vunpack.c.h.b16 %v498
    %v2264 = vunpack.c.l.b16 %v499
    %v2265 = vunpack.c.h.b16 %v499
    %v2266 = vunpack.c.l.b16 %v500
    %v2267 = vunpack.c.h.b16 %v500
    %v2268 = vunpack.c.l.b16 %v501
    %v2269 = vunpack.c.h.b16 %v501
    %v2270 = vunpack.c.l.b16 %v502
    %v2271 = vunpack.c.h.b16 %v502
    %v2272 = vunpack.c.l.b16 %v503
    %v2273 = vunpack.c.h.b16 %v503
    %v2274 = vunpack.c.l.b16 %v504
    %v2275 = vunpack.c.h.b16 %v504
    %v2276 = vunpack.c.l.b16 %v505
    %v2277 = vunpack.c.h.b16 %v505
    %v2278 = vunpack.c.l.b16 %v506
    %v2279 = vunpack.c.h.b16 %v506
    %v2280 = vunpack.c.l.b16 %v507
    %v2281 = vunpack.c.h.b16 %v507
    %v2282 = vunpack.c.l.b16 %v508
    %v2283 = vunpack.c.h.b16 %v508
    %v2284 = vunpack.c.l.b16 %v509
    %v2285 = vunpack.c.h.b16 %v509
    %v2286 = vunpack.c.l.b16 %v510
    %v2287 = vunpack.c.h.b16 %v510
    %v2288 = vunpack.c.l.b16 %v511
    %v2289 = vunpack.c.h.b16 %v511
    %v2290 = vunpack.c.l.b16 %v512
    %v2291 = vunpack.c.h.b16 %v512
    %v2292 = vunpack.c.l.b16 %v513
    %v2293 = vunpack.c.h.b16 %v513
    %v2294 = vunpack.c.l.b16 %v514
    %v2295 = vunpack.c.h.b16 %v514
    %v2296 = vunpack.c.l.b16 %v515
    %v2297 = vunpack.c.h.b16 %v515
    %v2298 = vunpack.c.l.b16 %v516
    %v2299 = vunpack.c.h.b16 %v516
    %v2300 = vunpack.c.l.b16 %v517
    %v2301 = vunpack.c.h.b16 %v517
    %v2302 = vunpack.c.l.b16 %v518
    %v2303 = vunpack.c.h.b16 %v518
    %v2304 = vunpack.c.l.b16 %v519
    %v2305 = vunpack.c.h.b16 %v519
    %v2306 = vunpack.c.l.b16 %v520
    %v2307 = vunpack.c.h.b16 %v520
    %v2308 = vunpack.c.l.b16 %v521
    %v2309 = vunpack.c.h.b16 %v521
    %v2310 = vunpack.c.l.b16 %v522
    %v2311 = vunpack.c.h.b16 %v522
    %v2312 = vunpack.c.l.b16 %v523
    %v2313 = vunpack.c.h.b16 %v523
    %v2314 = vunpack.c.l.b16 %v524
    %v2315 = vunpack.c.h.b16 %v524
    %v2316 = vunpack.c.l.b16 %v525
    %v2317 = vunpack.c.h.b16 %v525
    %v2318 = vunpack.c.l.b16 %v526
    %v2319 = vunpack.c.h.b16 %v526
    %v2320 = vunpack.c.l.b16 %v527
    %v2321 = vunpack.c.h.b16 %v527
    %v2322 = vunpack.c.l.b16 %v528
    %v2323 = vunpack.c.h.b16 %v528
    %v2324 = vunpack.c.l.b16 %v529
    %v2325 = vunpack.c.h.b16 %v529
    %v2326 = vunpack.c.l.b16 %v530
    %v2327 = vunpack.c.h.b16 %v530
    %v2328 = vunpack.c.l.b16 %v531
    %v2329 = vunpack.c.h.b16 %v531
    %v2330 = vunpack.c.l.b16 %v532
    %v2331 = vunpack.c.h.b16 %v532
    %v2332 = vunpack.c.l.b16 %v533
    %v2333 = vunpack.c.h.b16 %v533
    %v2334 = vunpack.c.l.b16 %v534
    %v2335 = vunpack.c.h.b16 %v534
    %v2336 = vunpack.c.l.b16 %v535
    %v2337 = vunpack.c.h.b16 %v535
    %v2338 = vunpack.c.l.b16 %v536
    %v2339 = vunpack.c.h.b16 %v536
    %v2340 = vunpack.c.l.b16 %v537
    %v2341 = vunpack.c.h.b16 %v537
    %v2342 = vunpack.c.l.b16 %v538
    %v2343 = vunpack.c.h.b16 %v538
    %v2344 = vunpack.c.l.b16 %v539
    %v2345 = vunpack.c.h.b16 %v539
    %v2346 = vunpack.c.l.b16 %v540
    %v2347 = vunpack.c.h.b16 %v540
    %v2348 = vunpack.c.l.b16 %v541
    %v2349 = vunpack.c.h.b16 %v541
    %v2350 = vunpack.c.l.b16 %v542
    %v2351 = vunpack.c.h.b16 %v542
    %v2352 = vunpack.c.l.b16 %v543
    %v2353 = vunpack.c.h.b16 %v543
    %v2354 = vunpack.c.l.b16 %v544
    %v2355 = vunpack.c.h.b16 %v544
    %v2356 = vunpack.c.l.b16 %v545
    %v2357 = vunpack.c.h.b16 %v545
    %v2358 = vunpack.c.l.b16 %v546
    %v2359 = vunpack.c.h.b16 %v546
    %v2360 = vunpack.c.l.b16 %v547
    %v2361 = vunpack.c.h.b16 %v547
    %v2362 = vunpack.c.l.b16 %v548
    %v2363 = vunpack.c.h.b16 %v548
    %v2364 = vunpack.c.l.b16 %v549
    %v2365 = vunpack.c.h.b16 %v549
    %v2366 = vunpack.c.l.b16 %v550
    %v2367 = vunpack.c.h.b16 %v550
    %v2368 = vunpack.c.l.b16 %v551
    %v2369 = vunpack.c.h.b16 %v551
    %v2370 = vunpack.c.l.b16 %v552
    %v2371 = vunpack.c.h.b16 %v552
    %v2372 = vunpack.c.l.b16 %v553
    %v2373 = vunpack.c.h.b16 %v553
    %v2374 = vunpack.c.l.b16 %v554
    %v2375 = vunpack.c.h.b16 %v554
    %v2376 = vunpack.c.l.b16 %v555
    %v2377 = vunpack.c.h.b16 %v555
    %v2378 = vunpack.c.l.b16 %v556
    %v2379 = vunpack.c.h.b16 %v556
    %v2380 = vunpack.c.l.b16 %v557
    %v2381 = vunpack.c.h.b16 %v557
    %v2382 = vunpack.c.l.b16 %v558
    %v2383 = vunpack.c.h.b16 %v558
    %v2384 = vunpack.c.l.b16 %v559
    %v2385 = vunpack.c.h.b16 %v559
    %v2386 = vunpack.c.l.b16 %v560
    %v2387 = vunpack.c.h.b16 %v560
    %v2388 = vunpack.c.l.b16 %v561
    %v2389 = vunpack.c.h.b16 %v561
    %v2390 = vunpack.c.l.b16 %v562
    %v2391 = vunpack.c.h.b16 %v562
    %v2392 = vunpack.c.l.b16 %v563
    %v2393 = vunpack.c.h.b16 %v563
    %v2394 = vunpack.c.l.b16 %v564
    %v2395 = vunpack.c.h.b16 %v564
    %v2396 = vunpack.c.l.b16 %v565
    %v2397 = vunpack.c.h.b16 %v565
    %v2398 = vunpack.c.l.b16 %v566
    %v2399 = vunpack.c.h.b16 %v566
    %v2400 = vunpack.c.l.b16 %v567
    %v2401 = vunpack.c.h.b16 %v567
    %v2402 = vunpack.c.l.b16 %v568
    %v2403 = vunpack.c.h.b16 %v568
    %v2404 = vunpack.c.l.b16 %v569
    %v2405 = vunpack.c.h.b16 %v569
    %v2406 = vunpack.c.l.b16 %v570
    %v2407 = vunpack.c.h.b16 %v570
    %v2408 = vunpack.c.l.b16 %v571
    %v2409 = vunpack.c.h.b16 %v571
    %v2410 = vunpack.c.l.b16 %v572
    %v2411 = vunpack.c.h.b16 %v572
    %v2412 = vunpack.c.l.b16 %v573
    %v2413 = vunpack.c.h.b16 %v573
    %v2414 = vunpack.c.l.b16 %v574
    %v2415 = vunpack.c.h.b16 %v574
    %v2416 = vunpack.c.l.b16 %v575
    %v2417 = vunpack.c.h.b16 %v575
    %v2418 = vunpack.c.l.b16 %v576
    %v2419 = vunpack.c.h.b16 %v576
    %v2420 = vunpack.c.l.b16 %v577
    %v2421 = vunpack.c.h.b16 %v577
    %v2422 = vunpack.c.l.b16 %v578
    %v2423 = vunpack.c.h.b16 %v578
    %v2424 = vunpack.c.l.b16 %v579
    %v2425 = vunpack.c.h.b16 %v579
    %v2426 = vunpack.c.l.b16 %v580
    %v2427 = vunpack.c.h.b16 %v580
    %v2428 = vunpack.c.l.b16 %v581
    %v2429 = vunpack.c.h.b16 %v581
    %v2430 = vunpack.c.l.b16 %v582
    %v2431 = vunpack.c.h.b16 %v582
    %v2432 = vunpack.c.l.b16 %v583
    %v2433 = vunpack.c.h.b16 %v583
    %v2434 = vunpack.c.l.b16 %v584
    %v2435 = vunpack.c.h.b16 %v584
    %v2436 = vunpack.c.l.b16 %v585
    %v2437 = vunpack.c.h.b16 %v585
    %v2438 = vunpack.c.l.b16 %v586
    %v2439 = vunpack.c.h.b16 %v586
    %v2440 = vunpack.c.l.b16 %v587
    %v2441 = vunpack.c.h.b16 %v587
    %v2442 = vunpack.c.l.b16 %v588
    %v2443 = vunpack.c.h.b16 %v588
    %v2444 = vunpack.c.l.b16 %v589
    %v2445 = vunpack.c.h.b16 %v589
    %v2446 = vunpack.c.l.b16 %v590
    %v2447 = vunpack.c.h.b16 %v590
    %v2448 = vunpack.c.l.b16 %v591
    %v2449 = vunpack.c.h.b16 %v591
    %v2450 = vunpack.c.l.b16 %v592
    %v2451 = vunpack.c.h.b16 %v592
    %v2452 = vunpack.c.l.b16 %v593
    %v2453 = vunpack.c.h.b16 %v593
    %v2454 = vunpack.c.l.b16 %v594
    %v2455 = vunpack.c.h.b16 %v594
    %v2456 = vunpack.c.l.b16 %v595
    %v2457 = vunpack.c.h.b16 %v595
    %v2458 = vunpack.c.l.b16 %v596
    %v2459 = vunpack.c.h.b16 %v596
    %v2460 = vunpack.c.l.b16 %v597
    %v2461 = vunpack.c.h.b16 %v597
    %v2462 = vunpack.c.l.b16 %v598
    %v2463 = vunpack.c.h.b16 %v598
    %v2464 = vunpack.c.l.b16 %v599
    %v2465 = vunpack.c.h.b16 %v599
    %v2466 = vunpack.c.l.b16 %v600
    %v2467 = vunpack.c.h.b16 %v600
    %v2468 = vunpack.c.l.b16 %v601
    %v2469 = vunpack.c.h.b16 %v601
    %v2470 = vunpack.c.l.b16 %v602
    %v2471 = vunpack.c.h.b16 %v602
    %v2472 = vunpack.c.l.b16 %v603
    %v2473 = vunpack.c.h.b16 %v603
    %v2474 = vunpack.c.l.b16 %v604
    %v2475 = vunpack.c.h.b16 %v604
    %v2476 = vunpack.c.l.b16 %v605
    %v2477 = vunpack.c.h.b16 %v605
    %v2478 = vunpack.c.l.b16 %v606
    %v2479 = vunpack.c.h.b16 %v606
    %v2480 = vunpack.c.l.b16 %v607
    %v2481 = vunpack.c.h.b16 %v607
    %v2482 = vunpack.c.l.b16 %v608
    %v2483 = vunpack.c.h.b16 %v608
    %v2484 = vunpack.c.l.b16 %v609
    %v2485 = vunpack.c.h.b16 %v609
    %v2486 = vunpack.c.l.b16 %v610
    %v2487 = vunpack.c.h.b16 %v610
    %v2488 = vunpack.c.l.b16 %v611
    %v2489 = vunpack.c.h.b16 %v611
    %v2490 = vunpack.c.l.b16 %v612
    %v2491 = vunpack.c.h.b16 %v612
    %v2492 = vunpack.c.l.b16 %v613
    %v2493 = vunpack.c.h.b16 %v613
    %v2494 = vunpack.c.l.b16 %v614
    %v2495 = vunpack.c.h.b16 %v614
    %v2496 = vunpack.c.l.b16 %v615
    %v2497 = vunpack.c.h.b16 %v615
    %v2498 = vunpack.c.l.b16 %v616
    %v2499 = vunpack.c.h.b16 %v616
    %v2500 = vunpack.c.l.b16 %v617
    %v2501 = vunpack.c.h.b16 %v617
    %v2502 = vunpack.c.l.b16 %v618
    %v2503 = vunpack.c.h.b16 %v618
    %v2504 = vunpack.c.l.b16 %v619
    %v2505 = vunpack.c.h.b16 %v619
    %v2506 = vunpack.c.l.b16 %v620
    %v2507 = vunpack.c.h.b16 %v620
    %v2508 = vunpack.c.l.b16 %v621
    %v2509 = vunpack.c.h.b16 %v621
    %v2510 = vunpack.c.l.b16 %v622
    %v2511 = vunpack.c.h.b16 %v622
    %v2512 = vunpack.c.l.b16 %v623
    %v2513 = vunpack.c.h.b16 %v623
    %v2514 = vunpack.c.l.b16 %v624
    %v2515 = vunpack.c.h.b16 %v624
    %v2516 = vunpack.c.l.b16 %v625
    %v2517 = vunpack.c.h.b16 %v625
    %v2518 = vunpack.c.l.b16 %v626
    %v2519 = vunpack.c.h.b16 %v626
    %v2520 = vunpack.c.l.b16 %v627
    %v2521 = vunpack.c.h.b16 %v627
    %v2522 = vunpack.c.l.b16 %v628
    %v2523 = vunpack.c.h.b16 %v628
    %v2524 = vunpack.c.l.b16 %v629
    %v2525 = vunpack.c.h.b16 %v629
    %v2526 = vunpack.c.l.b16 %v630
    %v2527 = vunpack.c.h.b16 %v630
    %v2528 = vunpack.c.l.b16 %v631
    %v2529 = vunpack.c.h.b16 %v631
    %v2530 = vunpack.c.l.b16 %v632
    %v2531 = vunpack.c.h.b16 %v632
    %v2532 = vunpack.c.l.b16 %v633
    %v2533 = vunpack.c.h.b16 %v633
    %v2534 = vunpack.c.l.b16 %v634
    %v2535 = vunpack.c.h.b16 %v634
    %v2536 = vunpack.c.l.b16 %v635
    %v2537 = vunpack.c.h.b16 %v635
    %v2538 = vunpack.c.l.b16 %v636
    %v2539 = vunpack.c.h.b16 %v636
    %v2540 = vunpack.c.l.b16 %v637
    %v2541 = vunpack.c.h.b16 %v637
    %v2542 = vunpack.c.l.b16 %v638
    %v2543 = vunpack.c.h.b16 %v638
    %v2544 = vunpack.c.l.b16 %v639
    %v2545 = vunpack.c.h.b16 %v639
    %v2546 = vunpack.c.l.b16 %v640
    %v2547 = vunpack.c.h.b16 %v640
    %v2548 = vunpack.c.l.b16 %v641
    %v2549 = vunpack.c.h.b16 %v641
    %v2550 = vpack.c.b16 %v1402, %v1398
    %v2551 = vpack.c.b16 %v1403, %v1399
    %v2552 = vpack.c.b16 %v1404, %v1400
    %v2553 = vpack.c.b16 %v1405, %v1401
    %v2554 = vpack.c.b16 %v1410, %v1406
    %v2555 = vpack.c.b16 %v1411, %v1407
    %v2556 = vpack.c.b16 %v1412, %v1408
    %v2557 = vpack.c.b16 %v1413, %v1409
    %v2558 = vpack.c.b16 %v1418, %v1414
    %v2559 = vpack.c.b16 %v1419, %v1415
    %v2560 = vpack.c.b16 %v1420, %v1416
    %v2561 = vpack.c.b16 %v1421, %v1417
    %v2562 = vpack.c.b16 %v1426, %v1422
    %v2563 = vpack.c.b16 %v1427, %v1423
    %v2564 = vpack.c.b16 %v1428, %v1424
    %v2565 = vpack.c.b16 %v1429, %v1425
    %v2566 = vpack.c.b16 %v1434, %v1430
    %v2567 = vpack.c.b16 %v1435, %v1431
    %v2568 = vpack.c.b16 %v1436, %v1432
    %v2569 = vpack.c.b16 %v1437, %v1433
    %v2570 = vpack.c.b16 %v1442, %v1438
    %v2571 = vpack.c.b16 %v1443, %v1439
    %v2572 = vpack.c.b16 %v1444, %v1440
    %v2573 = vpack.c.b16 %v1445, %v1441
    %v2574 = vpack.c.b16 %v1450, %v1446
    %v2575 = vpack.c.b16 %v1451, %v1447
    %v2576 = vpack.c.b16 %v1452, %v1448
    %v2577 = vpack.c.b16 %v1453, %v1449
    %v2578 = vpack.c.b16 %v1458, %v1454
    %v2579 = vpack.c.b16 %v1459, %v1455
    %v2580 = vpack.c.b16 %v1460, %v1456
    %v2581 = vpack.c.b16 %v1461, %v1457
    %v2582 = vpack.c.b16 %v1466, %v1462
    %v2583 = vpack.c.b16 %v1467, %v1463
    %v2584 = vpack.c.b16 %v1468, %v1464
    %v2585 = vpack.c.b16 %v1469, %v1465
    %v2586 = vpack.c.b16 %v1474, %v1470
    %v2587 = vpack.c.b16 %v1475, %v1471
    %v2588 = vpack.c.b16 %v1476, %v1472
    %v2589 = vpack.c.b16 %v1477, %v1473
    %v2590 = vpack.c.b16 %v1482, %v1478
    %v2591 = vpack.c.b16 %v1483, %v1479
    %v2592 = vpack.c.b16 %v1484, %v1480
    %v2593 = vpack.c.b16 %v1485, %v1481
    %v2594 = vpack.c.b16 %v1490, %v1486
    %v2595 = vpack.c.b16 %v1491, %v1487
    %v2596 = vpack.c.b16 %v1492, %v1488
    %v2597 = vpack.c.b16 %v1493, %v1489
    %v2598 = vpack.c.b16 %v1498, %v1494
    %v2599 = vpack.c.b16 %v1499, %v1495
    %v2600 = vpack.c.b16 %v1500, %v1496
    %v2601 = vpack.c.b16 %v1501, %v1497
    %v2602 = vpack.c.b16 %v1506, %v1502
    %v2603 = vpack.c.b16 %v1507, %v1503
    %v2604 = vpack.c.b16 %v1508, %v1504
    %v2605 = vpack.c.b16 %v1509, %v1505
    %v2606 = vpack.c.b16 %v1514, %v1510
    %v2607 = vpack.c.b16 %v1515, %v1511
    %v2608 = vpack.c.b16 %v1516, %v1512
    %v2609 = vpack.c.b16 %v1517, %v1513
    %v2610 = vpack.c.b16 %v1522, %v1518
    %v2611 = vpack.c.b16 %v1523, %v1519
    %v2612 = vpack.c.b16 %v1524, %v1520
    %v2613 = vpack.c.b16 %v1525, %v1521
    %v2614 = vpack.c.b16 %v1530, %v1526
    %v2615 = vpack.c.b16 %v1531, %v1527
    %v2616 = vpack.c.b16 %v1532, %v1528
    %v2617 = vpack.c.b16 %v1533, %v1529
    %v2618 = vpack.c.b16 %v1538, %v1534
    %v2619 = vpack.c.b16 %v1539, %v1535
    %v2620 = vpack.c.b16 %v1540, %v1536
    %v2621 = vpack.c.b16 %v1541, %v1537
    %v2622 = vpack.c.b16 %v1546, %v1542
    %v2623 = vpack.c.b16 %v1547, %v1543
    %v2624 = vpack.c.b16 %v1548, %v1544
    %v2625 = vpack.c.b16 %v1549, %v1545
    %v2626 = vpack.c.b16 %v1554, %v1550
    %v2627 = vpack.c.b16 %v1555, %v1551
    %v2628 = vpack.c.b16 %v1556, %v1552
    %v2629 = vpack.c.b16 %v1557, %v1553
    %v2630 = vpack.c.b16 %v1562, %v1558
    %v2631 = vpack.c.b16 %v1563, %v1559
    %v2632 = vpack.c.b16 %v1564, %v1560
    %v2633 = vpack.c.b16 %v1565, %v1561
    %v2634 = vpack.c.b16 %v1570, %v1566
    %v2635 = vpack.c.b16 %v1571, %v1567
    %v2636 = vpack.c.b16 %v1572, %v1568
    %v2637 = vpack.c.b16 %v1573, %v1569
    %v2638 = vpack.c.b16 %v1578, %v1574
    %v2639 = vpack.c.b16 %v1579, %v1575
    %v2640 = vpack.c.b16 %v1580, %v1576
    %v2641 = vpack.c.b16 %v1581, %v1577
    %v2642 = vpack.c.b16 %v1586, %v1582
    %v2643 = vpack.c.b16 %v1587, %v1583
    %v2644 = vpack.c.b16 %v1588, %v1584
    %v2645 = vpack.c.b16 %v1589, %v1585
    %v2646 = vpack.c.b16 %v1594, %v1590
    %v2647 = vpack.c.b16 %v1595, %v1591
    %v2648 = vpack.c.b16 %v1596, %v1592
    %v2649 = vpack.c.b16 %v1597, %v1593
    %v2650 = vpack.c.b16 %v1602, %v1598
    %v2651 = vpack.c.b16 %v1603, %v1599
    %v2652 = vpack.c.b16 %v1604, %v1600
    %v2653 = vpack.c.b16 %v1605, %v1601
    %v2654 = vpack.c.b16 %v1610, %v1606
    %v2655 = vpack.c.b16 %v1611, %v1607
    %v2656 = vpack.c.b16 %v1612, %v1608
    %v2657 = vpack.c.b16 %v1613, %v1609
    %v2658 = vpack.c.b16 %v1618, %v1614
    %v2659 = vpack.c.b16 %v1619, %v1615
    %v2660 = vpack.c.b16 %v1620, %v1616
    %v2661 = vpack.c.b16 %v1621, %v1617
    %v2662 = vpack.c.b16 %v1626, %v1622
    %v2663 = vpack.c.b16 %v1627, %v1623
    %v2664 = vpack.c.b16 %v1628, %v1624
    %v2665 = vpack.c.b16 %v1629, %v1625
    %v2666 = vpack.c.b16 %v1634, %v1630
    %v2667 = vpack.c.b16 %v1635, %v1631
    %v2668 = vpack.c.b16 %v1636, %v1632
    %v2669 = vpack.c.b16 %v1637, %v1633
    %v2670 = vpack.c.b16 %v1642, %v1638
    %v2671 = vpack.c.b16 %v1643, %v1639
    %v2672 = vpack.c.b16 %v1644, %v1640
    %v2673 = vpack.c.b16 %v1645, %v1641
    %v2674 = vpack.c.b16 %v1650, %v1646
    %v2675 = vpack.c.b16 %v1651, %v1647
    %v2676 = vpack.c.b16 %v1652, %v1648
    %v2677 = vpack.c.b16 %v1653, %v1649
    %v2678 = vpack.c.b16 %v1658, %v1654
    %v2679 = vpack.c.b16 %v1659, %v1655
    %v2680 = vpack.c.b16 %v1660, %v1656
    %v2681 = vpack.c.b16 %v1661, %v1657
    %v2682 = vpack.c.b16 %v1666, %v1662
    %v2683 = vpack.c.b16 %v1667, %v1663
    %v2684 = vpack.c.b16 %v1668, %v1664
    %v2685 = vpack.c.b16 %v1669, %v1665
    %v2686 = vpack.c.b16 %v1674, %v1670
    %v2687 = vpack.c.b16 %v1675, %v1671
    %v2688 = vpack.c.b16 %v1676, %v1672
    %v2689 = vpack.c.b16 %v1677, %v1673
    %v2690 = vpack.c.b16 %v1682, %v1678
    %v2691 = vpack.c.b16 %v1683, %v1679
    %v2692 = vpack.c.b16 %v1684, %v1680
    %v2693 = vpack.c.b16 %v1685, %v1681
    %v2694 = vpack.c.b16 %v1690, %v1686
    %v2695 = vpack.c.b16 %v1691, %v1687
    %v2696 = vpack.c.b16 %v1692, %v1688
    %v2697 = vpack.c.b16 %v1693, %v1689
    %v2698 = vpack.c.b16 %v1698, %v1694
    %v2699 = vpack.c.b16 %v1699, %v1695
    %v2700 = vpack.c.b16 %v1700, %v1696
    %v2701 = vpack.c.b16 %v1701, %v1697
    %v2702 = vpack.c.b16 %v1706, %v1702
    %v2703 = vpack.c.b16 %v1707, %v1703
    %v2704 = vpack.c.b16 %v1708, %v1704
    %v2705 = vpack.c.b16 %v1709, %v1705
    %v2706 = vpack.c.b16 %v1714, %v1710
    %v2707 = vpack.c.b16 %v1715, %v1711
    %v2708 = vpack.c.b16 %v1716, %v1712
    %v2709 = vpack.c.b16 %v1717, %v1713
    %v2710 = vpack.c.b16 %v1722, %v1718
    %v2711 = vpack.c.b16 %v1723, %v1719
    %v2712 = vpack.c.b16 %v1724, %v1720
    %v2713 = vpack.c.b16 %v1725, %v1721
    %v2714 = vpack.c.b16 %v1730, %v1726
    %v2715 = vpack.c.b16 %v1731, %v1727
    %v2716 = vpack.c.b16 %v1732, %v1728
    %v2717 = vpack.c.b16 %v1733, %v1729
    %v2718 = vpack.c.b16 %v1738, %v1734
    %v2719 = vpack.c.b16 %v1739, %v1735
    %v2720 = vpack.c.b16 %v1740, %v1736
    %v2721 = vpack.c.b16 %v1741, %v1737
    %v2722 = vpack.c.b16 %v1746, %v1742
    %v2723 = vpack.c.b16 %v1747, %v1743
    %v2724 = vpack.c.b16 %v1748, %v1744
    %v2725 = vpack.c.b16 %v1749, %v1745
    %v2726 = vpack.c.b16 %v1754, %v1750
    %v2727 = vpack.c.b16 %v1755, %v1751
    %v2728 = vpack.c.b16 %v1756, %v1752
    %v2729 = vpack.c.b16 %v1757, %v1753
    %v2730 = vpack.c.b16 %v1762, %v1758
    %v2731 = vpack.c.b16 %v1763, %v1759
    %v2732 = vpack.c.b16 %v1764, %v1760
    %v2733 = vpack.c.b16 %v1765, %v1761
    %v2734 = vpack.c.b16 %v1770, %v1766
    %v2735 = vpack.c.b16 %v1771, %v1767
    %v2736 = vpack.c.b16 %v1772, %v1768
    %v2737 = vpack.c.b16 %v1773, %v1769
    %v2738 = vpack.c.b16 %v1778, %v1774
    %v2739 = vpack.c.b16 %v1779, %v1775
    %v2740 = vpack.c.b16 %v1780, %v1776
    %v2741 = vpack.c.b16 %v1781, %v1777
    %v2742 = vpack.c.b16 %v1786, %v1782
    %v2743 = vpack.c.b16 %v1787, %v1783
    %v2744 = vpack.c.b16 %v1788, %v1784
    %v2745 = vpack.c.b16 %v1789, %v1785
    %v2746 = vpack.c.b16 %v1794, %v1790
    %v2747 = vpack.c.b16 %v1795, %v1791
    %v2748 = vpack.c.b16 %v1796, %v1792
    %v2749 = vpack.c.b16 %v1797, %v1793
    %v2750 = vpack.c.b16 %v1802, %v1798
    %v2751 = vpack.c.b16 %v1803, %v1799
    %v2752 = vpack.c.b16 %v1804, %v1800
    %v2753 = vpack.c.b16 %v1805, %v1801
    %v2754 = vpack.c.b16 %v1810, %v1806
    %v2755 = vpack.c.b16 %v1811, %v1807
    %v2756 = vpack.c.b16 %v1812, %v1808
    %v2757 = vpack.c.b16 %v1813, %v1809
    %v2758 = vpack.c.b16 %v1818, %v1814
    %v2759 = vpack.c.b16 %v1819, %v1815
    %v2760 = vpack.c.b16 %v1820, %v1816
    %v2761 = vpack.c.b16 %v1821, %v1817
    %v2762 = vpack.c.b16 %v1826, %v1822
    %v2763 = vpack.c.b16 %v1827, %v1823
    %v2764 = vpack.c.b16 %v1828, %v1824
    %v2765 = vpack.c.b16 %v1829, %v1825
    %v2766 = vpack.c.b16 %v1834, %v1830
    %v2767 = vpack.c.b16 %v1835, %v1831
    %v2768 = vpack.c.b16 %v1836, %v1832
    %v2769 = vpack.c.b16 %v1837, %v1833
    %v2770 = vpack.c.b16 %v1842, %v1838
    %v2771 = vpack.c.b16 %v1843, %v1839
    %v2772 = vpack.c.b16 %v1844, %v1840
    %v2773 = vpack.c.b16 %v1845, %v1841
    %v2774 = vpack.c.b16 %v1850, %v1846
    %v2775 = vpack.c.b16 %v1851, %v1847
    %v2776 = vpack.c.b16 %v1852, %v1848
    %v2777 = vpack.c.b16 %v1853, %v1849
    %v2778 = vpack.c.b16 %v1858, %v1854
    %v2779 = vpack.c.b16 %v1859, %v1855
    %v2780 = vpack.c.b16 %v1860, %v1856
    %v2781 = vpack.c.b16 %v1861, %v1857
    %v2782 = vpack.c.b16 %v1866, %v1862
    %v2783 = vpack.c.b16 %v1867, %v1863
    %v2784 = vpack.c.b16 %v1868, %v1864
    %v2785 = vpack.c.b16 %v1869, %v1865
    %v2786 = vpack.c.b16 %v1874, %v1870
    %v2787 = vpack.c.b16 %v1875, %v1871
    %v2788 = vpack.c.b16 %v1876, %v1872
    %v2789 = vpack.c.b16 %v1877, %v1873
    %v2790 = vpack.c.b16 %v1882, %v1878
    %v2791 = vpack.c.b16 %v1883, %v1879
    %v2792 = vpack.c.b16 %v1884, %v1880
    %v2793 = vpack.c.b16 %v1885, %v1881
    %v2794 = vpack.c.b16 %v1890, %v1886
    %v2795 = vpack.c.b16 %v1891, %v1887
    %v2796 = vpack.c.b16 %v1892, %v1888
    %v2797 = vpack.c.b16 %v1893, %v1889
    %v2798 = vpack.c.b16 %v1898, %v1894
    %v2799 = vpack.c.b16 %v1899, %v1895
    %v2800 = vpack.c.b16 %v1900, %v1896
    %v2801 = vpack.c.b16 %v1901, %v1897
    %v2802 = vpack.c.b16 %v1906, %v1902
    %v2803 = vpack.c.b16 %v1907, %v1903
    %v2804 = vpack.c.b16 %v1908, %v1904
    %v2805 = vpack.c.b16 %v1909, %v1905
    %v2806 = vpack.c.b16 %v1914, %v1910
    %v2807 = vpack.c.b16 %v1915, %v1911
    %v2808 = vpack.c.b16 %v1916, %v1912
    %v2809 = vpack.c.b16 %v1917, %v1913
    %v2810 = vpack.c.b16 %v1922, %v1918
    %v2811 = vpack.c.b16 %v1923, %v1919
    %v2812 = vpack.c.b16 %v1924, %v1920
    %v2813 = vpack.c.b16 %v1925, %v1921
    %v2814 = vpack.c.b16 %v1930, %v1926
    %v2815 = vpack.c.b16 %v1931, %v1927
    %v2816 = vpack.c.b16 %v1932, %v1928
    %v2817 = vpack.c.b16 %v1933, %v1929
    %v2818 = vpack.c.b16 %v1938, %v1934
    %v2819 = vpack.c.b16 %v1939, %v1935
    %v2820 = vpack.c.b16 %v1940, %v1936
    %v2821 = vpack.c.b16 %v1941, %v1937
    %v2822 = vpack.c.b16 %v1946, %v1942
    %v2823 = vpack.c.b16 %v1947, %v1943
    %v2824 = vpack.c.b16 %v1948, %v1944
    %v2825 = vpack.c.b16 %v1949, %v1945
    %v2826 = vpack.c.b16 %v1954, %v1950
    %v2827 = vpack.c.b16 %v1955, %v1951
    %v2828 = vpack.c.b16 %v1956, %v1952
    %v2829 = vpack.c.b16 %v1957, %v1953
    %v2830 = vpack.c.b16 %v1962, %v1958
    %v2831 = vpack.c.b16 %v1963, %v1959
    %v2832 = vpack.c.b16 %v1964, %v1960
    %v2833 = vpack.c.b16 %v1965, %v1961
    %v2834 = vpack.c.b16 %v1970, %v1966
    %v2835 = vpack.c.b16 %v1971, %v1967
    %v2836 = vpack.c.b16 %v1972, %v1968
    %v2837 = vpack.c.b16 %v1973, %v1969
    %v2838 = vpack.c.b16 %v1978, %v1974
    %v2839 = vpack.c.b16 %v1979, %v1975
    %v2840 = vpack.c.b16 %v1980, %v1976
    %v2841 = vpack.c.b16 %v1981, %v1977
    %v2842 = vpack.c.b16 %v1986, %v1982
    %v2843 = vpack.c.b16 %v1987, %v1983
    %v2844 = vpack.c.b16 %v1988, %v1984
    %v2845 = vpack.c.b16 %v1989, %v1985
    %v2846 = vpack.c.b16 %v1994, %v1990
    %v2847 = vpack.c.b16 %v1995, %v1991
    %v2848 = vpack.c.b16 %v1996, %v1992
    %v2849 = vpack.c.b16 %v1997, %v1993
    %v2850 = vpack.c.b16 %v2002, %v1998
    %v2851 = vpack.c.b16 %v2003, %v1999
    %v2852 = vpack.c.b16 %v2004, %v2000
    %v2853 = vpack.c.b16 %v2005, %v2001
    %v2854 = vpack.c.b16 %v2010, %v2006
    %v2855 = vpack.c.b16 %v2011, %v2007
    %v2856 = vpack.c.b16 %v2012, %v2008
    %v2857 = vpack.c.b16 %v2013, %v2009
    %v2858 = vpack.c.b16 %v2018, %v2014
    %v2859 = vpack.c.b16 %v2019, %v2015
    %v2860 = vpack.c.b16 %v2020, %v2016
    %v2861 = vpack.c.b16 %v2021, %v2017
    %v2862 = vpack.c.b16 %v2026, %v2022
    %v2863 = vpack.c.b16 %v2027, %v2023
    %v2864 = vpack.c.b16 %v2028, %v2024
    %v2865 = vpack.c.b16 %v2029, %v2025
    %v2866 = vpack.c.b16 %v2034, %v2030
    %v2867 = vpack.c.b16 %v2035, %v2031
    %v2868 = vpack.c.b16 %v2036, %v2032
    %v2869 = vpack.c.b16 %v2037, %v2033
    %v2870 = vpack.c.b16 %v2042, %v2038
    %v2871 = vpack.c.b16 %v2043, %v2039
    %v2872 = vpack.c.b16 %v2044, %v2040
    %v2873 = vpack.c.b16 %v2045, %v2041
    %v2874 = vpack.c.b16 %v2050, %v2046
    %v2875 = vpack.c.b16 %v2051, %v2047
    %v2876 = vpack.c.b16 %v2052, %v2048
    %v2877 = vpack.c.b16 %v2053, %v2049
    %v2878 = vpack.c.b16 %v2058, %v2054
    %v2879 = vpack.c.b16 %v2059, %v2055
    %v2880 = vpack.c.b16 %v2060, %v2056
    %v2881 = vpack.c.b16 %v2061, %v2057
    %v2882 = vpack.c.b16 %v2066, %v2062
    %v2883 = vpack.c.b16 %v2067, %v2063
    %v2884 = vpack.c.b16 %v2068, %v2064
    %v2885 = vpack.c.b16 %v2069, %v2065
    %v2886 = vpack.c.b16 %v2074, %v2070
    %v2887 = vpack.c.b16 %v2075, %v2071
    %v2888 = vpack.c.b16 %v2076, %v2072
    %v2889 = vpack.c.b16 %v2077, %v2073
    %v2890 = vpack.c.b16 %v2082, %v2078
    %v2891 = vpack.c.b16 %v2083, %v2079
    %v2892 = vpack.c.b16 %v2084, %v2080
    %v2893 = vpack.c.b16 %v2085, %v2081
    %v2894 = vpack.c.b16 %v2090, %v2086
    %v2895 = vpack.c.b16 %v2091, %v2087
    %v2896 = vpack.c.b16 %v2092, %v2088
    %v2897 = vpack.c.b16 %v2093, %v2089
    %v2898 = vpack.c.b16 %v2098, %v2094
    %v2899 = vpack.c.b16 %v2099, %v2095
    %v2900 = vpack.c.b16 %v2100, %v2096
    %v2901 = vpack.c.b16 %v2101, %v2097
    %v2902 = vpack.c.b16 %v2106, %v2102
    %v2903 = vpack.c.b16 %v2107, %v2103
    %v2904 = vpack.c.b16 %v2108, %v2104
    %v2905 = vpack.c.b16 %v2109, %v2105
    %v2906 = vpack.c.b16 %v2114, %v2110
    %v2907 = vpack.c.b16 %v2115, %v2111
    %v2908 = vpack.c.b16 %v2116, %v2112
    %v2909 = vpack.c.b16 %v2117, %v2113
    %v2910 = vpack.c.b16 %v2122, %v2118
    %v2911 = vpack.c.b16 %v2123, %v2119
    %v2912 = vpack.c.b16 %v2124, %v2120
    %v2913 = vpack.c.b16 %v2125, %v2121
    %v2914 = vpack.c.b16 %v2130, %v2126
    %v2915 = vpack.c.b16 %v2131, %v2127
    %v2916 = vpack.c.b16 %v2132, %v2128
    %v2917 = vpack.c.b16 %v2133, %v2129
    %v2918 = vpack.c.b16 %v2138, %v2134
    %v2919 = vpack.c.b16 %v2139, %v2135
    %v2920 = vpack.c.b16 %v2140, %v2136
    %v2921 = vpack.c.b16 %v2141, %v2137
    %v2922 = vpack.c.b16 %v2146, %v2142
    %v2923 = vpack.c.b16 %v2147, %v2143
    %v2924 = vpack.c.b16 %v2148, %v2144
    %v2925 = vpack.c.b16 %v2149, %v2145
    %v2926 = vpack.c.b16 %v2154, %v2150
    %v2927 = vpack.c.b16 %v2155, %v2151
    %v2928 = vpack.c.b16 %v2156, %v2152
    %v2929 = vpack.c.b16 %v2157, %v2153
    %v2930 = vpack.c.b16 %v2162, %v2158
    %v2931 = vpack.c.b16 %v2163, %v2159
    %v2932 = vpack.c.b16 %v2164, %v2160
    %v2933 = vpack.c.b16 %v2165, %v2161
    %v2934 = vpack.c.b16 %v2170, %v2166
    %v2935 = vpack.c.b16 %v2171, %v2167
    %v2936 = vpack.c.b16 %v2172, %v2168
    %v2937 = vpack.c.b16 %v2173, %v2169
    %v2938 = vpack.c.b16 %v2178, %v2174
    %v2939 = vpack.c.b16 %v2179, %v2175
    %v2940 = vpack.c.b16 %v2180, %v2176
    %v2941 = vpack.c.b16 %v2181, %v2177
    %v2942 = vpack.c.b16 %v2186, %v2182
    %v2943 = vpack.c.b16 %v2187, %v2183
    %v2944 = vpack.c.b16 %v2188, %v2184
    %v2945 = vpack.c.b16 %v2189, %v2185
    %v2946 = vpack.c.b16 %v2194, %v2190
    %v2947 = vpack.c.b16 %v2195, %v2191
    %v2948 = vpack.c.b16 %v2196, %v2192
    %v2949 = vpack.c.b16 %v2197, %v2193
    %v2950 = vpack.c.b16 %v2202, %v2198
    %v2951 = vpack.c.b16 %v2203, %v2199
    %v2952 = vpack.c.b16 %v2204, %v2200
    %v2953 = vpack.c.b16 %v2205, %v2201
    %v2954 = vpack.c.b16 %v2210, %v2206
    %v2955 = vpack.c.b16 %v2211, %v2207
    %v2956 = vpack.c.b16 %v2212, %v2208
    %v2957 = vpack.c.b16 %v2213, %v2209
    %v2958 = vpack.c.b16 %v2218, %v2214
    %v2959 = vpack.c.b16 %v2219, %v2215
    %v2960 = vpack.c.b16 %v2220, %v2216
    %v2961 = vpack.c.b16 %v2221, %v2217
    %v2962 = vpack.c.b16 %v2226, %v2222
    %v2963 = vpack.c.b16 %v2227, %v2223
    %v2964 = vpack.c.b16 %v2228, %v2224
    %v2965 = vpack.c.b16 %v2229, %v2225
    %v2966 = vpack.c.b16 %v2234, %v2230
    %v2967 = vpack.c.b16 %v2235, %v2231
    %v2968 = vpack.c.b16 %v2236, %v2232
    %v2969 = vpack.c.b16 %v2237, %v2233
    %v2970 = vpack.c.b16 %v2242, %v2238
    %v2971 = vpack.c.b16 %v2243, %v2239
    %v2972 = vpack.c.b16 %v2244, %v2240
    %v2973 = vpack.c.b16 %v2245, %v2241
    %v2974 = vpack.c.b16 %v2250, %v2246
    %v2975 = vpack.c.b16 %v2251, %v2247
    %v2976 = vpack.c.b16 %v2252, %v2248
    %v2977 = vpack.c.b16 %v2253, %v2249
    %v2978 = vpack.c.b16 %v2258, %v2254
    %v2979 = vpack.c.b16 %v2259, %v2255
    %v2980 = vpack.c.b16 %v2260, %v2256
    %v2981 = vpack.c.b16 %v2261, %v2257
    %v2982 = vpack.c.b16 %v2266, %v2262
    %v2983 = vpack.c.b16 %v2267, %v2263
    %v2984 = vpack.c.b16 %v2268, %v2264
    %v2985 = vpack.c.b16 %v2269, %v2265
    %v2986 = vpack.c.b16 %v2274, %v2270
    %v2987 = vpack.c.b16 %v2275, %v2271
    %v2988 = vpack.c.b16 %v2276, %v2272
    %v2989 = vpack.c.b16 %v2277, %v2273
    %v2990 = vpack.c.b16 %v2282, %v2278
    %v2991 = vpack.c.b16 %v2283, %v2279
    %v2992 = vpack.c.b16 %v2284, %v2280
    %v2993 = vpack.c.b16 %v2285, %v2281
    %v2994 = vpack.c.b16 %v2290, %v2286
    %v2995 = vpack.c.b16 %v2291, %v2287
    %v2996 = vpack.c.b16 %v2292, %v2288
    %v2997 = vpack.c.b16 %v2293, %v2289
    %v2998 = vpack.c.b16 %v2298, %v2294
    %v2999 = vpack.c.b16 %v2299, %v2295
    %v3000 = vpack.c.b16 %v2300, %v2296
    %v3001 = vpack.c.b16 %v2301, %v2297
    %v3002 = vpack.c.b16 %v2306, %v2302
    %v3003 = vpack.c.b16 %v2307, %v2303
    %v3004 = vpack.c.b16 %v2308, %v2304
    %v3005 = vpack.c.b16 %v2309, %v2305
    %v3006 = vpack.c.b16 %v2314, %v2310
    %v3007 = vpack.c.b16 %v2315, %v2311
    %v3008 = vpack.c.b16 %v2316, %v2312
    %v3009 = vpack.c.b16 %v2317, %v2313
    %v3010 = vpack.c.b16 %v2322, %v2318
    %v3011 = vpack.c.b16 %v2323, %v2319
    %v3012 = vpack.c.b16 %v2324, %v2320
    %v3013 = vpack.c.b16 %v2325, %v2321
    %v3014 = vpack.c.b16 %v2330, %v2326
    %v3015 = vpack.c.b16 %v2331, %v2327
    %v3016 = vpack.c.b16 %v2332, %v2328
    %v3017 = vpack.c.b16 %v2333, %v2329
    %v3018 = vpack.c.b16 %v2338, %v2334
    %v3019 = vpack.c.b16 %v2339, %v2335
    %v3020 = vpack.c.b16 %v2340, %v2336
    %v3021 = vpack.c.b16 %v2341, %v2337
    %v3022 = vpack.c.b16 %v2346, %v2342
    %v3023 = vpack.c.b16 %v2347, %v2343
    %v3024 = vpack.c.b16 %v2348, %v2344
    %v3025 = vpack.c.b16 %v2349, %v2345
    %v3026 = vpack.c.b16 %v2354, %v2350
    %v3027 = vpack.c.b16 %v2355, %v2351
    %v3028 = vpack.c.b16 %v2356, %v2352
    %v3029 = vpack.c.b16 %v2357, %v2353
    %v3030 = vpack.c.b16 %v2362, %v2358
    %v3031 = vpack.c.b16 %v2363, %v2359
    %v3032 = vpack.c.b16 %v2364, %v2360
    %v3033 = vpack.c.b16 %v2365, %v2361
    %v3034 = vpack.c.b16 %v2370, %v2366
    %v3035 = vpack.c.b16 %v2371, %v2367
    %v3036 = vpack.c.b16 %v2372, %v2368
    %v3037 = vpack.c.b16 %v2373, %v2369
    %v3038 = vpack.c.b16 %v2378, %v2374
    %v3039 = vpack.c.b16 %v2379, %v2375
    %v3040 = vpack.c.b16 %v2380, %v2376
    %v3041 = vpack.c.b16 %v2381, %v2377
    %v3042 = vpack.c.b16 %v2386, %v2382
    %v3043 = vpack.c.b16 %v2387, %v2383
    %v3044 = vpack.c.b16 %v2388, %v2384
    %v3045 = vpack.c.b16 %v2389, %v2385
    %v3046 = vpack.c.b16 %v2394, %v2390
    %v3047 = vpack.c.b16 %v2395, %v2391
    %v3048 = vpack.c.b16 %v2396, %v2392
    %v3049 = vpack.c.b16 %v2397, %v2393
    %v3050 = vpack.c.b16 %v2402, %v2398
    %v3051 = vpack.c.b16 %v2403, %v2399
    %v3052 = vpack.c.b16 %v2404, %v2400
    %v3053 = vpack.c.b16 %v2405, %v2401
    %v3054 = vpack.c.b16 %v2410, %v2406
    %v3055 = vpack.c.b16 %v2411, %v2407
    %v3056 = vpack.c.b16 %v2412, %v2408
    %v3057 = vpack.c.b16 %v2413, %v2409
    %v3058 = vpack.c.b16 %v2418, %v2414
    %v3059 = vpack.c.b16 %v2419, %v2415
    %v3060 = vpack.c.b16 %v2420, %v2416
    %v3061 = vpack.c.b16 %v2421, %v2417
    %v3062 = vpack.c.b16 %v2426, %v2422
    %v3063 = vpack.c.b16 %v2427, %v2423
    %v3064 = vpack.c.b16 %v2428, %v2424
    %v3065 = vpack.c.b16 %v2429, %v2425
    %v3066 = vpack.c.b16 %v2434, %v2430
    %v3067 = vpack.c.b16 %v2435, %v2431
    %v3068 = vpack.c.b16 %v2436, %v2432
    %v3069 = vpack.c.b16 %v2437, %v2433
    %v3070 = vpack.c.b16 %v2442, %v2438
    %v3071 = vpack.c.b16 %v2443, %v2439
    %v3072 = vpack.c.b16 %v2444, %v2440
    %v3073 = vpack.c.b16 %v2445, %v2441
    %v3074 = vpack.c.b16 %v2450, %v2446
    %v3075 = vpack.c.b16 %v2451, %v2447
    %v3076 = vpack.c.b16 %v2452, %v2448
    %v3077 = vpack.c.b16 %v2453, %v2449
    %v3078 = vpack.c.b16 %v2458, %v2454
    %v3079 = vpack.c.b16 %v2459, %v2455
    %v3080 = vpack.c.b16 %v2460, %v2456
    %v3081 = vpack.c.b16 %v2461, %v2457
    %v3082 = vpack.c.b16 %v2466, %v2462
    %v3083 = vpack.c.b16 %v2467, %v2463
    %v3084 = vpack.c.b16 %v2468, %v2464
    %v3085 = vpack.c.b16 %v2469, %v2465
    %v3086 = vpack.c.b16 %v2474, %v2470
    %v3087 = vpack.c.b16 %v2475, %v2471
    %v3088 = vpack.c.b16 %v2476, %v2472
    %v3089 = vpack.c.b16 %v2477, %v2473
    %v3090 = vpack.c.b16 %v2482, %v2478
    %v3091 = vpack.c.b16 %v2483, %v2479
    %v3092 = vpack.c.b16 %v2484, %v2480
    %v3093 = vpack.c.b16 %v2485, %v2481
    %v3094 = vpack.c.b16 %v2490, %v2486
    %v3095 = vpack.c.b16 %v2491, %v2487
    %v3096 = vpack.c.b16 %v2492, %v2488
    %v3097 = vpack.c.b16 %v2493, %v2489
    %v3098 = vpack.c.b16 %v2498, %v2494
    %v3099 = vpack.c.b16 %v2499, %v2495
    %v3100 = vpack.c.b16 %v2500, %v2496
    %v3101 = vpack.c.b16 %v2501, %v2497
    %v3102 = vpack.c.b16 %v2506, %v2502
    %v3103 = vpack.c.b16 %v2507, %v2503
    %v3104 = vpack.c.b16 %v2508, %v2504
    %v3105 = vpack.c.b16 %v2509, %v2505
    %v3106 = vpack.c.b16 %v2514, %v2510
    %v3107 = vpack.c.b16 %v2515, %v2511
    %v3108 = vpack.c.b16 %v2516, %v2512
    %v3109 = vpack.c.b16 %v2517, %v2513
    %v3110 = vpack.c.b16 %v2522, %v2518
    %v3111 = vpack.c.b16 %v2523, %v2519
    %v3112 = vpack.c.b16 %v2524, %v2520
    %v3113 = vpack.c.b16 %v2525, %v2521
    %v3114 = vpack.c.b16 %v2530, %v2526
    %v3115 = vpack.c.b16 %v2531, %v2527
    %v3116 = vpack.c.b16 %v2532, %v2528
    %v3117 = vpack.c.b16 %v2533, %v2529
    %v3118 = vpack.c.b16 %v2538, %v2534
    %v3119 = vpack.c.b16 %v2539, %v2535
    %v3120 = vpack.c.b16 %v2540, %v2536
    %v3121 = vpack.c.b16 %v2541, %v2537
    %v3122 = vpack.c.b16 %v2546, %v2542
    %v3123 = vpack.c.b16 %v2547, %v2543
    %v3124 = vpack.c.b16 %v2548, %v2544
    %v3125 = vpack.c.b16 %v2549, %v2545
    %3702 = vmatpush.bf16.msra.mxu0 %v2578
    %3703 = vmatpush.bf16.msra.mxu0 %v2574
    %3704 = vmatpush.bf16.msra.mxu0 %v2570
    %3705 = vmatpush.bf16.msra.mxu0 %v2566
    %3706 = vmatpush.bf16.msra.mxu0 %v2562
    %3707 = vmatpush.bf16.msra.mxu0 %v2558
    %3708 = vmatpush.bf16.msra.mxu0 %v2554
    %3709 = vmatpush.bf16.msra.mxu0 %v2550
    %3710 = vmatmul.bf16.gmra.mxu0 %v750
    %v3711 = vpop.f32.mrf.mxu0
    %v3712 = vadd.f32 0.0, %v3711
    %v3713 = vpop.f32.mrf.mxu0
    %v3714 = vadd.f32 0.0, %v3713
    %3715 = vmatmul.bf16.gmra.mxu0 %v768
    %v3716 = vpop.f32.mrf.mxu0
    %v3717 = vadd.f32 0.0, %v3716
    %v3718 = vpop.f32.mrf.mxu0
    %v3719 = vadd.f32 0.0, %v3718
    %3720 = vdwg.mxu0
    %3721 = vmatpush.bf16.msra.mxu0 %v2610
    %3722 = vmatpush.bf16.msra.mxu0 %v2606
    %3723 = vmatpush.bf16.msra.mxu0 %v2602
    %3724 = vmatpush.bf16.msra.mxu0 %v2598
    %3725 = vmatpush.bf16.msra.mxu0 %v2594
    %3726 = vmatpush.bf16.msra.mxu0 %v2590
    %3727 = vmatpush.bf16.msra.mxu0 %v2586
    %3728 = vmatpush.bf16.msra.mxu0 %v2582
    %3729 = vmatmul.bf16.gmra.mxu0 %v751
    %v3730 = vpop.f32.mrf.mxu0
    %v3731 = vadd.f32 %v3712, %v3730
    %v3732 = vpop.f32.mrf.mxu0
    %v3733 = vadd.f32 %v3714, %v3732
    %3734 = vmatmul.bf16.gmra.mxu0 %v769
    %v3735 = vpop.f32.mrf.mxu0
    %v3736 = vadd.f32 %v3717, %v3735
    %v3737 = vpop.f32.mrf.mxu0
    %v3738 = vadd.f32 %v3719, %v3737
    %3739 = vdwg.mxu0
    %3740 = vmatpush.bf16.msra.mxu0 %v2642
    %3741 = vmatpush.bf16.msra.mxu0 %v2638
    %3742 = vmatpush.bf16.msra.mxu0 %v2634
    %3743 = vmatpush.bf16.msra.mxu0 %v2630
    %3744 = vmatpush.bf16.msra.mxu0 %v2626
    %3745 = vmatpush.bf16.msra.mxu0 %v2622
    %3746 = vmatpush.bf16.msra.mxu0 %v2618
    %3747 = vmatpush.bf16.msra.mxu0 %v2614
    %3748 = vmatmul.bf16.gmra.mxu0 %v752
    %v3749 = vpop.f32.mrf.mxu0
    %v3750 = vadd.f32 %v3731, %v3749
    %v3751 = vpop.f32.mrf.mxu0
    %v3752 = vadd.f32 %v3733, %v3751
    %3753 = vmatmul.bf16.gmra.mxu0 %v770
    %v3754 = vpop.f32.mrf.mxu0
    %v3755 = vadd.f32 %v3736, %v3754
    %v3756 = vpop.f32.mrf.mxu0
    %v3757 = vadd.f32 %v3738, %v3756
    %3758 = vdwg.mxu0
    %3759 = vmatpush.bf16.msra.mxu0 %v2674
    %3760 = vmatpush.bf16.msra.mxu0 %v2670
    %3761 = vmatpush.bf16.msra.mxu0 %v2666
    %3762 = vmatpush.bf16.msra.mxu0 %v2662
    %3763 = vmatpush.bf16.msra.mxu0 %v2658
    %3764 = vmatpush.bf16.msra.mxu0 %v2654
    %3765 = vmatpush.bf16.msra.mxu0 %v2650
    %3766 = vmatpush.bf16.msra.mxu0 %v2646
    %3767 = vmatmul.bf16.gmra.mxu0 %v753
    %v3768 = vpop.f32.mrf.mxu0
    %v3769 = vadd.f32 %v3750, %v3768
    %v3770 = vpop.f32.mrf.mxu0
    %v3771 = vadd.f32 %v3752, %v3770
    %3772 = vmatmul.bf16.gmra.mxu0 %v771
    %v3773 = vpop.f32.mrf.mxu0
    %v3774 = vadd.f32 %v3755, %v3773
    %v3775 = vpop.f32.mrf.mxu0
    %v3776 = vadd.f32 %v3757, %v3775
    %3777 = vdwg.mxu0
    %3778 = vmatpush.bf16.msra.mxu0 %v2706
    %3779 = vmatpush.bf16.msra.mxu0 %v2702
    %3780 = vmatpush.bf16.msra.mxu0 %v2698
    %3781 = vmatpush.bf16.msra.mxu0 %v2694
    %3782 = vmatpush.bf16.msra.mxu0 %v2690
    %3783 = vmatpush.bf16.msra.mxu0 %v2686
    %3784 = vmatpush.bf16.msra.mxu0 %v2682
    %3785 = vmatpush.bf16.msra.mxu0 %v2678
    %3786 = vmatmul.bf16.gmra.mxu0 %v754
    %v3787 = vpop.f32.mrf.mxu0
    %v3788 = vadd.f32 %v3769, %v3787
    %v3789 = vpop.f32.mrf.mxu0
    %v3790 = vadd.f32 %v3771, %v3789
    %3791 = vmatmul.bf16.gmra.mxu0 %v772
    %v3792 = vpop.f32.mrf.mxu0
    %v3793 = vadd.f32 %v3774, %v3792
    %v3794 = vpop.f32.mrf.mxu0
    %v3795 = vadd.f32 %v3776, %v3794
    %3796 = vdwg.mxu0
    %3797 = vmatpush.bf16.msra.mxu0 %v2738
    %3798 = vmatpush.bf16.msra.mxu0 %v2734
    %3799 = vmatpush.bf16.msra.mxu0 %v2730
    %3800 = vmatpush.bf16.msra.mxu0 %v2726
    %3801 = vmatpush.bf16.msra.mxu0 %v2722
    %3802 = vmatpush.bf16.msra.mxu0 %v2718
    %3803 = vmatpush.bf16.msra.mxu0 %v2714
    %3804 = vmatpush.bf16.msra.mxu0 %v2710
    %3805 = vmatmul.bf16.gmra.mxu0 %v755
    %v3806 = vpop.f32.mrf.mxu0
    %v3807 = vadd.f32 %v3788, %v3806
    %v3808 = vpop.f32.mrf.mxu0
    %v3809 = vadd.f32 %v3790, %v3808
    %3810 = vmatmul.bf16.gmra.mxu0 %v773
    %v3811 = vpop.f32.mrf.mxu0
    %v3812 = vadd.f32 %v3793, %v3811
    %v3813 = vpop.f32.mrf.mxu0
    %v3814 = vadd.f32 %v3795, %v3813
    %3815 = vdwg.mxu0
    %3816 = vmatpush.bf16.msra.mxu0 %v2770
    %3817 = vmatpush.bf16.msra.mxu0 %v2766
    %3818 = vmatpush.bf16.msra.mxu0 %v2762
    %3819 = vmatpush.bf16.msra.mxu0 %v2758
    %3820 = vmatpush.bf16.msra.mxu0 %v2754
    %3821 = vmatpush.bf16.msra.mxu0 %v2750
    %3822 = vmatpush.bf16.msra.mxu0 %v2746
    %3823 = vmatpush.bf16.msra.mxu0 %v2742
    %3824 = vmatmul.bf16.gmra.mxu0 %v756
    %v3825 = vpop.f32.mrf.mxu0
    %v3826 = vadd.f32 %v3807, %v3825
    %v3827 = vpop.f32.mrf.mxu0
    %v3828 = vadd.f32 %v3809, %v3827
    %3829 = vmatmul.bf16.gmra.mxu0 %v774
    %v3830 = vpop.f32.mrf.mxu0
    %v3831 = vadd.f32 %v3812, %v3830
    %v3832 = vpop.f32.mrf.mxu0
    %v3833 = vadd.f32 %v3814, %v3832
    %3834 = vdwg.mxu0
    %3835 = vmatpush.bf16.msra.mxu0 %v2802
    %3836 = vmatpush.bf16.msra.mxu0 %v2798
    %3837 = vmatpush.bf16.msra.mxu0 %v2794
    %3838 = vmatpush.bf16.msra.mxu0 %v2790
    %3839 = vmatpush.bf16.msra.mxu0 %v2786
    %3840 = vmatpush.bf16.msra.mxu0 %v2782
    %3841 = vmatpush.bf16.msra.mxu0 %v2778
    %3842 = vmatpush.bf16.msra.mxu0 %v2774
    %3843 = vmatmul.bf16.gmra.mxu0 %v757
    %v3844 = vpop.f32.mrf.mxu0
    %v3845 = vadd.f32 %v3826, %v3844
    %v3846 = vpop.f32.mrf.mxu0
    %v3847 = vadd.f32 %v3828, %v3846
    %3848 = vmatmul.bf16.gmra.mxu0 %v775
    %v3849 = vpop.f32.mrf.mxu0
    %v3850 = vadd.f32 %v3831, %v3849
    %v3851 = vpop.f32.mrf.mxu0
    %v3852 = vadd.f32 %v3833, %v3851
    %3853 = vdwg.mxu0
    %3854 = vmatpush.bf16.msra.mxu0 %v2834
    %3855 = vmatpush.bf16.msra.mxu0 %v2830
    %3856 = vmatpush.bf16.msra.mxu0 %v2826
    %3857 = vmatpush.bf16.msra.mxu0 %v2822
    %3858 = vmatpush.bf16.msra.mxu0 %v2818
    %3859 = vmatpush.bf16.msra.mxu0 %v2814
    %3860 = vmatpush.bf16.msra.mxu0 %v2810
    %3861 = vmatpush.bf16.msra.mxu0 %v2806
    %3862 = vmatmul.bf16.gmra.mxu0 %v758
    %v3863 = vpop.f32.mrf.mxu0
    %v3864 = vadd.f32 %v3845, %v3863
    %v3865 = vpop.f32.mrf.mxu0
    %v3866 = vadd.f32 %v3847, %v3865
    %3867 = vmatmul.bf16.gmra.mxu0 %v776
    %v3868 = vpop.f32.mrf.mxu0
    %v3869 = vadd.f32 %v3850, %v3868
    %v3870 = vpop.f32.mrf.mxu0
    %v3871 = vadd.f32 %v3852, %v3870
    %3872 = vdwg.mxu0
    %3873 = vmatpush.bf16.msra.mxu0 %v2866
    %3874 = vmatpush.bf16.msra.mxu0 %v2862
    %3875 = vmatpush.bf16.msra.mxu0 %v2858
    %3876 = vmatpush.bf16.msra.mxu0 %v2854
    %3877 = vmatpush.bf16.msra.mxu0 %v2850
    %3878 = vmatpush.bf16.msra.mxu0 %v2846
    %3879 = vmatpush.bf16.msra.mxu0 %v2842
    %3880 = vmatpush.bf16.msra.mxu0 %v2838
    %3881 = vmatmul.bf16.gmra.mxu0 %v759
    %v3882 = vpop.f32.mrf.mxu0
    %v3883 = vadd.f32 %v3864, %v3882
    %v3884 = vpop.f32.mrf.mxu0
    %v3885 = vadd.f32 %v3866, %v3884
    %3886 = vmatmul.bf16.gmra.mxu0 %v777
    %v3887 = vpop.f32.mrf.mxu0
    %v3888 = vadd.f32 %v3869, %v3887
    %v3889 = vpop.f32.mrf.mxu0
    %v3890 = vadd.f32 %v3871, %v3889
    %3891 = vdwg.mxu0
    %3892 = vmatpush.bf16.msra.mxu0 %v2898
    %3893 = vmatpush.bf16.msra.mxu0 %v2894
    %3894 = vmatpush.bf16.msra.mxu0 %v2890
    %3895 = vmatpush.bf16.msra.mxu0 %v2886
    %3896 = vmatpush.bf16.msra.mxu0 %v2882
    %3897 = vmatpush.bf16.msra.mxu0 %v2878
    %3898 = vmatpush.bf16.msra.mxu0 %v2874
    %3899 = vmatpush.bf16.msra.mxu0 %v2870
    %3900 = vmatmul.bf16.gmra.mxu0 %v760
    %v3901 = vpop.f32.mrf.mxu0
    %v3902 = vadd.f32 %v3883, %v3901
    %v3903 = vpop.f32.mrf.mxu0
    %v3904 = vadd.f32 %v3885, %v3903
    %3905 = vmatmul.bf16.gmra.mxu0 %v778
    %v3906 = vpop.f32.mrf.mxu0
    %v3907 = vadd.f32 %v3888, %v3906
    %v3908 = vpop.f32.mrf.mxu0
    %v3909 = vadd.f32 %v3890, %v3908
    %3910 = vdwg.mxu0
    %3911 = vmatpush.bf16.msra.mxu0 %v2930
    %3912 = vmatpush.bf16.msra.mxu0 %v2926
    %3913 = vmatpush.bf16.msra.mxu0 %v2922
    %3914 = vmatpush.bf16.msra.mxu0 %v2918
    %3915 = vmatpush.bf16.msra.mxu0 %v2914
    %3916 = vmatpush.bf16.msra.mxu0 %v2910
    %3917 = vmatpush.bf16.msra.mxu0 %v2906
    %3918 = vmatpush.bf16.msra.mxu0 %v2902
    %3919 = vmatmul.bf16.gmra.mxu0 %v761
    %v3920 = vpop.f32.mrf.mxu0
    %v3921 = vadd.f32 %v3902, %v3920
    %v3922 = vpop.f32.mrf.mxu0
    %v3923 = vadd.f32 %v3904, %v3922
    %3924 = vmatmul.bf16.gmra.mxu0 %v779
    %v3925 = vpop.f32.mrf.mxu0
    %v3926 = vadd.f32 %v3907, %v3925
    %v3927 = vpop.f32.mrf.mxu0
    %v3928 = vadd.f32 %v3909, %v3927
    %3929 = vdwg.mxu0
    %3930 = vmatpush.bf16.msra.mxu0 %v2962
    %3931 = vmatpush.bf16.msra.mxu0 %v2958
    %3932 = vmatpush.bf16.msra.mxu0 %v2954
    %3933 = vmatpush.bf16.msra.mxu0 %v2950
    %3934 = vmatpush.bf16.msra.mxu0 %v2946
    %3935 = vmatpush.bf16.msra.mxu0 %v2942
    %3936 = vmatpush.bf16.msra.mxu0 %v2938
    %3937 = vmatpush.bf16.msra.mxu0 %v2934
    %3938 = vmatmul.bf16.gmra.mxu0 %v762
    %v3939 = vpop.f32.mrf.mxu0
    %v3940 = vadd.f32 %v3921, %v3939
    %v3941 = vpop.f32.mrf.mxu0
    %v3942 = vadd.f32 %v3923, %v3941
    %3943 = vmatmul.bf16.gmra.mxu0 %v780
    %v3944 = vpop.f32.mrf.mxu0
    %v3945 = vadd.f32 %v3926, %v3944
    %v3946 = vpop.f32.mrf.mxu0
    %v3947 = vadd.f32 %v3928, %v3946
    %3948 = vdwg.mxu0
    %3949 = vmatpush.bf16.msra.mxu0 %v2994
    %3950 = vmatpush.bf16.msra.mxu0 %v2990
    %3951 = vmatpush.bf16.msra.mxu0 %v2986
    %3952 = vmatpush.bf16.msra.mxu0 %v2982
    %3953 = vmatpush.bf16.msra.mxu0 %v2978
    %3954 = vmatpush.bf16.msra.mxu0 %v2974
    %3955 = vmatpush.bf16.msra.mxu0 %v2970
    %3956 = vmatpush.bf16.msra.mxu0 %v2966
    %3957 = vmatmul.bf16.gmra.mxu0 %v763
    %v3958 = vpop.f32.mrf.mxu0
    %v3959 = vadd.f32 %v3940, %v3958
    %v3960 = vpop.f32.mrf.mxu0
    %v3961 = vadd.f32 %v3942, %v3960
    %3962 = vmatmul.bf16.gmra.mxu0 %v781
    %v3963 = vpop.f32.mrf.mxu0
    %v3964 = vadd.f32 %v3945, %v3963
    %v3965 = vpop.f32.mrf.mxu0
    %v3966 = vadd.f32 %v3947, %v3965
    %3967 = vdwg.mxu0
    %3968 = vmatpush.bf16.msra.mxu0 %v3026
    %3969 = vmatpush.bf16.msra.mxu0 %v3022
    %3970 = vmatpush.bf16.msra.mxu0 %v3018
    %3971 = vmatpush.bf16.msra.mxu0 %v3014
    %3972 = vmatpush.bf16.msra.mxu0 %v3010
    %3973 = vmatpush.bf16.msra.mxu0 %v3006
    %3974 = vmatpush.bf16.msra.mxu0 %v3002
    %3975 = vmatpush.bf16.msra.mxu0 %v2998
    %3976 = vmatmul.bf16.gmra.mxu0 %v764
    %v3977 = vpop.f32.mrf.mxu0
    %v3978 = vadd.f32 %v3959, %v3977
    %v3979 = vpop.f32.mrf.mxu0
    %v3980 = vadd.f32 %v3961, %v3979
    %3981 = vmatmul.bf16.gmra.mxu0 %v782
    %v3982 = vpop.f32.mrf.mxu0
    %v3983 = vadd.f32 %v3964, %v3982
    %v3984 = vpop.f32.mrf.mxu0
    %v3985 = vadd.f32 %v3966, %v3984
    %3986 = vdwg.mxu0
    %3987 = vmatpush.bf16.msra.mxu0 %v3058
    %3988 = vmatpush.bf16.msra.mxu0 %v3054
    %3989 = vmatpush.bf16.msra.mxu0 %v3050
    %3990 = vmatpush.bf16.msra.mxu0 %v3046
    %3991 = vmatpush.bf16.msra.mxu0 %v3042
    %3992 = vmatpush.bf16.msra.mxu0 %v3038
    %3993 = vmatpush.bf16.msra.mxu0 %v3034
    %3994 = vmatpush.bf16.msra.mxu0 %v3030
    %3995 = vmatmul.bf16.gmra.mxu0 %v765
    %v3996 = vpop.f32.mrf.mxu0
    %v3997 = vadd.f32 %v3978, %v3996
    %v3998 = vpop.f32.mrf.mxu0
    %v3999 = vadd.f32 %v3980, %v3998
    %4000 = vmatmul.bf16.gmra.mxu0 %v783
    %v4001 = vpop.f32.mrf.mxu0
    %v4002 = vadd.f32 %v3983, %v4001
    %v4003 = vpop.f32.mrf.mxu0
    %v4004 = vadd.f32 %v3985, %v4003
    %4005 = vdwg.mxu0
    %4006 = vmatpush.bf16.msra.mxu0 %v3090
    %4007 = vmatpush.bf16.msra.mxu0 %v3086
    %4008 = vmatpush.bf16.msra.mxu0 %v3082
    %4009 = vmatpush.bf16.msra.mxu0 %v3078
    %4010 = vmatpush.bf16.msra.mxu0 %v3074
    %4011 = vmatpush.bf16.msra.mxu0 %v3070
    %4012 = vmatpush.bf16.msra.mxu0 %v3066
    %4013 = vmatpush.bf16.msra.mxu0 %v3062
    %4014 = vmatmul.bf16.gmra.mxu0 %v766
    %v4015 = vpop.f32.mrf.mxu0
    %v4016 = vadd.f32 %v3997, %v4015
    %v4017 = vpop.f32.mrf.mxu0
    %v4018 = vadd.f32 %v3999, %v4017
    %4019 = vmatmul.bf16.gmra.mxu0 %v784
    %v4020 = vpop.f32.mrf.mxu0
    %v4021 = vadd.f32 %v4002, %v4020
    %v4022 = vpop.f32.mrf.mxu0
    %v4023 = vadd.f32 %v4004, %v4022
    %4024 = vdwg.mxu0
    %4025 = vmatpush.bf16.msra.mxu0 %v3122
    %4026 = vmatpush.bf16.msra.mxu0 %v3118
    %4027 = vmatpush.bf16.msra.mxu0 %v3114
    %4028 = vmatpush.bf16.msra.mxu0 %v3110
    %4029 = vmatpush.bf16.msra.mxu0 %v3106
    %4030 = vmatpush.bf16.msra.mxu0 %v3102
    %4031 = vmatpush.bf16.msra.mxu0 %v3098
    %4032 = vmatpush.bf16.msra.mxu0 %v3094
    %4033 = vmatmul.bf16.gmra.mxu0 %v767
    %v4034 = vpop.f32.mrf.mxu0
    %v4035 = vadd.f32 %v4016, %v4034
    %v4036 = vpop.f32.mrf.mxu0
    %v4037 = vadd.f32 %v4018, %v4036
    %4038 = vmatmul.bf16.gmra.mxu0 %v785
    %v4039 = vpop.f32.mrf.mxu0
    %v4040 = vadd.f32 %v4021, %v4039
    %v4041 = vpop.f32.mrf.mxu0
    %v4042 = vadd.f32 %v4023, %v4041
    %4043 = vdwg.mxu0
    %4044 = vmatpush.bf16.msra.mxu0 %v2579
    %4045 = vmatpush.bf16.msra.mxu0 %v2575
    %4046 = vmatpush.bf16.msra.mxu0 %v2571
    %4047 = vmatpush.bf16.msra.mxu0 %v2567
    %4048 = vmatpush.bf16.msra.mxu0 %v2563
    %4049 = vmatpush.bf16.msra.mxu0 %v2559
    %4050 = vmatpush.bf16.msra.mxu0 %v2555
    %4051 = vmatpush.bf16.msra.mxu0 %v2551
    %4052 = vmatmul.bf16.gmra.mxu0 %v750
    %v4053 = vpop.f32.mrf.mxu0
    %v4054 = vadd.f32 0.0, %v4053
    %v4055 = vpop.f32.mrf.mxu0
    %v4056 = vadd.f32 0.0, %v4055
    %4057 = vmatmul.bf16.gmra.mxu0 %v768
    %v4058 = vpop.f32.mrf.mxu0
    %v4059 = vadd.f32 0.0, %v4058
    %v4060 = vpop.f32.mrf.mxu0
    %v4061 = vadd.f32 0.0, %v4060
    %4062 = vdwg.mxu0
    %4063 = vmatpush.bf16.msra.mxu0 %v2611
    %4064 = vmatpush.bf16.msra.mxu0 %v2607
    %4065 = vmatpush.bf16.msra.mxu0 %v2603
    %4066 = vmatpush.bf16.msra.mxu0 %v2599
    %4067 = vmatpush.bf16.msra.mxu0 %v2595
    %4068 = vmatpush.bf16.msra.mxu0 %v2591
    %4069 = vmatpush.bf16.msra.mxu0 %v2587
    %4070 = vmatpush.bf16.msra.mxu0 %v2583
    %4071 = vmatmul.bf16.gmra.mxu0 %v751
    %v4072 = vpop.f32.mrf.mxu0
    %v4073 = vadd.f32 %v4054, %v4072
    %v4074 = vpop.f32.mrf.mxu0
    %v4075 = vadd.f32 %v4056, %v4074
    %4076 = vmatmul.bf16.gmra.mxu0 %v769
    %v4077 = vpop.f32.mrf.mxu0
    %v4078 = vadd.f32 %v4059, %v4077
    %v4079 = vpop.f32.mrf.mxu0
    %v4080 = vadd.f32 %v4061, %v4079
    %4081 = vdwg.mxu0
    %4082 = vmatpush.bf16.msra.mxu0 %v2643
    %4083 = vmatpush.bf16.msra.mxu0 %v2639
    %4084 = vmatpush.bf16.msra.mxu0 %v2635
    %4085 = vmatpush.bf16.msra.mxu0 %v2631
    %4086 = vmatpush.bf16.msra.mxu0 %v2627
    %4087 = vmatpush.bf16.msra.mxu0 %v2623
    %4088 = vmatpush.bf16.msra.mxu0 %v2619
    %4089 = vmatpush.bf16.msra.mxu0 %v2615
    %4090 = vmatmul.bf16.gmra.mxu0 %v752
    %v4091 = vpop.f32.mrf.mxu0
    %v4092 = vadd.f32 %v4073, %v4091
    %v4093 = vpop.f32.mrf.mxu0
    %v4094 = vadd.f32 %v4075, %v4093
    %4095 = vmatmul.bf16.gmra.mxu0 %v770
    %v4096 = vpop.f32.mrf.mxu0
    %v4097 = vadd.f32 %v4078, %v4096
    %v4098 = vpop.f32.mrf.mxu0
    %v4099 = vadd.f32 %v4080, %v4098
    %4100 = vdwg.mxu0
    %4101 = vmatpush.bf16.msra.mxu0 %v2675
    %4102 = vmatpush.bf16.msra.mxu0 %v2671
    %4103 = vmatpush.bf16.msra.mxu0 %v2667
    %4104 = vmatpush.bf16.msra.mxu0 %v2663
    %4105 = vmatpush.bf16.msra.mxu0 %v2659
    %4106 = vmatpush.bf16.msra.mxu0 %v2655
    %4107 = vmatpush.bf16.msra.mxu0 %v2651
    %4108 = vmatpush.bf16.msra.mxu0 %v2647
    %4109 = vmatmul.bf16.gmra.mxu0 %v753
    %v4110 = vpop.f32.mrf.mxu0
    %v4111 = vadd.f32 %v4092, %v4110
    %v4112 = vpop.f32.mrf.mxu0
    %v4113 = vadd.f32 %v4094, %v4112
    %4114 = vmatmul.bf16.gmra.mxu0 %v771
    %v4115 = vpop.f32.mrf.mxu0
    %v4116 = vadd.f32 %v4097, %v4115
    %v4117 = vpop.f32.mrf.mxu0
    %v4118 = vadd.f32 %v4099, %v4117
    %4119 = vdwg.mxu0
    %4120 = vmatpush.bf16.msra.mxu0 %v2707
    %4121 = vmatpush.bf16.msra.mxu0 %v2703
    %4122 = vmatpush.bf16.msra.mxu0 %v2699
    %4123 = vmatpush.bf16.msra.mxu0 %v2695
    %4124 = vmatpush.bf16.msra.mxu0 %v2691
    %4125 = vmatpush.bf16.msra.mxu0 %v2687
    %4126 = vmatpush.bf16.msra.mxu0 %v2683
    %4127 = vmatpush.bf16.msra.mxu0 %v2679
    %4128 = vmatmul.bf16.gmra.mxu0 %v754
    %v4129 = vpop.f32.mrf.mxu0
    %v4130 = vadd.f32 %v4111, %v4129
    %v4131 = vpop.f32.mrf.mxu0
    %v4132 = vadd.f32 %v4113, %v4131
    %4133 = vmatmul.bf16.gmra.mxu0 %v772
    %v4134 = vpop.f32.mrf.mxu0
    %v4135 = vadd.f32 %v4116, %v4134
    %v4136 = vpop.f32.mrf.mxu0
    %v4137 = vadd.f32 %v4118, %v4136
    %4138 = vdwg.mxu0
    %4139 = vmatpush.bf16.msra.mxu0 %v2739
    %4140 = vmatpush.bf16.msra.mxu0 %v2735
    %4141 = vmatpush.bf16.msra.mxu0 %v2731
    %4142 = vmatpush.bf16.msra.mxu0 %v2727
    %4143 = vmatpush.bf16.msra.mxu0 %v2723
    %4144 = vmatpush.bf16.msra.mxu0 %v2719
    %4145 = vmatpush.bf16.msra.mxu0 %v2715
    %4146 = vmatpush.bf16.msra.mxu0 %v2711
    %4147 = vmatmul.bf16.gmra.mxu0 %v755
    %v4148 = vpop.f32.mrf.mxu0
    %v4149 = vadd.f32 %v4130, %v4148
    %v4150 = vpop.f32.mrf.mxu0
    %v4151 = vadd.f32 %v4132, %v4150
    %4152 = vmatmul.bf16.gmra.mxu0 %v773
    %v4153 = vpop.f32.mrf.mxu0
    %v4154 = vadd.f32 %v4135, %v4153
    %v4155 = vpop.f32.mrf.mxu0
    %v4156 = vadd.f32 %v4137, %v4155
    %4157 = vdwg.mxu0
    %4158 = vmatpush.bf16.msra.mxu0 %v2771
    %4159 = vmatpush.bf16.msra.mxu0 %v2767
    %4160 = vmatpush.bf16.msra.mxu0 %v2763
    %4161 = vmatpush.bf16.msra.mxu0 %v2759
    %4162 = vmatpush.bf16.msra.mxu0 %v2755
    %4163 = vmatpush.bf16.msra.mxu0 %v2751
    %4164 = vmatpush.bf16.msra.mxu0 %v2747
    %4165 = vmatpush.bf16.msra.mxu0 %v2743
    %4166 = vmatmul.bf16.gmra.mxu0 %v756
    %v4167 = vpop.f32.mrf.mxu0
    %v4168 = vadd.f32 %v4149, %v4167
    %v4169 = vpop.f32.mrf.mxu0
    %v4170 = vadd.f32 %v4151, %v4169
    %4171 = vmatmul.bf16.gmra.mxu0 %v774
    %v4172 = vpop.f32.mrf.mxu0
    %v4173 = vadd.f32 %v4154, %v4172
    %v4174 = vpop.f32.mrf.mxu0
    %v4175 = vadd.f32 %v4156, %v4174
    %4176 = vdwg.mxu0
    %4177 = vmatpush.bf16.msra.mxu0 %v2803
    %4178 = vmatpush.bf16.msra.mxu0 %v2799
    %4179 = vmatpush.bf16.msra.mxu0 %v2795
    %4180 = vmatpush.bf16.msra.mxu0 %v2791
    %4181 = vmatpush.bf16.msra.mxu0 %v2787
    %4182 = vmatpush.bf16.msra.mxu0 %v2783
    %4183 = vmatpush.bf16.msra.mxu0 %v2779
    %4184 = vmatpush.bf16.msra.mxu0 %v2775
    %4185 = vmatmul.bf16.gmra.mxu0 %v757
    %v4186 = vpop.f32.mrf.mxu0
    %v4187 = vadd.f32 %v4168, %v4186
    %v4188 = vpop.f32.mrf.mxu0
    %v4189 = vadd.f32 %v4170, %v4188
    %4190 = vmatmul.bf16.gmra.mxu0 %v775
    %v4191 = vpop.f32.mrf.mxu0
    %v4192 = vadd.f32 %v4173, %v4191
    %v4193 = vpop.f32.mrf.mxu0
    %v4194 = vadd.f32 %v4175, %v4193
    %4195 = vdwg.mxu0
    %4196 = vmatpush.bf16.msra.mxu0 %v2835
    %4197 = vmatpush.bf16.msra.mxu0 %v2831
    %4198 = vmatpush.bf16.msra.mxu0 %v2827
    %4199 = vmatpush.bf16.msra.mxu0 %v2823
    %4200 = vmatpush.bf16.msra.mxu0 %v2819
    %4201 = vmatpush.bf16.msra.mxu0 %v2815
    %4202 = vmatpush.bf16.msra.mxu0 %v2811
    %4203 = vmatpush.bf16.msra.mxu0 %v2807
    %4204 = vmatmul.bf16.gmra.mxu0 %v758
    %v4205 = vpop.f32.mrf.mxu0
    %v4206 = vadd.f32 %v4187, %v4205
    %v4207 = vpop.f32.mrf.mxu0
    %v4208 = vadd.f32 %v4189, %v4207
    %4209 = vmatmul.bf16.gmra.mxu0 %v776
    %v4210 = vpop.f32.mrf.mxu0
    %v4211 = vadd.f32 %v4192, %v4210
    %v4212 = vpop.f32.mrf.mxu0
    %v4213 = vadd.f32 %v4194, %v4212
    %4214 = vdwg.mxu0
    %4215 = vmatpush.bf16.msra.mxu0 %v2867
    %4216 = vmatpush.bf16.msra.mxu0 %v2863
    %4217 = vmatpush.bf16.msra.mxu0 %v2859
    %4218 = vmatpush.bf16.msra.mxu0 %v2855
    %4219 = vmatpush.bf16.msra.mxu0 %v2851
    %4220 = vmatpush.bf16.msra.mxu0 %v2847
    %4221 = vmatpush.bf16.msra.mxu0 %v2843
    %4222 = vmatpush.bf16.msra.mxu0 %v2839
    %4223 = vmatmul.bf16.gmra.mxu0 %v759
    %v4224 = vpop.f32.mrf.mxu0
    %v4225 = vadd.f32 %v4206, %v4224
    %v4226 = vpop.f32.mrf.mxu0
    %v4227 = vadd.f32 %v4208, %v4226
    %4228 = vmatmul.bf16.gmra.mxu0 %v777
    %v4229 = vpop.f32.mrf.mxu0
    %v4230 = vadd.f32 %v4211, %v4229
    %v4231 = vpop.f32.mrf.mxu0
    %v4232 = vadd.f32 %v4213, %v4231
    %4233 = vdwg.mxu0
    %4234 = vmatpush.bf16.msra.mxu0 %v2899
    %4235 = vmatpush.bf16.msra.mxu0 %v2895
    %4236 = vmatpush.bf16.msra.mxu0 %v2891
    %4237 = vmatpush.bf16.msra.mxu0 %v2887
    %4238 = vmatpush.bf16.msra.mxu0 %v2883
    %4239 = vmatpush.bf16.msra.mxu0 %v2879
    %4240 = vmatpush.bf16.msra.mxu0 %v2875
    %4241 = vmatpush.bf16.msra.mxu0 %v2871
    %4242 = vmatmul.bf16.gmra.mxu0 %v760
    %v4243 = vpop.f32.mrf.mxu0
    %v4244 = vadd.f32 %v4225, %v4243
    %v4245 = vpop.f32.mrf.mxu0
    %v4246 = vadd.f32 %v4227, %v4245
    %4247 = vmatmul.bf16.gmra.mxu0 %v778
    %v4248 = vpop.f32.mrf.mxu0
    %v4249 = vadd.f32 %v4230, %v4248
    %v4250 = vpop.f32.mrf.mxu0
    %v4251 = vadd.f32 %v4232, %v4250
    %4252 = vdwg.mxu0
    %4253 = vmatpush.bf16.msra.mxu0 %v2931
    %4254 = vmatpush.bf16.msra.mxu0 %v2927
    %4255 = vmatpush.bf16.msra.mxu0 %v2923
    %4256 = vmatpush.bf16.msra.mxu0 %v2919
    %4257 = vmatpush.bf16.msra.mxu0 %v2915
    %4258 = vmatpush.bf16.msra.mxu0 %v2911
    %4259 = vmatpush.bf16.msra.mxu0 %v2907
    %4260 = vmatpush.bf16.msra.mxu0 %v2903
    %4261 = vmatmul.bf16.gmra.mxu0 %v761
    %v4262 = vpop.f32.mrf.mxu0
    %v4263 = vadd.f32 %v4244, %v4262
    %v4264 = vpop.f32.mrf.mxu0
    %v4265 = vadd.f32 %v4246, %v4264
    %4266 = vmatmul.bf16.gmra.mxu0 %v779
    %v4267 = vpop.f32.mrf.mxu0
    %v4268 = vadd.f32 %v4249, %v4267
    %v4269 = vpop.f32.mrf.mxu0
    %v4270 = vadd.f32 %v4251, %v4269
    %4271 = vdwg.mxu0
    %4272 = vmatpush.bf16.msra.mxu0 %v2963
    %4273 = vmatpush.bf16.msra.mxu0 %v2959
    %4274 = vmatpush.bf16.msra.mxu0 %v2955
    %4275 = vmatpush.bf16.msra.mxu0 %v2951
    %4276 = vmatpush.bf16.msra.mxu0 %v2947
    %4277 = vmatpush.bf16.msra.mxu0 %v2943
    %4278 = vmatpush.bf16.msra.mxu0 %v2939
    %4279 = vmatpush.bf16.msra.mxu0 %v2935
    %4280 = vmatmul.bf16.gmra.mxu0 %v762
    %v4281 = vpop.f32.mrf.mxu0
    %v4282 = vadd.f32 %v4263, %v4281
    %v4283 = vpop.f32.mrf.mxu0
    %v4284 = vadd.f32 %v4265, %v4283
    %4285 = vmatmul.bf16.gmra.mxu0 %v780
    %v4286 = vpop.f32.mrf.mxu0
    %v4287 = vadd.f32 %v4268, %v4286
    %v4288 = vpop.f32.mrf.mxu0
    %v4289 = vadd.f32 %v4270, %v4288
    %4290 = vdwg.mxu0
    %4291 = vmatpush.bf16.msra.mxu0 %v2995
    %4292 = vmatpush.bf16.msra.mxu0 %v2991
    %4293 = vmatpush.bf16.msra.mxu0 %v2987
    %4294 = vmatpush.bf16.msra.mxu0 %v2983
    %4295 = vmatpush.bf16.msra.mxu0 %v2979
    %4296 = vmatpush.bf16.msra.mxu0 %v2975
    %4297 = vmatpush.bf16.msra.mxu0 %v2971
    %4298 = vmatpush.bf16.msra.mxu0 %v2967
    %4299 = vmatmul.bf16.gmra.mxu0 %v763
    %v4300 = vpop.f32.mrf.mxu0
    %v4301 = vadd.f32 %v4282, %v4300
    %v4302 = vpop.f32.mrf.mxu0
    %v4303 = vadd.f32 %v4284, %v4302
    %4304 = vmatmul.bf16.gmra.mxu0 %v781
    %v4305 = vpop.f32.mrf.mxu0
    %v4306 = vadd.f32 %v4287, %v4305
    %v4307 = vpop.f32.mrf.mxu0
    %v4308 = vadd.f32 %v4289, %v4307
    %4309 = vdwg.mxu0
    %4310 = vmatpush.bf16.msra.mxu0 %v3027
    %4311 = vmatpush.bf16.msra.mxu0 %v3023
    %4312 = vmatpush.bf16.msra.mxu0 %v3019
    %4313 = vmatpush.bf16.msra.mxu0 %v3015
    %4314 = vmatpush.bf16.msra.mxu0 %v3011
    %4315 = vmatpush.bf16.msra.mxu0 %v3007
    %4316 = vmatpush.bf16.msra.mxu0 %v3003
    %4317 = vmatpush.bf16.msra.mxu0 %v2999
    %4318 = vmatmul.bf16.gmra.mxu0 %v764
    %v4319 = vpop.f32.mrf.mxu0
    %v4320 = vadd.f32 %v4301, %v4319
    %v4321 = vpop.f32.mrf.mxu0
    %v4322 = vadd.f32 %v4303, %v4321
    %4323 = vmatmul.bf16.gmra.mxu0 %v782
    %v4324 = vpop.f32.mrf.mxu0
    %v4325 = vadd.f32 %v4306, %v4324
    %v4326 = vpop.f32.mrf.mxu0
    %v4327 = vadd.f32 %v4308, %v4326
    %4328 = vdwg.mxu0
    %4329 = vmatpush.bf16.msra.mxu0 %v3059
    %4330 = vmatpush.bf16.msra.mxu0 %v3055
    %4331 = vmatpush.bf16.msra.mxu0 %v3051
    %4332 = vmatpush.bf16.msra.mxu0 %v3047
    %4333 = vmatpush.bf16.msra.mxu0 %v3043
    %4334 = vmatpush.bf16.msra.mxu0 %v3039
    %4335 = vmatpush.bf16.msra.mxu0 %v3035
    %4336 = vmatpush.bf16.msra.mxu0 %v3031
    %4337 = vmatmul.bf16.gmra.mxu0 %v765
    %v4338 = vpop.f32.mrf.mxu0
    %v4339 = vadd.f32 %v4320, %v4338
    %v4340 = vpop.f32.mrf.mxu0
    %v4341 = vadd.f32 %v4322, %v4340
    %4342 = vmatmul.bf16.gmra.mxu0 %v783
    %v4343 = vpop.f32.mrf.mxu0
    %v4344 = vadd.f32 %v4325, %v4343
    %v4345 = vpop.f32.mrf.mxu0
    %v4346 = vadd.f32 %v4327, %v4345
    %4347 = vdwg.mxu0
    %4348 = vmatpush.bf16.msra.mxu0 %v3091
    %4349 = vmatpush.bf16.msra.mxu0 %v3087
    %4350 = vmatpush.bf16.msra.mxu0 %v3083
    %4351 = vmatpush.bf16.msra.mxu0 %v3079
    %4352 = vmatpush.bf16.msra.mxu0 %v3075
    %4353 = vmatpush.bf16.msra.mxu0 %v3071
    %4354 = vmatpush.bf16.msra.mxu0 %v3067
    %4355 = vmatpush.bf16.msra.mxu0 %v3063
    %4356 = vmatmul.bf16.gmra.mxu0 %v766
    %v4357 = vpop.f32.mrf.mxu0
    %v4358 = vadd.f32 %v4339, %v4357
    %v4359 = vpop.f32.mrf.mxu0
    %v4360 = vadd.f32 %v4341, %v4359
    %4361 = vmatmul.bf16.gmra.mxu0 %v784
    %v4362 = vpop.f32.mrf.mxu0
    %v4363 = vadd.f32 %v4344, %v4362
    %v4364 = vpop.f32.mrf.mxu0
    %v4365 = vadd.f32 %v4346, %v4364
    %4366 = vdwg.mxu0
    %4367 = vmatpush.bf16.msra.mxu0 %v3123
    %4368 = vmatpush.bf16.msra.mxu0 %v3119
    %4369 = vmatpush.bf16.msra.mxu0 %v3115
    %4370 = vmatpush.bf16.msra.mxu0 %v3111
    %4371 = vmatpush.bf16.msra.mxu0 %v3107
    %4372 = vmatpush.bf16.msra.mxu0 %v3103
    %4373 = vmatpush.bf16.msra.mxu0 %v3099
    %4374 = vmatpush.bf16.msra.mxu0 %v3095
    %4375 = vmatmul.bf16.gmra.mxu0 %v767
    %v4376 = vpop.f32.mrf.mxu0
    %v4377 = vadd.f32 %v4358, %v4376
    %v4378 = vpop.f32.mrf.mxu0
    %v4379 = vadd.f32 %v4360, %v4378
    %4380 = vmatmul.bf16.gmra.mxu0 %v785
    %v4381 = vpop.f32.mrf.mxu0
    %v4382 = vadd.f32 %v4363, %v4381
    %v4383 = vpop.f32.mrf.mxu0
    %v4384 = vadd.f32 %v4365, %v4383
    %4385 = vdwg.mxu0
    %4386 = vmatpush.bf16.msra.mxu0 %v2580
    %4387 = vmatpush.bf16.msra.mxu0 %v2576
    %4388 = vmatpush.bf16.msra.mxu0 %v2572
    %4389 = vmatpush.bf16.msra.mxu0 %v2568
    %4390 = vmatpush.bf16.msra.mxu0 %v2564
    %4391 = vmatpush.bf16.msra.mxu0 %v2560
    %4392 = vmatpush.bf16.msra.mxu0 %v2556
    %4393 = vmatpush.bf16.msra.mxu0 %v2552
    %4394 = vmatmul.bf16.gmra.mxu0 %v750
    %v4395 = vpop.f32.mrf.mxu0
    %v4396 = vadd.f32 0.0, %v4395
    %v4397 = vpop.f32.mrf.mxu0
    %v4398 = vadd.f32 0.0, %v4397
    %4399 = vmatmul.bf16.gmra.mxu0 %v768
    %v4400 = vpop.f32.mrf.mxu0
    %v4401 = vadd.f32 0.0, %v4400
    %v4402 = vpop.f32.mrf.mxu0
    %v4403 = vadd.f32 0.0, %v4402
    %4404 = vdwg.mxu0
    %4405 = vmatpush.bf16.msra.mxu0 %v2612
    %4406 = vmatpush.bf16.msra.mxu0 %v2608
    %4407 = vmatpush.bf16.msra.mxu0 %v2604
    %4408 = vmatpush.bf16.msra.mxu0 %v2600
    %4409 = vmatpush.bf16.msra.mxu0 %v2596
    %4410 = vmatpush.bf16.msra.mxu0 %v2592
    %4411 = vmatpush.bf16.msra.mxu0 %v2588
    %4412 = vmatpush.bf16.msra.mxu0 %v2584
    %4413 = vmatmul.bf16.gmra.mxu0 %v751
    %v4414 = vpop.f32.mrf.mxu0
    %v4415 = vadd.f32 %v4396, %v4414
    %v4416 = vpop.f32.mrf.mxu0
    %v4417 = vadd.f32 %v4398, %v4416
    %4418 = vmatmul.bf16.gmra.mxu0 %v769
    %v4419 = vpop.f32.mrf.mxu0
    %v4420 = vadd.f32 %v4401, %v4419
    %v4421 = vpop.f32.mrf.mxu0
    %v4422 = vadd.f32 %v4403, %v4421
    %4423 = vdwg.mxu0
    %4424 = vmatpush.bf16.msra.mxu0 %v2644
    %4425 = vmatpush.bf16.msra.mxu0 %v2640
    %4426 = vmatpush.bf16.msra.mxu0 %v2636
    %4427 = vmatpush.bf16.msra.mxu0 %v2632
    %4428 = vmatpush.bf16.msra.mxu0 %v2628
    %4429 = vmatpush.bf16.msra.mxu0 %v2624
    %4430 = vmatpush.bf16.msra.mxu0 %v2620
    %4431 = vmatpush.bf16.msra.mxu0 %v2616
    %4432 = vmatmul.bf16.gmra.mxu0 %v752
    %v4433 = vpop.f32.mrf.mxu0
    %v4434 = vadd.f32 %v4415, %v4433
    %v4435 = vpop.f32.mrf.mxu0
    %v4436 = vadd.f32 %v4417, %v4435
    %4437 = vmatmul.bf16.gmra.mxu0 %v770
    %v4438 = vpop.f32.mrf.mxu0
    %v4439 = vadd.f32 %v4420, %v4438
    %v4440 = vpop.f32.mrf.mxu0
    %v4441 = vadd.f32 %v4422, %v4440
    %4442 = vdwg.mxu0
    %4443 = vmatpush.bf16.msra.mxu0 %v2676
    %4444 = vmatpush.bf16.msra.mxu0 %v2672
    %4445 = vmatpush.bf16.msra.mxu0 %v2668
    %4446 = vmatpush.bf16.msra.mxu0 %v2664
    %4447 = vmatpush.bf16.msra.mxu0 %v2660
    %4448 = vmatpush.bf16.msra.mxu0 %v2656
    %4449 = vmatpush.bf16.msra.mxu0 %v2652
    %4450 = vmatpush.bf16.msra.mxu0 %v2648
    %4451 = vmatmul.bf16.gmra.mxu0 %v753
    %v4452 = vpop.f32.mrf.mxu0
    %v4453 = vadd.f32 %v4434, %v4452
    %v4454 = vpop.f32.mrf.mxu0
    %v4455 = vadd.f32 %v4436, %v4454
    %4456 = vmatmul.bf16.gmra.mxu0 %v771
    %v4457 = vpop.f32.mrf.mxu0
    %v4458 = vadd.f32 %v4439, %v4457
    %v4459 = vpop.f32.mrf.mxu0
    %v4460 = vadd.f32 %v4441, %v4459
    %4461 = vdwg.mxu0
    %4462 = vmatpush.bf16.msra.mxu0 %v2708
    %4463 = vmatpush.bf16.msra.mxu0 %v2704
    %4464 = vmatpush.bf16.msra.mxu0 %v2700
    %4465 = vmatpush.bf16.msra.mxu0 %v2696
    %4466 = vmatpush.bf16.msra.mxu0 %v2692
    %4467 = vmatpush.bf16.msra.mxu0 %v2688
    %4468 = vmatpush.bf16.msra.mxu0 %v2684
    %4469 = vmatpush.bf16.msra.mxu0 %v2680
    %4470 = vmatmul.bf16.gmra.mxu0 %v754
    %v4471 = vpop.f32.mrf.mxu0
    %v4472 = vadd.f32 %v4453, %v4471
    %v4473 = vpop.f32.mrf.mxu0
    %v4474 = vadd.f32 %v4455, %v4473
    %4475 = vmatmul.bf16.gmra.mxu0 %v772
    %v4476 = vpop.f32.mrf.mxu0
    %v4477 = vadd.f32 %v4458, %v4476
    %v4478 = vpop.f32.mrf.mxu0
    %v4479 = vadd.f32 %v4460, %v4478
    %4480 = vdwg.mxu0
    %4481 = vmatpush.bf16.msra.mxu0 %v2740
    %4482 = vmatpush.bf16.msra.mxu0 %v2736
    %4483 = vmatpush.bf16.msra.mxu0 %v2732
    %4484 = vmatpush.bf16.msra.mxu0 %v2728
    %4485 = vmatpush.bf16.msra.mxu0 %v2724
    %4486 = vmatpush.bf16.msra.mxu0 %v2720
    %4487 = vmatpush.bf16.msra.mxu0 %v2716
    %4488 = vmatpush.bf16.msra.mxu0 %v2712
    %4489 = vmatmul.bf16.gmra.mxu0 %v755
    %v4490 = vpop.f32.mrf.mxu0
    %v4491 = vadd.f32 %v4472, %v4490
    %v4492 = vpop.f32.mrf.mxu0
    %v4493 = vadd.f32 %v4474, %v4492
    %4494 = vmatmul.bf16.gmra.mxu0 %v773
    %v4495 = vpop.f32.mrf.mxu0
    %v4496 = vadd.f32 %v4477, %v4495
    %v4497 = vpop.f32.mrf.mxu0
    %v4498 = vadd.f32 %v4479, %v4497
    %4499 = vdwg.mxu0
    %4500 = vmatpush.bf16.msra.mxu0 %v2772
    %4501 = vmatpush.bf16.msra.mxu0 %v2768
    %4502 = vmatpush.bf16.msra.mxu0 %v2764
    %4503 = vmatpush.bf16.msra.mxu0 %v2760
    %4504 = vmatpush.bf16.msra.mxu0 %v2756
    %4505 = vmatpush.bf16.msra.mxu0 %v2752
    %4506 = vmatpush.bf16.msra.mxu0 %v2748
    %4507 = vmatpush.bf16.msra.mxu0 %v2744
    %4508 = vmatmul.bf16.gmra.mxu0 %v756
    %v4509 = vpop.f32.mrf.mxu0
    %v4510 = vadd.f32 %v4491, %v4509
    %v4511 = vpop.f32.mrf.mxu0
    %v4512 = vadd.f32 %v4493, %v4511
    %4513 = vmatmul.bf16.gmra.mxu0 %v774
    %v4514 = vpop.f32.mrf.mxu0
    %v4515 = vadd.f32 %v4496, %v4514
    %v4516 = vpop.f32.mrf.mxu0
    %v4517 = vadd.f32 %v4498, %v4516
    %4518 = vdwg.mxu0
    %4519 = vmatpush.bf16.msra.mxu0 %v2804
    %4520 = vmatpush.bf16.msra.mxu0 %v2800
    %4521 = vmatpush.bf16.msra.mxu0 %v2796
    %4522 = vmatpush.bf16.msra.mxu0 %v2792
    %4523 = vmatpush.bf16.msra.mxu0 %v2788
    %4524 = vmatpush.bf16.msra.mxu0 %v2784
    %4525 = vmatpush.bf16.msra.mxu0 %v2780
    %4526 = vmatpush.bf16.msra.mxu0 %v2776
    %4527 = vmatmul.bf16.gmra.mxu0 %v757
    %v4528 = vpop.f32.mrf.mxu0
    %v4529 = vadd.f32 %v4510, %v4528
    %v4530 = vpop.f32.mrf.mxu0
    %v4531 = vadd.f32 %v4512, %v4530
    %4532 = vmatmul.bf16.gmra.mxu0 %v775
    %v4533 = vpop.f32.mrf.mxu0
    %v4534 = vadd.f32 %v4515, %v4533
    %v4535 = vpop.f32.mrf.mxu0
    %v4536 = vadd.f32 %v4517, %v4535
    %4537 = vdwg.mxu0
    %4538 = vmatpush.bf16.msra.mxu0 %v2836
    %4539 = vmatpush.bf16.msra.mxu0 %v2832
    %4540 = vmatpush.bf16.msra.mxu0 %v2828
    %4541 = vmatpush.bf16.msra.mxu0 %v2824
    %4542 = vmatpush.bf16.msra.mxu0 %v2820
    %4543 = vmatpush.bf16.msra.mxu0 %v2816
    %4544 = vmatpush.bf16.msra.mxu0 %v2812
    %4545 = vmatpush.bf16.msra.mxu0 %v2808
    %4546 = vmatmul.bf16.gmra.mxu0 %v758
    %v4547 = vpop.f32.mrf.mxu0
    %v4548 = vadd.f32 %v4529, %v4547
    %v4549 = vpop.f32.mrf.mxu0
    %v4550 = vadd.f32 %v4531, %v4549
    %4551 = vmatmul.bf16.gmra.mxu0 %v776
    %v4552 = vpop.f32.mrf.mxu0
    %v4553 = vadd.f32 %v4534, %v4552
    %v4554 = vpop.f32.mrf.mxu0
    %v4555 = vadd.f32 %v4536, %v4554
    %4556 = vdwg.mxu0
    %4557 = vmatpush.bf16.msra.mxu0 %v2868
    %4558 = vmatpush.bf16.msra.mxu0 %v2864
    %4559 = vmatpush.bf16.msra.mxu0 %v2860
    %4560 = vmatpush.bf16.msra.mxu0 %v2856
    %4561 = vmatpush.bf16.msra.mxu0 %v2852
    %4562 = vmatpush.bf16.msra.mxu0 %v2848
    %4563 = vmatpush.bf16.msra.mxu0 %v2844
    %4564 = vmatpush.bf16.msra.mxu0 %v2840
    %4565 = vmatmul.bf16.gmra.mxu0 %v759
    %v4566 = vpop.f32.mrf.mxu0
    %v4567 = vadd.f32 %v4548, %v4566
    %v4568 = vpop.f32.mrf.mxu0
    %v4569 = vadd.f32 %v4550, %v4568
    %4570 = vmatmul.bf16.gmra.mxu0 %v777
    %v4571 = vpop.f32.mrf.mxu0
    %v4572 = vadd.f32 %v4553, %v4571
    %v4573 = vpop.f32.mrf.mxu0
    %v4574 = vadd.f32 %v4555, %v4573
    %4575 = vdwg.mxu0
    %4576 = vmatpush.bf16.msra.mxu0 %v2900
    %4577 = vmatpush.bf16.msra.mxu0 %v2896
    %4578 = vmatpush.bf16.msra.mxu0 %v2892
    %4579 = vmatpush.bf16.msra.mxu0 %v2888
    %4580 = vmatpush.bf16.msra.mxu0 %v2884
    %4581 = vmatpush.bf16.msra.mxu0 %v2880
    %4582 = vmatpush.bf16.msra.mxu0 %v2876
    %4583 = vmatpush.bf16.msra.mxu0 %v2872
    %4584 = vmatmul.bf16.gmra.mxu0 %v760
    %v4585 = vpop.f32.mrf.mxu0
    %v4586 = vadd.f32 %v4567, %v4585
    %v4587 = vpop.f32.mrf.mxu0
    %v4588 = vadd.f32 %v4569, %v4587
    %4589 = vmatmul.bf16.gmra.mxu0 %v778
    %v4590 = vpop.f32.mrf.mxu0
    %v4591 = vadd.f32 %v4572, %v4590
    %v4592 = vpop.f32.mrf.mxu0
    %v4593 = vadd.f32 %v4574, %v4592
    %4594 = vdwg.mxu0
    %4595 = vmatpush.bf16.msra.mxu0 %v2932
    %4596 = vmatpush.bf16.msra.mxu0 %v2928
    %4597 = vmatpush.bf16.msra.mxu0 %v2924
    %4598 = vmatpush.bf16.msra.mxu0 %v2920
    %4599 = vmatpush.bf16.msra.mxu0 %v2916
    %4600 = vmatpush.bf16.msra.mxu0 %v2912
    %4601 = vmatpush.bf16.msra.mxu0 %v2908
    %4602 = vmatpush.bf16.msra.mxu0 %v2904
    %4603 = vmatmul.bf16.gmra.mxu0 %v761
    %v4604 = vpop.f32.mrf.mxu0
    %v4605 = vadd.f32 %v4586, %v4604
    %v4606 = vpop.f32.mrf.mxu0
    %v4607 = vadd.f32 %v4588, %v4606
    %4608 = vmatmul.bf16.gmra.mxu0 %v779
    %v4609 = vpop.f32.mrf.mxu0
    %v4610 = vadd.f32 %v4591, %v4609
    %v4611 = vpop.f32.mrf.mxu0
    %v4612 = vadd.f32 %v4593, %v4611
    %4613 = vdwg.mxu0
    %4614 = vmatpush.bf16.msra.mxu0 %v2964
    %4615 = vmatpush.bf16.msra.mxu0 %v2960
    %4616 = vmatpush.bf16.msra.mxu0 %v2956
    %4617 = vmatpush.bf16.msra.mxu0 %v2952
    %4618 = vmatpush.bf16.msra.mxu0 %v2948
    %4619 = vmatpush.bf16.msra.mxu0 %v2944
    %4620 = vmatpush.bf16.msra.mxu0 %v2940
    %4621 = vmatpush.bf16.msra.mxu0 %v2936
    %4622 = vmatmul.bf16.gmra.mxu0 %v762
    %v4623 = vpop.f32.mrf.mxu0
    %v4624 = vadd.f32 %v4605, %v4623
    %v4625 = vpop.f32.mrf.mxu0
    %v4626 = vadd.f32 %v4607, %v4625
    %4627 = vmatmul.bf16.gmra.mxu0 %v780
    %v4628 = vpop.f32.mrf.mxu0
    %v4629 = vadd.f32 %v4610, %v4628
    %v4630 = vpop.f32.mrf.mxu0
    %v4631 = vadd.f32 %v4612, %v4630
    %4632 = vdwg.mxu0
    %4633 = vmatpush.bf16.msra.mxu0 %v2996
    %4634 = vmatpush.bf16.msra.mxu0 %v2992
    %4635 = vmatpush.bf16.msra.mxu0 %v2988
    %4636 = vmatpush.bf16.msra.mxu0 %v2984
    %4637 = vmatpush.bf16.msra.mxu0 %v2980
    %4638 = vmatpush.bf16.msra.mxu0 %v2976
    %4639 = vmatpush.bf16.msra.mxu0 %v2972
    %4640 = vmatpush.bf16.msra.mxu0 %v2968
    %4641 = vmatmul.bf16.gmra.mxu0 %v763
    %v4642 = vpop.f32.mrf.mxu0
    %v4643 = vadd.f32 %v4624, %v4642
    %v4644 = vpop.f32.mrf.mxu0
    %v4645 = vadd.f32 %v4626, %v4644
    %4646 = vmatmul.bf16.gmra.mxu0 %v781
    %v4647 = vpop.f32.mrf.mxu0
    %v4648 = vadd.f32 %v4629, %v4647
    %v4649 = vpop.f32.mrf.mxu0
    %v4650 = vadd.f32 %v4631, %v4649
    %4651 = vdwg.mxu0
    %4652 = vmatpush.bf16.msra.mxu0 %v3028
    %4653 = vmatpush.bf16.msra.mxu0 %v3024
    %4654 = vmatpush.bf16.msra.mxu0 %v3020
    %4655 = vmatpush.bf16.msra.mxu0 %v3016
    %4656 = vmatpush.bf16.msra.mxu0 %v3012
    %4657 = vmatpush.bf16.msra.mxu0 %v3008
    %4658 = vmatpush.bf16.msra.mxu0 %v3004
    %4659 = vmatpush.bf16.msra.mxu0 %v3000
    %4660 = vmatmul.bf16.gmra.mxu0 %v764
    %v4661 = vpop.f32.mrf.mxu0
    %v4662 = vadd.f32 %v4643, %v4661
    %v4663 = vpop.f32.mrf.mxu0
    %v4664 = vadd.f32 %v4645, %v4663
    %4665 = vmatmul.bf16.gmra.mxu0 %v782
    %v4666 = vpop.f32.mrf.mxu0
    %v4667 = vadd.f32 %v4648, %v4666
    %v4668 = vpop.f32.mrf.mxu0
    %v4669 = vadd.f32 %v4650, %v4668
    %4670 = vdwg.mxu0
    %4671 = vmatpush.bf16.msra.mxu0 %v3060
    %4672 = vmatpush.bf16.msra.mxu0 %v3056
    %4673 = vmatpush.bf16.msra.mxu0 %v3052
    %4674 = vmatpush.bf16.msra.mxu0 %v3048
    %4675 = vmatpush.bf16.msra.mxu0 %v3044
    %4676 = vmatpush.bf16.msra.mxu0 %v3040
    %4677 = vmatpush.bf16.msra.mxu0 %v3036
    %4678 = vmatpush.bf16.msra.mxu0 %v3032
    %4679 = vmatmul.bf16.gmra.mxu0 %v765
    %v4680 = vpop.f32.mrf.mxu0
    %v4681 = vadd.f32 %v4662, %v4680
    %v4682 = vpop.f32.mrf.mxu0
    %v4683 = vadd.f32 %v4664, %v4682
    %4684 = vmatmul.bf16.gmra.mxu0 %v783
    %v4685 = vpop.f32.mrf.mxu0
    %v4686 = vadd.f32 %v4667, %v4685
    %v4687 = vpop.f32.mrf.mxu0
    %v4688 = vadd.f32 %v4669, %v4687
    %4689 = vdwg.mxu0
    %4690 = vmatpush.bf16.msra.mxu0 %v3092
    %4691 = vmatpush.bf16.msra.mxu0 %v3088
    %4692 = vmatpush.bf16.msra.mxu0 %v3084
    %4693 = vmatpush.bf16.msra.mxu0 %v3080
    %4694 = vmatpush.bf16.msra.mxu0 %v3076
    %4695 = vmatpush.bf16.msra.mxu0 %v3072
    %4696 = vmatpush.bf16.msra.mxu0 %v3068
    %4697 = vmatpush.bf16.msra.mxu0 %v3064
    %4698 = vmatmul.bf16.gmra.mxu0 %v766
    %v4699 = vpop.f32.mrf.mxu0
    %v4700 = vadd.f32 %v4681, %v4699
    %v4701 = vpop.f32.mrf.mxu0
    %v4702 = vadd.f32 %v4683, %v4701
    %4703 = vmatmul.bf16.gmra.mxu0 %v784
    %v4704 = vpop.f32.mrf.mxu0
    %v4705 = vadd.f32 %v4686, %v4704
    %v4706 = vpop.f32.mrf.mxu0
    %v4707 = vadd.f32 %v4688, %v4706
    %4708 = vdwg.mxu0
    %4709 = vmatpush.bf16.msra.mxu0 %v3124
    %4710 = vmatpush.bf16.msra.mxu0 %v3120
    %4711 = vmatpush.bf16.msra.mxu0 %v3116
    %4712 = vmatpush.bf16.msra.mxu0 %v3112
    %4713 = vmatpush.bf16.msra.mxu0 %v3108
    %4714 = vmatpush.bf16.msra.mxu0 %v3104
    %4715 = vmatpush.bf16.msra.mxu0 %v3100
    %4716 = vmatpush.bf16.msra.mxu0 %v3096
    %4717 = vmatmul.bf16.gmra.mxu0 %v767
    %v4718 = vpop.f32.mrf.mxu0
    %v4719 = vadd.f32 %v4700, %v4718
    %v4720 = vpop.f32.mrf.mxu0
    %v4721 = vadd.f32 %v4702, %v4720
    %4722 = vmatmul.bf16.gmra.mxu0 %v785
    %v4723 = vpop.f32.mrf.mxu0
    %v4724 = vadd.f32 %v4705, %v4723
    %v4725 = vpop.f32.mrf.mxu0
    %v4726 = vadd.f32 %v4707, %v4725
    %4727 = vdwg.mxu0
    %4728 = vmatpush.bf16.msra.mxu0 %v2581
    %4729 = vmatpush.bf16.msra.mxu0 %v2577
    %4730 = vmatpush.bf16.msra.mxu0 %v2573
    %4731 = vmatpush.bf16.msra.mxu0 %v2569
    %4732 = vmatpush.bf16.msra.mxu0 %v2565
    %4733 = vmatpush.bf16.msra.mxu0 %v2561
    %4734 = vmatpush.bf16.msra.mxu0 %v2557
    %4735 = vmatpush.bf16.msra.mxu0 %v2553
    %4736 = vmatmul.bf16.gmra.mxu0 %v750
    %v4737 = vpop.f32.mrf.mxu0
    %v4738 = vadd.f32 0.0, %v4737
    %v4739 = vpop.f32.mrf.mxu0
    %v4740 = vadd.f32 0.0, %v4739
    %4741 = vmatmul.bf16.gmra.mxu0 %v768
    %v4742 = vpop.f32.mrf.mxu0
    %v4743 = vadd.f32 0.0, %v4742
    %v4744 = vpop.f32.mrf.mxu0
    %v4745 = vadd.f32 0.0, %v4744
    %4746 = vdwg.mxu0
    %4747 = vmatpush.bf16.msra.mxu0 %v2613
    %4748 = vmatpush.bf16.msra.mxu0 %v2609
    %4749 = vmatpush.bf16.msra.mxu0 %v2605
    %4750 = vmatpush.bf16.msra.mxu0 %v2601
    %4751 = vmatpush.bf16.msra.mxu0 %v2597
    %4752 = vmatpush.bf16.msra.mxu0 %v2593
    %4753 = vmatpush.bf16.msra.mxu0 %v2589
    %4754 = vmatpush.bf16.msra.mxu0 %v2585
    %4755 = vmatmul.bf16.gmra.mxu0 %v751
    %v4756 = vpop.f32.mrf.mxu0
    %v4757 = vadd.f32 %v4738, %v4756
    %v4758 = vpop.f32.mrf.mxu0
    %v4759 = vadd.f32 %v4740, %v4758
    %4760 = vmatmul.bf16.gmra.mxu0 %v769
    %v4761 = vpop.f32.mrf.mxu0
    %v4762 = vadd.f32 %v4743, %v4761
    %v4763 = vpop.f32.mrf.mxu0
    %v4764 = vadd.f32 %v4745, %v4763
    %4765 = vdwg.mxu0
    %4766 = vmatpush.bf16.msra.mxu0 %v2645
    %4767 = vmatpush.bf16.msra.mxu0 %v2641
    %4768 = vmatpush.bf16.msra.mxu0 %v2637
    %4769 = vmatpush.bf16.msra.mxu0 %v2633
    %4770 = vmatpush.bf16.msra.mxu0 %v2629
    %4771 = vmatpush.bf16.msra.mxu0 %v2625
    %4772 = vmatpush.bf16.msra.mxu0 %v2621
    %4773 = vmatpush.bf16.msra.mxu0 %v2617
    %4774 = vmatmul.bf16.gmra.mxu0 %v752
    %v4775 = vpop.f32.mrf.mxu0
    %v4776 = vadd.f32 %v4757, %v4775
    %v4777 = vpop.f32.mrf.mxu0
    %v4778 = vadd.f32 %v4759, %v4777
    %4779 = vmatmul.bf16.gmra.mxu0 %v770
    %v4780 = vpop.f32.mrf.mxu0
    %v4781 = vadd.f32 %v4762, %v4780
    %v4782 = vpop.f32.mrf.mxu0
    %v4783 = vadd.f32 %v4764, %v4782
    %4784 = vdwg.mxu0
    %4785 = vmatpush.bf16.msra.mxu0 %v2677
    %4786 = vmatpush.bf16.msra.mxu0 %v2673
    %4787 = vmatpush.bf16.msra.mxu0 %v2669
    %4788 = vmatpush.bf16.msra.mxu0 %v2665
    %4789 = vmatpush.bf16.msra.mxu0 %v2661
    %4790 = vmatpush.bf16.msra.mxu0 %v2657
    %4791 = vmatpush.bf16.msra.mxu0 %v2653
    %4792 = vmatpush.bf16.msra.mxu0 %v2649
    %4793 = vmatmul.bf16.gmra.mxu0 %v753
    %v4794 = vpop.f32.mrf.mxu0
    %v4795 = vadd.f32 %v4776, %v4794
    %v4796 = vpop.f32.mrf.mxu0
    %v4797 = vadd.f32 %v4778, %v4796
    %4798 = vmatmul.bf16.gmra.mxu0 %v771
    %v4799 = vpop.f32.mrf.mxu0
    %v4800 = vadd.f32 %v4781, %v4799
    %v4801 = vpop.f32.mrf.mxu0
    %v4802 = vadd.f32 %v4783, %v4801
    %4803 = vdwg.mxu0
    %4804 = vmatpush.bf16.msra.mxu0 %v2709
    %4805 = vmatpush.bf16.msra.mxu0 %v2705
    %4806 = vmatpush.bf16.msra.mxu0 %v2701
    %4807 = vmatpush.bf16.msra.mxu0 %v2697
    %4808 = vmatpush.bf16.msra.mxu0 %v2693
    %4809 = vmatpush.bf16.msra.mxu0 %v2689
    %4810 = vmatpush.bf16.msra.mxu0 %v2685
    %4811 = vmatpush.bf16.msra.mxu0 %v2681
    %4812 = vmatmul.bf16.gmra.mxu0 %v754
    %v4813 = vpop.f32.mrf.mxu0
    %v4814 = vadd.f32 %v4795, %v4813
    %v4815 = vpop.f32.mrf.mxu0
    %v4816 = vadd.f32 %v4797, %v4815
    %4817 = vmatmul.bf16.gmra.mxu0 %v772
    %v4818 = vpop.f32.mrf.mxu0
    %v4819 = vadd.f32 %v4800, %v4818
    %v4820 = vpop.f32.mrf.mxu0
    %v4821 = vadd.f32 %v4802, %v4820
    %4822 = vdwg.mxu0
    %4823 = vmatpush.bf16.msra.mxu0 %v2741
    %4824 = vmatpush.bf16.msra.mxu0 %v2737
    %4825 = vmatpush.bf16.msra.mxu0 %v2733
    %4826 = vmatpush.bf16.msra.mxu0 %v2729
    %4827 = vmatpush.bf16.msra.mxu0 %v2725
    %4828 = vmatpush.bf16.msra.mxu0 %v2721
    %4829 = vmatpush.bf16.msra.mxu0 %v2717
    %4830 = vmatpush.bf16.msra.mxu0 %v2713
    %4831 = vmatmul.bf16.gmra.mxu0 %v755
    %v4832 = vpop.f32.mrf.mxu0
    %v4833 = vadd.f32 %v4814, %v4832
    %v4834 = vpop.f32.mrf.mxu0
    %v4835 = vadd.f32 %v4816, %v4834
    %4836 = vmatmul.bf16.gmra.mxu0 %v773
    %v4837 = vpop.f32.mrf.mxu0
    %v4838 = vadd.f32 %v4819, %v4837
    %v4839 = vpop.f32.mrf.mxu0
    %v4840 = vadd.f32 %v4821, %v4839
    %4841 = vdwg.mxu0
    %4842 = vmatpush.bf16.msra.mxu0 %v2773
    %4843 = vmatpush.bf16.msra.mxu0 %v2769
    %4844 = vmatpush.bf16.msra.mxu0 %v2765
    %4845 = vmatpush.bf16.msra.mxu0 %v2761
    %4846 = vmatpush.bf16.msra.mxu0 %v2757
    %4847 = vmatpush.bf16.msra.mxu0 %v2753
    %4848 = vmatpush.bf16.msra.mxu0 %v2749
    %4849 = vmatpush.bf16.msra.mxu0 %v2745
    %4850 = vmatmul.bf16.gmra.mxu0 %v756
    %v4851 = vpop.f32.mrf.mxu0
    %v4852 = vadd.f32 %v4833, %v4851
    %v4853 = vpop.f32.mrf.mxu0
    %v4854 = vadd.f32 %v4835, %v4853
    %4855 = vmatmul.bf16.gmra.mxu0 %v774
    %v4856 = vpop.f32.mrf.mxu0
    %v4857 = vadd.f32 %v4838, %v4856
    %v4858 = vpop.f32.mrf.mxu0
    %v4859 = vadd.f32 %v4840, %v4858
    %4860 = vdwg.mxu0
    %4861 = vmatpush.bf16.msra.mxu0 %v2805
    %4862 = vmatpush.bf16.msra.mxu0 %v2801
    %4863 = vmatpush.bf16.msra.mxu0 %v2797
    %4864 = vmatpush.bf16.msra.mxu0 %v2793
    %4865 = vmatpush.bf16.msra.mxu0 %v2789
    %4866 = vmatpush.bf16.msra.mxu0 %v2785
    %4867 = vmatpush.bf16.msra.mxu0 %v2781
    %4868 = vmatpush.bf16.msra.mxu0 %v2777
    %4869 = vmatmul.bf16.gmra.mxu0 %v757
    %v4870 = vpop.f32.mrf.mxu0
    %v4871 = vadd.f32 %v4852, %v4870
    %v4872 = vpop.f32.mrf.mxu0
    %v4873 = vadd.f32 %v4854, %v4872
    %4874 = vmatmul.bf16.gmra.mxu0 %v775
    %v4875 = vpop.f32.mrf.mxu0
    %v4876 = vadd.f32 %v4857, %v4875
    %v4877 = vpop.f32.mrf.mxu0
    %v4878 = vadd.f32 %v4859, %v4877
    %4879 = vdwg.mxu0
    %4880 = vmatpush.bf16.msra.mxu0 %v2837
    %4881 = vmatpush.bf16.msra.mxu0 %v2833
    %4882 = vmatpush.bf16.msra.mxu0 %v2829
    %4883 = vmatpush.bf16.msra.mxu0 %v2825
    %4884 = vmatpush.bf16.msra.mxu0 %v2821
    %4885 = vmatpush.bf16.msra.mxu0 %v2817
    %4886 = vmatpush.bf16.msra.mxu0 %v2813
    %4887 = vmatpush.bf16.msra.mxu0 %v2809
    %4888 = vmatmul.bf16.gmra.mxu0 %v758
    %v4889 = vpop.f32.mrf.mxu0
    %v4890 = vadd.f32 %v4871, %v4889
    %v4891 = vpop.f32.mrf.mxu0
    %v4892 = vadd.f32 %v4873, %v4891
    %4893 = vmatmul.bf16.gmra.mxu0 %v776
    %v4894 = vpop.f32.mrf.mxu0
    %v4895 = vadd.f32 %v4876, %v4894
    %v4896 = vpop.f32.mrf.mxu0
    %v4897 = vadd.f32 %v4878, %v4896
    %4898 = vdwg.mxu0
    %4899 = vmatpush.bf16.msra.mxu0 %v2869
    %4900 = vmatpush.bf16.msra.mxu0 %v2865
    %4901 = vmatpush.bf16.msra.mxu0 %v2861
    %4902 = vmatpush.bf16.msra.mxu0 %v2857
    %4903 = vmatpush.bf16.msra.mxu0 %v2853
    %4904 = vmatpush.bf16.msra.mxu0 %v2849
    %4905 = vmatpush.bf16.msra.mxu0 %v2845
    %4906 = vmatpush.bf16.msra.mxu0 %v2841
    %4907 = vmatmul.bf16.gmra.mxu0 %v759
    %v4908 = vpop.f32.mrf.mxu0
    %v4909 = vadd.f32 %v4890, %v4908
    %v4910 = vpop.f32.mrf.mxu0
    %v4911 = vadd.f32 %v4892, %v4910
    %4912 = vmatmul.bf16.gmra.mxu0 %v777
    %v4913 = vpop.f32.mrf.mxu0
    %v4914 = vadd.f32 %v4895, %v4913
    %v4915 = vpop.f32.mrf.mxu0
    %v4916 = vadd.f32 %v4897, %v4915
    %4917 = vdwg.mxu0
    %4918 = vmatpush.bf16.msra.mxu0 %v2901
    %4919 = vmatpush.bf16.msra.mxu0 %v2897
    %4920 = vmatpush.bf16.msra.mxu0 %v2893
    %4921 = vmatpush.bf16.msra.mxu0 %v2889
    %4922 = vmatpush.bf16.msra.mxu0 %v2885
    %4923 = vmatpush.bf16.msra.mxu0 %v2881
    %4924 = vmatpush.bf16.msra.mxu0 %v2877
    %4925 = vmatpush.bf16.msra.mxu0 %v2873
    %4926 = vmatmul.bf16.gmra.mxu0 %v760
    %v4927 = vpop.f32.mrf.mxu0
    %v4928 = vadd.f32 %v4909, %v4927
    %v4929 = vpop.f32.mrf.mxu0
    %v4930 = vadd.f32 %v4911, %v4929
    %4931 = vmatmul.bf16.gmra.mxu0 %v778
    %v4932 = vpop.f32.mrf.mxu0
    %v4933 = vadd.f32 %v4914, %v4932
    %v4934 = vpop.f32.mrf.mxu0
    %v4935 = vadd.f32 %v4916, %v4934
    %4936 = vdwg.mxu0
    %4937 = vmatpush.bf16.msra.mxu0 %v2933
    %4938 = vmatpush.bf16.msra.mxu0 %v2929
    %4939 = vmatpush.bf16.msra.mxu0 %v2925
    %4940 = vmatpush.bf16.msra.mxu0 %v2921
    %4941 = vmatpush.bf16.msra.mxu0 %v2917
    %4942 = vmatpush.bf16.msra.mxu0 %v2913
    %4943 = vmatpush.bf16.msra.mxu0 %v2909
    %4944 = vmatpush.bf16.msra.mxu0 %v2905
    %4945 = vmatmul.bf16.gmra.mxu0 %v761
    %v4946 = vpop.f32.mrf.mxu0
    %v4947 = vadd.f32 %v4928, %v4946
    %v4948 = vpop.f32.mrf.mxu0
    %v4949 = vadd.f32 %v4930, %v4948
    %4950 = vmatmul.bf16.gmra.mxu0 %v779
    %v4951 = vpop.f32.mrf.mxu0
    %v4952 = vadd.f32 %v4933, %v4951
    %v4953 = vpop.f32.mrf.mxu0
    %v4954 = vadd.f32 %v4935, %v4953
    %4955 = vdwg.mxu0
    %4956 = vmatpush.bf16.msra.mxu0 %v2965
    %4957 = vmatpush.bf16.msra.mxu0 %v2961
    %4958 = vmatpush.bf16.msra.mxu0 %v2957
    %4959 = vmatpush.bf16.msra.mxu0 %v2953
    %4960 = vmatpush.bf16.msra.mxu0 %v2949
    %4961 = vmatpush.bf16.msra.mxu0 %v2945
    %4962 = vmatpush.bf16.msra.mxu0 %v2941
    %4963 = vmatpush.bf16.msra.mxu0 %v2937
    %4964 = vmatmul.bf16.gmra.mxu0 %v762
    %v4965 = vpop.f32.mrf.mxu0
    %v4966 = vadd.f32 %v4947, %v4965
    %v4967 = vpop.f32.mrf.mxu0
    %v4968 = vadd.f32 %v4949, %v4967
    %4969 = vmatmul.bf16.gmra.mxu0 %v780
    %v4970 = vpop.f32.mrf.mxu0
    %v4971 = vadd.f32 %v4952, %v4970
    %v4972 = vpop.f32.mrf.mxu0
    %v4973 = vadd.f32 %v4954, %v4972
    %4974 = vdwg.mxu0
    %4975 = vmatpush.bf16.msra.mxu0 %v2997
    %4976 = vmatpush.bf16.msra.mxu0 %v2993
    %4977 = vmatpush.bf16.msra.mxu0 %v2989
    %4978 = vmatpush.bf16.msra.mxu0 %v2985
    %4979 = vmatpush.bf16.msra.mxu0 %v2981
    %4980 = vmatpush.bf16.msra.mxu0 %v2977
    %4981 = vmatpush.bf16.msra.mxu0 %v2973
    %4982 = vmatpush.bf16.msra.mxu0 %v2969
    %4983 = vmatmul.bf16.gmra.mxu0 %v763
    %v4984 = vpop.f32.mrf.mxu0
    %v4985 = vadd.f32 %v4966, %v4984
    %v4986 = vpop.f32.mrf.mxu0
    %v4987 = vadd.f32 %v4968, %v4986
    %4988 = vmatmul.bf16.gmra.mxu0 %v781
    %v4989 = vpop.f32.mrf.mxu0
    %v4990 = vadd.f32 %v4971, %v4989
    %v4991 = vpop.f32.mrf.mxu0
    %v4992 = vadd.f32 %v4973, %v4991
    %4993 = vdwg.mxu0
    %4994 = vmatpush.bf16.msra.mxu0 %v3029
    %4995 = vmatpush.bf16.msra.mxu0 %v3025
    %4996 = vmatpush.bf16.msra.mxu0 %v3021
    %4997 = vmatpush.bf16.msra.mxu0 %v3017
    %4998 = vmatpush.bf16.msra.mxu0 %v3013
    %4999 = vmatpush.bf16.msra.mxu0 %v3009
    %5000 = vmatpush.bf16.msra.mxu0 %v3005
    %5001 = vmatpush.bf16.msra.mxu0 %v3001
    %5002 = vmatmul.bf16.gmra.mxu0 %v764
    %v5003 = vpop.f32.mrf.mxu0
    %v5004 = vadd.f32 %v4985, %v5003
    %v5005 = vpop.f32.mrf.mxu0
    %v5006 = vadd.f32 %v4987, %v5005
    %5007 = vmatmul.bf16.gmra.mxu0 %v782
    %v5008 = vpop.f32.mrf.mxu0
    %v5009 = vadd.f32 %v4990, %v5008
    %v5010 = vpop.f32.mrf.mxu0
    %v5011 = vadd.f32 %v4992, %v5010
    %5012 = vdwg.mxu0
    %5013 = vmatpush.bf16.msra.mxu0 %v3061
    %5014 = vmatpush.bf16.msra.mxu0 %v3057
    %5015 = vmatpush.bf16.msra.mxu0 %v3053
    %5016 = vmatpush.bf16.msra.mxu0 %v3049
    %5017 = vmatpush.bf16.msra.mxu0 %v3045
    %5018 = vmatpush.bf16.msra.mxu0 %v3041
    %5019 = vmatpush.bf16.msra.mxu0 %v3037
    %5020 = vmatpush.bf16.msra.mxu0 %v3033
    %5021 = vmatmul.bf16.gmra.mxu0 %v765
    %v5022 = vpop.f32.mrf.mxu0
    %v5023 = vadd.f32 %v5004, %v5022
    %v5024 = vpop.f32.mrf.mxu0
    %v5025 = vadd.f32 %v5006, %v5024
    %5026 = vmatmul.bf16.gmra.mxu0 %v783
    %v5027 = vpop.f32.mrf.mxu0
    %v5028 = vadd.f32 %v5009, %v5027
    %v5029 = vpop.f32.mrf.mxu0
    %v5030 = vadd.f32 %v5011, %v5029
    %5031 = vdwg.mxu0
    %5032 = vmatpush.bf16.msra.mxu0 %v3093
    %5033 = vmatpush.bf16.msra.mxu0 %v3089
    %5034 = vmatpush.bf16.msra.mxu0 %v3085
    %5035 = vmatpush.bf16.msra.mxu0 %v3081
    %5036 = vmatpush.bf16.msra.mxu0 %v3077
    %5037 = vmatpush.bf16.msra.mxu0 %v3073
    %5038 = vmatpush.bf16.msra.mxu0 %v3069
    %5039 = vmatpush.bf16.msra.mxu0 %v3065
    %5040 = vmatmul.bf16.gmra.mxu0 %v766
    %v5041 = vpop.f32.mrf.mxu0
    %v5042 = vadd.f32 %v5023, %v5041
    %v5043 = vpop.f32.mrf.mxu0
    %v5044 = vadd.f32 %v5025, %v5043
    %5045 = vmatmul.bf16.gmra.mxu0 %v784
    %v5046 = vpop.f32.mrf.mxu0
    %v5047 = vadd.f32 %v5028, %v5046
    %v5048 = vpop.f32.mrf.mxu0
    %v5049 = vadd.f32 %v5030, %v5048
    %5050 = vdwg.mxu0
    %5051 = vmatpush.bf16.msra.mxu0 %v3125
    %5052 = vmatpush.bf16.msra.mxu0 %v3121
    %5053 = vmatpush.bf16.msra.mxu0 %v3117
    %5054 = vmatpush.bf16.msra.mxu0 %v3113
    %5055 = vmatpush.bf16.msra.mxu0 %v3109
    %5056 = vmatpush.bf16.msra.mxu0 %v3105
    %5057 = vmatpush.bf16.msra.mxu0 %v3101
    %5058 = vmatpush.bf16.msra.mxu0 %v3097
    %5059 = vmatmul.bf16.gmra.mxu0 %v767
    %v5060 = vpop.f32.mrf.mxu0
    %v5061 = vadd.f32 %v5042, %v5060
    %v5062 = vpop.f32.mrf.mxu0
    %v5063 = vadd.f32 %v5044, %v5062
    %5064 = vmatmul.bf16.gmra.mxu0 %v785
    %v5065 = vpop.f32.mrf.mxu0
    %v5066 = vadd.f32 %v5047, %v5065
    %v5067 = vpop.f32.mrf.mxu0
    %v5068 = vadd.f32 %v5049, %v5067
    %5069 = vdwg.mxu0
    %5070 = vst [vmem:[%s2] sm:$0xff] %v4035
    %5071 = vst [vmem:[%s2 + $0x8] sm:$0xff] %v4377
    %5072 = vst [vmem:[%s2 + $0x10] sm:$0xff] %v4719
    %5073 = vst [vmem:[%s2 + $0x18] sm:$0xff] %v5061
    %5074 = vst [vmem:[%s2 + $0x20] sm:$0xff] %v4037
    %5075 = vst [vmem:[%s2 + $0x28] sm:$0xff] %v4379
    %5076 = vst [vmem:[%s2 + $0x30] sm:$0xff] %v4721
    %5077 = vst [vmem:[%s2 + $0x38] sm:$0xff] %v5063
    %5078 = vst [vmem:[%s2 + $0x40] sm:$0xff] %v4040
    %5079 = vst [vmem:[%s2 + $0x48] sm:$0xff] %v4382
    %5080 = vst [vmem:[%s2 + $0x50] sm:$0xff] %v4724
    %5081 = vst [vmem:[%s2 + $0x58] sm:$0xff] %v5066
    %5082 = vst [vmem:[%s2 + $0x60] sm:$0xff] %v4042
    %5083 = vst [vmem:[%s2 + $0x68] sm:$0xff] %v4384
    %5084 = vst [vmem:[%s2 + $0x70] sm:$0xff] %v4726
    %5085 = vst [vmem:[%s2 + $0x78] sm:$0xff] %v5068
    %p5086 = scmp.eq.s32.totalorder 0, 0
    // Predicated region
    $region14: #{dcgan_generator.9} parent=1 // pred_check
      %p5087 = pneg %p5086
    $region15: #{dcgan_generator.9} parent=1 // pred_check_branch
      %5089 = sbr.rel (%p5087) target = $region17
    $region16: #{dcgan_generator.9} parent=1 // pred_region
      %v5090 = vlaneseq
      %vm5091 = vcmp.ge.s32.totalorder %v5090, 0
      %vm5092 = vcmp.lt.s32.totalorder %v5090, 512
      %vm5093 = vmand %vm5091, %vm5092
      %5094 = vst.msk [vmem:[#allocation2] sm:$0xf] %vm5093, 0.0
      %5095 = vst.msk [vmem:[#allocation3] sm:$0xf] %vm5093, 0.0
    $region17: #{dcgan_generator.9} parent=1 // pred_fallthru
      _
    %v5096 = vld [vmem:[#allocation2] sm:$0xf]
    %v5097 = vadd.f32 %v4035, %v4037
    %v5098 = vadd.f32 %v5097, %v4040
    %v5099 = vadd.f32 %v5098, %v4042
    %v5100 = vrot.slane %v5099, 4
    %v5101 = vadd.f32 %v5099, %v5100
    %v5102 = vrot.slane %v5101, 2
    %v5103 = vadd.f32 %v5101, %v5102
    %v5104 = vrot.slane %v5103, 1
    %v5105 = vadd.f32 %v5103, %v5104
    %v5106 = vadd.f32 %v4377, %v4379
    %v5107 = vadd.f32 %v5106, %v4382
    %v5108 = vadd.f32 %v5107, %v4384
    %v5109 = vrot.slane %v5108, 4
    %v5110 = vadd.f32 %v5108, %v5109
    %v5111 = vrot.slane %v5110, 2
    %v5112 = vadd.f32 %v5110, %v5111
    %v5113 = vrot.slane %v5112, 1
    %v5114 = vadd.f32 %v5112, %v5113
    %v5115 = vadd.f32 %v4719, %v4721
    %v5116 = vadd.f32 %v5115, %v4724
    %v5117 = vadd.f32 %v5116, %v4726
    %v5118 = vrot.slane %v5117, 4
    %v5119 = vadd.f32 %v5117, %v5118
    %v5120 = vrot.slane %v5119, 2
    %v5121 = vadd.f32 %v5119, %v5120
    %v5122 = vrot.slane %v5121, 1
    %v5123 = vadd.f32 %v5121, %v5122
    %v5124 = vadd.f32 %v5061, %v5063
    %v5125 = vadd.f32 %v5124, %v5066
    %v5126 = vadd.f32 %v5125, %v5068
    %v5127 = vrot.slane %v5126, 4
    %v5128 = vadd.f32 %v5126, %v5127
    %v5129 = vrot.slane %v5128, 2
    %v5130 = vadd.f32 %v5128, %v5129
    %v5131 = vrot.slane %v5130, 1
    %v5132 = vadd.f32 %v5130, %v5131
    %v5137 = vrot.slane %v5114, 7
    %v5138 = vrot.slane %v5123, 6
    %v5139 = vrot.slane %v5132, 5
    %vm5140 = vcmask 1040384
    %v5141 = vsel %vm5140, %v5105, %v5137
    %vm5142 = vcmask 1042434
    %v5143 = vsel %vm5142, %v5138, %v5139
    %vm5144 = vcmask 1041408
    %v5145 = vsel %vm5144, %v5141, %v5143
    %v5147 = vadd.f32 %v5096, %v5145
    %v5148 = vlaneseq
    %vm5149 = vcmp.ge.s32.totalorder %v5148, 0
    %vm5150 = vcmp.lt.s32.totalorder %v5148, 512
    %vm5151 = vmand %vm5149, %vm5150
    %5152 = vst.msk [vmem:[#allocation2] sm:$0xf] %vm5151, %v5147
    %v5153 = vld [vmem:[#allocation3] sm:$0xf]
    %v5154 = vmul.f32 %v4035, %v4035
    %v5155 = vmul.f32 %v4377, %v4377
    %v5156 = vmul.f32 %v4719, %v4719
    %v5157 = vmul.f32 %v5061, %v5061
    %v5158 = vmul.f32 %v4037, %v4037
    %v5159 = vmul.f32 %v4379, %v4379
    %v5160 = vmul.f32 %v4721, %v4721
    %v5161 = vmul.f32 %v5063, %v5063
    %v5162 = vmul.f32 %v4040, %v4040
    %v5163 = vmul.f32 %v4382, %v4382
    %v5164 = vmul.f32 %v4724, %v4724
    %v5165 = vmul.f32 %v5066, %v5066
    %v5166 = vmul.f32 %v4042, %v4042
    %v5167 = vmul.f32 %v4384, %v4384
    %v5168 = vmul.f32 %v4726, %v4726
    %v5169 = vmul.f32 %v5068, %v5068
    %v5170 = vadd.f32 %v5154, %v5158
    %v5171 = vadd.f32 %v5170, %v5162
    %v5172 = vadd.f32 %v5171, %v5166
    %v5173 = vrot.slane %v5172, 4
    %v5174 = vadd.f32 %v5172, %v5173
    %v5175 = vrot.slane %v5174, 2
    %v5176 = vadd.f32 %v5174, %v5175
    %v5177 = vrot.slane %v5176, 1
    %v5178 = vadd.f32 %v5176, %v5177
    %v5179 = vadd.f32 %v5155, %v5159
    %v5180 = vadd.f32 %v5179, %v5163
    %v5181 = vadd.f32 %v5180, %v5167
    %v5182 = vrot.slane %v5181, 4
    %v5183 = vadd.f32 %v5181, %v5182
    %v5184 = vrot.slane %v5183, 2
    %v5185 = vadd.f32 %v5183, %v5184
    %v5186 = vrot.slane %v5185, 1
    %v5187 = vadd.f32 %v5185, %v5186
    %v5188 = vadd.f32 %v5156, %v5160
    %v5189 = vadd.f32 %v5188, %v5164
    %v5190 = vadd.f32 %v5189, %v5168
    %v5191 = vrot.slane %v5190, 4
    %v5192 = vadd.f32 %v5190, %v5191
    %v5193 = vrot.slane %v5192, 2
    %v5194 = vadd.f32 %v5192, %v5193
    %v5195 = vrot.slane %v5194, 1
    %v5196 = vadd.f32 %v5194, %v5195
    %v5197 = vadd.f32 %v5157, %v5161
    %v5198 = vadd.f32 %v5197, %v5165
    %v5199 = vadd.f32 %v5198, %v5169
    %v5200 = vrot.slane %v5199, 4
    %v5201 = vadd.f32 %v5199, %v5200
    %v5202 = vrot.slane %v5201, 2
    %v5203 = vadd.f32 %v5201, %v5202
    %v5204 = vrot.slane %v5203, 1
    %v5205 = vadd.f32 %v5203, %v5204
    %v5210 = vrot.slane %v5187, 7
    %v5211 = vrot.slane %v5196, 6
    %v5212 = vrot.slane %v5205, 5
    %v5213 = vsel %vm5140, %v5178, %v5210
    %v5214 = vsel %vm5142, %v5211, %v5212
    %v5215 = vsel %vm5144, %v5213, %v5214
    %v5217 = vadd.f32 %v5153, %v5215
    %5218 = vst.msk [vmem:[#allocation3] sm:$0xf] %vm5151, %v5217
    // Predicated region
    $region18: #{dcgan_generator.9} parent=1 // pred_check
      %p5219 = pneg %p5086
    $region19: #{dcgan_generator.9} parent=1 // pred_check_branch
      %5221 = sbr.rel (%p5219) target = $region21
    $region20: #{dcgan_generator.9} parent=1 // pred_region
      %v5222 = vld [vmem:[#allocation2] sm:$0xf]
      %5223 = vst.msk [vmem:[%s3] sm:$0xf] %vm5151, %v5222
      %v5224 = vld [vmem:[#allocation3] sm:$0xf]
      %5225 = vst.msk [vmem:[%s4] sm:$0xf] %vm5151, %v5224
    $region21: #{dcgan_generator.9} parent=1 // pred_fallthru
      _
    // Predicated region
    $region22: #{dcgan_generator.9} parent=1 // pred_check
      _
    $region23: #{dcgan_generator.9} parent=1 // pred_check_branch
      %5227 = sbr.rel (0) target = $region25
    $region24: #{dcgan_generator.9} parent=1 // pred_region
      _
    $region25: #{dcgan_generator.9} parent=1 // pred_fallthru
      _
    // Predicated region
    $region26: #{dcgan_generator.9} parent=1 // pred_check
      _
    $region27: #{dcgan_generator.9} parent=1 // pred_check_branch
      %5229 = sbr.rel (0) target = $region29
    $region28: #{dcgan_generator.9} parent=1 // pred_region
      _
    $region29: #{dcgan_generator.9} parent=1 // pred_fallthru
      _
    // Predicated region
    $region30: #{dcgan_generator.9} parent=1 // pred_check
      _
    $region31: #{dcgan_generator.9} parent=1 // pred_check_branch
      %5231 = sbr.rel (0) target = $region33
    $region32: #{dcgan_generator.9} parent=1 // pred_region
      _
    $region33: #{dcgan_generator.9} parent=1 // pred_fallthru
      _
    // Predicated region
    $region34: #{dcgan_generator.9} parent=1 // pred_check
      _
    $region35: #{dcgan_generator.9} parent=1 // pred_check_branch
      %5233 = sbr.rel (0) target = $region37
    $region36: #{dcgan_generator.9} parent=1 // pred_region
      _
    $region37: #{dcgan_generator.9} parent=1 // pred_fallthru
      _
    // Predicated region
    $region38: #{dcgan_generator.9} parent=1 // pred_check
      _
    $region39: #{dcgan_generator.9} parent=1 // pred_check_branch
      %5235 = sbr.rel (0) target = $region41
    $region40: #{dcgan_generator.9} parent=1 // pred_region
      _
    $region41: #{dcgan_generator.9} parent=1 // pred_fallthru
      _
    // Predicated region
    $region42: #{dcgan_generator.9} parent=1 // pred_check
      _
    $region43: #{dcgan_generator.9} parent=1 // pred_check_branch
      %5237 = sbr.rel (0) target = $region45
    $region44: #{dcgan_generator.9} parent=1 // pred_region
      _
    $region45: #{dcgan_generator.9} parent=1 // pred_fallthru
      _
    %5238 = vsyncpa [#allocation5], 1

// kernel: dcgan_generator.13
$region0: #{dcgan_generator.13}
  #allocation0 [shape = 'u32[]', space=smem, size = 0x4, offset = 0x4, fixed_abs, tag = 'smem constant byte address 0x4 - core index']
  #allocation1 [shape = 'u32[72,128]{1,0:T(1,128)}', space=vmem, size = 0x9000, scoped, tag = 'internal scratch']
  #allocation2 [shape = 'f32[1,128]{1,0:T(1,128)}', space=vmem, size = 0x200, scoped, tag = 'scratch operand']
  #allocation3 [shape = 'f32[1,128]{1,0:T(1,128)}', space=vmem, size = 0x200, scoped, tag = 'scratch operand']
  %s0 = inlined_call_operand.vmem [shape: bf16[512,576], index: 0, kind: input, shape index: {}]
  %s1 = inlined_call_operand.vmem [shape: bf16[576,128], index: 1, kind: input, shape index: {}]
  %s2 = inlined_call_operand.vmem [shape: f32[512,128], index: 2, kind: output, shape index: {0}]
  %s3 = inlined_call_operand.hbm [shape: f32[1,128], index: 3, kind: output, shape index: {1}]
  %s4 = inlined_call_operand.hbm [shape: f32[1,128], index: 4, kind: output, shape index: {2}]
  %5 = xla_tuple %s2, %s3, %s4
  %s6 = sld [smem:[#allocation0]]
  $region65: #{dcgan_generator.13} parent=0
    _
  %s8 = ssub.s32 1, %s6
  %s9 = scalar_select 0, %s8, %s6
  $region1: #{dcgan_generator.13} parent=0
    #allocation4 [shape = 'u8[512]{0}', space=vmem, size = 0x400, scoped, tag = 'output window, operand 1, single buffered']
    #allocation5 [shape = 's32[2]{0}', space=sflag, size = 0x8, scoped, tag = 'scoped memory for dcgan_generator.13']
    #allocation6 [shape = 'u8[512]{0}', space=vmem, size = 0x400, scoped, tag = 'output window, operand 2, single buffered']
    #allocation7 [shape = 's32[1]{0}', space=sflag, size = 0x4, scoped, tag = 'scoped memory for dcgan_generator.13']
    %10 = vsyncpa [#allocation5], 0
    %11 = vsyncpa [#allocation7], 0
    loop: start=0, step=1, limit=4
    $region2: #{dcgan_generator.13} parent=1 // loop_pre_header
      _
    $region3: #{dcgan_generator.13} parent=1 // loop_header
      %s13 = sphi 0, %s17
      %p14 = scmp.ge.s32.totalorder %s13, 4
      %s20 = sphi 0, %s32
      %s21 = sphi 0, %s28
      %s22 = sphi 0, %s20
      %s23 = sphi 0, %s21
      %s24 = sphi 0, %s22
      %s25 = sphi 0, %s23
      %s35 = sphi 0, %s37
      %s38 = sphi 0, %s35
      %s39 = sphi 0, %s38
      %s55 = sphi 0, %s39
      %s61 = sphi 0, %s63
      %s64 = sphi 0, %s61
      %s65 = sphi 0, %s64
      %s81 = sphi 0, %s65
      %s89 = sphi 0, %s91
      %s92 = sphi 0, %s89
      %s93 = sphi 0, %s92
      %s109 = sphi 0, %s93
      %s115 = sphi 0, %s117
      %s118 = sphi 0, %s115
      %s119 = sphi 0, %s118
      %s135 = sphi 0, %s119
      %s141 = sphi 0, %s143
      %s144 = sphi 0, %s141
      %s145 = sphi 0, %s144
      %s161 = sphi 0, %s145
    $region4: #{dcgan_generator.13} parent=1 // loop_header_branch
      %16 = sbr.rel (%p14) target = $region8
    $region5: #{dcgan_generator.13} parent=1 // loop_body
      %s18 = ssub.s32 %s13, 1
      %s19 = ssub.s32 %s13, 2
      %s26 = sadd.s32 1, %s21
      %p27 = scmp.ge.s32.totalorder %s26, 2
      %s28 = scalar_select %p27, 0, %s26
      %s29 = sadd.s32 1, %s20
      %s30 = scalar_select %p27, %s29, %s20
      %p31 = scmp.ge.s32.totalorder %s30, 1
      %s32 = scalar_select %p31, 0, %s30
      %s33 = ssub.s32 %s21, %s28
      %p34 = scmp.eq.s32.totalorder %s33, 0
      %s36 = sadd.s32 %s35, 1
      %s37 = scalar_select %p34, %s35, %s36
      %p40 = pneg %p34
      %p41 = scmp.eq.s32.totalorder %s13, 1
      %p42 = por %p40, %p41
      %p43 = scmp.ne.s32.totalorder %s35, %s38
      %p44 = scmp.eq.s32.totalorder %s13, 0
      %p45 = por %p43, %p44
      %p46 = scmp.ne.s32.totalorder %s35, %s38
      %p47 = scmp.eq.s32.totalorder %s18, 1
      %p48 = por %p46, %p47
      %p49 = scmp.ne.s32.totalorder %s38, %s39
      %p50 = scmp.eq.s32.totalorder %s18, 0
      %p51 = por %p49, %p50
      %p52 = scmp.ne.s32.totalorder %s38, %s39
      %p53 = scmp.eq.s32.totalorder %s19, 1
      %p54 = por %p52, %p53
      %p56 = scmp.ne.s32.totalorder %s39, %s55
      %p57 = scmp.eq.s32.totalorder %s19, 0
      %p58 = por %p56, %p57
      %s59 = ssub.s32 %s20, %s32
      %p60 = scmp.eq.s32.totalorder %s59, 0
      %s62 = sadd.s32 %s61, 1
      %s63 = scalar_select %p60, %s61, %s62
      %p66 = pneg %p60
      %p67 = scmp.eq.s32.totalorder %s13, 1
      %p68 = por %p66, %p67
      %p69 = scmp.ne.s32.totalorder %s61, %s64
      %p70 = scmp.eq.s32.totalorder %s13, 0
      %p71 = por %p69, %p70
      %p72 = scmp.ne.s32.totalorder %s61, %s64
      %p73 = scmp.eq.s32.totalorder %s18, 1
      %p74 = por %p72, %p73
      %p75 = scmp.ne.s32.totalorder %s64, %s65
      %p76 = scmp.eq.s32.totalorder %s18, 0
      %p77 = por %p75, %p76
      %p78 = scmp.ne.s32.totalorder %s64, %s65
      %p79 = scmp.eq.s32.totalorder %s19, 1
      %p80 = por %p78, %p79
      %p82 = scmp.ne.s32.totalorder %s65, %s81
      %p83 = scmp.eq.s32.totalorder %s19, 0
      %p84 = por %p82, %p83
      %s85 = ssub.s32 %s21, %s28
      %s86 = ssub.s32 %s20, %s32
      %s87 = sor.u32 %s85, %s86
      %p88 = scmp.eq.s32.totalorder %s87, 0
      %s90 = sadd.s32 %s89, 1
      %s91 = scalar_select %p88, %s89, %s90
      %p94 = pneg %p88
      %p95 = scmp.eq.s32.totalorder %s13, 1
      %p96 = por %p94, %p95
      %p97 = scmp.ne.s32.totalorder %s89, %s92
      %p98 = scmp.eq.s32.totalorder %s13, 0
      %p99 = por %p97, %p98
      %p100 = scmp.ne.s32.totalorder %s89, %s92
      %p101 = scmp.eq.s32.totalorder %s18, 1
      %p102 = por %p100, %p101
      %p103 = scmp.ne.s32.totalorder %s92, %s93
      %p104 = scmp.eq.s32.totalorder %s18, 0
      %p105 = por %p103, %p104
      %p106 = scmp.ne.s32.totalorder %s92, %s93
      %p107 = scmp.eq.s32.totalorder %s19, 1
      %p108 = por %p106, %p107
      %p110 = scmp.ne.s32.totalorder %s93, %s109
      %p111 = scmp.eq.s32.totalorder %s19, 0
      %p112 = por %p110, %p111
      %s113 = ssub.s32 %s20, %s32
      %p114 = scmp.eq.s32.totalorder %s113, 0
      %s116 = sadd.s32 %s115, 1
      %s117 = scalar_select %p114, %s115, %s116
      %p120 = pneg %p114
      %p121 = scmp.eq.s32.totalorder %s13, 1
      %p122 = por %p120, %p121
      %p123 = scmp.ne.s32.totalorder %s115, %s118
      %p124 = scmp.eq.s32.totalorder %s13, 0
      %p125 = por %p123, %p124
      %p126 = scmp.ne.s32.totalorder %s115, %s118
      %p127 = scmp.eq.s32.totalorder %s18, 1
      %p128 = por %p126, %p127
      %p129 = scmp.ne.s32.totalorder %s118, %s119
      %p130 = scmp.eq.s32.totalorder %s18, 0
      %p131 = por %p129, %p130
      %p132 = scmp.ne.s32.totalorder %s118, %s119
      %p133 = scmp.eq.s32.totalorder %s19, 1
      %p134 = por %p132, %p133
      %p136 = scmp.ne.s32.totalorder %s119, %s135
      %p137 = scmp.eq.s32.totalorder %s19, 0
      %p138 = por %p136, %p137
      %s139 = ssub.s32 %s20, %s32
      %p140 = scmp.eq.s32.totalorder %s139, 0
      %s142 = sadd.s32 %s141, 1
      %s143 = scalar_select %p140, %s141, %s142
      %p146 = pneg %p140
      %p147 = scmp.eq.s32.totalorder %s13, 1
      %p148 = por %p146, %p147
      %p149 = scmp.ne.s32.totalorder %s141, %s144
      %p150 = scmp.eq.s32.totalorder %s13, 0
      %p151 = por %p149, %p150
      %p152 = scmp.ne.s32.totalorder %s141, %s144
      %p153 = scmp.eq.s32.totalorder %s18, 1
      %p154 = por %p152, %p153
      %p155 = scmp.ne.s32.totalorder %s144, %s145
      %p156 = scmp.eq.s32.totalorder %s18, 0
      %p157 = por %p155, %p156
      %p158 = scmp.ne.s32.totalorder %s144, %s145
      %p159 = scmp.eq.s32.totalorder %s19, 1
      %p160 = por %p158, %p159
      %p162 = scmp.ne.s32.totalorder %s145, %s161
      %p163 = scmp.eq.s32.totalorder %s19, 0
      %p164 = por %p162, %p163
      %p165 = scmp.le.s32.totalorder 1, %s13
      %p166 = scmp.lt.s32.totalorder %s13, 3
      %p167 = pnand %p165, %p166
      %p168 = pneg %p167
      // Predicated region
      $region9: #{dcgan_generator.13} parent=5 // pred_check
        _
      $region10: #{dcgan_generator.13} parent=5 // pred_check_branch
        %170 = sbr.rel (%p167) target = $region12
      $region11: #{dcgan_generator.13} parent=5 // pred_region
        %s171 = ssub.s32 %s13, 1
        // Predicated region
        $region13: #{dcgan_generator.13} parent=11 // pred_check
          %p172 = pneg %p77
        $region14: #{dcgan_generator.13} parent=11 // pred_check_branch
          %174 = sbr.rel (%p172) target = $region16
        $region15: #{dcgan_generator.13} parent=11 // pred_region
          %p175 = scmp.lt.s32.totalorder %s22, 0
          %s176 = scalar_select %p175, %s22, 0
          %s177 = smul.addr %s176, 4
          %s178 = scalar_lea.vmem %s1, %s177
        $region16: #{dcgan_generator.13} parent=11 // pred_fallthru
          _
      $region12: #{dcgan_generator.13} parent=5 // pred_fallthru
        _
      %p179 = scmp.lt.s32.totalorder %s13, 2
      // Predicated region
      $region17: #{dcgan_generator.13} parent=5 // pred_check
        %p180 = pneg %p179
      $region18: #{dcgan_generator.13} parent=5 // pred_check_branch
        %182 = sbr.rel (%p180) target = $region20
      $region19: #{dcgan_generator.13} parent=5 // pred_region
        // Predicated region
        $region21: #{dcgan_generator.13} parent=19 // pred_check
          %p183 = pneg %p45
        $region22: #{dcgan_generator.13} parent=19 // pred_check_branch
          %185 = sbr.rel (%p183) target = $region24
        $region23: #{dcgan_generator.13} parent=19 // pred_region
          %s186 = smul.u32 32, %s21
          %p187 = scmp.lt.s32.totalorder %s186, 63
          %s188 = scalar_select %p187, %s186, 63
          %s189 = smul.addr %s188, 5
          %s190 = smul.addr %s189, 4
          %s191 = scalar_lea.vmem %s0, %s190
          %s192 = smul.u32 32, %s21
        $region24: #{dcgan_generator.13} parent=19 // pred_fallthru
          _
      $region20: #{dcgan_generator.13} parent=5 // pred_fallthru
        _
      %p193 = scmp.le.s32.totalorder 1, %s13
      %p194 = scmp.lt.s32.totalorder %s13, 3
      %p195 = pnand %p193, %p194
      %p196 = pneg %p195
      // Predicated region
      $region25: #{dcgan_generator.13} parent=5 // pred_check
        _
      $region26: #{dcgan_generator.13} parent=5 // pred_check_branch
        %198 = sbr.rel (%p195) target = $region28
      $region27: #{dcgan_generator.13} parent=5 // pred_region
        %s199 = ssub.s32 %s13, 1
        %s200 = smul.u32 32, %s23
        %p201 = scmp.lt.s32.totalorder %s200, 63
        %s202 = scalar_select %p201, %s200, 63
        %s203 = smul.addr %s202, 5
        %s204 = smul.addr %s203, 4
        %s205 = scalar_lea.vmem %s0, %s204
        %p206 = pneg %p51
        %p207 = pneg %p48
        %p208 = scmp.lt.s32.totalorder %s22, 0
        %s209 = scalar_select %p208, %s22, 0
        %s210 = smul.addr %s209, 4
        %s211 = scalar_lea.vmem %s1, %s210
        %p212 = pneg %p77
        %p213 = pneg %p74
        %p214 = pneg %p105
        %p215 = pneg %p102
        %s216 = smul.u32 32, %s23
        %p217 = scmp.lt.s32.totalorder %s216, 63
        %s218 = scalar_select %p217, %s216, 63
        %p219 = scmp.lt.s32.totalorder %s22, 0
        %s220 = scalar_select %p219, %s22, 0
        %s221 = sadd.s32 %s220, %s218
        %s222 = smul.addr %s221, 8
        %s223 = scalar_lea.vmem %s2, %s222
        %p224 = pneg %p131
        %p225 = pneg %p128
        %p226 = pneg %p157
        %p227 = pneg %p154
        %s228 = smul.u32 32, %s23
        %p229 = scmp.lt.s32.totalorder %s228, 63
        %s230 = scalar_select %p229, %s228, 63
        %s231 = smul.addr %s230, 5
        %s232 = smul.addr %s231, 4
        %s233 = scalar_lea.vmem %s0, %s232
        %s234 = smul.u32 32, %s23
        %p235 = scmp.lt.s32.totalorder %s22, 0
        %s236 = scalar_select %p235, %s22, 0
        %s237 = smul.addr %s236, 4
        %s238 = scalar_lea.vmem %s1, %s237
        %s239 = smul.u32 32, %s23
        %p240 = scmp.lt.s32.totalorder %s239, 63
        %s241 = scalar_select %p240, %s239, 63
        %p242 = scmp.lt.s32.totalorder %s22, 0
        %s243 = scalar_select %p242, %s22, 0
        %s244 = sadd.s32 %s243, %s241
        %s245 = smul.addr %s244, 8
        %s246 = scalar_lea.vmem %s2, %s245
        %s247 = smul.u32 32, %s23
        %v249 = vld [vmem:[%s233] sm:$0xff]
        %v250 = vld [vmem:[%s233 + $0x8] sm:$0xff]
        %v251 = vld [vmem:[%s233 + $0x10] sm:$0xf]
        %v252 = vld [vmem:[%s233 + $0x14] sm:$0xff]
        %v253 = vld [vmem:[%s233 + $0x1c] sm:$0xff]
        %v254 = vld [vmem:[%s233 + $0x24] sm:$0xf]
        %v255 = vld [vmem:[%s233 + $0x28] sm:$0xff]
        %v256 = vld [vmem:[%s233 + $0x30] sm:$0xff]
        %v257 = vld [vmem:[%s233 + $0x38] sm:$0xf]
        %v258 = vld [vmem:[%s233 + $0x3c] sm:$0xff]
        %v259 = vld [vmem:[%s233 + $0x44] sm:$0xff]
        %v260 = vld [vmem:[%s233 + $0x4c] sm:$0xf]
        %v261 = vld [vmem:[%s233 + $0x50] sm:$0xff]
        %v262 = vld [vmem:[%s233 + $0x58] sm:$0xff]
        %v263 = vld [vmem:[%s233 + $0x60] sm:$0xf]
        %v264 = vld [vmem:[%s233 + $0x64] sm:$0xff]
        %v265 = vld [vmem:[%s233 + $0x6c] sm:$0xff]
        %v266 = vld [vmem:[%s233 + $0x74] sm:$0xf]
        %v267 = vld [vmem:[%s233 + $0x78] sm:$0xff]
        %v268 = vld [vmem:[%s233 + $0x80] sm:$0xff]
        %v269 = vld [vmem:[%s233 + $0x88] sm:$0xf]
        %v270 = vld [vmem:[%s233 + $0x8c] sm:$0xff]
        %v271 = vld [vmem:[%s233 + $0x94] sm:$0xff]
        %v272 = vld [vmem:[%s233 + $0x9c] sm:$0xf]
        %v273 = vld [vmem:[%s233 + $0xa0] sm:$0xff]
        %v274 = vld [vmem:[%s233 + $0xa8] sm:$0xff]
        %v275 = vld [vmem:[%s233 + $0xb0] sm:$0xf]
        %v276 = vld [vmem:[%s233 + $0xb4] sm:$0xff]
        %v277 = vld [vmem:[%s233 + $0xbc] sm:$0xff]
        %v278 = vld [vmem:[%s233 + $0xc4] sm:$0xf]
        %v279 = vld [vmem:[%s233 + $0xc8] sm:$0xff]
        %v280 = vld [vmem:[%s233 + $0xd0] sm:$0xff]
        %v281 = vld [vmem:[%s233 + $0xd8] sm:$0xf]
        %v282 = vld [vmem:[%s233 + $0xdc] sm:$0xff]
        %v283 = vld [vmem:[%s233 + $0xe4] sm:$0xff]
        %v284 = vld [vmem:[%s233 + $0xec] sm:$0xf]
        %v285 = vld [vmem:[%s233 + $0xf0] sm:$0xff]
        %v286 = vld [vmem:[%s233 + $0xf8] sm:$0xff]
        %v287 = vld [vmem:[%s233 + $0x100] sm:$0xf]
        %v288 = vld [vmem:[%s233 + $0x104] sm:$0xff]
        %v289 = vld [vmem:[%s233 + $0x10c] sm:$0xff]
        %v290 = vld [vmem:[%s233 + $0x114] sm:$0xf]
        %v291 = vld [vmem:[%s233 + $0x118] sm:$0xff]
        %v292 = vld [vmem:[%s233 + $0x120] sm:$0xff]
        %v293 = vld [vmem:[%s233 + $0x128] sm:$0xf]
        %v294 = vld [vmem:[%s233 + $0x12c] sm:$0xff]
        %v295 = vld [vmem:[%s233 + $0x134] sm:$0xff]
        %v296 = vld [vmem:[%s233 + $0x13c] sm:$0xf]
        %v297 = vld [vmem:[%s233 + $0x140] sm:$0xff]
        %v298 = vld [vmem:[%s233 + $0x148] sm:$0xff]
        %v299 = vld [vmem:[%s233 + $0x150] sm:$0xf]
        %v300 = vld [vmem:[%s233 + $0x154] sm:$0xff]
        %v301 = vld [vmem:[%s233 + $0x15c] sm:$0xff]
        %v302 = vld [vmem:[%s233 + $0x164] sm:$0xf]
        %v303 = vld [vmem:[%s233 + $0x168] sm:$0xff]
        %v304 = vld [vmem:[%s233 + $0x170] sm:$0xff]
        %v305 = vld [vmem:[%s233 + $0x178] sm:$0xf]
        %v306 = vld [vmem:[%s233 + $0x17c] sm:$0xff]
        %v307 = vld [vmem:[%s233 + $0x184] sm:$0xff]
        %v308 = vld [vmem:[%s233 + $0x18c] sm:$0xf]
        %v309 = vld [vmem:[%s233 + $0x190] sm:$0xff]
        %v310 = vld [vmem:[%s233 + $0x198] sm:$0xff]
        %v311 = vld [vmem:[%s233 + $0x1a0] sm:$0xf]
        %v312 = vld [vmem:[%s233 + $0x1a4] sm:$0xff]
        %v313 = vld [vmem:[%s233 + $0x1ac] sm:$0xff]
        %v314 = vld [vmem:[%s233 + $0x1b4] sm:$0xf]
        %v315 = vld [vmem:[%s233 + $0x1b8] sm:$0xff]
        %v316 = vld [vmem:[%s233 + $0x1c0] sm:$0xff]
        %v317 = vld [vmem:[%s233 + $0x1c8] sm:$0xf]
        %v318 = vld [vmem:[%s233 + $0x1cc] sm:$0xff]
        %v319 = vld [vmem:[%s233 + $0x1d4] sm:$0xff]
        %v320 = vld [vmem:[%s233 + $0x1dc] sm:$0xf]
        %v321 = vld [vmem:[%s233 + $0x1e0] sm:$0xff]
        %v322 = vld [vmem:[%s233 + $0x1e8] sm:$0xff]
        %v323 = vld [vmem:[%s233 + $0x1f0] sm:$0xf]
        %v324 = vld [vmem:[%s233 + $0x1f4] sm:$0xff]
        %v325 = vld [vmem:[%s233 + $0x1fc] sm:$0xff]
        %v326 = vld [vmem:[%s233 + $0x204] sm:$0xf]
        %v327 = vld [vmem:[%s233 + $0x208] sm:$0xff]
        %v328 = vld [vmem:[%s233 + $0x210] sm:$0xff]
        %v329 = vld [vmem:[%s233 + $0x218] sm:$0xf]
        %v330 = vld [vmem:[%s233 + $0x21c] sm:$0xff]
        %v331 = vld [vmem:[%s233 + $0x224] sm:$0xff]
        %v332 = vld [vmem:[%s233 + $0x22c] sm:$0xf]
        %v333 = vld [vmem:[%s233 + $0x230] sm:$0xff]
        %v334 = vld [vmem:[%s233 + $0x238] sm:$0xff]
        %v335 = vld [vmem:[%s233 + $0x240] sm:$0xf]
        %v336 = vld [vmem:[%s233 + $0x244] sm:$0xff]
        %v337 = vld [vmem:[%s233 + $0x24c] sm:$0xff]
        %v338 = vld [vmem:[%s233 + $0x254] sm:$0xf]
        %v339 = vld [vmem:[%s233 + $0x258] sm:$0xff]
        %v340 = vld [vmem:[%s233 + $0x260] sm:$0xff]
        %v341 = vld [vmem:[%s233 + $0x268] sm:$0xf]
        %v342 = vld [vmem:[%s233 + $0x26c] sm:$0xff]
        %v343 = vld [vmem:[%s233 + $0x274] sm:$0xff]
        %v344 = vld [vmem:[%s233 + $0x27c] sm:$0xf]
        %v345 = vld [vmem:[%s238] sm:$0xf]
        %v346 = vld [vmem:[%s238 + $0x4] sm:$0xf]
        %v347 = vld [vmem:[%s238 + $0x8] sm:$0xf]
        %v348 = vld [vmem:[%s238 + $0xc] sm:$0xf]
        %v349 = vld [vmem:[%s238 + $0x10] sm:$0xf]
        %v350 = vld [vmem:[%s238 + $0x14] sm:$0xf]
        %v351 = vld [vmem:[%s238 + $0x18] sm:$0xf]
        %v352 = vld [vmem:[%s238 + $0x1c] sm:$0xf]
        %v353 = vld [vmem:[%s238 + $0x20] sm:$0xf]
        %v354 = vld [vmem:[%s238 + $0x24] sm:$0xf]
        %v355 = vld [vmem:[%s238 + $0x28] sm:$0xf]
        %v356 = vld [vmem:[%s238 + $0x2c] sm:$0xf]
        %v357 = vld [vmem:[%s238 + $0x30] sm:$0xf]
        %v358 = vld [vmem:[%s238 + $0x34] sm:$0xf]
        %v359 = vld [vmem:[%s238 + $0x38] sm:$0xf]
        %v360 = vld [vmem:[%s238 + $0x3c] sm:$0xf]
        %v361 = vld [vmem:[%s238 + $0x40] sm:$0xf]
        %v362 = vld [vmem:[%s238 + $0x44] sm:$0xf]
        %v363 = vld [vmem:[%s238 + $0x48] sm:$0xf]
        %v364 = vld [vmem:[%s238 + $0x4c] sm:$0xf]
        %v365 = vld [vmem:[%s238 + $0x50] sm:$0xf]
        %v366 = vld [vmem:[%s238 + $0x54] sm:$0xf]
        %v367 = vld [vmem:[%s238 + $0x58] sm:$0xf]
        %v368 = vld [vmem:[%s238 + $0x5c] sm:$0xf]
        %v369 = vld [vmem:[%s238 + $0x60] sm:$0xf]
        %v370 = vld [vmem:[%s238 + $0x64] sm:$0xf]
        %v371 = vld [vmem:[%s238 + $0x68] sm:$0xf]
        %v372 = vld [vmem:[%s238 + $0x6c] sm:$0xf]
        %v373 = vld [vmem:[%s238 + $0x70] sm:$0xf]
        %v374 = vld [vmem:[%s238 + $0x74] sm:$0xf]
        %v375 = vld [vmem:[%s238 + $0x78] sm:$0xf]
        %v376 = vld [vmem:[%s238 + $0x7c] sm:$0xf]
        %v377 = vld [vmem:[%s238 + $0x80] sm:$0xf]
        %v378 = vld [vmem:[%s238 + $0x84] sm:$0xf]
        %v379 = vld [vmem:[%s238 + $0x88] sm:$0xf]
        %v380 = vld [vmem:[%s238 + $0x8c] sm:$0xf]
        %v381 = vld [vmem:[%s238 + $0x90] sm:$0xf]
        %v382 = vld [vmem:[%s238 + $0x94] sm:$0xf]
        %v383 = vld [vmem:[%s238 + $0x98] sm:$0xf]
        %v384 = vld [vmem:[%s238 + $0x9c] sm:$0xf]
        %v385 = vld [vmem:[%s238 + $0xa0] sm:$0xf]
        %v386 = vld [vmem:[%s238 + $0xa4] sm:$0xf]
        %v387 = vld [vmem:[%s238 + $0xa8] sm:$0xf]
        %v388 = vld [vmem:[%s238 + $0xac] sm:$0xf]
        %v389 = vld [vmem:[%s238 + $0xb0] sm:$0xf]
        %v390 = vld [vmem:[%s238 + $0xb4] sm:$0xf]
        %v391 = vld [vmem:[%s238 + $0xb8] sm:$0xf]
        %v392 = vld [vmem:[%s238 + $0xbc] sm:$0xf]
        %v393 = vld [vmem:[%s238 + $0xc0] sm:$0xf]
        %v394 = vld [vmem:[%s238 + $0xc4] sm:$0xf]
        %v395 = vld [vmem:[%s238 + $0xc8] sm:$0xf]
        %v396 = vld [vmem:[%s238 + $0xcc] sm:$0xf]
        %v397 = vld [vmem:[%s238 + $0xd0] sm:$0xf]
        %v398 = vld [vmem:[%s238 + $0xd4] sm:$0xf]
        %v399 = vld [vmem:[%s238 + $0xd8] sm:$0xf]
        %v400 = vld [vmem:[%s238 + $0xdc] sm:$0xf]
        %v401 = vld [vmem:[%s238 + $0xe0] sm:$0xf]
        %v402 = vld [vmem:[%s238 + $0xe4] sm:$0xf]
        %v403 = vld [vmem:[%s238 + $0xe8] sm:$0xf]
        %v404 = vld [vmem:[%s238 + $0xec] sm:$0xf]
        %v405 = vld [vmem:[%s238 + $0xf0] sm:$0xf]
        %v406 = vld [vmem:[%s238 + $0xf4] sm:$0xf]
        %v407 = vld [vmem:[%s238 + $0xf8] sm:$0xf]
        %v408 = vld [vmem:[%s238 + $0xfc] sm:$0xf]
        %v409 = vld [vmem:[%s238 + $0x100] sm:$0xf]
        %v410 = vld [vmem:[%s238 + $0x104] sm:$0xf]
        %v411 = vld [vmem:[%s238 + $0x108] sm:$0xf]
        %v412 = vld [vmem:[%s238 + $0x10c] sm:$0xf]
        %v413 = vld [vmem:[%s238 + $0x110] sm:$0xf]
        %v414 = vld [vmem:[%s238 + $0x114] sm:$0xf]
        %v415 = vld [vmem:[%s238 + $0x118] sm:$0xf]
        %v416 = vld [vmem:[%s238 + $0x11c] sm:$0xf]
        %v513 = vunpack.c.l.b16 %v249
        %v514 = vunpack.c.h.b16 %v249
        %v515 = vunpack.c.l.b16 %v250
        %v516 = vunpack.c.h.b16 %v250
        %v517 = vunpack.c.l.b16 %v251
        %v518 = vunpack.c.l.b16 %v252
        %v519 = vunpack.c.h.b16 %v252
        %v520 = vunpack.c.l.b16 %v253
        %v521 = vunpack.c.h.b16 %v253
        %v522 = vunpack.c.l.b16 %v254
        %v523 = vunpack.c.l.b16 %v255
        %v524 = vunpack.c.h.b16 %v255
        %v525 = vunpack.c.l.b16 %v256
        %v526 = vunpack.c.h.b16 %v256
        %v527 = vunpack.c.l.b16 %v257
        %v528 = vunpack.c.l.b16 %v258
        %v529 = vunpack.c.h.b16 %v258
        %v530 = vunpack.c.l.b16 %v259
        %v531 = vunpack.c.h.b16 %v259
        %v532 = vunpack.c.l.b16 %v260
        %v533 = vunpack.c.l.b16 %v261
        %v534 = vunpack.c.h.b16 %v261
        %v535 = vunpack.c.l.b16 %v262
        %v536 = vunpack.c.h.b16 %v262
        %v537 = vunpack.c.l.b16 %v263
        %v538 = vunpack.c.l.b16 %v264
        %v539 = vunpack.c.h.b16 %v264
        %v540 = vunpack.c.l.b16 %v265
        %v541 = vunpack.c.h.b16 %v265
        %v542 = vunpack.c.l.b16 %v266
        %v543 = vunpack.c.l.b16 %v267
        %v544 = vunpack.c.h.b16 %v267
        %v545 = vunpack.c.l.b16 %v268
        %v546 = vunpack.c.h.b16 %v268
        %v547 = vunpack.c.l.b16 %v269
        %v548 = vunpack.c.l.b16 %v270
        %v549 = vunpack.c.h.b16 %v270
        %v550 = vunpack.c.l.b16 %v271
        %v551 = vunpack.c.h.b16 %v271
        %v552 = vunpack.c.l.b16 %v272
        %v553 = vunpack.c.l.b16 %v273
        %v554 = vunpack.c.h.b16 %v273
        %v555 = vunpack.c.l.b16 %v274
        %v556 = vunpack.c.h.b16 %v274
        %v557 = vunpack.c.l.b16 %v275
        %v558 = vunpack.c.l.b16 %v276
        %v559 = vunpack.c.h.b16 %v276
        %v560 = vunpack.c.l.b16 %v277
        %v561 = vunpack.c.h.b16 %v277
        %v562 = vunpack.c.l.b16 %v278
        %v563 = vunpack.c.l.b16 %v279
        %v564 = vunpack.c.h.b16 %v279
        %v565 = vunpack.c.l.b16 %v280
        %v566 = vunpack.c.h.b16 %v280
        %v567 = vunpack.c.l.b16 %v281
        %v568 = vunpack.c.l.b16 %v282
        %v569 = vunpack.c.h.b16 %v282
        %v570 = vunpack.c.l.b16 %v283
        %v571 = vunpack.c.h.b16 %v283
        %v572 = vunpack.c.l.b16 %v284
        %v573 = vunpack.c.l.b16 %v285
        %v574 = vunpack.c.h.b16 %v285
        %v575 = vunpack.c.l.b16 %v286
        %v576 = vunpack.c.h.b16 %v286
        %v577 = vunpack.c.l.b16 %v287
        %v578 = vunpack.c.l.b16 %v288
        %v579 = vunpack.c.h.b16 %v288
        %v580 = vunpack.c.l.b16 %v289
        %v581 = vunpack.c.h.b16 %v289
        %v582 = vunpack.c.l.b16 %v290
        %v583 = vunpack.c.l.b16 %v291
        %v584 = vunpack.c.h.b16 %v291
        %v585 = vunpack.c.l.b16 %v292
        %v586 = vunpack.c.h.b16 %v292
        %v587 = vunpack.c.l.b16 %v293
        %v588 = vunpack.c.l.b16 %v294
        %v589 = vunpack.c.h.b16 %v294
        %v590 = vunpack.c.l.b16 %v295
        %v591 = vunpack.c.h.b16 %v295
        %v592 = vunpack.c.l.b16 %v296
        %v593 = vunpack.c.l.b16 %v297
        %v594 = vunpack.c.h.b16 %v297
        %v595 = vunpack.c.l.b16 %v298
        %v596 = vunpack.c.h.b16 %v298
        %v597 = vunpack.c.l.b16 %v299
        %v598 = vunpack.c.l.b16 %v300
        %v599 = vunpack.c.h.b16 %v300
        %v600 = vunpack.c.l.b16 %v301
        %v601 = vunpack.c.h.b16 %v301
        %v602 = vunpack.c.l.b16 %v302
        %v603 = vunpack.c.l.b16 %v303
        %v604 = vunpack.c.h.b16 %v303
        %v605 = vunpack.c.l.b16 %v304
        %v606 = vunpack.c.h.b16 %v304
        %v607 = vunpack.c.l.b16 %v305
        %v608 = vunpack.c.l.b16 %v306
        %v609 = vunpack.c.h.b16 %v306
        %v610 = vunpack.c.l.b16 %v307
        %v611 = vunpack.c.h.b16 %v307
        %v612 = vunpack.c.l.b16 %v308
        %v613 = vunpack.c.l.b16 %v309
        %v614 = vunpack.c.h.b16 %v309
        %v615 = vunpack.c.l.b16 %v310
        %v616 = vunpack.c.h.b16 %v310
        %v617 = vunpack.c.l.b16 %v311
        %v618 = vunpack.c.l.b16 %v312
        %v619 = vunpack.c.h.b16 %v312
        %v620 = vunpack.c.l.b16 %v313
        %v621 = vunpack.c.h.b16 %v313
        %v622 = vunpack.c.l.b16 %v314
        %v623 = vunpack.c.l.b16 %v315
        %v624 = vunpack.c.h.b16 %v315
        %v625 = vunpack.c.l.b16 %v316
        %v626 = vunpack.c.h.b16 %v316
        %v627 = vunpack.c.l.b16 %v317
        %v628 = vunpack.c.l.b16 %v318
        %v629 = vunpack.c.h.b16 %v318
        %v630 = vunpack.c.l.b16 %v319
        %v631 = vunpack.c.h.b16 %v319
        %v632 = vunpack.c.l.b16 %v320
        %v633 = vunpack.c.l.b16 %v321
        %v634 = vunpack.c.h.b16 %v321
        %v635 = vunpack.c.l.b16 %v322
        %v636 = vunpack.c.h.b16 %v322
        %v637 = vunpack.c.l.b16 %v323
        %v638 = vunpack.c.l.b16 %v324
        %v639 = vunpack.c.h.b16 %v324
        %v640 = vunpack.c.l.b16 %v325
        %v641 = vunpack.c.h.b16 %v325
        %v642 = vunpack.c.l.b16 %v326
        %v643 = vunpack.c.l.b16 %v327
        %v644 = vunpack.c.h.b16 %v327
        %v645 = vunpack.c.l.b16 %v328
        %v646 = vunpack.c.h.b16 %v328
        %v647 = vunpack.c.l.b16 %v329
        %v648 = vunpack.c.l.b16 %v330
        %v649 = vunpack.c.h.b16 %v330
        %v650 = vunpack.c.l.b16 %v331
        %v651 = vunpack.c.h.b16 %v331
        %v652 = vunpack.c.l.b16 %v332
        %v653 = vunpack.c.l.b16 %v333
        %v654 = vunpack.c.h.b16 %v333
        %v655 = vunpack.c.l.b16 %v334
        %v656 = vunpack.c.h.b16 %v334
        %v657 = vunpack.c.l.b16 %v335
        %v658 = vunpack.c.l.b16 %v336
        %v659 = vunpack.c.h.b16 %v336
        %v660 = vunpack.c.l.b16 %v337
        %v661 = vunpack.c.h.b16 %v337
        %v662 = vunpack.c.l.b16 %v338
        %v663 = vunpack.c.l.b16 %v339
        %v664 = vunpack.c.h.b16 %v339
        %v665 = vunpack.c.l.b16 %v340
        %v666 = vunpack.c.h.b16 %v340
        %v667 = vunpack.c.l.b16 %v341
        %v668 = vunpack.c.l.b16 %v342
        %v669 = vunpack.c.h.b16 %v342
        %v670 = vunpack.c.l.b16 %v343
        %v671 = vunpack.c.h.b16 %v343
        %v672 = vunpack.c.l.b16 %v344
        %v673 = vpack.c.b16 %v518, %v513
        %v674 = vpack.c.b16 %v519, %v514
        %v675 = vpack.c.b16 %v520, %v515
        %v676 = vpack.c.b16 %v521, %v516
        %v677 = vpack.c.b16 %v522, %v517
        %v678 = vpack.c.b16 %v528, %v523
        %v679 = vpack.c.b16 %v529, %v524
        %v680 = vpack.c.b16 %v530, %v525
        %v681 = vpack.c.b16 %v531, %v526
        %v682 = vpack.c.b16 %v532, %v527
        %v683 = vpack.c.b16 %v538, %v533
        %v684 = vpack.c.b16 %v539, %v534
        %v685 = vpack.c.b16 %v540, %v535
        %v686 = vpack.c.b16 %v541, %v536
        %v687 = vpack.c.b16 %v542, %v537
        %v688 = vpack.c.b16 %v548, %v543
        %v689 = vpack.c.b16 %v549, %v544
        %v690 = vpack.c.b16 %v550, %v545
        %v691 = vpack.c.b16 %v551, %v546
        %v692 = vpack.c.b16 %v552, %v547
        %v693 = vpack.c.b16 %v558, %v553
        %v694 = vpack.c.b16 %v559, %v554
        %v695 = vpack.c.b16 %v560, %v555
        %v696 = vpack.c.b16 %v561, %v556
        %v697 = vpack.c.b16 %v562, %v557
        %v698 = vpack.c.b16 %v568, %v563
        %v699 = vpack.c.b16 %v569, %v564
        %v700 = vpack.c.b16 %v570, %v565
        %v701 = vpack.c.b16 %v571, %v566
        %v702 = vpack.c.b16 %v572, %v567
        %v703 = vpack.c.b16 %v578, %v573
        %v704 = vpack.c.b16 %v579, %v574
        %v705 = vpack.c.b16 %v580, %v575
        %v706 = vpack.c.b16 %v581, %v576
        %v707 = vpack.c.b16 %v582, %v577
        %v708 = vpack.c.b16 %v588, %v583
        %v709 = vpack.c.b16 %v589, %v584
        %v710 = vpack.c.b16 %v590, %v585
        %v711 = vpack.c.b16 %v591, %v586
        %v712 = vpack.c.b16 %v592, %v587
        %v713 = vpack.c.b16 %v598, %v593
        %v714 = vpack.c.b16 %v599, %v594
        %v715 = vpack.c.b16 %v600, %v595
        %v716 = vpack.c.b16 %v601, %v596
        %v717 = vpack.c.b16 %v602, %v597
        %v718 = vpack.c.b16 %v608, %v603
        %v719 = vpack.c.b16 %v609, %v604
        %v720 = vpack.c.b16 %v610, %v605
        %v721 = vpack.c.b16 %v611, %v606
        %v722 = vpack.c.b16 %v612, %v607
        %v723 = vpack.c.b16 %v618, %v613
        %v724 = vpack.c.b16 %v619, %v614
        %v725 = vpack.c.b16 %v620, %v615
        %v726 = vpack.c.b16 %v621, %v616
        %v727 = vpack.c.b16 %v622, %v617
        %v728 = vpack.c.b16 %v628, %v623
        %v729 = vpack.c.b16 %v629, %v624
        %v730 = vpack.c.b16 %v630, %v625
        %v731 = vpack.c.b16 %v631, %v626
        %v732 = vpack.c.b16 %v632, %v627
        %v733 = vpack.c.b16 %v638, %v633
        %v734 = vpack.c.b16 %v639, %v634
        %v735 = vpack.c.b16 %v640, %v635
        %v736 = vpack.c.b16 %v641, %v636
        %v737 = vpack.c.b16 %v642, %v637
        %v738 = vpack.c.b16 %v648, %v643
        %v739 = vpack.c.b16 %v649, %v644
        %v740 = vpack.c.b16 %v650, %v645
        %v741 = vpack.c.b16 %v651, %v646
        %v742 = vpack.c.b16 %v652, %v647
        %v743 = vpack.c.b16 %v658, %v653
        %v744 = vpack.c.b16 %v659, %v654
        %v745 = vpack.c.b16 %v660, %v655
        %v746 = vpack.c.b16 %v661, %v656
        %v747 = vpack.c.b16 %v662, %v657
        %v748 = vpack.c.b16 %v668, %v663
        %v749 = vpack.c.b16 %v669, %v664
        %v750 = vpack.c.b16 %v670, %v665
        %v751 = vpack.c.b16 %v671, %v666
        %v752 = vpack.c.b16 %v672, %v667
        %v889 = vunpack.c.l.b16 %v345
        %v890 = vunpack.c.l.b16 %v346
        %v891 = vunpack.c.l.b16 %v347
        %v892 = vunpack.c.l.b16 %v348
        %v893 = vunpack.c.l.b16 %v349
        %v894 = vunpack.c.l.b16 %v350
        %v895 = vunpack.c.l.b16 %v351
        %v896 = vunpack.c.l.b16 %v352
        %v897 = vunpack.c.l.b16 %v353
        %v898 = vunpack.c.l.b16 %v354
        %v899 = vunpack.c.l.b16 %v355
        %v900 = vunpack.c.l.b16 %v356
        %v901 = vunpack.c.l.b16 %v357
        %v902 = vunpack.c.l.b16 %v358
        %v903 = vunpack.c.l.b16 %v359
        %v904 = vunpack.c.l.b16 %v360
        %v905 = vunpack.c.l.b16 %v361
        %v906 = vunpack.c.l.b16 %v362
        %v907 = vunpack.c.l.b16 %v363
        %v908 = vunpack.c.l.b16 %v364
        %v909 = vunpack.c.l.b16 %v365
        %v910 = vunpack.c.l.b16 %v366
        %v911 = vunpack.c.l.b16 %v367
        %v912 = vunpack.c.l.b16 %v368
        %v913 = vunpack.c.l.b16 %v369
        %v914 = vunpack.c.l.b16 %v370
        %v915 = vunpack.c.l.b16 %v371
        %v916 = vunpack.c.l.b16 %v372
        %v917 = vunpack.c.l.b16 %v373
        %v918 = vunpack.c.l.b16 %v374
        %v919 = vunpack.c.l.b16 %v375
        %v920 = vunpack.c.l.b16 %v376
        %v921 = vunpack.c.l.b16 %v377
        %v922 = vunpack.c.l.b16 %v378
        %v923 = vunpack.c.l.b16 %v379
        %v924 = vunpack.c.l.b16 %v380
        %v925 = vunpack.c.l.b16 %v381
        %v926 = vunpack.c.l.b16 %v382
        %v927 = vunpack.c.l.b16 %v383
        %v928 = vunpack.c.l.b16 %v384
        %v929 = vunpack.c.l.b16 %v385
        %v930 = vunpack.c.l.b16 %v386
        %v931 = vunpack.c.l.b16 %v387
        %v932 = vunpack.c.l.b16 %v388
        %v933 = vunpack.c.l.b16 %v389
        %v934 = vunpack.c.l.b16 %v390
        %v935 = vunpack.c.l.b16 %v391
        %v936 = vunpack.c.l.b16 %v392
        %v937 = vunpack.c.l.b16 %v393
        %v938 = vunpack.c.l.b16 %v394
        %v939 = vunpack.c.l.b16 %v395
        %v940 = vunpack.c.l.b16 %v396
        %v941 = vunpack.c.l.b16 %v397
        %v942 = vunpack.c.l.b16 %v398
        %v943 = vunpack.c.l.b16 %v399
        %v944 = vunpack.c.l.b16 %v400
        %v945 = vunpack.c.l.b16 %v401
        %v946 = vunpack.c.l.b16 %v402
        %v947 = vunpack.c.l.b16 %v403
        %v948 = vunpack.c.l.b16 %v404
        %v949 = vunpack.c.l.b16 %v405
        %v950 = vunpack.c.l.b16 %v406
        %v951 = vunpack.c.l.b16 %v407
        %v952 = vunpack.c.l.b16 %v408
        %v953 = vunpack.c.l.b16 %v409
        %v954 = vunpack.c.l.b16 %v410
        %v955 = vunpack.c.l.b16 %v411
        %v956 = vunpack.c.l.b16 %v412
        %v957 = vunpack.c.l.b16 %v413
        %v958 = vunpack.c.l.b16 %v414
        %v959 = vunpack.c.l.b16 %v415
        %v960 = vunpack.c.l.b16 %v416
        %v961 = vpack.c.b16 %v890, %v889
        %v962 = vpack.c.b16 %v892, %v891
        %v963 = vpack.c.b16 %v894, %v893
        %v964 = vpack.c.b16 %v896, %v895
        %v965 = vpack.c.b16 %v898, %v897
        %v966 = vpack.c.b16 %v900, %v899
        %v967 = vpack.c.b16 %v902, %v901
        %v968 = vpack.c.b16 %v904, %v903
        %v969 = vpack.c.b16 %v906, %v905
        %v970 = vpack.c.b16 %v908, %v907
        %v971 = vpack.c.b16 %v910, %v909
        %v972 = vpack.c.b16 %v912, %v911
        %v973 = vpack.c.b16 %v914, %v913
        %v974 = vpack.c.b16 %v916, %v915
        %v975 = vpack.c.b16 %v918, %v917
        %v976 = vpack.c.b16 %v920, %v919
        %v977 = vpack.c.b16 %v922, %v921
        %v978 = vpack.c.b16 %v924, %v923
        %v979 = vpack.c.b16 %v926, %v925
        %v980 = vpack.c.b16 %v928, %v927
        %v981 = vpack.c.b16 %v930, %v929
        %v982 = vpack.c.b16 %v932, %v931
        %v983 = vpack.c.b16 %v934, %v933
        %v984 = vpack.c.b16 %v936, %v935
        %v985 = vpack.c.b16 %v938, %v937
        %v986 = vpack.c.b16 %v940, %v939
        %v987 = vpack.c.b16 %v942, %v941
        %v988 = vpack.c.b16 %v944, %v943
        %v989 = vpack.c.b16 %v946, %v945
        %v990 = vpack.c.b16 %v948, %v947
        %v991 = vpack.c.b16 %v950, %v949
        %v992 = vpack.c.b16 %v952, %v951
        %v993 = vpack.c.b16 %v954, %v953
        %v994 = vpack.c.b16 %v956, %v955
        %v995 = vpack.c.b16 %v958, %v957
        %v996 = vpack.c.b16 %v960, %v959
        %vm1033 = vcmask 523264
        %v1035 = vsel %vm1033, %v677, 0
        %v1038 = vsel %vm1033, %v682, 0
        %v1041 = vsel %vm1033, %v687, 0
        %v1044 = vsel %vm1033, %v692, 0
        %v1047 = vsel %vm1033, %v697, 0
        %v1050 = vsel %vm1033, %v702, 0
        %v1053 = vsel %vm1033, %v707, 0
        %v1056 = vsel %vm1033, %v712, 0
        %v1059 = vsel %vm1033, %v717, 0
        %v1062 = vsel %vm1033, %v722, 0
        %v1065 = vsel %vm1033, %v727, 0
        %v1068 = vsel %vm1033, %v732, 0
        %v1071 = vsel %vm1033, %v737, 0
        %v1074 = vsel %vm1033, %v742, 0
        %v1077 = vsel %vm1033, %v747, 0
        %v1080 = vsel %vm1033, %v752, 0
        %1082 = vmatpush.bf16.msra.mxu0 %v968
        %1083 = vmatpush.bf16.msra.mxu0 %v967
        %1084 = vmatpush.bf16.msra.mxu0 %v966
        %1085 = vmatpush.bf16.msra.mxu0 %v965
        %1086 = vmatpush.bf16.msra.mxu0 %v964
        %1087 = vmatpush.bf16.msra.mxu0 %v963
        %1088 = vmatpush.bf16.msra.mxu0 %v962
        %1089 = vmatpush.bf16.msra.mxu0 %v961
        %1090 = vmatmul.bf16.gmra.mxu0 %v673
        %v1091 = vpop.f32.mrf.mxu0
        %v1092 = vadd.f32 0.0, %v1091
        %v1093 = vpop.f32.mrf.mxu0
        %v1094 = vadd.f32 0.0, %v1093
        %1095 = vmatmul.bf16.gmra.mxu0 %v678
        %v1096 = vpop.f32.mrf.mxu0
        %v1097 = vadd.f32 0.0, %v1096
        %v1098 = vpop.f32.mrf.mxu0
        %v1099 = vadd.f32 0.0, %v1098
        %1100 = vmatmul.bf16.gmra.mxu0 %v683
        %v1101 = vpop.f32.mrf.mxu0
        %v1102 = vadd.f32 0.0, %v1101
        %v1103 = vpop.f32.mrf.mxu0
        %v1104 = vadd.f32 0.0, %v1103
        %1105 = vmatmul.bf16.gmra.mxu0 %v688
        %v1106 = vpop.f32.mrf.mxu0
        %v1107 = vadd.f32 0.0, %v1106
        %v1108 = vpop.f32.mrf.mxu0
        %v1109 = vadd.f32 0.0, %v1108
        %1110 = vmatmul.bf16.gmra.mxu0 %v693
        %v1111 = vpop.f32.mrf.mxu0
        %v1112 = vadd.f32 0.0, %v1111
        %v1113 = vpop.f32.mrf.mxu0
        %v1114 = vadd.f32 0.0, %v1113
        %1115 = vmatmul.bf16.gmra.mxu0 %v698
        %v1116 = vpop.f32.mrf.mxu0
        %v1117 = vadd.f32 0.0, %v1116
        %v1118 = vpop.f32.mrf.mxu0
        %v1119 = vadd.f32 0.0, %v1118
        %1120 = vmatmul.bf16.gmra.mxu0 %v703
        %v1121 = vpop.f32.mrf.mxu0
        %v1122 = vadd.f32 0.0, %v1121
        %v1123 = vpop.f32.mrf.mxu0
        %v1124 = vadd.f32 0.0, %v1123
        %1125 = vmatmul.bf16.gmra.mxu0 %v708
        %v1126 = vpop.f32.mrf.mxu0
        %v1127 = vadd.f32 0.0, %v1126
        %v1128 = vpop.f32.mrf.mxu0
        %v1129 = vadd.f32 0.0, %v1128
        %1130 = vmatmul.bf16.gmra.mxu0 %v713
        %v1131 = vpop.f32.mrf.mxu0
        %v1132 = vadd.f32 0.0, %v1131
        %v1133 = vpop.f32.mrf.mxu0
        %v1134 = vadd.f32 0.0, %v1133
        %1135 = vmatmul.bf16.gmra.mxu0 %v718
        %v1136 = vpop.f32.mrf.mxu0
        %v1137 = vadd.f32 0.0, %v1136
        %v1138 = vpop.f32.mrf.mxu0
        %v1139 = vadd.f32 0.0, %v1138
        %1140 = vmatmul.bf16.gmra.mxu0 %v723
        %v1141 = vpop.f32.mrf.mxu0
        %v1142 = vadd.f32 0.0, %v1141
        %v1143 = vpop.f32.mrf.mxu0
        %v1144 = vadd.f32 0.0, %v1143
        %1145 = vmatmul.bf16.gmra.mxu0 %v728
        %v1146 = vpop.f32.mrf.mxu0
        %v1147 = vadd.f32 0.0, %v1146
        %v1148 = vpop.f32.mrf.mxu0
        %v1149 = vadd.f32 0.0, %v1148
        %1150 = vmatmul.bf16.gmra.mxu0 %v733
        %v1151 = vpop.f32.mrf.mxu0
        %v1152 = vadd.f32 0.0, %v1151
        %v1153 = vpop.f32.mrf.mxu0
        %v1154 = vadd.f32 0.0, %v1153
        %1155 = vmatmul.bf16.gmra.mxu0 %v738
        %v1156 = vpop.f32.mrf.mxu0
        %v1157 = vadd.f32 0.0, %v1156
        %v1158 = vpop.f32.mrf.mxu0
        %v1159 = vadd.f32 0.0, %v1158
        %1160 = vmatmul.bf16.gmra.mxu0 %v743
        %v1161 = vpop.f32.mrf.mxu0
        %v1162 = vadd.f32 0.0, %v1161
        %v1163 = vpop.f32.mrf.mxu0
        %v1164 = vadd.f32 0.0, %v1163
        %1165 = vmatmul.bf16.gmra.mxu0 %v748
        %v1166 = vpop.f32.mrf.mxu0
        %v1167 = vadd.f32 0.0, %v1166
        %v1168 = vpop.f32.mrf.mxu0
        %v1169 = vadd.f32 0.0, %v1168
        %1170 = vdwg.mxu0
        %1171 = vmatpush.bf16.msra.mxu0 %v976
        %1172 = vmatpush.bf16.msra.mxu0 %v975
        %1173 = vmatpush.bf16.msra.mxu0 %v974
        %1174 = vmatpush.bf16.msra.mxu0 %v973
        %1175 = vmatpush.bf16.msra.mxu0 %v972
        %1176 = vmatpush.bf16.msra.mxu0 %v971
        %1177 = vmatpush.bf16.msra.mxu0 %v970
        %1178 = vmatpush.bf16.msra.mxu0 %v969
        %1179 = vmatmul.bf16.gmra.mxu0 %v674
        %v1180 = vpop.f32.mrf.mxu0
        %v1181 = vadd.f32 %v1092, %v1180
        %v1182 = vpop.f32.mrf.mxu0
        %v1183 = vadd.f32 %v1094, %v1182
        %1184 = vmatmul.bf16.gmra.mxu0 %v679
        %v1185 = vpop.f32.mrf.mxu0
        %v1186 = vadd.f32 %v1097, %v1185
        %v1187 = vpop.f32.mrf.mxu0
        %v1188 = vadd.f32 %v1099, %v1187
        %1189 = vmatmul.bf16.gmra.mxu0 %v684
        %v1190 = vpop.f32.mrf.mxu0
        %v1191 = vadd.f32 %v1102, %v1190
        %v1192 = vpop.f32.mrf.mxu0
        %v1193 = vadd.f32 %v1104, %v1192
        %1194 = vmatmul.bf16.gmra.mxu0 %v689
        %v1195 = vpop.f32.mrf.mxu0
        %v1196 = vadd.f32 %v1107, %v1195
        %v1197 = vpop.f32.mrf.mxu0
        %v1198 = vadd.f32 %v1109, %v1197
        %1199 = vmatmul.bf16.gmra.mxu0 %v694
        %v1200 = vpop.f32.mrf.mxu0
        %v1201 = vadd.f32 %v1112, %v1200
        %v1202 = vpop.f32.mrf.mxu0
        %v1203 = vadd.f32 %v1114, %v1202
        %1204 = vmatmul.bf16.gmra.mxu0 %v699
        %v1205 = vpop.f32.mrf.mxu0
        %v1206 = vadd.f32 %v1117, %v1205
        %v1207 = vpop.f32.mrf.mxu0
        %v1208 = vadd.f32 %v1119, %v1207
        %1209 = vmatmul.bf16.gmra.mxu0 %v704
        %v1210 = vpop.f32.mrf.mxu0
        %v1211 = vadd.f32 %v1122, %v1210
        %v1212 = vpop.f32.mrf.mxu0
        %v1213 = vadd.f32 %v1124, %v1212
        %1214 = vmatmul.bf16.gmra.mxu0 %v709
        %v1215 = vpop.f32.mrf.mxu0
        %v1216 = vadd.f32 %v1127, %v1215
        %v1217 = vpop.f32.mrf.mxu0
        %v1218 = vadd.f32 %v1129, %v1217
        %1219 = vmatmul.bf16.gmra.mxu0 %v714
        %v1220 = vpop.f32.mrf.mxu0
        %v1221 = vadd.f32 %v1132, %v1220
        %v1222 = vpop.f32.mrf.mxu0
        %v1223 = vadd.f32 %v1134, %v1222
        %1224 = vmatmul.bf16.gmra.mxu0 %v719
        %v1225 = vpop.f32.mrf.mxu0
        %v1226 = vadd.f32 %v1137, %v1225
        %v1227 = vpop.f32.mrf.mxu0
        %v1228 = vadd.f32 %v1139, %v1227
        %1229 = vmatmul.bf16.gmra.mxu0 %v724
        %v1230 = vpop.f32.mrf.mxu0
        %v1231 = vadd.f32 %v1142, %v1230
        %v1232 = vpop.f32.mrf.mxu0
        %v1233 = vadd.f32 %v1144, %v1232
        %1234 = vmatmul.bf16.gmra.mxu0 %v729
        %v1235 = vpop.f32.mrf.mxu0
        %v1236 = vadd.f32 %v1147, %v1235
        %v1237 = vpop.f32.mrf.mxu0
        %v1238 = vadd.f32 %v1149, %v1237
        %1239 = vmatmul.bf16.gmra.mxu0 %v734
        %v1240 = vpop.f32.mrf.mxu0
        %v1241 = vadd.f32 %v1152, %v1240
        %v1242 = vpop.f32.mrf.mxu0
        %v1243 = vadd.f32 %v1154, %v1242
        %1244 = vmatmul.bf16.gmra.mxu0 %v739
        %v1245 = vpop.f32.mrf.mxu0
        %v1246 = vadd.f32 %v1157, %v1245
        %v1247 = vpop.f32.mrf.mxu0
        %v1248 = vadd.f32 %v1159, %v1247
        %1249 = vmatmul.bf16.gmra.mxu0 %v744
        %v1250 = vpop.f32.mrf.mxu0
        %v1251 = vadd.f32 %v1162, %v1250
        %v1252 = vpop.f32.mrf.mxu0
        %v1253 = vadd.f32 %v1164, %v1252
        %1254 = vmatmul.bf16.gmra.mxu0 %v749
        %v1255 = vpop.f32.mrf.mxu0
        %v1256 = vadd.f32 %v1167, %v1255
        %v1257 = vpop.f32.mrf.mxu0
        %v1258 = vadd.f32 %v1169, %v1257
        %1259 = vdwg.mxu0
        %1260 = vmatpush.bf16.msra.mxu0 %v984
        %1261 = vmatpush.bf16.msra.mxu0 %v983
        %1262 = vmatpush.bf16.msra.mxu0 %v982
        %1263 = vmatpush.bf16.msra.mxu0 %v981
        %1264 = vmatpush.bf16.msra.mxu0 %v980
        %1265 = vmatpush.bf16.msra.mxu0 %v979
        %1266 = vmatpush.bf16.msra.mxu0 %v978
        %1267 = vmatpush.bf16.msra.mxu0 %v977
        %1268 = vmatmul.bf16.gmra.mxu0 %v675
        %v1269 = vpop.f32.mrf.mxu0
        %v1270 = vadd.f32 %v1181, %v1269
        %v1271 = vpop.f32.mrf.mxu0
        %v1272 = vadd.f32 %v1183, %v1271
        %1273 = vmatmul.bf16.gmra.mxu0 %v680
        %v1274 = vpop.f32.mrf.mxu0
        %v1275 = vadd.f32 %v1186, %v1274
        %v1276 = vpop.f32.mrf.mxu0
        %v1277 = vadd.f32 %v1188, %v1276
        %1278 = vmatmul.bf16.gmra.mxu0 %v685
        %v1279 = vpop.f32.mrf.mxu0
        %v1280 = vadd.f32 %v1191, %v1279
        %v1281 = vpop.f32.mrf.mxu0
        %v1282 = vadd.f32 %v1193, %v1281
        %1283 = vmatmul.bf16.gmra.mxu0 %v690
        %v1284 = vpop.f32.mrf.mxu0
        %v1285 = vadd.f32 %v1196, %v1284
        %v1286 = vpop.f32.mrf.mxu0
        %v1287 = vadd.f32 %v1198, %v1286
        %1288 = vmatmul.bf16.gmra.mxu0 %v695
        %v1289 = vpop.f32.mrf.mxu0
        %v1290 = vadd.f32 %v1201, %v1289
        %v1291 = vpop.f32.mrf.mxu0
        %v1292 = vadd.f32 %v1203, %v1291
        %1293 = vmatmul.bf16.gmra.mxu0 %v700
        %v1294 = vpop.f32.mrf.mxu0
        %v1295 = vadd.f32 %v1206, %v1294
        %v1296 = vpop.f32.mrf.mxu0
        %v1297 = vadd.f32 %v1208, %v1296
        %1298 = vmatmul.bf16.gmra.mxu0 %v705
        %v1299 = vpop.f32.mrf.mxu0
        %v1300 = vadd.f32 %v1211, %v1299
        %v1301 = vpop.f32.mrf.mxu0
        %v1302 = vadd.f32 %v1213, %v1301
        %1303 = vmatmul.bf16.gmra.mxu0 %v710
        %v1304 = vpop.f32.mrf.mxu0
        %v1305 = vadd.f32 %v1216, %v1304
        %v1306 = vpop.f32.mrf.mxu0
        %v1307 = vadd.f32 %v1218, %v1306
        %1308 = vmatmul.bf16.gmra.mxu0 %v715
        %v1309 = vpop.f32.mrf.mxu0
        %v1310 = vadd.f32 %v1221, %v1309
        %v1311 = vpop.f32.mrf.mxu0
        %v1312 = vadd.f32 %v1223, %v1311
        %1313 = vmatmul.bf16.gmra.mxu0 %v720
        %v1314 = vpop.f32.mrf.mxu0
        %v1315 = vadd.f32 %v1226, %v1314
        %v1316 = vpop.f32.mrf.mxu0
        %v1317 = vadd.f32 %v1228, %v1316
        %1318 = vmatmul.bf16.gmra.mxu0 %v725
        %v1319 = vpop.f32.mrf.mxu0
        %v1320 = vadd.f32 %v1231, %v1319
        %v1321 = vpop.f32.mrf.mxu0
        %v1322 = vadd.f32 %v1233, %v1321
        %1323 = vmatmul.bf16.gmra.mxu0 %v730
        %v1324 = vpop.f32.mrf.mxu0
        %v1325 = vadd.f32 %v1236, %v1324
        %v1326 = vpop.f32.mrf.mxu0
        %v1327 = vadd.f32 %v1238, %v1326
        %1328 = vmatmul.bf16.gmra.mxu0 %v735
        %v1329 = vpop.f32.mrf.mxu0
        %v1330 = vadd.f32 %v1241, %v1329
        %v1331 = vpop.f32.mrf.mxu0
        %v1332 = vadd.f32 %v1243, %v1331
        %1333 = vmatmul.bf16.gmra.mxu0 %v740
        %v1334 = vpop.f32.mrf.mxu0
        %v1335 = vadd.f32 %v1246, %v1334
        %v1336 = vpop.f32.mrf.mxu0
        %v1337 = vadd.f32 %v1248, %v1336
        %1338 = vmatmul.bf16.gmra.mxu0 %v745
        %v1339 = vpop.f32.mrf.mxu0
        %v1340 = vadd.f32 %v1251, %v1339
        %v1341 = vpop.f32.mrf.mxu0
        %v1342 = vadd.f32 %v1253, %v1341
        %1343 = vmatmul.bf16.gmra.mxu0 %v750
        %v1344 = vpop.f32.mrf.mxu0
        %v1345 = vadd.f32 %v1256, %v1344
        %v1346 = vpop.f32.mrf.mxu0
        %v1347 = vadd.f32 %v1258, %v1346
        %1348 = vdwg.mxu0
        %1349 = vmatpush.bf16.msra.mxu0 %v992
        %1350 = vmatpush.bf16.msra.mxu0 %v991
        %1351 = vmatpush.bf16.msra.mxu0 %v990
        %1352 = vmatpush.bf16.msra.mxu0 %v989
        %1353 = vmatpush.bf16.msra.mxu0 %v988
        %1354 = vmatpush.bf16.msra.mxu0 %v987
        %1355 = vmatpush.bf16.msra.mxu0 %v986
        %1356 = vmatpush.bf16.msra.mxu0 %v985
        %1357 = vmatmul.bf16.gmra.mxu0 %v676
        %v1358 = vpop.f32.mrf.mxu0
        %v1359 = vadd.f32 %v1270, %v1358
        %v1360 = vpop.f32.mrf.mxu0
        %v1361 = vadd.f32 %v1272, %v1360
        %1362 = vmatmul.bf16.gmra.mxu0 %v681
        %v1363 = vpop.f32.mrf.mxu0
        %v1364 = vadd.f32 %v1275, %v1363
        %v1365 = vpop.f32.mrf.mxu0
        %v1366 = vadd.f32 %v1277, %v1365
        %1367 = vmatmul.bf16.gmra.mxu0 %v686
        %v1368 = vpop.f32.mrf.mxu0
        %v1369 = vadd.f32 %v1280, %v1368
        %v1370 = vpop.f32.mrf.mxu0
        %v1371 = vadd.f32 %v1282, %v1370
        %1372 = vmatmul.bf16.gmra.mxu0 %v691
        %v1373 = vpop.f32.mrf.mxu0
        %v1374 = vadd.f32 %v1285, %v1373
        %v1375 = vpop.f32.mrf.mxu0
        %v1376 = vadd.f32 %v1287, %v1375
        %1377 = vmatmul.bf16.gmra.mxu0 %v696
        %v1378 = vpop.f32.mrf.mxu0
        %v1379 = vadd.f32 %v1290, %v1378
        %v1380 = vpop.f32.mrf.mxu0
        %v1381 = vadd.f32 %v1292, %v1380
        %1382 = vmatmul.bf16.gmra.mxu0 %v701
        %v1383 = vpop.f32.mrf.mxu0
        %v1384 = vadd.f32 %v1295, %v1383
        %v1385 = vpop.f32.mrf.mxu0
        %v1386 = vadd.f32 %v1297, %v1385
        %1387 = vmatmul.bf16.gmra.mxu0 %v706
        %v1388 = vpop.f32.mrf.mxu0
        %v1389 = vadd.f32 %v1300, %v1388
        %v1390 = vpop.f32.mrf.mxu0
        %v1391 = vadd.f32 %v1302, %v1390
        %1392 = vmatmul.bf16.gmra.mxu0 %v711
        %v1393 = vpop.f32.mrf.mxu0
        %v1394 = vadd.f32 %v1305, %v1393
        %v1395 = vpop.f32.mrf.mxu0
        %v1396 = vadd.f32 %v1307, %v1395
        %1397 = vmatmul.bf16.gmra.mxu0 %v716
        %v1398 = vpop.f32.mrf.mxu0
        %v1399 = vadd.f32 %v1310, %v1398
        %v1400 = vpop.f32.mrf.mxu0
        %v1401 = vadd.f32 %v1312, %v1400
        %1402 = vmatmul.bf16.gmra.mxu0 %v721
        %v1403 = vpop.f32.mrf.mxu0
        %v1404 = vadd.f32 %v1315, %v1403
        %v1405 = vpop.f32.mrf.mxu0
        %v1406 = vadd.f32 %v1317, %v1405
        %1407 = vmatmul.bf16.gmra.mxu0 %v726
        %v1408 = vpop.f32.mrf.mxu0
        %v1409 = vadd.f32 %v1320, %v1408
        %v1410 = vpop.f32.mrf.mxu0
        %v1411 = vadd.f32 %v1322, %v1410
        %1412 = vmatmul.bf16.gmra.mxu0 %v731
        %v1413 = vpop.f32.mrf.mxu0
        %v1414 = vadd.f32 %v1325, %v1413
        %v1415 = vpop.f32.mrf.mxu0
        %v1416 = vadd.f32 %v1327, %v1415
        %1417 = vmatmul.bf16.gmra.mxu0 %v736
        %v1418 = vpop.f32.mrf.mxu0
        %v1419 = vadd.f32 %v1330, %v1418
        %v1420 = vpop.f32.mrf.mxu0
        %v1421 = vadd.f32 %v1332, %v1420
        %1422 = vmatmul.bf16.gmra.mxu0 %v741
        %v1423 = vpop.f32.mrf.mxu0
        %v1424 = vadd.f32 %v1335, %v1423
        %v1425 = vpop.f32.mrf.mxu0
        %v1426 = vadd.f32 %v1337, %v1425
        %1427 = vmatmul.bf16.gmra.mxu0 %v746
        %v1428 = vpop.f32.mrf.mxu0
        %v1429 = vadd.f32 %v1340, %v1428
        %v1430 = vpop.f32.mrf.mxu0
        %v1431 = vadd.f32 %v1342, %v1430
        %1432 = vmatmul.bf16.gmra.mxu0 %v751
        %v1433 = vpop.f32.mrf.mxu0
        %v1434 = vadd.f32 %v1345, %v1433
        %v1435 = vpop.f32.mrf.mxu0
        %v1436 = vadd.f32 %v1347, %v1435
        %1437 = vdwg.mxu0
        %1438 = vmatpush.bf16.msra.mxu0 0
        %1439 = vmatpush.bf16.msra.mxu0 0
        %1440 = vmatpush.bf16.msra.mxu0 0
        %1441 = vmatpush.bf16.msra.mxu0 0
        %1442 = vmatpush.bf16.msra.mxu0 %v996
        %1443 = vmatpush.bf16.msra.mxu0 %v995
        %1444 = vmatpush.bf16.msra.mxu0 %v994
        %1445 = vmatpush.bf16.msra.mxu0 %v993
        %1446 = vmatmul.bf16.gmra.mxu0 %v1035
        %v1447 = vpop.f32.mrf.mxu0
        %v1448 = vadd.f32 %v1359, %v1447
        %v1449 = vpop.f32.mrf.mxu0
        %v1450 = vadd.f32 %v1361, %v1449
        %1451 = vmatmul.bf16.gmra.mxu0 %v1038
        %v1452 = vpop.f32.mrf.mxu0
        %v1453 = vadd.f32 %v1364, %v1452
        %v1454 = vpop.f32.mrf.mxu0
        %v1455 = vadd.f32 %v1366, %v1454
        %1456 = vmatmul.bf16.gmra.mxu0 %v1041
        %v1457 = vpop.f32.mrf.mxu0
        %v1458 = vadd.f32 %v1369, %v1457
        %v1459 = vpop.f32.mrf.mxu0
        %v1460 = vadd.f32 %v1371, %v1459
        %1461 = vmatmul.bf16.gmra.mxu0 %v1044
        %v1462 = vpop.f32.mrf.mxu0
        %v1463 = vadd.f32 %v1374, %v1462
        %v1464 = vpop.f32.mrf.mxu0
        %v1465 = vadd.f32 %v1376, %v1464
        %1466 = vmatmul.bf16.gmra.mxu0 %v1047
        %v1467 = vpop.f32.mrf.mxu0
        %v1468 = vadd.f32 %v1379, %v1467
        %v1469 = vpop.f32.mrf.mxu0
        %v1470 = vadd.f32 %v1381, %v1469
        %1471 = vmatmul.bf16.gmra.mxu0 %v1050
        %v1472 = vpop.f32.mrf.mxu0
        %v1473 = vadd.f32 %v1384, %v1472
        %v1474 = vpop.f32.mrf.mxu0
        %v1475 = vadd.f32 %v1386, %v1474
        %1476 = vmatmul.bf16.gmra.mxu0 %v1053
        %v1477 = vpop.f32.mrf.mxu0
        %v1478 = vadd.f32 %v1389, %v1477
        %v1479 = vpop.f32.mrf.mxu0
        %v1480 = vadd.f32 %v1391, %v1479
        %1481 = vmatmul.bf16.gmra.mxu0 %v1056
        %v1482 = vpop.f32.mrf.mxu0
        %v1483 = vadd.f32 %v1394, %v1482
        %v1484 = vpop.f32.mrf.mxu0
        %v1485 = vadd.f32 %v1396, %v1484
        %1486 = vmatmul.bf16.gmra.mxu0 %v1059
        %v1487 = vpop.f32.mrf.mxu0
        %v1488 = vadd.f32 %v1399, %v1487
        %v1489 = vpop.f32.mrf.mxu0
        %v1490 = vadd.f32 %v1401, %v1489
        %1491 = vmatmul.bf16.gmra.mxu0 %v1062
        %v1492 = vpop.f32.mrf.mxu0
        %v1493 = vadd.f32 %v1404, %v1492
        %v1494 = vpop.f32.mrf.mxu0
        %v1495 = vadd.f32 %v1406, %v1494
        %1496 = vmatmul.bf16.gmra.mxu0 %v1065
        %v1497 = vpop.f32.mrf.mxu0
        %v1498 = vadd.f32 %v1409, %v1497
        %v1499 = vpop.f32.mrf.mxu0
        %v1500 = vadd.f32 %v1411, %v1499
        %1501 = vmatmul.bf16.gmra.mxu0 %v1068
        %v1502 = vpop.f32.mrf.mxu0
        %v1503 = vadd.f32 %v1414, %v1502
        %v1504 = vpop.f32.mrf.mxu0
        %v1505 = vadd.f32 %v1416, %v1504
        %1506 = vmatmul.bf16.gmra.mxu0 %v1071
        %v1507 = vpop.f32.mrf.mxu0
        %v1508 = vadd.f32 %v1419, %v1507
        %v1509 = vpop.f32.mrf.mxu0
        %v1510 = vadd.f32 %v1421, %v1509
        %1511 = vmatmul.bf16.gmra.mxu0 %v1074
        %v1512 = vpop.f32.mrf.mxu0
        %v1513 = vadd.f32 %v1424, %v1512
        %v1514 = vpop.f32.mrf.mxu0
        %v1515 = vadd.f32 %v1426, %v1514
        %1516 = vmatmul.bf16.gmra.mxu0 %v1077
        %v1517 = vpop.f32.mrf.mxu0
        %v1518 = vadd.f32 %v1429, %v1517
        %v1519 = vpop.f32.mrf.mxu0
        %v1520 = vadd.f32 %v1431, %v1519
        %1521 = vmatmul.bf16.gmra.mxu0 %v1080
        %v1522 = vpop.f32.mrf.mxu0
        %v1523 = vadd.f32 %v1434, %v1522
        %v1524 = vpop.f32.mrf.mxu0
        %v1525 = vadd.f32 %v1436, %v1524
        %1526 = vdwg.mxu0
        %1527 = vst [vmem:[%s246] sm:$0xff] %v1448
        %1528 = vst [vmem:[%s246 + $0x8] sm:$0xff] %v1450
        %1529 = vst [vmem:[%s246 + $0x10] sm:$0xff] %v1453
        %1530 = vst [vmem:[%s246 + $0x18] sm:$0xff] %v1455
        %1531 = vst [vmem:[%s246 + $0x20] sm:$0xff] %v1458
        %1532 = vst [vmem:[%s246 + $0x28] sm:$0xff] %v1460
        %1533 = vst [vmem:[%s246 + $0x30] sm:$0xff] %v1463
        %1534 = vst [vmem:[%s246 + $0x38] sm:$0xff] %v1465
        %1535 = vst [vmem:[%s246 + $0x40] sm:$0xff] %v1468
        %1536 = vst [vmem:[%s246 + $0x48] sm:$0xff] %v1470
        %1537 = vst [vmem:[%s246 + $0x50] sm:$0xff] %v1473
        %1538 = vst [vmem:[%s246 + $0x58] sm:$0xff] %v1475
        %1539 = vst [vmem:[%s246 + $0x60] sm:$0xff] %v1478
        %1540 = vst [vmem:[%s246 + $0x68] sm:$0xff] %v1480
        %1541 = vst [vmem:[%s246 + $0x70] sm:$0xff] %v1483
        %1542 = vst [vmem:[%s246 + $0x78] sm:$0xff] %v1485
        %1543 = vst [vmem:[%s246 + $0x80] sm:$0xff] %v1488
        %1544 = vst [vmem:[%s246 + $0x88] sm:$0xff] %v1490
        %1545 = vst [vmem:[%s246 + $0x90] sm:$0xff] %v1493
        %1546 = vst [vmem:[%s246 + $0x98] sm:$0xff] %v1495
        %1547 = vst [vmem:[%s246 + $0xa0] sm:$0xff] %v1498
        %1548 = vst [vmem:[%s246 + $0xa8] sm:$0xff] %v1500
        %1549 = vst [vmem:[%s246 + $0xb0] sm:$0xff] %v1503
        %1550 = vst [vmem:[%s246 + $0xb8] sm:$0xff] %v1505
        %1551 = vst [vmem:[%s246 + $0xc0] sm:$0xff] %v1508
        %1552 = vst [vmem:[%s246 + $0xc8] sm:$0xff] %v1510
        %1553 = vst [vmem:[%s246 + $0xd0] sm:$0xff] %v1513
        %1554 = vst [vmem:[%s246 + $0xd8] sm:$0xff] %v1515
        %1555 = vst [vmem:[%s246 + $0xe0] sm:$0xff] %v1518
        %1556 = vst [vmem:[%s246 + $0xe8] sm:$0xff] %v1520
        %1557 = vst [vmem:[%s246 + $0xf0] sm:$0xff] %v1523
        %1558 = vst [vmem:[%s246 + $0xf8] sm:$0xff] %v1525
        %p1559 = scmp.eq.s32.totalorder %s23, 0
        // Predicated region
        $region29: #{dcgan_generator.13} parent=27 // pred_check
          %p1560 = pneg %p1559
        $region30: #{dcgan_generator.13} parent=27 // pred_check_branch
          %1562 = sbr.rel (%p1560) target = $region32
        $region31: #{dcgan_generator.13} parent=27 // pred_region
          %1563 = vst [vmem:[#allocation2] sm:$0x1] 0.0
          %1564 = vst [vmem:[#allocation3] sm:$0x1] 0.0
        $region32: #{dcgan_generator.13} parent=27 // pred_fallthru
          _
        %v1565 = vld [vmem:[#allocation2] sm:$0x1]
        %v1566 = vadd.f32 %v1448, %v1450
        %v1567 = vadd.f32 %v1566, %v1453
        %v1568 = vadd.f32 %v1567, %v1455
        %v1569 = vadd.f32 %v1568, %v1458
        %v1570 = vadd.f32 %v1569, %v1460
        %v1571 = vadd.f32 %v1570, %v1463
        %v1572 = vadd.f32 %v1571, %v1465
        %v1573 = vadd.f32 %v1572, %v1468
        %v1574 = vadd.f32 %v1573, %v1470
        %v1575 = vadd.f32 %v1574, %v1473
        %v1576 = vadd.f32 %v1575, %v1475
        %v1577 = vadd.f32 %v1576, %v1478
        %v1578 = vadd.f32 %v1577, %v1480
        %v1579 = vadd.f32 %v1578, %v1483
        %v1580 = vadd.f32 %v1579, %v1485
        %v1581 = vadd.f32 %v1580, %v1488
        %v1582 = vadd.f32 %v1581, %v1490
        %v1583 = vadd.f32 %v1582, %v1493
        %v1584 = vadd.f32 %v1583, %v1495
        %v1585 = vadd.f32 %v1584, %v1498
        %v1586 = vadd.f32 %v1585, %v1500
        %v1587 = vadd.f32 %v1586, %v1503
        %v1588 = vadd.f32 %v1587, %v1505
        %v1589 = vadd.f32 %v1588, %v1508
        %v1590 = vadd.f32 %v1589, %v1510
        %v1591 = vadd.f32 %v1590, %v1513
        %v1592 = vadd.f32 %v1591, %v1515
        %v1593 = vadd.f32 %v1592, %v1518
        %v1594 = vadd.f32 %v1593, %v1520
        %v1595 = vadd.f32 %v1594, %v1523
        %v1596 = vadd.f32 %v1595, %v1525
        %v1597 = vrot.slane %v1596, 4
        %v1598 = vadd.f32 %v1596, %v1597
        %v1599 = vrot.slane %v1598, 2
        %v1600 = vadd.f32 %v1598, %v1599
        %v1601 = vrot.slane %v1600, 1
        %v1602 = vadd.f32 %v1600, %v1601
        %v1603 = vadd.f32 %v1565, %v1602
        %1604 = vst [vmem:[#allocation2] sm:$0x1] %v1603
        %v1605 = vld [vmem:[#allocation3] sm:$0x1]
        %v1606 = vmul.f32 %v1448, %v1448
        %v1607 = vmul.f32 %v1450, %v1450
        %v1608 = vmul.f32 %v1453, %v1453
        %v1609 = vmul.f32 %v1455, %v1455
        %v1610 = vmul.f32 %v1458, %v1458
        %v1611 = vmul.f32 %v1460, %v1460
        %v1612 = vmul.f32 %v1463, %v1463
        %v1613 = vmul.f32 %v1465, %v1465
        %v1614 = vmul.f32 %v1468, %v1468
        %v1615 = vmul.f32 %v1470, %v1470
        %v1616 = vmul.f32 %v1473, %v1473
        %v1617 = vmul.f32 %v1475, %v1475
        %v1618 = vmul.f32 %v1478, %v1478
        %v1619 = vmul.f32 %v1480, %v1480
        %v1620 = vmul.f32 %v1483, %v1483
        %v1621 = vmul.f32 %v1485, %v1485
        %v1622 = vmul.f32 %v1488, %v1488
        %v1623 = vmul.f32 %v1490, %v1490
        %v1624 = vmul.f32 %v1493, %v1493
        %v1625 = vmul.f32 %v1495, %v1495
        %v1626 = vmul.f32 %v1498, %v1498
        %v1627 = vmul.f32 %v1500, %v1500
        %v1628 = vmul.f32 %v1503, %v1503
        %v1629 = vmul.f32 %v1505, %v1505
        %v1630 = vmul.f32 %v1508, %v1508
        %v1631 = vmul.f32 %v1510, %v1510
        %v1632 = vmul.f32 %v1513, %v1513
        %v1633 = vmul.f32 %v1515, %v1515
        %v1634 = vmul.f32 %v1518, %v1518
        %v1635 = vmul.f32 %v1520, %v1520
        %v1636 = vmul.f32 %v1523, %v1523
        %v1637 = vmul.f32 %v1525, %v1525
        %v1638 = vadd.f32 %v1606, %v1607
        %v1639 = vadd.f32 %v1638, %v1608
        %v1640 = vadd.f32 %v1639, %v1609
        %v1641 = vadd.f32 %v1640, %v1610
        %v1642 = vadd.f32 %v1641, %v1611
        %v1643 = vadd.f32 %v1642, %v1612
        %v1644 = vadd.f32 %v1643, %v1613
        %v1645 = vadd.f32 %v1644, %v1614
        %v1646 = vadd.f32 %v1645, %v1615
        %v1647 = vadd.f32 %v1646, %v1616
        %v1648 = vadd.f32 %v1647, %v1617
        %v1649 = vadd.f32 %v1648, %v1618
        %v1650 = vadd.f32 %v1649, %v1619
        %v1651 = vadd.f32 %v1650, %v1620
        %v1652 = vadd.f32 %v1651, %v1621
        %v1653 = vadd.f32 %v1652, %v1622
        %v1654 = vadd.f32 %v1653, %v1623
        %v1655 = vadd.f32 %v1654, %v1624
        %v1656 = vadd.f32 %v1655, %v1625
        %v1657 = vadd.f32 %v1656, %v1626
        %v1658 = vadd.f32 %v1657, %v1627
        %v1659 = vadd.f32 %v1658, %v1628
        %v1660 = vadd.f32 %v1659, %v1629
        %v1661 = vadd.f32 %v1660, %v1630
        %v1662 = vadd.f32 %v1661, %v1631
        %v1663 = vadd.f32 %v1662, %v1632
        %v1664 = vadd.f32 %v1663, %v1633
        %v1665 = vadd.f32 %v1664, %v1634
        %v1666 = vadd.f32 %v1665, %v1635
        %v1667 = vadd.f32 %v1666, %v1636
        %v1668 = vadd.f32 %v1667, %v1637
        %v1669 = vrot.slane %v1668, 4
        %v1670 = vadd.f32 %v1668, %v1669
        %v1671 = vrot.slane %v1670, 2
        %v1672 = vadd.f32 %v1670, %v1671
        %v1673 = vrot.slane %v1672, 1
        %v1674 = vadd.f32 %v1672, %v1673
        %v1675 = vadd.f32 %v1605, %v1674
        %1676 = vst [vmem:[#allocation3] sm:$0x1] %v1675
        %p1677 = scmp.eq.s32.totalorder %s23, 1
        // Predicated region
        $region33: #{dcgan_generator.13} parent=27 // pred_check
          %p1678 = pneg %p1677
        $region34: #{dcgan_generator.13} parent=27 // pred_check_branch
          %1680 = sbr.rel (%p1678) target = $region36
        $region35: #{dcgan_generator.13} parent=27 // pred_region
          %v1681 = vld [vmem:[#allocation2] sm:$0x1]
          %1682 = vst [vmem:[#allocation4] sm:$0x1] %v1681
          %v1683 = vld [vmem:[#allocation3] sm:$0x1]
          %1684 = vst [vmem:[#allocation6] sm:$0x1] %v1683
        $region36: #{dcgan_generator.13} parent=27 // pred_fallthru
          _
        %s1685 = smul.u32 32, %s23
        %p1686 = scmp.lt.s32.totalorder %s1685, 63
        %s1687 = scalar_select %p1686, %s1685, 63
        %p1688 = scmp.lt.s32.totalorder %s22, 0
        %s1689 = scalar_select %p1688, %s22, 0
        %s1690 = sadd.s32 %s1689, %s1687
        %s1691 = smul.addr %s1690, 8
        %s1692 = scalar_lea.vmem %s2, %s1691
        // Predicated region
        $region37: #{dcgan_generator.13} parent=27 // pred_check
          %p1693 = pneg %p102
        $region38: #{dcgan_generator.13} parent=27 // pred_check_branch
          %1695 = sbr.rel (%p1693) target = $region40
        $region39: #{dcgan_generator.13} parent=27 // pred_region
          %s1696 = smul.u32 32, %s23
        $region40: #{dcgan_generator.13} parent=27 // pred_fallthru
          _
        // Predicated region
        $region41: #{dcgan_generator.13} parent=27 // pred_check
          %p1697 = pneg %p128
        $region42: #{dcgan_generator.13} parent=27 // pred_check_branch
          %1699 = sbr.rel (%p1697) target = $region44
        $region43: #{dcgan_generator.13} parent=27 // pred_region
          %1701 = vsyncadd [#allocation5], 0
          %s1702 = scalar_lea.hbm %s3, %s22
          %s1704 = sshll.u32 [#allocation4], 4
          %s1705 = int_to_ptr.vmem [resolvable:$true] %s1704
          %s1706 = sshll.u32 %s1702, 4
          %s1707 = int_to_ptr.hbm [resolvable:$true] %s1706
          %1709 = dma.vmem_to_hbm [thread:$0]  %s1705, 16, %s1707, [#allocation5]
        $region44: #{dcgan_generator.13} parent=27 // pred_fallthru
          _
        // Predicated region
        $region45: #{dcgan_generator.13} parent=27 // pred_check
          %p1710 = pneg %p154
        $region46: #{dcgan_generator.13} parent=27 // pred_check_branch
          %1712 = sbr.rel (%p1710) target = $region48
        $region47: #{dcgan_generator.13} parent=27 // pred_region
          %1714 = vsyncadd [#allocation7], 0
          %s1715 = scalar_lea.hbm %s4, %s22
          %s1717 = sshll.u32 [#allocation6], 4
          %s1718 = int_to_ptr.vmem [resolvable:$true] %s1717
          %s1719 = sshll.u32 %s1715, 4
          %s1720 = int_to_ptr.hbm [resolvable:$true] %s1719
          %1722 = dma.vmem_to_hbm [thread:$0]  %s1718, 16, %s1720, [#allocation7]
        $region48: #{dcgan_generator.13} parent=27 // pred_fallthru
          _
        // Predicated region
        $region49: #{dcgan_generator.13} parent=27 // pred_check
          %p1723 = pneg %p128
        $region50: #{dcgan_generator.13} parent=27 // pred_check_branch
          %1725 = sbr.rel (%p1723) target = $region52
        $region51: #{dcgan_generator.13} parent=27 // pred_region
          %1727 = dma.done [#allocation5], 16
        $region52: #{dcgan_generator.13} parent=27 // pred_fallthru
          _
        // Predicated region
        $region53: #{dcgan_generator.13} parent=27 // pred_check
          %p1728 = pneg %p154
        $region54: #{dcgan_generator.13} parent=27 // pred_check_branch
          %1730 = sbr.rel (%p1728) target = $region56
        $region55: #{dcgan_generator.13} parent=27 // pred_region
          %1732 = dma.done [#allocation7], 16
        $region56: #{dcgan_generator.13} parent=27 // pred_fallthru
          _
      $region28: #{dcgan_generator.13} parent=5 // pred_fallthru
        _
      %p1733 = scmp.le.s32.totalorder 2, %s13
      // Predicated region
      $region57: #{dcgan_generator.13} parent=5 // pred_check
        %p1734 = pneg %p1733
      $region58: #{dcgan_generator.13} parent=5 // pred_check_branch
        %1736 = sbr.rel (%p1734) target = $region60
      $region59: #{dcgan_generator.13} parent=5 // pred_region
        %s1737 = ssub.s32 %s13, 2
        // Predicated region
        $region61: #{dcgan_generator.13} parent=59 // pred_check
          %p1738 = pneg %p108
        $region62: #{dcgan_generator.13} parent=59 // pred_check_branch
          %1740 = sbr.rel (%p1738) target = $region64
        $region63: #{dcgan_generator.13} parent=59 // pred_region
          %s1741 = smul.u32 32, %s25
          %p1742 = scmp.lt.s32.totalorder %s1741, 63
          %s1743 = scalar_select %p1742, %s1741, 63
          %p1744 = scmp.lt.s32.totalorder %s24, 0
          %s1745 = scalar_select %p1744, %s24, 0
          %s1746 = sadd.s32 %s1745, %s1743
          %s1747 = smul.addr %s1746, 8
          %s1748 = scalar_lea.vmem %s2, %s1747
        $region64: #{dcgan_generator.13} parent=59 // pred_fallthru
          _
      $region60: #{dcgan_generator.13} parent=5 // pred_fallthru
        _
    $region6: #{dcgan_generator.13} parent=1 // loop_footer
      %s17 = sadd.s32 1, %s13
    $region7: #{dcgan_generator.13} parent=1 // loop_footer_branch
      %12 = sbr.rel target = $region3
    $region8: #{dcgan_generator.13} parent=1 // loop_exit
      _
    %1749 = vsyncpa [#allocation5], 1
    %s1750 = scalar_lea.sflag [#allocation5], 1
    %1751 = vsyncpa %s1750, 1
    %1752 = vsyncpa [#allocation7], 1

</llo_original>
